<compile_context>
chip_gen: v5e
topology: v5e:2x2
jax: 0.10.0
libtpu: 0.0.40
codegen_flags: <defaults>
</compile_context>

<pallas_src>
import jax
import jax.numpy as jnp
from jax import lax
from jax.experimental import pallas as pl
from jax.experimental.pallas import tpu as pltpu

_VMEM_LIMIT = 32 * 1024 * 1024


# ----------------------------------------------------------------------------
# Pallas kernels
# ----------------------------------------------------------------------------
def _conv_bn_relu_pool_kernel(a_ref, w_ref, shift_ref, o_ref):
    """Fused conv-as-GEMM + BatchNorm shift + ReLU + 2x2 MaxPool epilogue.

    a_ref:     (4, tg, K) bf16  -- parity-major im2col rows (p = 2*hp + wp)
    w_ref:     (K, 128)  bf16   -- conv weights with BN scale folded in
    shift_ref: (1, 128)  f32    -- folded BN shift (conv bias included)
    o_ref:     (tg, 128) bf16   -- pooled output rows, lane-dense
    """
    acc = None
    for p in range(4):
        y = jnp.dot(a_ref[p], w_ref[...], preferred_element_type=jnp.float32)
        y = jnp.maximum(y + shift_ref[...], 0.0)
        acc = y if acc is None else jnp.maximum(acc, y)
    o_ref[...] = acc.astype(o_ref.dtype)


def _matmul_bias_kernel(a_ref, w_ref, bias_ref, o_ref):
    """o = A @ W + bias (bf16 MXU operands, f32 accumulation)."""
    y = jnp.dot(a_ref[...], w_ref[...], preferred_element_type=jnp.float32)
    o_ref[...] = (y + bias_ref[...]).astype(o_ref.dtype)


# ----------------------------------------------------------------------------
# Pallas wrappers
# ----------------------------------------------------------------------------
def _row_tile(n_rows, t_max):
    """Full block for small row counts; otherwise a multiple-of-8 tile that
    yields at least two grid steps (keeps both v7x TensorCores busy)."""
    if n_rows <= 256:
        return n_rows
    t = min(t_max, -(-n_rows // 2))
    return -(-t // 8) * 8


def conv_gemm_bn_relu_pool(a4, w_p, shift_p, tg=1024):
    """a4: (4, G, K) parity-major im2col rows -> pooled (G, 128) bf16 slab."""
    _, G, K = a4.shape
    Kw, Np = w_p.shape
    assert Kw == K and Np == 128
    tg_eff = _row_tile(G, tg)
    return pl.pallas_call(
        _conv_bn_relu_pool_kernel,
        out_shape=jax.ShapeDtypeStruct((G, Np), jnp.bfloat16),
        grid=(pl.cdiv(G, tg_eff),),
        in_specs=[
            pl.BlockSpec((4, tg_eff, K), lambda i: (0, i, 0)),
            pl.BlockSpec((K, Np), lambda i: (0, 0)),
            pl.BlockSpec((1, Np), lambda i: (0, 0)),
        ],
        out_specs=pl.BlockSpec((tg_eff, Np), lambda i: (i, 0)),
        compiler_params=pltpu.CompilerParams(
            dimension_semantics=("parallel",),
            vmem_limit_bytes=_VMEM_LIMIT),
    )(a4, w_p, shift_p)


def matmul_bias(a, w_p, bias_p, out_dtype=jnp.float32, tm=1024):
    """(M, K) @ (K, 128) + bias, lane-dense (M, 128) output (cols >= n are 0)."""
    M, K = a.shape
    Kw, Np = w_p.shape
    assert Kw == K and Np == 128
    tm_eff = _row_tile(M, tm)
    return pl.pallas_call(
        _matmul_bias_kernel,
        out_shape=jax.ShapeDtypeStruct((M, Np), out_dtype),
        grid=(pl.cdiv(M, tm_eff),),
        in_specs=[
            pl.BlockSpec((tm_eff, K), lambda i: (i, 0)),
            pl.BlockSpec((K, Np), lambda i: (0, 0)),
            pl.BlockSpec((1, Np), lambda i: (0, 0)),
        ],
        out_specs=pl.BlockSpec((tm_eff, Np), lambda i: (i, 0)),
        compiler_params=pltpu.CompilerParams(
            dimension_semantics=("parallel",),
            vmem_limit_bytes=_VMEM_LIMIT),
    )(a.astype(jnp.bfloat16), w_p, bias_p)


# ----------------------------------------------------------------------------
# Glue: im2col (pool-grouped rows) and parameter preparation
# ----------------------------------------------------------------------------
def im2col_pool_groups(x_nhwc, k=5, pad=2, k_pad_to=None):
    """SAME kxk patches arranged for the fused 2x2/stride-2 MaxPool epilogue.

    Returns (4, N*Ho*Wo, K'):
      axis 0: pool parity p = 2*hp + wp (the 4 conv pixels of one pool window)
      axis 1: pooled-pixel row q = (n*Ho + ho)*Wo + wo
      axis 2: features ordered (kh, kw, cin), matching conv_weight_to_matrix,
              optionally zero-padded to k_pad_to (sublane alignment).
    """
    N, H, W, C = x_nhwc.shape
    Ho, Wo = H // 2, W // 2
    K = k * k * C
    xp = jnp.pad(x_nhwc, ((0, 0), (pad, pad), (pad, pad), (0, 0)))
    cols = [lax.slice(xp, (0, di, dj, 0), (N, di + H, dj + W, C))
            for di in range(k) for dj in range(k)]          # explicit end idx
    a = jnp.concatenate(cols, axis=-1)                       # (N, H, W, K)
    if k_pad_to is not None and k_pad_to > K:
        a = jnp.pad(a, ((0, 0), (0, 0), (0, 0), (0, k_pad_to - K)))
        K = k_pad_to
    a = a.reshape(N, Ho, 2, Wo, 2, K)
    a = jnp.transpose(a, (2, 4, 0, 1, 3, 5))                 # (hp, wp, N, Ho, Wo, K)
    return a.reshape(4, N * Ho * Wo, K)


def conv_weight_to_matrix(w_oihw):
    """PyTorch (Cout, Cin, kh, kw) -> (kh*kw*Cin, Cout), matching im2col order."""
    cout, cin, kh, kw = w_oihw.shape
    return jnp.transpose(w_oihw, (2, 3, 1, 0)).reshape(kh * kw * cin, cout)


def bn_fold(conv_bias, gamma, beta, running_mean, running_var, eps=1e-5):
    scale = gamma / jnp.sqrt(running_var + eps)
    shift = beta + (conv_bias - running_mean) * scale
    return scale, shift


def prepare_params(p, eps=1e-5):
    """Fold BN into the conv GEMM weights, pad everything lane-dense (128
    columns) / K-aligned, and permute the FC weight to consume the NHWC
    pooled slab directly.  Run once, outside the per-step forward."""
    out = {}

    s1, sh1 = bn_fold(p["b1"], p["g1"], p["beta1"], p["m1"], p["v1"], eps)
    w1 = conv_weight_to_matrix(p["w1"]) * s1[None, :]               # (25, 16)
    out["w1"] = jnp.pad(w1, ((0, 32 - 25), (0, 128 - 16))).astype(jnp.bfloat16)
    out["sh1"] = jnp.pad(sh1, (0, 128 - 16)).reshape(1, 128).astype(jnp.float32)

    s2, sh2 = bn_fold(p["b2"], p["g2"], p["beta2"], p["m2"], p["v2"], eps)
    w2 = conv_weight_to_matrix(p["w2"]) * s2[None, :]               # (400, 32)
    out["w2"] = jnp.pad(w2, ((0, 0), (0, 128 - 32))).astype(jnp.bfloat16)
    out["sh2"] = jnp.pad(sh2, (0, 128 - 32)).reshape(1, 128).astype(jnp.float32)

    # FC: PyTorch flattens NCHW (f = c*49 + h*7 + w); the pooled Pallas slab is
    # NHWC lane-dense (g = h*7*128 + w*128 + c).  Permute + zero-pad the weight
    # once so the activations need no transpose/slice.
    # NOTE: bf16 weights -> ~1e-2 relative drift vs an f32 PyTorch reference.
    wf = p["wf"].reshape(10, 32, 7, 7)                               # (out, c, h, w)
    wf = jnp.transpose(wf, (2, 3, 1, 0))                             # (h, w, c, out)
    wf = jnp.pad(wf, ((0, 0), (0, 0), (0, 128 - 32), (0, 128 - 10)))
    out["wf"] = wf.reshape(7 * 7 * 128, 128).astype(jnp.bfloat16)
    out["bf"] = jnp.pad(p["bf"], (0, 128 - 10)).reshape(1, 128).astype(jnp.float32)
    return out


def init_params(key):
    ks = jax.random.split(key, 12)
    p = {}
    p["w1"] = jax.random.normal(ks[0], (16, 1, 5, 5), jnp.float32) * 0.1
    p["b1"] = jax.random.normal(ks[1], (16,), jnp.float32) * 0.1
    p["g1"] = 1.0 + 0.1 * jax.random.normal(ks[2], (16,), jnp.float32)
    p["beta1"] = 0.1 * jax.random.normal(ks[3], (16,), jnp.float32)
    p["m1"] = 0.1 * jax.random.normal(ks[4], (16,), jnp.float32)
    p["v1"] = 0.5 + jnp.abs(jax.random.normal(ks[5], (16,), jnp.float32))

    p["w2"] = jax.random.normal(ks[6], (32, 16, 5, 5), jnp.float32) * 0.05
    p["b2"] = jax.random.normal(ks[7], (32,), jnp.float32) * 0.1
    p["g2"] = 1.0 + 0.1 * jax.random.normal(ks[8], (32,), jnp.float32)
    p["beta2"] = 0.1 * jax.random.normal(ks[9], (32,), jnp.float32)
    p["m2"] = 0.1 * jax.random.normal(ks[10], (32,), jnp.float32)
    p["v2"] = 0.5 + jnp.abs(jax.random.normal(ks[11], (32,), jnp.float32))

    kf1, kf2 = jax.random.split(jax.random.fold_in(key, 99))
    p["wf"] = jax.random.normal(kf1, (10, 7 * 7 * 32), jnp.float32) * 0.02
    p["bf"] = jax.random.normal(kf2, (10,), jnp.float32) * 0.1
    return p


# ----------------------------------------------------------------------------
# Forward pass
# ----------------------------------------------------------------------------
def convnet_forward(x_nchw, prep):
    N = x_nchw.shape[0]
    x = jnp.transpose(x_nchw, (0, 2, 3, 1)).astype(jnp.bfloat16)     # NCHW -> NHWC

    # layer1: Conv(1->16,5,p=2) + BN + ReLU + MaxPool(2)  (fused pool epilogue)
    a1 = im2col_pool_groups(x, k=5, pad=2, k_pad_to=32)              # (4, N*196, 32)
    p1 = conv_gemm_bn_relu_pool(a1, prep["w1"], prep["sh1"])         # (N*196, 128)
    p1 = p1.reshape(N, 14, 14, 128)[..., :16]                        # NHWC, 16 real ch

    # layer2: Conv(16->32,5,p=2) + BN + ReLU + MaxPool(2)
    a2 = im2col_pool_groups(p1, k=5, pad=2)                          # (4, N*49, 400)
    p2 = conv_gemm_bn_relu_pool(a2, prep["w2"], prep["sh2"])         # (N*49, 128)

    # fc: Linear(7*7*32 -> 10) directly on the lane-dense pooled slab
    flat = p2.reshape(N, 7 * 7 * 128)
    logits = matmul_bias(flat, prep["wf"], prep["bf"], out_dtype=jnp.float32)
    return logits[:, :10]                                            # (N, 10) f32


if __name__ == "__main__":
    key = jax.random.PRNGKey(0)
    kx, kp = jax.random.split(key)
    # Input must be 28x28 single-channel (fc expects 7*7*32 features); batch 2.
    x = jax.random.normal(kx, (2, 1, 28, 28), jnp.float32)
    params = init_params(kp)
    prep = prepare_params(params)          # folded/padded weights, built once

    fwd = jax.jit(convnet_forward)
    out = jax.block_until_ready(fwd(x, prep))
    assert out.shape == (2, 10) and out.dtype == jnp.float32
    assert bool(jnp.all(jnp.isfinite(out)))
    print("KERNEL_OK")
</pallas_src>

<mosaic_0001>
module attributes {stable_mosaic.version = 11 : i64} {
  func.func @_conv_bn_relu_pool_kernel(%arg0: i32, %arg1: memref<4x200x32xbf16, #tpu.memory_space<vmem>>, %arg2: memref<32x128xbf16, #tpu.memory_space<vmem>>, %arg3: memref<1x128xf32, #tpu.memory_space<vmem>>, %arg4: memref<200x128xbf16, #tpu.memory_space<vmem>>) attributes {dimension_semantics = [#tpu.dimension_semantics<parallel>], iteration_bounds = array<i64: 2>, scalar_prefetch = 0 : i64, scratch_operands = 0 : i64, tpu.core_type = #tpu.core_type<tc>, window_params = [{transform_indices = @transform_0, window_bounds = array<i64: 4, 200, 32>}, {pipeline_mode = #tpu.pipeline_mode<synchronous>, transform_indices = @transform_1, window_bounds = array<i64: 32, 128>}, {pipeline_mode = #tpu.pipeline_mode<synchronous>, transform_indices = @transform_2, window_bounds = array<i64: 1, 128>}, {transform_indices = @transform_3, window_bounds = array<i64: 200, 128>}]} {
    %c0 = arith.constant 0 : index
    %c0_0 = arith.constant 0 : index
    %c0_1 = arith.constant 0 : index
    %0 = vector.load %arg1[%c0, %c0_0, %c0_1] : memref<4x200x32xbf16, #tpu.memory_space<vmem>>, vector<1x200x32xbf16>
    %1 = vector.shape_cast %0 : vector<1x200x32xbf16> to vector<200x32xbf16>
    %c0_2 = arith.constant 0 : index
    %c0_3 = arith.constant 0 : index
    %2 = vector.load %arg2[%c0_2, %c0_3] : memref<32x128xbf16, #tpu.memory_space<vmem>>, vector<32x128xbf16>
    %cst = arith.constant dense<0.000000e+00> : vector<200x128xf32>
    %3 = tpu.matmul %1, %2, %cst {dimension_numbers = #tpu.dot_dimension_numbers<[1], [0], [0], [1], [0, 0, 1, 1], [], []>} : vector<200x32xbf16>, vector<32x128xbf16>, vector<200x128xf32> -> vector<200x128xf32>
    %c0_4 = arith.constant 0 : index
    %c0_5 = arith.constant 0 : index
    %4 = vector.load %arg3[%c0_4, %c0_5] : memref<1x128xf32, #tpu.memory_space<vmem>>, vector<1x128xf32>
    %5 = vector.broadcast %4 : vector<1x128xf32> to vector<200x128xf32>
    %6 = arith.addf %3, %5 : vector<200x128xf32>
    %cst_6 = arith.constant 0.000000e+00 : f32
    %7 = vector.broadcast %cst_6 : f32 to vector<200x128xf32>
    %8 = arith.maximumf %6, %7 : vector<200x128xf32>
    %c1 = arith.constant 1 : index
    %c0_7 = arith.constant 0 : index
    %c0_8 = arith.constant 0 : index
    %9 = vector.load %arg1[%c1, %c0_7, %c0_8] : memref<4x200x32xbf16, #tpu.memory_space<vmem>>, vector<1x200x32xbf16>
    %10 = vector.shape_cast %9 : vector<1x200x32xbf16> to vector<200x32xbf16>
    %c0_9 = arith.constant 0 : index
    %c0_10 = arith.constant 0 : index
    %11 = vector.load %arg2[%c0_9, %c0_10] : memref<32x128xbf16, #tpu.memory_space<vmem>>, vector<32x128xbf16>
    %cst_11 = arith.constant dense<0.000000e+00> : vector<200x128xf32>
    %12 = tpu.matmul %10, %11, %cst_11 {dimension_numbers = #tpu.dot_dimension_numbers<[1], [0], [0], [1], [0, 0, 1, 1], [], []>} : vector<200x32xbf16>, vector<32x128xbf16>, vector<200x128xf32> -> vector<200x128xf32>
    %c0_12 = arith.constant 0 : index
    %c0_13 = arith.constant 0 : index
    %13 = vector.load %arg3[%c0_12, %c0_13] : memref<1x128xf32, #tpu.memory_space<vmem>>, vector<1x128xf32>
    %14 = vector.broadcast %13 : vector<1x128xf32> to vector<200x128xf32>
    %15 = arith.addf %12, %14 : vector<200x128xf32>
    %cst_14 = arith.constant 0.000000e+00 : f32
    %16 = vector.broadcast %cst_14 : f32 to vector<200x128xf32>
    %17 = arith.maximumf %15, %16 : vector<200x128xf32>
    %18 = arith.maximumf %8, %17 : vector<200x128xf32>
    %c2 = arith.constant 2 : index
    %c0_15 = arith.constant 0 : index
    %c0_16 = arith.constant 0 : index
    %19 = vector.load %arg1[%c2, %c0_15, %c0_16] : memref<4x200x32xbf16, #tpu.memory_space<vmem>>, vector<1x200x32xbf16>
    %20 = vector.shape_cast %19 : vector<1x200x32xbf16> to vector<200x32xbf16>
    %c0_17 = arith.constant 0 : index
    %c0_18 = arith.constant 0 : index
    %21 = vector.load %arg2[%c0_17, %c0_18] : memref<32x128xbf16, #tpu.memory_space<vmem>>, vector<32x128xbf16>
    %cst_19 = arith.constant dense<0.000000e+00> : vector<200x128xf32>
    %22 = tpu.matmul %20, %21, %cst_19 {dimension_numbers = #tpu.dot_dimension_numbers<[1], [0], [0], [1], [0, 0, 1, 1], [], []>} : vector<200x32xbf16>, vector<32x128xbf16>, vector<200x128xf32> -> vector<200x128xf32>
    %c0_20 = arith.constant 0 : index
    %c0_21 = arith.constant 0 : index
    %23 = vector.load %arg3[%c0_20, %c0_21] : memref<1x128xf32, #tpu.memory_space<vmem>>, vector<1x128xf32>
    %24 = vector.broadcast %23 : vector<1x128xf32> to vector<200x128xf32>
    %25 = arith.addf %22, %24 : vector<200x128xf32>
    %cst_22 = arith.constant 0.000000e+00 : f32
    %26 = vector.broadcast %cst_22 : f32 to vector<200x128xf32>
    %27 = arith.maximumf %25, %26 : vector<200x128xf32>
    %28 = arith.maximumf %18, %27 : vector<200x128xf32>
    %c3 = arith.constant 3 : index
    %c0_23 = arith.constant 0 : index
    %c0_24 = arith.constant 0 : index
    %29 = vector.load %arg1[%c3, %c0_23, %c0_24] : memref<4x200x32xbf16, #tpu.memory_space<vmem>>, vector<1x200x32xbf16>
    %30 = vector.shape_cast %29 : vector<1x200x32xbf16> to vector<200x32xbf16>
    %c0_25 = arith.constant 0 : index
    %c0_26 = arith.constant 0 : index
    %31 = vector.load %arg2[%c0_25, %c0_26] : memref<32x128xbf16, #tpu.memory_space<vmem>>, vector<32x128xbf16>
    %cst_27 = arith.constant dense<0.000000e+00> : vector<200x128xf32>
    %32 = tpu.matmul %30, %31, %cst_27 {dimension_numbers = #tpu.dot_dimension_numbers<[1], [0], [0], [1], [0, 0, 1, 1], [], []>} : vector<200x32xbf16>, vector<32x128xbf16>, vector<200x128xf32> -> vector<200x128xf32>
    %c0_28 = arith.constant 0 : index
    %c0_29 = arith.constant 0 : index
    %33 = vector.load %arg3[%c0_28, %c0_29] : memref<1x128xf32, #tpu.memory_space<vmem>>, vector<1x128xf32>
    %34 = vector.broadcast %33 : vector<1x128xf32> to vector<200x128xf32>
    %35 = arith.addf %32, %34 : vector<200x128xf32>
    %cst_30 = arith.constant 0.000000e+00 : f32
    %36 = vector.broadcast %cst_30 : f32 to vector<200x128xf32>
    %37 = arith.maximumf %35, %36 : vector<200x128xf32>
    %38 = arith.maximumf %28, %37 : vector<200x128xf32>
    %39 = arith.truncf %38 : vector<200x128xf32> to vector<200x128xbf16>
    %c0_31 = arith.constant 0 : index
    %c0_32 = arith.constant 0 : index
    %40 = vector.load %arg4[%c0_31, %c0_32] : memref<200x128xbf16, #tpu.memory_space<vmem>>, vector<200x128xbf16>
    tpu.vector_store %arg4[%c0_31, %c0_32], %39 {strides = array<i32>} : memref<200x128xbf16, #tpu.memory_space<vmem>>, vector<200x128xbf16>,
    return
  }
  func.func @transform_0(%arg0: i32) -> (i32, i32, i32) {
    %c0_i32 = arith.constant 0 : i32
    %c0_i32_0 = arith.constant 0 : i32
    %c0_i32_1 = arith.constant 0 : i32
    return %c0_i32, %arg0, %c0_i32_0 : i32, i32, i32
  }
  func.func @transform_1(%arg0: i32) -> (i32, i32) {
    %c0_i32 = arith.constant 0 : i32
    %c0_i32_0 = arith.constant 0 : i32
    %c0_i32_1 = arith.constant 0 : i32
    return %c0_i32, %c0_i32_0 : i32, i32
  }
  func.func @transform_2(%arg0: i32) -> (i32, i32) {
    %c0_i32 = arith.constant 0 : i32
    %c0_i32_0 = arith.constant 0 : i32
    %c0_i32_1 = arith.constant 0 : i32
    return %c0_i32, %c0_i32_0 : i32, i32
  }
  func.func @transform_3(%arg0: i32) -> (i32, i32) {
    %c0_i32 = arith.constant 0 : i32
    %c0_i32_0 = arith.constant 0 : i32
    return %arg0, %c0_i32 : i32, i32
  }
}

module attributes {stable_mosaic.version = 11 : i64} {
  func.func @_conv_bn_relu_pool_kernel(%arg0: i32, %arg1: memref<4x98x400xbf16, #tpu.memory_space<vmem>>, %arg2: memref<400x128xbf16, #tpu.memory_space<vmem>>, %arg3: memref<1x128xf32, #tpu.memory_space<vmem>>, %arg4: memref<98x128xbf16, #tpu.memory_space<vmem>>) attributes {dimension_semantics = [#tpu.dimension_semantics<parallel>], iteration_bounds = array<i64: 1>, scalar_prefetch = 0 : i64, scratch_operands = 0 : i64, tpu.core_type = #tpu.core_type<tc>, window_params = [{transform_indices = @transform_0, window_bounds = array<i64: 4, 98, 400>}, {pipeline_mode = #tpu.pipeline_mode<synchronous>, transform_indices = @transform_1, window_bounds = array<i64: 400, 128>}, {pipeline_mode = #tpu.pipeline_mode<synchronous>, transform_indices = @transform_2, window_bounds = array<i64: 1, 128>}, {transform_indices = @transform_3, window_bounds = array<i64: 98, 128>}]} {
    %c0 = arith.constant 0 : index
    %c0_0 = arith.constant 0 : index
    %c0_1 = arith.constant 0 : index
    %0 = vector.load %arg1[%c0, %c0_0, %c0_1] : memref<4x98x400xbf16, #tpu.memory_space<vmem>>, vector<1x98x400xbf16>
    %1 = vector.shape_cast %0 : vector<1x98x400xbf16> to vector<98x400xbf16>
    %c0_2 = arith.constant 0 : index
    %c0_3 = arith.constant 0 : index
    %2 = vector.load %arg2[%c0_2, %c0_3] : memref<400x128xbf16, #tpu.memory_space<vmem>>, vector<400x128xbf16>
    %cst = arith.constant dense<0.000000e+00> : vector<98x128xf32>
    %3 = tpu.matmul %1, %2, %cst {dimension_numbers = #tpu.dot_dimension_numbers<[1], [0], [0], [1], [0, 0, 1, 1], [], []>} : vector<98x400xbf16>, vector<400x128xbf16>, vector<98x128xf32> -> vector<98x128xf32>
    %c0_4 = arith.constant 0 : index
    %c0_5 = arith.constant 0 : index
    %4 = vector.load %arg3[%c0_4, %c0_5] : memref<1x128xf32, #tpu.memory_space<vmem>>, vector<1x128xf32>
    %5 = vector.broadcast %4 : vector<1x128xf32> to vector<98x128xf32>
    %6 = arith.addf %3, %5 : vector<98x128xf32>
    %cst_6 = arith.constant 0.000000e+00 : f32
    %7 = vector.broadcast %cst_6 : f32 to vector<98x128xf32>
    %8 = arith.maximumf %6, %7 : vector<98x128xf32>
    %c1 = arith.constant 1 : index
    %c0_7 = arith.constant 0 : index
    %c0_8 = arith.constant 0 : index
    %9 = vector.load %arg1[%c1, %c0_7, %c0_8] : memref<4x98x400xbf16, #tpu.memory_space<vmem>>, vector<1x98x400xbf16>
    %10 = vector.shape_cast %9 : vector<1x98x400xbf16> to vector<98x400xbf16>
    %c0_9 = arith.constant 0 : index
    %c0_10 = arith.constant 0 : index
    %11 = vector.load %arg2[%c0_9, %c0_10] : memref<400x128xbf16, #tpu.memory_space<vmem>>, vector<400x128xbf16>
    %cst_11 = arith.constant dense<0.000000e+00> : vector<98x128xf32>
    %12 = tpu.matmul %10, %11, %cst_11 {dimension_numbers = #tpu.dot_dimension_numbers<[1], [0], [0], [1], [0, 0, 1, 1], [], []>} : vector<98x400xbf16>, vector<400x128xbf16>, vector<98x128xf32> -> vector<98x128xf32>
    %c0_12 = arith.constant 0 : index
    %c0_13 = arith.constant 0 : index
    %13 = vector.load %arg3[%c0_12, %c0_13] : memref<1x128xf32, #tpu.memory_space<vmem>>, vector<1x128xf32>
    %14 = vector.broadcast %13 : vector<1x128xf32> to vector<98x128xf32>
    %15 = arith.addf %12, %14 : vector<98x128xf32>
    %cst_14 = arith.constant 0.000000e+00 : f32
    %16 = vector.broadcast %cst_14 : f32 to vector<98x128xf32>
    %17 = arith.maximumf %15, %16 : vector<98x128xf32>
    %18 = arith.maximumf %8, %17 : vector<98x128xf32>
    %c2 = arith.constant 2 : index
    %c0_15 = arith.constant 0 : index
    %c0_16 = arith.constant 0 : index
    %19 = vector.load %arg1[%c2, %c0_15, %c0_16] : memref<4x98x400xbf16, #tpu.memory_space<vmem>>, vector<1x98x400xbf16>
    %20 = vector.shape_cast %19 : vector<1x98x400xbf16> to vector<98x400xbf16>
    %c0_17 = arith.constant 0 : index
    %c0_18 = arith.constant 0 : index
    %21 = vector.load %arg2[%c0_17, %c0_18] : memref<400x128xbf16, #tpu.memory_space<vmem>>, vector<400x128xbf16>
    %cst_19 = arith.constant dense<0.000000e+00> : vector<98x128xf32>
    %22 = tpu.matmul %20, %21, %cst_19 {dimension_numbers = #tpu.dot_dimension_numbers<[1], [0], [0], [1], [0, 0, 1, 1], [], []>} : vector<98x400xbf16>, vector<400x128xbf16>, vector<98x128xf32> -> vector<98x128xf32>
    %c0_20 = arith.constant 0 : index
    %c0_21 = arith.constant 0 : index
    %23 = vector.load %arg3[%c0_20, %c0_21] : memref<1x128xf32, #tpu.memory_space<vmem>>, vector<1x128xf32>
    %24 = vector.broadcast %23 : vector<1x128xf32> to vector<98x128xf32>
    %25 = arith.addf %22, %24 : vector<98x128xf32>
    %cst_22 = arith.constant 0.000000e+00 : f32
    %26 = vector.broadcast %cst_22 : f32 to vector<98x128xf32>
    %27 = arith.maximumf %25, %26 : vector<98x128xf32>
    %28 = arith.maximumf %18, %27 : vector<98x128xf32>
    %c3 = arith.constant 3 : index
    %c0_23 = arith.constant 0 : index
    %c0_24 = arith.constant 0 : index
    %29 = vector.load %arg1[%c3, %c0_23, %c0_24] : memref<4x98x400xbf16, #tpu.memory_space<vmem>>, vector<1x98x400xbf16>
    %30 = vector.shape_cast %29 : vector<1x98x400xbf16> to vector<98x400xbf16>
    %c0_25 = arith.constant 0 : index
    %c0_26 = arith.constant 0 : index
    %31 = vector.load %arg2[%c0_25, %c0_26] : memref<400x128xbf16, #tpu.memory_space<vmem>>, vector<400x128xbf16>
    %cst_27 = arith.constant dense<0.000000e+00> : vector<98x128xf32>
    %32 = tpu.matmul %30, %31, %cst_27 {dimension_numbers = #tpu.dot_dimension_numbers<[1], [0], [0], [1], [0, 0, 1, 1], [], []>} : vector<98x400xbf16>, vector<400x128xbf16>, vector<98x128xf32> -> vector<98x128xf32>
    %c0_28 = arith.constant 0 : index
    %c0_29 = arith.constant 0 : index
    %33 = vector.load %arg3[%c0_28, %c0_29] : memref<1x128xf32, #tpu.memory_space<vmem>>, vector<1x128xf32>
    %34 = vector.broadcast %33 : vector<1x128xf32> to vector<98x128xf32>
    %35 = arith.addf %32, %34 : vector<98x128xf32>
    %cst_30 = arith.constant 0.000000e+00 : f32
    %36 = vector.broadcast %cst_30 : f32 to vector<98x128xf32>
    %37 = arith.maximumf %35, %36 : vector<98x128xf32>
    %38 = arith.maximumf %28, %37 : vector<98x128xf32>
    %39 = arith.truncf %38 : vector<98x128xf32> to vector<98x128xbf16>
    %c0_31 = arith.constant 0 : index
    %c0_32 = arith.constant 0 : index
    %40 = vector.load %arg4[%c0_31, %c0_32] : memref<98x128xbf16, #tpu.memory_space<vmem>>, vector<98x128xbf16>
    tpu.vector_store %arg4[%c0_31, %c0_32], %39 {strides = array<i32>} : memref<98x128xbf16, #tpu.memory_space<vmem>>, vector<98x128xbf16>,
    return
  }
  func.func @transform_0(%arg0: i32) -> (i32, i32, i32) {
    %c0_i32 = arith.constant 0 : i32
    %c0_i32_0 = arith.constant 0 : i32
    %c0_i32_1 = arith.constant 0 : i32
    return %c0_i32, %arg0, %c0_i32_0 : i32, i32, i32
  }
  func.func @transform_1(%arg0: i32) -> (i32, i32) {
    %c0_i32 = arith.constant 0 : i32
    %c0_i32_0 = arith.constant 0 : i32
    %c0_i32_1 = arith.constant 0 : i32
    return %c0_i32, %c0_i32_0 : i32, i32
  }
  func.func @transform_2(%arg0: i32) -> (i32, i32) {
    %c0_i32 = arith.constant 0 : i32
    %c0_i32_0 = arith.constant 0 : i32
    %c0_i32_1 = arith.constant 0 : i32
    return %c0_i32, %c0_i32_0 : i32, i32
  }
  func.func @transform_3(%arg0: i32) -> (i32, i32) {
    %c0_i32 = arith.constant 0 : i32
    %c0_i32_0 = arith.constant 0 : i32
    return %arg0, %c0_i32 : i32, i32
  }
}

module attributes {stable_mosaic.version = 11 : i64} {
  func.func @_matmul_bias_kernel(%arg0: i32, %arg1: memref<2x6272xbf16, #tpu.memory_space<vmem>>, %arg2: memref<6272x128xbf16, #tpu.memory_space<vmem>>, %arg3: memref<1x128xf32, #tpu.memory_space<vmem>>, %arg4: memref<2x128xf32, #tpu.memory_space<vmem>>) attributes {dimension_semantics = [#tpu.dimension_semantics<parallel>], iteration_bounds = array<i64: 1>, scalar_prefetch = 0 : i64, scratch_operands = 0 : i64, tpu.core_type = #tpu.core_type<tc>, window_params = [{transform_indices = @transform_0, window_bounds = array<i64: 2, 6272>}, {pipeline_mode = #tpu.pipeline_mode<synchronous>, transform_indices = @transform_1, window_bounds = array<i64: 6272, 128>}, {pipeline_mode = #tpu.pipeline_mode<synchronous>, transform_indices = @transform_2, window_bounds = array<i64: 1, 128>}, {transform_indices = @transform_3, window_bounds = array<i64: 2, 128>}]} {
    %c0 = arith.constant 0 : index
    %c0_0 = arith.constant 0 : index
    %0 = vector.load %arg1[%c0, %c0_0] : memref<2x6272xbf16, #tpu.memory_space<vmem>>, vector<2x6272xbf16>
    %c0_1 = arith.constant 0 : index
    %c0_2 = arith.constant 0 : index
    %1 = vector.load %arg2[%c0_1, %c0_2] : memref<6272x128xbf16, #tpu.memory_space<vmem>>, vector<6272x128xbf16>
    %cst = arith.constant dense<0.000000e+00> : vector<2x128xf32>
    %2 = tpu.matmul %0, %1, %cst {dimension_numbers = #tpu.dot_dimension_numbers<[1], [0], [0], [1], [0, 0, 1, 1], [], []>} : vector<2x6272xbf16>, vector<6272x128xbf16>, vector<2x128xf32> -> vector<2x128xf32>
    %c0_3 = arith.constant 0 : index
    %c0_4 = arith.constant 0 : index
    %3 = vector.load %arg3[%c0_3, %c0_4] : memref<1x128xf32, #tpu.memory_space<vmem>>, vector<1x128xf32>
    %4 = vector.broadcast %3 : vector<1x128xf32> to vector<2x128xf32>
    %5 = arith.addf %2, %4 : vector<2x128xf32>
    %c0_5 = arith.constant 0 : index
    %c0_6 = arith.constant 0 : index
    %6 = vector.load %arg4[%c0_5, %c0_6] : memref<2x128xf32, #tpu.memory_space<vmem>>, vector<2x128xf32>
    tpu.vector_store %arg4[%c0_5, %c0_6], %5 {strides = array<i32>} : memref<2x128xf32, #tpu.memory_space<vmem>>, vector<2x128xf32>,
    return
  }
  func.func @transform_0(%arg0: i32) -> (i32, i32) {
    %c0_i32 = arith.constant 0 : i32
    %c0_i32_0 = arith.constant 0 : i32
    return %arg0, %c0_i32 : i32, i32
  }
  func.func @transform_1(%arg0: i32) -> (i32, i32) {
    %c0_i32 = arith.constant 0 : i32
    %c0_i32_0 = arith.constant 0 : i32
    %c0_i32_1 = arith.constant 0 : i32
    return %c0_i32, %c0_i32_0 : i32, i32
  }
  func.func @transform_2(%arg0: i32) -> (i32, i32) {
    %c0_i32 = arith.constant 0 : i32
    %c0_i32_0 = arith.constant 0 : i32
    %c0_i32_1 = arith.constant 0 : i32
    return %c0_i32, %c0_i32_0 : i32, i32
  }
  func.func @transform_3(%arg0: i32) -> (i32, i32) {
    %c0_i32 = arith.constant 0 : i32
    %c0_i32_0 = arith.constant 0 : i32
    return %arg0, %c0_i32 : i32, i32
  }
}

</mosaic_0001>

<llo_original>
// kernel: convnet_forward.3
$region0: #{convnet_forward.3}
  #allocation0 [shape = 'u32[]', space=smem, size = 0x4, offset = 0x4, fixed_abs, tag = 'smem constant byte address 0x4 - core index']
  #allocation1 [shape = 'u32[72,128]{1,0:T(1,128)}', space=vmem, size = 0x9000, scoped, tag = 'internal scratch']
  %s0 = inlined_call_operand.vmem [shape: bf16[4,392,32], index: 0, kind: input, shape index: {}]
  %s1 = inlined_call_operand.vmem [shape: bf16[32,128], index: 1, kind: input, shape index: {}]
  %s2 = inlined_call_operand.vmem [shape: f32[1,128], index: 2, kind: input, shape index: {}]
  %s3 = inlined_call_operand.vmem [shape: bf16[392,128], index: 3, kind: output, shape index: {}]
  %s4 = sld [smem:[#allocation0]]
  $region151: #{convnet_forward.3} parent=0
    _
  %s6 = ssub.s32 1, %s4
  %s7 = scalar_select 0, %s6, %s4
  $region1: #{convnet_forward.3} parent=0
    #allocation2 [shape = 'u8[409600]{0}', space=vmem, size = 0x64000, scoped, tag = 'input window, operand 0']
    #allocation3 [shape = 'u8[102400]{0}', space=vmem, size = 0x19000, scoped, tag = 'output window, operand 0']
    loop: start=0, step=1, limit=4
    $region2: #{convnet_forward.3} parent=1 // loop_pre_header
      _
    $region3: #{convnet_forward.3} parent=1 // loop_header
      %s9 = sphi 0, %s13
      %p10 = scmp.ge.s32.totalorder %s9, 4
      %s19 = sphi 0, %s21
      %s22 = sphi 0, %s19
      %s23 = sphi 0, %s22
      %s39 = sphi 0, %s23
      %s43 = sphi 0, %s43
      %s45 = sphi 0, %s43
      %s46 = sphi 0, %s45
      %s60 = sphi 0, %s46
      %s64 = sphi 0, %s64
      %s66 = sphi 0, %s64
      %s67 = sphi 0, %s66
      %s81 = sphi 0, %s67
      %s87 = sphi 0, %s89
      %s90 = sphi 0, %s87
      %s91 = sphi 0, %s90
      %s107 = sphi 0, %s91
    $region4: #{convnet_forward.3} parent=1 // loop_header_branch
      %12 = sbr.rel (%p10) target = $region8
    $region5: #{convnet_forward.3} parent=1 // loop_body
      %s14 = ssub.s32 %s9, 1
      %s15 = ssub.s32 %s9, 2
      %s16 = sadd.s32 %s9, 1
      %s17 = ssub.s32 %s9, %s16
      %p18 = scmp.eq.s32.totalorder %s17, 0
      %s20 = sadd.s32 %s19, 1
      %s21 = scalar_select %p18, %s19, %s20
      %p24 = pneg %p18
      %p25 = scmp.eq.s32.totalorder %s9, 1
      %p26 = por %p24, %p25
      %p27 = scmp.ne.s32.totalorder %s19, %s22
      %p28 = scmp.eq.s32.totalorder %s9, 0
      %p29 = por %p27, %p28
      %p30 = scmp.ne.s32.totalorder %s19, %s22
      %p31 = scmp.eq.s32.totalorder %s14, 1
      %p32 = por %p30, %p31
      %p33 = scmp.ne.s32.totalorder %s22, %s23
      %p34 = scmp.eq.s32.totalorder %s14, 0
      %p35 = por %p33, %p34
      %p36 = scmp.ne.s32.totalorder %s22, %s23
      %p37 = scmp.eq.s32.totalorder %s15, 1
      %p38 = por %p36, %p37
      %p40 = scmp.ne.s32.totalorder %s23, %s39
      %p41 = scmp.eq.s32.totalorder %s15, 0
      %p42 = por %p40, %p41
      %s44 = sadd.s32 %s43, 1
      %p47 = scmp.eq.s32.totalorder %s9, 1
      %p48 = scmp.ne.s32.totalorder %s43, %s45
      %p49 = scmp.eq.s32.totalorder %s9, 0
      %p50 = por %p48, %p49
      %p51 = scmp.ne.s32.totalorder %s43, %s45
      %p52 = scmp.eq.s32.totalorder %s14, 1
      %p53 = por %p51, %p52
      %p54 = scmp.ne.s32.totalorder %s45, %s46
      %p55 = scmp.eq.s32.totalorder %s14, 0
      %p56 = por %p54, %p55
      %p57 = scmp.ne.s32.totalorder %s45, %s46
      %p58 = scmp.eq.s32.totalorder %s15, 1
      %p59 = por %p57, %p58
      %p61 = scmp.ne.s32.totalorder %s46, %s60
      %p62 = scmp.eq.s32.totalorder %s15, 0
      %p63 = por %p61, %p62
      %s65 = sadd.s32 %s64, 1
      %p68 = scmp.eq.s32.totalorder %s9, 1
      %p69 = scmp.ne.s32.totalorder %s64, %s66
      %p70 = scmp.eq.s32.totalorder %s9, 0
      %p71 = por %p69, %p70
      %p72 = scmp.ne.s32.totalorder %s64, %s66
      %p73 = scmp.eq.s32.totalorder %s14, 1
      %p74 = por %p72, %p73
      %p75 = scmp.ne.s32.totalorder %s66, %s67
      %p76 = scmp.eq.s32.totalorder %s14, 0
      %p77 = por %p75, %p76
      %p78 = scmp.ne.s32.totalorder %s66, %s67
      %p79 = scmp.eq.s32.totalorder %s15, 1
      %p80 = por %p78, %p79
      %p82 = scmp.ne.s32.totalorder %s67, %s81
      %p83 = scmp.eq.s32.totalorder %s15, 0
      %p84 = por %p82, %p83
      %s85 = ssub.s32 %s9, %s16
      %p86 = scmp.eq.s32.totalorder %s85, 0
      %s88 = sadd.s32 %s87, 1
      %s89 = scalar_select %p86, %s87, %s88
      %p92 = pneg %p86
      %p93 = scmp.eq.s32.totalorder %s9, 1
      %p94 = por %p92, %p93
      %p95 = scmp.ne.s32.totalorder %s87, %s90
      %p96 = scmp.eq.s32.totalorder %s9, 0
      %p97 = por %p95, %p96
      %p98 = scmp.ne.s32.totalorder %s87, %s90
      %p99 = scmp.eq.s32.totalorder %s14, 1
      %p100 = por %p98, %p99
      %p101 = scmp.ne.s32.totalorder %s90, %s91
      %p102 = scmp.eq.s32.totalorder %s14, 0
      %p103 = por %p101, %p102
      %p104 = scmp.ne.s32.totalorder %s90, %s91
      %p105 = scmp.eq.s32.totalorder %s15, 1
      %p106 = por %p104, %p105
      %p108 = scmp.ne.s32.totalorder %s91, %s107
      %p109 = scmp.eq.s32.totalorder %s15, 0
      %p110 = por %p108, %p109
      %p111 = scmp.le.s32.totalorder 1, %s9
      %p112 = scmp.lt.s32.totalorder %s9, 3
      %p113 = pnand %p111, %p112
      %p114 = pneg %p113
      // Predicated region
      $region9: #{convnet_forward.3} parent=5 // pred_check
        _
      $region10: #{convnet_forward.3} parent=5 // pred_check_branch
        %116 = sbr.rel (%p113) target = $region12
      $region11: #{convnet_forward.3} parent=5 // pred_region
        %s117 = ssub.s32 %s9, 1
        // Predicated region
        $region13: #{convnet_forward.3} parent=11 // pred_check
          %p118 = pneg %p56
        $region14: #{convnet_forward.3} parent=11 // pred_check_branch
          %120 = sbr.rel (%p118) target = $region16
        $region15: #{convnet_forward.3} parent=11 // pred_region
          _
        $region16: #{convnet_forward.3} parent=11 // pred_fallthru
          _
        // Predicated region
        $region17: #{convnet_forward.3} parent=11 // pred_check
          %p121 = pneg %p77
        $region18: #{convnet_forward.3} parent=11 // pred_check_branch
          %123 = sbr.rel (%p121) target = $region20
        $region19: #{convnet_forward.3} parent=11 // pred_region
          _
        $region20: #{convnet_forward.3} parent=11 // pred_fallthru
          _
      $region12: #{convnet_forward.3} parent=5 // pred_fallthru
        _
      %p124 = scmp.lt.s32.totalorder %s9, 2
      // Predicated region
      $region21: #{convnet_forward.3} parent=5 // pred_check
        %p125 = pneg %p124
      $region22: #{convnet_forward.3} parent=5 // pred_check_branch
        %127 = sbr.rel (%p125) target = $region24
      $region23: #{convnet_forward.3} parent=5 // pred_region
        // Predicated region
        $region25: #{convnet_forward.3} parent=23 // pred_check
          %p128 = pneg %p29
        $region26: #{convnet_forward.3} parent=23 // pred_check_branch
          %130 = sbr.rel (%p128) target = $region28
        $region27: #{convnet_forward.3} parent=23 // pred_region
          %s131 = sand.u32 %s19, 1
          %s132 = sand.u32 %s19, 1
          %s133 = smul.addr %s132, 400
          %s134 = scalar_lea.vmem [#allocation2], %s133
          %s135 = smul.u32 25, %s9
          %s136 = ssub.s32 49, %s135
          %p137 = scmp.lt.s32.totalorder %s136, 25
          %s138 = scalar_select %p137, %s136, 25
          %s139 = smul.u32 16, %s138
          %p140 = scmp.ne.s32.totalorder 0, %s139
          %s141 = smul.addr %s135, 4
          %s142 = scalar_lea.vmem %s0, %s141
          // Predicated region
          $region29: #{convnet_forward.3} parent=27 // pred_check
            %p143 = pneg %p140
          $region30: #{convnet_forward.3} parent=27 // pred_check_branch
            %145 = sbr.rel (%p143) target = $region32
          $region31: #{convnet_forward.3} parent=27 // pred_region
            // Predicated region
            $region33: #{convnet_forward.3} parent=31 // pred_check
              _
            $region34: #{convnet_forward.3} parent=31 // pred_check_branch
              %147 = sbr.rel target = $region36
            $region35: #{convnet_forward.3} parent=31 // pred_region
              // Predicated region
              $region55: #{convnet_forward.3} parent=35 // pred_check
                _
              $region56: #{convnet_forward.3} parent=35 // pred_check_branch
                %265 = sbr.rel (0) target = $region58
              $region57: #{convnet_forward.3} parent=35 // pred_region
                %s266 = sshrl.u32 %s138, 4
                // While loop
                $region59: #{convnet_forward.3} parent=57 // loop_pre_header
                  _
                $region60: #{convnet_forward.3} parent=57 // loop_header
                  %s268 = sphi 0, %s270
                  %p269 = scmp.ge.s32.totalorder %s268, %s266
                  %s273 = sphi 0, %s278
                  %s274 = sphi %s142, %s281
                  %s275 = sphi %s134, %s282
                $region61: #{convnet_forward.3} parent=57 // loop_header_branch
                  %272 = sbr.rel (%p269) target = $region65
                $region62: #{convnet_forward.3} parent=57 // loop_body
                  %s276 = sadd.s32 1, %s273
                  %p277 = scmp.ge.s32.totalorder %s276, %s266
                  %s278 = scalar_select %p277, 0, %s276
                  %s279 = smul.u32 %s278, 64
                  %s280 = smul.u32 %s278, 64
                  %s281 = scalar_lea.vmem %s142, %s279
                  %s282 = scalar_lea.vmem %s134, %s280 [#allocation2]
                $region63: #{convnet_forward.3} parent=57 // loop_footer
                  %s270 = sadd.s32 %s268, 1
                $region64: #{convnet_forward.3} parent=57 // loop_footer_branch
                  %267 = sbr.rel target = $region60
                $region65: #{convnet_forward.3} parent=57 // loop_exit
                  _
                %s283 = sshrl.u32 %s138, 4
                %s284 = sand.u32 %s138, 15
                %s285 = smul.u32 %s283, 16
                %s286 = smul.u32 4, %s285
                %s287 = scalar_lea.vmem %s142, %s286
                %s288 = smul.u32 4, %s285
                %s289 = scalar_lea.vmem %s134, %s288 [#allocation2]
                // While loop
                $region66: #{convnet_forward.3} parent=57 // loop_pre_header
                  _
                $region67: #{convnet_forward.3} parent=57 // loop_header
                  %s291 = sphi 0, %s293
                  %p292 = scmp.ge.s32.totalorder %s291, %s284
                  %s296 = sphi 0, %s301
                  %s297 = sphi %s287, %s304
                  %s298 = sphi %s289, %s305
                $region68: #{convnet_forward.3} parent=57 // loop_header_branch
                  %295 = sbr.rel (%p292) target = $region72
                $region69: #{convnet_forward.3} parent=57 // loop_body
                  %s299 = sadd.s32 1, %s296
                  %p300 = scmp.ge.s32.totalorder %s299, %s284
                  %s301 = scalar_select %p300, 0, %s299
                  %s302 = smul.u32 %s301, 4
                  %s303 = smul.u32 %s301, 4
                  %s304 = scalar_lea.vmem %s287, %s302
                  %s305 = scalar_lea.vmem %s289, %s303 [#allocation2]
                $region70: #{convnet_forward.3} parent=57 // loop_footer
                  %s293 = sadd.s32 %s291, 1
                $region71: #{convnet_forward.3} parent=57 // loop_footer_branch
                  %290 = sbr.rel target = $region67
                $region72: #{convnet_forward.3} parent=57 // loop_exit
                  _
                %s307 = ssub.s32 16, 1
                %s308 = sshrl.u32 %s138, 3
                // While loop
                $region73: #{convnet_forward.3} parent=57 // loop_pre_header
                  _
                $region74: #{convnet_forward.3} parent=57 // loop_header
                  %s310 = sphi 0, %s312
                  %p311 = scmp.ge.s32.totalorder %s310, %s308
                  %s315 = sphi 0, %s384
                  %s316 = sphi %s142, %s387
                  %s317 = sphi %s134, %s388
                $region75: #{convnet_forward.3} parent=57 // loop_header_branch
                  %314 = sbr.rel (%p311) target = $region79
                $region76: #{convnet_forward.3} parent=57 // loop_body
                  %v318 = vld [vmem:[%s316] sm:%s307]
                  %319 = vst [vmem:[%s317] sm:%s307] %v318
                  %v320 = vld [vmem:[%s316 + $0x4] sm:%s307]
                  %321 = vst [vmem:[%s317 + $0x4] sm:%s307] %v320
                  %v322 = vld [vmem:[%s316 + $0x8] sm:%s307]
                  %323 = vst [vmem:[%s317 + $0x8] sm:%s307] %v322
                  %v324 = vld [vmem:[%s316 + $0xc] sm:%s307]
                  %325 = vst [vmem:[%s317 + $0xc] sm:%s307] %v324
                  %v326 = vld [vmem:[%s316 + $0x10] sm:%s307]
                  %327 = vst [vmem:[%s317 + $0x10] sm:%s307] %v326
                  %v328 = vld [vmem:[%s316 + $0x14] sm:%s307]
                  %329 = vst [vmem:[%s317 + $0x14] sm:%s307] %v328
                  %v330 = vld [vmem:[%s316 + $0x18] sm:%s307]
                  %331 = vst [vmem:[%s317 + $0x18] sm:%s307] %v330
                  %v332 = vld [vmem:[%s316 + $0x1c] sm:%s307]
                  %333 = vst [vmem:[%s317 + $0x1c] sm:%s307] %v332
                  %v334 = vld [vmem:[%s316 + $0xc4] sm:%s307]
                  %335 = vst [vmem:[%s317 + $0x64] sm:%s307] %v334
                  %v336 = vld [vmem:[%s316 + $0xc8] sm:%s307]
                  %337 = vst [vmem:[%s317 + $0x68] sm:%s307] %v336
                  %v338 = vld [vmem:[%s316 + $0xcc] sm:%s307]
                  %339 = vst [vmem:[%s317 + $0x6c] sm:%s307] %v338
                  %v340 = vld [vmem:[%s316 + $0xd0] sm:%s307]
                  %341 = vst [vmem:[%s317 + $0x70] sm:%s307] %v340
                  %v342 = vld [vmem:[%s316 + $0xd4] sm:%s307]
                  %343 = vst [vmem:[%s317 + $0x74] sm:%s307] %v342
                  %v344 = vld [vmem:[%s316 + $0xd8] sm:%s307]
                  %345 = vst [vmem:[%s317 + $0x78] sm:%s307] %v344
                  %v346 = vld [vmem:[%s316 + $0xdc] sm:%s307]
                  %347 = vst [vmem:[%s317 + $0x7c] sm:%s307] %v346
                  %v348 = vld [vmem:[%s316 + $0xe0] sm:%s307]
                  %349 = vst [vmem:[%s317 + $0x80] sm:%s307] %v348
                  %v350 = vld [vmem:[%s316 + $0x188] sm:%s307]
                  %351 = vst [vmem:[%s317 + $0xc8] sm:%s307] %v350
                  %v352 = vld [vmem:[%s316 + $0x18c] sm:%s307]
                  %353 = vst [vmem:[%s317 + $0xcc] sm:%s307] %v352
                  %v354 = vld [vmem:[%s316 + $0x190] sm:%s307]
                  %355 = vst [vmem:[%s317 + $0xd0] sm:%s307] %v354
                  %v356 = vld [vmem:[%s316 + $0x194] sm:%s307]
                  %357 = vst [vmem:[%s317 + $0xd4] sm:%s307] %v356
                  %v358 = vld [vmem:[%s316 + $0x198] sm:%s307]
                  %359 = vst [vmem:[%s317 + $0xd8] sm:%s307] %v358
                  %v360 = vld [vmem:[%s316 + $0x19c] sm:%s307]
                  %361 = vst [vmem:[%s317 + $0xdc] sm:%s307] %v360
                  %v362 = vld [vmem:[%s316 + $0x1a0] sm:%s307]
                  %363 = vst [vmem:[%s317 + $0xe0] sm:%s307] %v362
                  %v364 = vld [vmem:[%s316 + $0x1a4] sm:%s307]
                  %365 = vst [vmem:[%s317 + $0xe4] sm:%s307] %v364
                  %v366 = vld [vmem:[%s316 + $0x24c] sm:%s307]
                  %367 = vst [vmem:[%s317 + $0x12c] sm:%s307] %v366
                  %v368 = vld [vmem:[%s316 + $0x250] sm:%s307]
                  %369 = vst [vmem:[%s317 + $0x130] sm:%s307] %v368
                  %v370 = vld [vmem:[%s316 + $0x254] sm:%s307]
                  %371 = vst [vmem:[%s317 + $0x134] sm:%s307] %v370
                  %v372 = vld [vmem:[%s316 + $0x258] sm:%s307]
                  %373 = vst [vmem:[%s317 + $0x138] sm:%s307] %v372
                  %v374 = vld [vmem:[%s316 + $0x25c] sm:%s307]
                  %375 = vst [vmem:[%s317 + $0x13c] sm:%s307] %v374
                  %v376 = vld [vmem:[%s316 + $0x260] sm:%s307]
                  %377 = vst [vmem:[%s317 + $0x140] sm:%s307] %v376
                  %v378 = vld [vmem:[%s316 + $0x264] sm:%s307]
                  %379 = vst [vmem:[%s317 + $0x144] sm:%s307] %v378
                  %v380 = vld [vmem:[%s316 + $0x268] sm:%s307]
                  %381 = vst [vmem:[%s317 + $0x148] sm:%s307] %v380
                  %s382 = sadd.s32 1, %s315
                  %p383 = scmp.ge.s32.totalorder %s382, %s308
                  %s384 = scalar_select %p383, 0, %s382
                  %s385 = smul.u32 %s384, 32
                  %s386 = smul.u32 %s384, 32
                  %s387 = scalar_lea.vmem %s142, %s385
                  %s388 = scalar_lea.vmem %s134, %s386 [#allocation2]
                $region77: #{convnet_forward.3} parent=57 // loop_footer
                  %s312 = sadd.s32 %s310, 1
                $region78: #{convnet_forward.3} parent=57 // loop_footer_branch
                  %309 = sbr.rel target = $region74
                $region79: #{convnet_forward.3} parent=57 // loop_exit
                  _
                %s389 = sshrl.u32 %s138, 3
                %s390 = sand.u32 %s138, 7
                %s391 = smul.u32 %s389, 8
                %s392 = smul.u32 4, %s391
                %s393 = scalar_lea.vmem %s142, %s392
                %s394 = smul.u32 4, %s391
                %s395 = scalar_lea.vmem %s134, %s394 [#allocation2]
                // While loop
                $region80: #{convnet_forward.3} parent=57 // loop_pre_header
                  _
                $region81: #{convnet_forward.3} parent=57 // loop_header
                  %s397 = sphi 0, %s399
                  %p398 = scmp.ge.s32.totalorder %s397, %s390
                  %s402 = sphi 0, %s415
                  %s403 = sphi %s393, %s418
                  %s404 = sphi %s395, %s419
                $region82: #{convnet_forward.3} parent=57 // loop_header_branch
                  %401 = sbr.rel (%p398) target = $region86
                $region83: #{convnet_forward.3} parent=57 // loop_body
                  %v405 = vld [vmem:[%s403] sm:%s307]
                  %406 = vst [vmem:[%s404] sm:%s307] %v405
                  %v407 = vld [vmem:[%s403 + $0xc4] sm:%s307]
                  %408 = vst [vmem:[%s404 + $0x64] sm:%s307] %v407
                  %v409 = vld [vmem:[%s403 + $0x188] sm:%s307]
                  %410 = vst [vmem:[%s404 + $0xc8] sm:%s307] %v409
                  %v411 = vld [vmem:[%s403 + $0x24c] sm:%s307]
                  %412 = vst [vmem:[%s404 + $0x12c] sm:%s307] %v411
                  %s413 = sadd.s32 1, %s402
                  %p414 = scmp.ge.s32.totalorder %s413, %s390
                  %s415 = scalar_select %p414, 0, %s413
                  %s416 = smul.u32 %s415, 4
                  %s417 = smul.u32 %s415, 4
                  %s418 = scalar_lea.vmem %s393, %s416
                  %s419 = scalar_lea.vmem %s395, %s417 [#allocation2]
                $region84: #{convnet_forward.3} parent=57 // loop_footer
                  %s399 = sadd.s32 %s397, 1
                $region85: #{convnet_forward.3} parent=57 // loop_footer_branch
                  %396 = sbr.rel target = $region81
                $region86: #{convnet_forward.3} parent=57 // loop_exit
                  _
              $region58: #{convnet_forward.3} parent=35 // pred_fallthru
                _
            $region36: #{convnet_forward.3} parent=31 // pred_fallthru
              _
            // Predicated region
            $region37: #{convnet_forward.3} parent=31 // pred_check
              _
            $region38: #{convnet_forward.3} parent=31 // pred_check_branch
              %149 = sbr.rel (0) target = $region40
            $region39: #{convnet_forward.3} parent=31 // pred_region
              %s151 = ssub.s32 16, 1
              %s152 = sshrl.u32 %s138, 3
              // While loop
              $region41: #{convnet_forward.3} parent=39 // loop_pre_header
                _
              $region42: #{convnet_forward.3} parent=39 // loop_header
                %s154 = sphi 0, %s156
                %p155 = scmp.ge.s32.totalorder %s154, %s152
                %s159 = sphi 0, %s228
                %s160 = sphi %s142, %s231
                %s161 = sphi %s134, %s232
              $region43: #{convnet_forward.3} parent=39 // loop_header_branch
                %158 = sbr.rel (%p155) target = $region47
              $region44: #{convnet_forward.3} parent=39 // loop_body
                %v162 = vld [vmem:[%s160] sm:%s151]
                %163 = vst [vmem:[%s161] sm:%s151] %v162
                %v164 = vld [vmem:[%s160 + $0x4] sm:%s151]
                %165 = vst [vmem:[%s161 + $0x4] sm:%s151] %v164
                %v166 = vld [vmem:[%s160 + $0x8] sm:%s151]
                %167 = vst [vmem:[%s161 + $0x8] sm:%s151] %v166
                %v168 = vld [vmem:[%s160 + $0xc] sm:%s151]
                %169 = vst [vmem:[%s161 + $0xc] sm:%s151] %v168
                %v170 = vld [vmem:[%s160 + $0x10] sm:%s151]
                %171 = vst [vmem:[%s161 + $0x10] sm:%s151] %v170
                %v172 = vld [vmem:[%s160 + $0x14] sm:%s151]
                %173 = vst [vmem:[%s161 + $0x14] sm:%s151] %v172
                %v174 = vld [vmem:[%s160 + $0x18] sm:%s151]
                %175 = vst [vmem:[%s161 + $0x18] sm:%s151] %v174
                %v176 = vld [vmem:[%s160 + $0x1c] sm:%s151]
                %177 = vst [vmem:[%s161 + $0x1c] sm:%s151] %v176
                %v178 = vld [vmem:[%s160 + $0xc4] sm:%s151]
                %179 = vst [vmem:[%s161 + $0x64] sm:%s151] %v178
                %v180 = vld [vmem:[%s160 + $0xc8] sm:%s151]
                %181 = vst [vmem:[%s161 + $0x68] sm:%s151] %v180
                %v182 = vld [vmem:[%s160 + $0xcc] sm:%s151]
                %183 = vst [vmem:[%s161 + $0x6c] sm:%s151] %v182
                %v184 = vld [vmem:[%s160 + $0xd0] sm:%s151]
                %185 = vst [vmem:[%s161 + $0x70] sm:%s151] %v184
                %v186 = vld [vmem:[%s160 + $0xd4] sm:%s151]
                %187 = vst [vmem:[%s161 + $0x74] sm:%s151] %v186
                %v188 = vld [vmem:[%s160 + $0xd8] sm:%s151]
                %189 = vst [vmem:[%s161 + $0x78] sm:%s151] %v188
                %v190 = vld [vmem:[%s160 + $0xdc] sm:%s151]
                %191 = vst [vmem:[%s161 + $0x7c] sm:%s151] %v190
                %v192 = vld [vmem:[%s160 + $0xe0] sm:%s151]
                %193 = vst [vmem:[%s161 + $0x80] sm:%s151] %v192
                %v194 = vld [vmem:[%s160 + $0x188] sm:%s151]
                %195 = vst [vmem:[%s161 + $0xc8] sm:%s151] %v194
                %v196 = vld [vmem:[%s160 + $0x18c] sm:%s151]
                %197 = vst [vmem:[%s161 + $0xcc] sm:%s151] %v196
                %v198 = vld [vmem:[%s160 + $0x190] sm:%s151]
                %199 = vst [vmem:[%s161 + $0xd0] sm:%s151] %v198
                %v200 = vld [vmem:[%s160 + $0x194] sm:%s151]
                %201 = vst [vmem:[%s161 + $0xd4] sm:%s151] %v200
                %v202 = vld [vmem:[%s160 + $0x198] sm:%s151]
                %203 = vst [vmem:[%s161 + $0xd8] sm:%s151] %v202
                %v204 = vld [vmem:[%s160 + $0x19c] sm:%s151]
                %205 = vst [vmem:[%s161 + $0xdc] sm:%s151] %v204
                %v206 = vld [vmem:[%s160 + $0x1a0] sm:%s151]
                %207 = vst [vmem:[%s161 + $0xe0] sm:%s151] %v206
                %v208 = vld [vmem:[%s160 + $0x1a4] sm:%s151]
                %209 = vst [vmem:[%s161 + $0xe4] sm:%s151] %v208
                %v210 = vld [vmem:[%s160 + $0x24c] sm:%s151]
                %211 = vst [vmem:[%s161 + $0x12c] sm:%s151] %v210
                %v212 = vld [vmem:[%s160 + $0x250] sm:%s151]
                %213 = vst [vmem:[%s161 + $0x130] sm:%s151] %v212
                %v214 = vld [vmem:[%s160 + $0x254] sm:%s151]
                %215 = vst [vmem:[%s161 + $0x134] sm:%s151] %v214
                %v216 = vld [vmem:[%s160 + $0x258] sm:%s151]
                %217 = vst [vmem:[%s161 + $0x138] sm:%s151] %v216
                %v218 = vld [vmem:[%s160 + $0x25c] sm:%s151]
                %219 = vst [vmem:[%s161 + $0x13c] sm:%s151] %v218
                %v220 = vld [vmem:[%s160 + $0x260] sm:%s151]
                %221 = vst [vmem:[%s161 + $0x140] sm:%s151] %v220
                %v222 = vld [vmem:[%s160 + $0x264] sm:%s151]
                %223 = vst [vmem:[%s161 + $0x144] sm:%s151] %v222
                %v224 = vld [vmem:[%s160 + $0x268] sm:%s151]
                %225 = vst [vmem:[%s161 + $0x148] sm:%s151] %v224
                %s226 = sadd.s32 1, %s159
                %p227 = scmp.ge.s32.totalorder %s226, %s152
                %s228 = scalar_select %p227, 0, %s226
                %s229 = smul.u32 %s228, 32
                %s230 = smul.u32 %s228, 32
                %s231 = scalar_lea.vmem %s142, %s229
                %s232 = scalar_lea.vmem %s134, %s230 [#allocation2]
              $region45: #{convnet_forward.3} parent=39 // loop_footer
                %s156 = sadd.s32 %s154, 1
              $region46: #{convnet_forward.3} parent=39 // loop_footer_branch
                %153 = sbr.rel target = $region42
              $region47: #{convnet_forward.3} parent=39 // loop_exit
                _
              %s233 = sshrl.u32 %s138, 3
              %s234 = sand.u32 %s138, 7
              %s235 = smul.u32 %s233, 8
              %s236 = smul.u32 4, %s235
              %s237 = scalar_lea.vmem %s142, %s236
              %s238 = smul.u32 4, %s235
              %s239 = scalar_lea.vmem %s134, %s238 [#allocation2]
              // While loop
              $region48: #{convnet_forward.3} parent=39 // loop_pre_header
                _
              $region49: #{convnet_forward.3} parent=39 // loop_header
                %s241 = sphi 0, %s243
                %p242 = scmp.ge.s32.totalorder %s241, %s234
                %s246 = sphi 0, %s259
                %s247 = sphi %s237, %s262
                %s248 = sphi %s239, %s263
              $region50: #{convnet_forward.3} parent=39 // loop_header_branch
                %245 = sbr.rel (%p242) target = $region54
              $region51: #{convnet_forward.3} parent=39 // loop_body
                %v249 = vld [vmem:[%s247] sm:%s151]
                %250 = vst [vmem:[%s248] sm:%s151] %v249
                %v251 = vld [vmem:[%s247 + $0xc4] sm:%s151]
                %252 = vst [vmem:[%s248 + $0x64] sm:%s151] %v251
                %v253 = vld [vmem:[%s247 + $0x188] sm:%s151]
                %254 = vst [vmem:[%s248 + $0xc8] sm:%s151] %v253
                %v255 = vld [vmem:[%s247 + $0x24c] sm:%s151]
                %256 = vst [vmem:[%s248 + $0x12c] sm:%s151] %v255
                %s257 = sadd.s32 1, %s246
                %p258 = scmp.ge.s32.totalorder %s257, %s234
                %s259 = scalar_select %p258, 0, %s257
                %s260 = smul.u32 %s259, 4
                %s261 = smul.u32 %s259, 4
                %s262 = scalar_lea.vmem %s237, %s260
                %s263 = scalar_lea.vmem %s239, %s261 [#allocation2]
              $region52: #{convnet_forward.3} parent=39 // loop_footer
                %s243 = sadd.s32 %s241, 1
              $region53: #{convnet_forward.3} parent=39 // loop_footer_branch
                %240 = sbr.rel target = $region49
              $region54: #{convnet_forward.3} parent=39 // loop_exit
                _
            $region40: #{convnet_forward.3} parent=31 // pred_fallthru
              _
          $region32: #{convnet_forward.3} parent=27 // pred_fallthru
            _
          %420 = vnop
        $region28: #{convnet_forward.3} parent=23 // pred_fallthru
          _
      $region24: #{convnet_forward.3} parent=5 // pred_fallthru
        _
      %p421 = scmp.le.s32.totalorder 1, %s9
      %p422 = scmp.lt.s32.totalorder %s9, 3
      %p423 = pnand %p421, %p422
      %p424 = pneg %p423
      // Predicated region
      $region87: #{convnet_forward.3} parent=5 // pred_check
        _
      $region88: #{convnet_forward.3} parent=5 // pred_check_branch
        %426 = sbr.rel (%p423) target = $region90
      $region89: #{convnet_forward.3} parent=5 // pred_region
        %s427 = ssub.s32 %s9, 1
        %s428 = sand.u32 %s22, 1
        %s429 = sand.u32 %s22, 1
        %s430 = smul.addr %s429, 400
        %s431 = scalar_lea.vmem [#allocation2], %s430
        // Predicated region
        $region91: #{convnet_forward.3} parent=89 // pred_check
          %p432 = pneg %p35
        $region92: #{convnet_forward.3} parent=89 // pred_check_branch
          %434 = sbr.rel (%p432) target = $region94
        $region93: #{convnet_forward.3} parent=89 // pred_region
          _
        $region94: #{convnet_forward.3} parent=89 // pred_fallthru
          _
        %s435 = sand.u32 %s22, 1
        %s436 = sand.u32 %s22, 1
        %s437 = smul.addr %s436, 400
        %s438 = scalar_lea.vmem [#allocation2], %s437
        %p439 = pneg %p35
        %p440 = pneg %p32
        %p441 = pneg %p56
        %p442 = pneg %p53
        %p443 = pneg %p77
        %p444 = pneg %p74
        %p445 = pneg %p103
        %p446 = pneg %p100
        %s447 = sand.u32 %s90, 1
        %s448 = sand.u32 %s90, 1
        %s449 = smul.addr %s448, 100
        %s450 = scalar_lea.vmem [#allocation3], %s449
        %s451 = smul.u32 25, %s14
        %s452 = ssub.s32 49, %s451
        %p453 = scmp.lt.s32.totalorder %s452, 25
        %s454 = scalar_select %p453, %s452, 25
        %s455 = smul.u32 16, %s454
        %s456 = smul.u32 25, %s14
        %s457 = ssub.s32 49, %s456
        %p458 = scmp.lt.s32.totalorder %s457, 25
        %s459 = scalar_select %p458, %s457, 25
        %s460 = smul.u32 4, %s459
        %v462 = vld [vmem:[%s431] sm:$0xf]
        %v463 = vld [vmem:[%s431 + $0x4] sm:$0xf]
        %v464 = vld [vmem:[%s431 + $0x8] sm:$0xf]
        %v465 = vld [vmem:[%s431 + $0xc] sm:$0xf]
        %v466 = vld [vmem:[%s431 + $0x10] sm:$0xf]
        %v467 = vld [vmem:[%s431 + $0x14] sm:$0xf]
        %v468 = vld [vmem:[%s431 + $0x18] sm:$0xf]
        %v469 = vld [vmem:[%s431 + $0x1c] sm:$0xf]
        %v470 = vld [vmem:[%s431 + $0x20] sm:$0xf]
        %v471 = vld [vmem:[%s431 + $0x24] sm:$0xf]
        %v472 = vld [vmem:[%s431 + $0x28] sm:$0xf]
        %v473 = vld [vmem:[%s431 + $0x2c] sm:$0xf]
        %v474 = vld [vmem:[%s431 + $0x30] sm:$0xf]
        %v475 = vld [vmem:[%s431 + $0x34] sm:$0xf]
        %v476 = vld [vmem:[%s431 + $0x38] sm:$0xf]
        %v477 = vld [vmem:[%s431 + $0x3c] sm:$0xf]
        %v478 = vld [vmem:[%s431 + $0x40] sm:$0xf]
        %v479 = vld [vmem:[%s431 + $0x44] sm:$0xf]
        %v480 = vld [vmem:[%s431 + $0x48] sm:$0xf]
        %v481 = vld [vmem:[%s431 + $0x4c] sm:$0xf]
        %v482 = vld [vmem:[%s431 + $0x50] sm:$0xf]
        %v483 = vld [vmem:[%s431 + $0x54] sm:$0xf]
        %v484 = vld [vmem:[%s431 + $0x58] sm:$0xf]
        %v485 = vld [vmem:[%s431 + $0x5c] sm:$0xf]
        %v486 = vld [vmem:[%s431 + $0x60] sm:$0xf]
        %v487 = vld [vmem:[%s1] sm:$0xf]
        %v488 = vld [vmem:[%s1 + $0x4] sm:$0xf]
        %v489 = vld [vmem:[%s1 + $0x8] sm:$0xf]
        %v490 = vld [vmem:[%s1 + $0xc] sm:$0xf]
        %v491 = vld [vmem:[%s2] sm:$0x1]
        %v493 = vperm.slane %v491, 0
        %v520 = vunpack.c.l.b16 %v462
        %v521 = vunpack.c.l.b16 %v463
        %v522 = vunpack.c.l.b16 %v464
        %v523 = vunpack.c.l.b16 %v465
        %v524 = vunpack.c.l.b16 %v466
        %v525 = vunpack.c.l.b16 %v467
        %v526 = vunpack.c.l.b16 %v468
        %v527 = vunpack.c.l.b16 %v469
        %v528 = vunpack.c.l.b16 %v470
        %v529 = vunpack.c.l.b16 %v471
        %v530 = vunpack.c.l.b16 %v472
        %v531 = vunpack.c.l.b16 %v473
        %v532 = vunpack.c.l.b16 %v474
        %v533 = vunpack.c.l.b16 %v475
        %v534 = vunpack.c.l.b16 %v476
        %v535 = vunpack.c.l.b16 %v477
        %v536 = vunpack.c.l.b16 %v478
        %v537 = vunpack.c.l.b16 %v479
        %v538 = vunpack.c.l.b16 %v480
        %v539 = vunpack.c.l.b16 %v481
        %v540 = vunpack.c.l.b16 %v482
        %v541 = vunpack.c.l.b16 %v483
        %v542 = vunpack.c.l.b16 %v484
        %v543 = vunpack.c.l.b16 %v485
        %v544 = vunpack.c.l.b16 %v486
        %v545 = vpack.c.b16 %v521, %v520
        %v546 = vpack.c.b16 %v523, %v522
        %v547 = vpack.c.b16 %v525, %v524
        %v548 = vpack.c.b16 %v527, %v526
        %v549 = vpack.c.b16 %v529, %v528
        %v550 = vpack.c.b16 %v531, %v530
        %v551 = vpack.c.b16 %v533, %v532
        %v552 = vpack.c.b16 %v535, %v534
        %v553 = vpack.c.b16 %v537, %v536
        %v554 = vpack.c.b16 %v539, %v538
        %v555 = vpack.c.b16 %v541, %v540
        %v556 = vpack.c.b16 %v543, %v542
        %v557 = vpack.c.b16 %v544, %v544
        %v562 = vunpack.c.l.b16 %v487
        %v563 = vunpack.c.l.b16 %v488
        %v564 = vunpack.c.l.b16 %v489
        %v565 = vunpack.c.l.b16 %v490
        %v566 = vpack.c.b16 %v563, %v562
        %v567 = vpack.c.b16 %v565, %v564
        %vm570 = vcmask 261120
        %v572 = vsel %vm570, %v545, 0
        %v575 = vsel %vm570, %v546, 0
        %v578 = vsel %vm570, %v547, 0
        %v581 = vsel %vm570, %v548, 0
        %v584 = vsel %vm570, %v549, 0
        %v587 = vsel %vm570, %v550, 0
        %v590 = vsel %vm570, %v551, 0
        %v593 = vsel %vm570, %v552, 0
        %v596 = vsel %vm570, %v553, 0
        %v599 = vsel %vm570, %v554, 0
        %v602 = vsel %vm570, %v555, 0
        %v605 = vsel %vm570, %v556, 0
        %v608 = vsel %vm570, %v557, 0
        %610 = vmatpush.bf16.msra.mxu0 0
        %611 = vmatpush.bf16.msra.mxu0 0
        %612 = vmatpush.bf16.msra.mxu0 0
        %613 = vmatpush.bf16.msra.mxu0 0
        %614 = vmatpush.bf16.msra.mxu0 0
        %615 = vmatpush.bf16.msra.mxu0 0
        %616 = vmatpush.bf16.msra.mxu0 %v567
        %617 = vmatpush.bf16.msra.mxu0 %v566
        %618 = vmatmul.bf16.gmra.mxu0 %v572
        %v619 = vpop.f32.mrf.mxu0
        %v620 = vadd.f32 %v493, %v619
        %v621 = vpop.f32.mrf.mxu0
        %v622 = vadd.f32 %v493, %v621
        %623 = vmatmul.bf16.gmra.mxu0 %v575
        %v624 = vpop.f32.mrf.mxu0
        %v625 = vadd.f32 %v493, %v624
        %v626 = vpop.f32.mrf.mxu0
        %v627 = vadd.f32 %v493, %v626
        %628 = vmatmul.bf16.gmra.mxu0 %v578
        %v629 = vpop.f32.mrf.mxu0
        %v630 = vadd.f32 %v493, %v629
        %v631 = vpop.f32.mrf.mxu0
        %v632 = vadd.f32 %v493, %v631
        %633 = vmatmul.bf16.gmra.mxu0 %v581
        %v634 = vpop.f32.mrf.mxu0
        %v635 = vadd.f32 %v493, %v634
        %v636 = vpop.f32.mrf.mxu0
        %v637 = vadd.f32 %v493, %v636
        %638 = vmatmul.bf16.gmra.mxu0 %v584
        %v639 = vpop.f32.mrf.mxu0
        %v640 = vadd.f32 %v493, %v639
        %v641 = vpop.f32.mrf.mxu0
        %v642 = vadd.f32 %v493, %v641
        %643 = vmatmul.bf16.gmra.mxu0 %v587
        %v644 = vpop.f32.mrf.mxu0
        %v645 = vadd.f32 %v493, %v644
        %v646 = vpop.f32.mrf.mxu0
        %v647 = vadd.f32 %v493, %v646
        %648 = vmatmul.bf16.gmra.mxu0 %v590
        %v649 = vpop.f32.mrf.mxu0
        %v650 = vadd.f32 %v493, %v649
        %v651 = vpop.f32.mrf.mxu0
        %v652 = vadd.f32 %v493, %v651
        %653 = vmatmul.bf16.gmra.mxu0 %v593
        %v654 = vpop.f32.mrf.mxu0
        %v655 = vadd.f32 %v493, %v654
        %v656 = vpop.f32.mrf.mxu0
        %v657 = vadd.f32 %v493, %v656
        %658 = vmatmul.bf16.gmra.mxu0 %v596
        %v659 = vpop.f32.mrf.mxu0
        %v660 = vadd.f32 %v493, %v659
        %v661 = vpop.f32.mrf.mxu0
        %v662 = vadd.f32 %v493, %v661
        %663 = vmatmul.bf16.gmra.mxu0 %v599
        %v664 = vpop.f32.mrf.mxu0
        %v665 = vadd.f32 %v493, %v664
        %v666 = vpop.f32.mrf.mxu0
        %v667 = vadd.f32 %v493, %v666
        %668 = vmatmul.bf16.gmra.mxu0 %v602
        %v669 = vpop.f32.mrf.mxu0
        %v670 = vadd.f32 %v493, %v669
        %v671 = vpop.f32.mrf.mxu0
        %v672 = vadd.f32 %v493, %v671
        %673 = vmatmul.bf16.gmra.mxu0 %v605
        %v674 = vpop.f32.mrf.mxu0
        %v675 = vadd.f32 %v493, %v674
        %v676 = vpop.f32.mrf.mxu0
        %v677 = vadd.f32 %v493, %v676
        %678 = vmatmul.bf16.gmra.mxu0 %v608
        %v679 = vpop.f32.mrf.mxu0
        %v680 = vadd.f32 %v493, %v679
        %v681 = vpop.f32.mrf.mxu0
        %682 = vdwg.mxu0
        %v683 = vmax.f32 %v620, 0.0
        %v684 = vmax.f32 %v622, 0.0
        %v685 = vmax.f32 %v625, 0.0
        %v686 = vmax.f32 %v627, 0.0
        %v687 = vmax.f32 %v630, 0.0
        %v688 = vmax.f32 %v632, 0.0
        %v689 = vmax.f32 %v635, 0.0
        %v690 = vmax.f32 %v637, 0.0
        %v691 = vmax.f32 %v640, 0.0
        %v692 = vmax.f32 %v642, 0.0
        %v693 = vmax.f32 %v645, 0.0
        %v694 = vmax.f32 %v647, 0.0
        %v695 = vmax.f32 %v650, 0.0
        %v696 = vmax.f32 %v652, 0.0
        %v697 = vmax.f32 %v655, 0.0
        %v698 = vmax.f32 %v657, 0.0
        %v699 = vmax.f32 %v660, 0.0
        %v700 = vmax.f32 %v662, 0.0
        %v701 = vmax.f32 %v665, 0.0
        %v702 = vmax.f32 %v667, 0.0
        %v703 = vmax.f32 %v670, 0.0
        %v704 = vmax.f32 %v672, 0.0
        %v705 = vmax.f32 %v675, 0.0
        %v706 = vmax.f32 %v677, 0.0
        %v707 = vmax.f32 %v680, 0.0
        %s708 = scalar_lea.vmem %s431, 100 [#allocation2]
        %v709 = vld [vmem:[%s708] sm:$0xf]
        %v710 = vld [vmem:[%s708 + $0x4] sm:$0xf]
        %v711 = vld [vmem:[%s708 + $0x8] sm:$0xf]
        %v712 = vld [vmem:[%s708 + $0xc] sm:$0xf]
        %v713 = vld [vmem:[%s708 + $0x10] sm:$0xf]
        %v714 = vld [vmem:[%s708 + $0x14] sm:$0xf]
        %v715 = vld [vmem:[%s708 + $0x18] sm:$0xf]
        %v716 = vld [vmem:[%s708 + $0x1c] sm:$0xf]
        %v717 = vld [vmem:[%s708 + $0x20] sm:$0xf]
        %v718 = vld [vmem:[%s708 + $0x24] sm:$0xf]
        %v719 = vld [vmem:[%s708 + $0x28] sm:$0xf]
        %v720 = vld [vmem:[%s708 + $0x2c] sm:$0xf]
        %v721 = vld [vmem:[%s708 + $0x30] sm:$0xf]
        %v722 = vld [vmem:[%s708 + $0x34] sm:$0xf]
        %v723 = vld [vmem:[%s708 + $0x38] sm:$0xf]
        %v724 = vld [vmem:[%s708 + $0x3c] sm:$0xf]
        %v725 = vld [vmem:[%s708 + $0x40] sm:$0xf]
        %v726 = vld [vmem:[%s708 + $0x44] sm:$0xf]
        %v727 = vld [vmem:[%s708 + $0x48] sm:$0xf]
        %v728 = vld [vmem:[%s708 + $0x4c] sm:$0xf]
        %v729 = vld [vmem:[%s708 + $0x50] sm:$0xf]
        %v730 = vld [vmem:[%s708 + $0x54] sm:$0xf]
        %v731 = vld [vmem:[%s708 + $0x58] sm:$0xf]
        %v732 = vld [vmem:[%s708 + $0x5c] sm:$0xf]
        %v733 = vld [vmem:[%s708 + $0x60] sm:$0xf]
        %v759 = vunpack.c.l.b16 %v709
        %v760 = vunpack.c.l.b16 %v710
        %v761 = vunpack.c.l.b16 %v711
        %v762 = vunpack.c.l.b16 %v712
        %v763 = vunpack.c.l.b16 %v713
        %v764 = vunpack.c.l.b16 %v714
        %v765 = vunpack.c.l.b16 %v715
        %v766 = vunpack.c.l.b16 %v716
        %v767 = vunpack.c.l.b16 %v717
        %v768 = vunpack.c.l.b16 %v718
        %v769 = vunpack.c.l.b16 %v719
        %v770 = vunpack.c.l.b16 %v720
        %v771 = vunpack.c.l.b16 %v721
        %v772 = vunpack.c.l.b16 %v722
        %v773 = vunpack.c.l.b16 %v723
        %v774 = vunpack.c.l.b16 %v724
        %v775 = vunpack.c.l.b16 %v725
        %v776 = vunpack.c.l.b16 %v726
        %v777 = vunpack.c.l.b16 %v727
        %v778 = vunpack.c.l.b16 %v728
        %v779 = vunpack.c.l.b16 %v729
        %v780 = vunpack.c.l.b16 %v730
        %v781 = vunpack.c.l.b16 %v731
        %v782 = vunpack.c.l.b16 %v732
        %v783 = vunpack.c.l.b16 %v733
        %v784 = vpack.c.b16 %v760, %v759
        %v785 = vpack.c.b16 %v762, %v761
        %v786 = vpack.c.b16 %v764, %v763
        %v787 = vpack.c.b16 %v766, %v765
        %v788 = vpack.c.b16 %v768, %v767
        %v789 = vpack.c.b16 %v770, %v769
        %v790 = vpack.c.b16 %v772, %v771
        %v791 = vpack.c.b16 %v774, %v773
        %v792 = vpack.c.b16 %v776, %v775
        %v793 = vpack.c.b16 %v778, %v777
        %v794 = vpack.c.b16 %v780, %v779
        %v795 = vpack.c.b16 %v782, %v781
        %v796 = vpack.c.b16 %v783, %v783
        %v798 = vsel %vm570, %v784, 0
        %v801 = vsel %vm570, %v785, 0
        %v804 = vsel %vm570, %v786, 0
        %v807 = vsel %vm570, %v787, 0
        %v810 = vsel %vm570, %v788, 0
        %v813 = vsel %vm570, %v789, 0
        %v816 = vsel %vm570, %v790, 0
        %v819 = vsel %vm570, %v791, 0
        %v822 = vsel %vm570, %v792, 0
        %v825 = vsel %vm570, %v793, 0
        %v828 = vsel %vm570, %v794, 0
        %v831 = vsel %vm570, %v795, 0
        %v834 = vsel %vm570, %v796, 0
        %836 = vmatpush.bf16.msra.mxu0 0
        %837 = vmatpush.bf16.msra.mxu0 0
        %838 = vmatpush.bf16.msra.mxu0 0
        %839 = vmatpush.bf16.msra.mxu0 0
        %840 = vmatpush.bf16.msra.mxu0 0
        %841 = vmatpush.bf16.msra.mxu0 0
        %842 = vmatpush.bf16.msra.mxu0 %v567
        %843 = vmatpush.bf16.msra.mxu0 %v566
        %844 = vmatmul.bf16.gmra.mxu0 %v798
        %v845 = vpop.f32.mrf.mxu0
        %v846 = vadd.f32 %v493, %v845
        %v847 = vpop.f32.mrf.mxu0
        %v848 = vadd.f32 %v493, %v847
        %849 = vmatmul.bf16.gmra.mxu0 %v801
        %v850 = vpop.f32.mrf.mxu0
        %v851 = vadd.f32 %v493, %v850
        %v852 = vpop.f32.mrf.mxu0
        %v853 = vadd.f32 %v493, %v852
        %854 = vmatmul.bf16.gmra.mxu0 %v804
        %v855 = vpop.f32.mrf.mxu0
        %v856 = vadd.f32 %v493, %v855
        %v857 = vpop.f32.mrf.mxu0
        %v858 = vadd.f32 %v493, %v857
        %859 = vmatmul.bf16.gmra.mxu0 %v807
        %v860 = vpop.f32.mrf.mxu0
        %v861 = vadd.f32 %v493, %v860
        %v862 = vpop.f32.mrf.mxu0
        %v863 = vadd.f32 %v493, %v862
        %864 = vmatmul.bf16.gmra.mxu0 %v810
        %v865 = vpop.f32.mrf.mxu0
        %v866 = vadd.f32 %v493, %v865
        %v867 = vpop.f32.mrf.mxu0
        %v868 = vadd.f32 %v493, %v867
        %869 = vmatmul.bf16.gmra.mxu0 %v813
        %v870 = vpop.f32.mrf.mxu0
        %v871 = vadd.f32 %v493, %v870
        %v872 = vpop.f32.mrf.mxu0
        %v873 = vadd.f32 %v493, %v872
        %874 = vmatmul.bf16.gmra.mxu0 %v816
        %v875 = vpop.f32.mrf.mxu0
        %v876 = vadd.f32 %v493, %v875
        %v877 = vpop.f32.mrf.mxu0
        %v878 = vadd.f32 %v493, %v877
        %879 = vmatmul.bf16.gmra.mxu0 %v819
        %v880 = vpop.f32.mrf.mxu0
        %v881 = vadd.f32 %v493, %v880
        %v882 = vpop.f32.mrf.mxu0
        %v883 = vadd.f32 %v493, %v882
        %884 = vmatmul.bf16.gmra.mxu0 %v822
        %v885 = vpop.f32.mrf.mxu0
        %v886 = vadd.f32 %v493, %v885
        %v887 = vpop.f32.mrf.mxu0
        %v888 = vadd.f32 %v493, %v887
        %889 = vmatmul.bf16.gmra.mxu0 %v825
        %v890 = vpop.f32.mrf.mxu0
        %v891 = vadd.f32 %v493, %v890
        %v892 = vpop.f32.mrf.mxu0
        %v893 = vadd.f32 %v493, %v892
        %894 = vmatmul.bf16.gmra.mxu0 %v828
        %v895 = vpop.f32.mrf.mxu0
        %v896 = vadd.f32 %v493, %v895
        %v897 = vpop.f32.mrf.mxu0
        %v898 = vadd.f32 %v493, %v897
        %899 = vmatmul.bf16.gmra.mxu0 %v831
        %v900 = vpop.f32.mrf.mxu0
        %v901 = vadd.f32 %v493, %v900
        %v902 = vpop.f32.mrf.mxu0
        %v903 = vadd.f32 %v493, %v902
        %904 = vmatmul.bf16.gmra.mxu0 %v834
        %v905 = vpop.f32.mrf.mxu0
        %v906 = vadd.f32 %v493, %v905
        %v907 = vpop.f32.mrf.mxu0
        %908 = vdwg.mxu0
        %v909 = vmax.f32 %v846, 0.0
        %v910 = vmax.f32 %v848, 0.0
        %v911 = vmax.f32 %v851, 0.0
        %v912 = vmax.f32 %v853, 0.0
        %v913 = vmax.f32 %v856, 0.0
        %v914 = vmax.f32 %v858, 0.0
        %v915 = vmax.f32 %v861, 0.0
        %v916 = vmax.f32 %v863, 0.0
        %v917 = vmax.f32 %v866, 0.0
        %v918 = vmax.f32 %v868, 0.0
        %v919 = vmax.f32 %v871, 0.0
        %v920 = vmax.f32 %v873, 0.0
        %v921 = vmax.f32 %v876, 0.0
        %v922 = vmax.f32 %v878, 0.0
        %v923 = vmax.f32 %v881, 0.0
        %v924 = vmax.f32 %v883, 0.0
        %v925 = vmax.f32 %v886, 0.0
        %v926 = vmax.f32 %v888, 0.0
        %v927 = vmax.f32 %v891, 0.0
        %v928 = vmax.f32 %v893, 0.0
        %v929 = vmax.f32 %v896, 0.0
        %v930 = vmax.f32 %v898, 0.0
        %v931 = vmax.f32 %v901, 0.0
        %v932 = vmax.f32 %v903, 0.0
        %v933 = vmax.f32 %v906, 0.0
        %v934 = vmax.f32 %v683, %v909
        %v935 = vmax.f32 %v684, %v910
        %v936 = vmax.f32 %v685, %v911
        %v937 = vmax.f32 %v686, %v912
        %v938 = vmax.f32 %v687, %v913
        %v939 = vmax.f32 %v688, %v914
        %v940 = vmax.f32 %v689, %v915
        %v941 = vmax.f32 %v690, %v916
        %v942 = vmax.f32 %v691, %v917
        %v943 = vmax.f32 %v692, %v918
        %v944 = vmax.f32 %v693, %v919
        %v945 = vmax.f32 %v694, %v920
        %v946 = vmax.f32 %v695, %v921
        %v947 = vmax.f32 %v696, %v922
        %v948 = vmax.f32 %v697, %v923
        %v949 = vmax.f32 %v698, %v924
        %v950 = vmax.f32 %v699, %v925
        %v951 = vmax.f32 %v700, %v926
        %v952 = vmax.f32 %v701, %v927
        %v953 = vmax.f32 %v702, %v928
        %v954 = vmax.f32 %v703, %v929
        %v955 = vmax.f32 %v704, %v930
        %v956 = vmax.f32 %v705, %v931
        %v957 = vmax.f32 %v706, %v932
        %v958 = vmax.f32 %v707, %v933
        %s959 = scalar_lea.vmem %s431, 200 [#allocation2]
        %v960 = vld [vmem:[%s959] sm:$0xf]
        %v961 = vld [vmem:[%s959 + $0x4] sm:$0xf]
        %v962 = vld [vmem:[%s959 + $0x8] sm:$0xf]
        %v963 = vld [vmem:[%s959 + $0xc] sm:$0xf]
        %v964 = vld [vmem:[%s959 + $0x10] sm:$0xf]
        %v965 = vld [vmem:[%s959 + $0x14] sm:$0xf]
        %v966 = vld [vmem:[%s959 + $0x18] sm:$0xf]
        %v967 = vld [vmem:[%s959 + $0x1c] sm:$0xf]
        %v968 = vld [vmem:[%s959 + $0x20] sm:$0xf]
        %v969 = vld [vmem:[%s959 + $0x24] sm:$0xf]
        %v970 = vld [vmem:[%s959 + $0x28] sm:$0xf]
        %v971 = vld [vmem:[%s959 + $0x2c] sm:$0xf]
        %v972 = vld [vmem:[%s959 + $0x30] sm:$0xf]
        %v973 = vld [vmem:[%s959 + $0x34] sm:$0xf]
        %v974 = vld [vmem:[%s959 + $0x38] sm:$0xf]
        %v975 = vld [vmem:[%s959 + $0x3c] sm:$0xf]
        %v976 = vld [vmem:[%s959 + $0x40] sm:$0xf]
        %v977 = vld [vmem:[%s959 + $0x44] sm:$0xf]
        %v978 = vld [vmem:[%s959 + $0x48] sm:$0xf]
        %v979 = vld [vmem:[%s959 + $0x4c] sm:$0xf]
        %v980 = vld [vmem:[%s959 + $0x50] sm:$0xf]
        %v981 = vld [vmem:[%s959 + $0x54] sm:$0xf]
        %v982 = vld [vmem:[%s959 + $0x58] sm:$0xf]
        %v983 = vld [vmem:[%s959 + $0x5c] sm:$0xf]
        %v984 = vld [vmem:[%s959 + $0x60] sm:$0xf]
        %v1010 = vunpack.c.l.b16 %v960
        %v1011 = vunpack.c.l.b16 %v961
        %v1012 = vunpack.c.l.b16 %v962
        %v1013 = vunpack.c.l.b16 %v963
        %v1014 = vunpack.c.l.b16 %v964
        %v1015 = vunpack.c.l.b16 %v965
        %v1016 = vunpack.c.l.b16 %v966
        %v1017 = vunpack.c.l.b16 %v967
        %v1018 = vunpack.c.l.b16 %v968
        %v1019 = vunpack.c.l.b16 %v969
        %v1020 = vunpack.c.l.b16 %v970
        %v1021 = vunpack.c.l.b16 %v971
        %v1022 = vunpack.c.l.b16 %v972
        %v1023 = vunpack.c.l.b16 %v973
        %v1024 = vunpack.c.l.b16 %v974
        %v1025 = vunpack.c.l.b16 %v975
        %v1026 = vunpack.c.l.b16 %v976
        %v1027 = vunpack.c.l.b16 %v977
        %v1028 = vunpack.c.l.b16 %v978
        %v1029 = vunpack.c.l.b16 %v979
        %v1030 = vunpack.c.l.b16 %v980
        %v1031 = vunpack.c.l.b16 %v981
        %v1032 = vunpack.c.l.b16 %v982
        %v1033 = vunpack.c.l.b16 %v983
        %v1034 = vunpack.c.l.b16 %v984
        %v1035 = vpack.c.b16 %v1011, %v1010
        %v1036 = vpack.c.b16 %v1013, %v1012
        %v1037 = vpack.c.b16 %v1015, %v1014
        %v1038 = vpack.c.b16 %v1017, %v1016
        %v1039 = vpack.c.b16 %v1019, %v1018
        %v1040 = vpack.c.b16 %v1021, %v1020
        %v1041 = vpack.c.b16 %v1023, %v1022
        %v1042 = vpack.c.b16 %v1025, %v1024
        %v1043 = vpack.c.b16 %v1027, %v1026
        %v1044 = vpack.c.b16 %v1029, %v1028
        %v1045 = vpack.c.b16 %v1031, %v1030
        %v1046 = vpack.c.b16 %v1033, %v1032
        %v1047 = vpack.c.b16 %v1034, %v1034
        %v1049 = vsel %vm570, %v1035, 0
        %v1052 = vsel %vm570, %v1036, 0
        %v1055 = vsel %vm570, %v1037, 0
        %v1058 = vsel %vm570, %v1038, 0
        %v1061 = vsel %vm570, %v1039, 0
        %v1064 = vsel %vm570, %v1040, 0
        %v1067 = vsel %vm570, %v1041, 0
        %v1070 = vsel %vm570, %v1042, 0
        %v1073 = vsel %vm570, %v1043, 0
        %v1076 = vsel %vm570, %v1044, 0
        %v1079 = vsel %vm570, %v1045, 0
        %v1082 = vsel %vm570, %v1046, 0
        %v1085 = vsel %vm570, %v1047, 0
        %1087 = vmatpush.bf16.msra.mxu0 0
        %1088 = vmatpush.bf16.msra.mxu0 0
        %1089 = vmatpush.bf16.msra.mxu0 0
        %1090 = vmatpush.bf16.msra.mxu0 0
        %1091 = vmatpush.bf16.msra.mxu0 0
        %1092 = vmatpush.bf16.msra.mxu0 0
        %1093 = vmatpush.bf16.msra.mxu0 %v567
        %1094 = vmatpush.bf16.msra.mxu0 %v566
        %1095 = vmatmul.bf16.gmra.mxu0 %v1049
        %v1096 = vpop.f32.mrf.mxu0
        %v1097 = vadd.f32 %v493, %v1096
        %v1098 = vpop.f32.mrf.mxu0
        %v1099 = vadd.f32 %v493, %v1098
        %1100 = vmatmul.bf16.gmra.mxu0 %v1052
        %v1101 = vpop.f32.mrf.mxu0
        %v1102 = vadd.f32 %v493, %v1101
        %v1103 = vpop.f32.mrf.mxu0
        %v1104 = vadd.f32 %v493, %v1103
        %1105 = vmatmul.bf16.gmra.mxu0 %v1055
        %v1106 = vpop.f32.mrf.mxu0
        %v1107 = vadd.f32 %v493, %v1106
        %v1108 = vpop.f32.mrf.mxu0
        %v1109 = vadd.f32 %v493, %v1108
        %1110 = vmatmul.bf16.gmra.mxu0 %v1058
        %v1111 = vpop.f32.mrf.mxu0
        %v1112 = vadd.f32 %v493, %v1111
        %v1113 = vpop.f32.mrf.mxu0
        %v1114 = vadd.f32 %v493, %v1113
        %1115 = vmatmul.bf16.gmra.mxu0 %v1061
        %v1116 = vpop.f32.mrf.mxu0
        %v1117 = vadd.f32 %v493, %v1116
        %v1118 = vpop.f32.mrf.mxu0
        %v1119 = vadd.f32 %v493, %v1118
        %1120 = vmatmul.bf16.gmra.mxu0 %v1064
        %v1121 = vpop.f32.mrf.mxu0
        %v1122 = vadd.f32 %v493, %v1121
        %v1123 = vpop.f32.mrf.mxu0
        %v1124 = vadd.f32 %v493, %v1123
        %1125 = vmatmul.bf16.gmra.mxu0 %v1067
        %v1126 = vpop.f32.mrf.mxu0
        %v1127 = vadd.f32 %v493, %v1126
        %v1128 = vpop.f32.mrf.mxu0
        %v1129 = vadd.f32 %v493, %v1128
        %1130 = vmatmul.bf16.gmra.mxu0 %v1070
        %v1131 = vpop.f32.mrf.mxu0
        %v1132 = vadd.f32 %v493, %v1131
        %v1133 = vpop.f32.mrf.mxu0
        %v1134 = vadd.f32 %v493, %v1133
        %1135 = vmatmul.bf16.gmra.mxu0 %v1073
        %v1136 = vpop.f32.mrf.mxu0
        %v1137 = vadd.f32 %v493, %v1136
        %v1138 = vpop.f32.mrf.mxu0
        %v1139 = vadd.f32 %v493, %v1138
        %1140 = vmatmul.bf16.gmra.mxu0 %v1076
        %v1141 = vpop.f32.mrf.mxu0
        %v1142 = vadd.f32 %v493, %v1141
        %v1143 = vpop.f32.mrf.mxu0
        %v1144 = vadd.f32 %v493, %v1143
        %1145 = vmatmul.bf16.gmra.mxu0 %v1079
        %v1146 = vpop.f32.mrf.mxu0
        %v1147 = vadd.f32 %v493, %v1146
        %v1148 = vpop.f32.mrf.mxu0
        %v1149 = vadd.f32 %v493, %v1148
        %1150 = vmatmul.bf16.gmra.mxu0 %v1082
        %v1151 = vpop.f32.mrf.mxu0
        %v1152 = vadd.f32 %v493, %v1151
        %v1153 = vpop.f32.mrf.mxu0
        %v1154 = vadd.f32 %v493, %v1153
        %1155 = vmatmul.bf16.gmra.mxu0 %v1085
        %v1156 = vpop.f32.mrf.mxu0
        %v1157 = vadd.f32 %v493, %v1156
        %v1158 = vpop.f32.mrf.mxu0
        %1159 = vdwg.mxu0
        %v1160 = vmax.f32 %v1097, 0.0
        %v1161 = vmax.f32 %v1099, 0.0
        %v1162 = vmax.f32 %v1102, 0.0
        %v1163 = vmax.f32 %v1104, 0.0
        %v1164 = vmax.f32 %v1107, 0.0
        %v1165 = vmax.f32 %v1109, 0.0
        %v1166 = vmax.f32 %v1112, 0.0
        %v1167 = vmax.f32 %v1114, 0.0
        %v1168 = vmax.f32 %v1117, 0.0
        %v1169 = vmax.f32 %v1119, 0.0
        %v1170 = vmax.f32 %v1122, 0.0
        %v1171 = vmax.f32 %v1124, 0.0
        %v1172 = vmax.f32 %v1127, 0.0
        %v1173 = vmax.f32 %v1129, 0.0
        %v1174 = vmax.f32 %v1132, 0.0
        %v1175 = vmax.f32 %v1134, 0.0
        %v1176 = vmax.f32 %v1137, 0.0
        %v1177 = vmax.f32 %v1139, 0.0
        %v1178 = vmax.f32 %v1142, 0.0
        %v1179 = vmax.f32 %v1144, 0.0
        %v1180 = vmax.f32 %v1147, 0.0
        %v1181 = vmax.f32 %v1149, 0.0
        %v1182 = vmax.f32 %v1152, 0.0
        %v1183 = vmax.f32 %v1154, 0.0
        %v1184 = vmax.f32 %v1157, 0.0
        %v1185 = vmax.f32 %v934, %v1160
        %v1186 = vmax.f32 %v935, %v1161
        %v1187 = vmax.f32 %v936, %v1162
        %v1188 = vmax.f32 %v937, %v1163
        %v1189 = vmax.f32 %v938, %v1164
        %v1190 = vmax.f32 %v939, %v1165
        %v1191 = vmax.f32 %v940, %v1166
        %v1192 = vmax.f32 %v941, %v1167
        %v1193 = vmax.f32 %v942, %v1168
        %v1194 = vmax.f32 %v943, %v1169
        %v1195 = vmax.f32 %v944, %v1170
        %v1196 = vmax.f32 %v945, %v1171
        %v1197 = vmax.f32 %v946, %v1172
        %v1198 = vmax.f32 %v947, %v1173
        %v1199 = vmax.f32 %v948, %v1174
        %v1200 = vmax.f32 %v949, %v1175
        %v1201 = vmax.f32 %v950, %v1176
        %v1202 = vmax.f32 %v951, %v1177
        %v1203 = vmax.f32 %v952, %v1178
        %v1204 = vmax.f32 %v953, %v1179
        %v1205 = vmax.f32 %v954, %v1180
        %v1206 = vmax.f32 %v955, %v1181
        %v1207 = vmax.f32 %v956, %v1182
        %v1208 = vmax.f32 %v957, %v1183
        %v1209 = vmax.f32 %v958, %v1184
        %s1210 = scalar_lea.vmem %s431, 300 [#allocation2]
        %v1211 = vld [vmem:[%s1210] sm:$0xf]
        %v1212 = vld [vmem:[%s1210 + $0x4] sm:$0xf]
        %v1213 = vld [vmem:[%s1210 + $0x8] sm:$0xf]
        %v1214 = vld [vmem:[%s1210 + $0xc] sm:$0xf]
        %v1215 = vld [vmem:[%s1210 + $0x10] sm:$0xf]
        %v1216 = vld [vmem:[%s1210 + $0x14] sm:$0xf]
        %v1217 = vld [vmem:[%s1210 + $0x18] sm:$0xf]
        %v1218 = vld [vmem:[%s1210 + $0x1c] sm:$0xf]
        %v1219 = vld [vmem:[%s1210 + $0x20] sm:$0xf]
        %v1220 = vld [vmem:[%s1210 + $0x24] sm:$0xf]
        %v1221 = vld [vmem:[%s1210 + $0x28] sm:$0xf]
        %v1222 = vld [vmem:[%s1210 + $0x2c] sm:$0xf]
        %v1223 = vld [vmem:[%s1210 + $0x30] sm:$0xf]
        %v1224 = vld [vmem:[%s1210 + $0x34] sm:$0xf]
        %v1225 = vld [vmem:[%s1210 + $0x38] sm:$0xf]
        %v1226 = vld [vmem:[%s1210 + $0x3c] sm:$0xf]
        %v1227 = vld [vmem:[%s1210 + $0x40] sm:$0xf]
        %v1228 = vld [vmem:[%s1210 + $0x44] sm:$0xf]
        %v1229 = vld [vmem:[%s1210 + $0x48] sm:$0xf]
        %v1230 = vld [vmem:[%s1210 + $0x4c] sm:$0xf]
        %v1231 = vld [vmem:[%s1210 + $0x50] sm:$0xf]
        %v1232 = vld [vmem:[%s1210 + $0x54] sm:$0xf]
        %v1233 = vld [vmem:[%s1210 + $0x58] sm:$0xf]
        %v1234 = vld [vmem:[%s1210 + $0x5c] sm:$0xf]
        %v1235 = vld [vmem:[%s1210 + $0x60] sm:$0xf]
        %v1261 = vunpack.c.l.b16 %v1211
        %v1262 = vunpack.c.l.b16 %v1212
        %v1263 = vunpack.c.l.b16 %v1213
        %v1264 = vunpack.c.l.b16 %v1214
        %v1265 = vunpack.c.l.b16 %v1215
        %v1266 = vunpack.c.l.b16 %v1216
        %v1267 = vunpack.c.l.b16 %v1217
        %v1268 = vunpack.c.l.b16 %v1218
        %v1269 = vunpack.c.l.b16 %v1219
        %v1270 = vunpack.c.l.b16 %v1220
        %v1271 = vunpack.c.l.b16 %v1221
        %v1272 = vunpack.c.l.b16 %v1222
        %v1273 = vunpack.c.l.b16 %v1223
        %v1274 = vunpack.c.l.b16 %v1224
        %v1275 = vunpack.c.l.b16 %v1225
        %v1276 = vunpack.c.l.b16 %v1226
        %v1277 = vunpack.c.l.b16 %v1227
        %v1278 = vunpack.c.l.b16 %v1228
        %v1279 = vunpack.c.l.b16 %v1229
        %v1280 = vunpack.c.l.b16 %v1230
        %v1281 = vunpack.c.l.b16 %v1231
        %v1282 = vunpack.c.l.b16 %v1232
        %v1283 = vunpack.c.l.b16 %v1233
        %v1284 = vunpack.c.l.b16 %v1234
        %v1285 = vunpack.c.l.b16 %v1235
        %v1286 = vpack.c.b16 %v1262, %v1261
        %v1287 = vpack.c.b16 %v1264, %v1263
        %v1288 = vpack.c.b16 %v1266, %v1265
        %v1289 = vpack.c.b16 %v1268, %v1267
        %v1290 = vpack.c.b16 %v1270, %v1269
        %v1291 = vpack.c.b16 %v1272, %v1271
        %v1292 = vpack.c.b16 %v1274, %v1273
        %v1293 = vpack.c.b16 %v1276, %v1275
        %v1294 = vpack.c.b16 %v1278, %v1277
        %v1295 = vpack.c.b16 %v1280, %v1279
        %v1296 = vpack.c.b16 %v1282, %v1281
        %v1297 = vpack.c.b16 %v1284, %v1283
        %v1298 = vpack.c.b16 %v1285, %v1285
        %v1300 = vsel %vm570, %v1286, 0
        %v1303 = vsel %vm570, %v1287, 0
        %v1306 = vsel %vm570, %v1288, 0
        %v1309 = vsel %vm570, %v1289, 0
        %v1312 = vsel %vm570, %v1290, 0
        %v1315 = vsel %vm570, %v1291, 0
        %v1318 = vsel %vm570, %v1292, 0
        %v1321 = vsel %vm570, %v1293, 0
        %v1324 = vsel %vm570, %v1294, 0
        %v1327 = vsel %vm570, %v1295, 0
        %v1330 = vsel %vm570, %v1296, 0
        %v1333 = vsel %vm570, %v1297, 0
        %v1336 = vsel %vm570, %v1298, 0
        %1338 = vmatpush.bf16.msra.mxu0 0
        %1339 = vmatpush.bf16.msra.mxu0 0
        %1340 = vmatpush.bf16.msra.mxu0 0
        %1341 = vmatpush.bf16.msra.mxu0 0
        %1342 = vmatpush.bf16.msra.mxu0 0
        %1343 = vmatpush.bf16.msra.mxu0 0
        %1344 = vmatpush.bf16.msra.mxu0 %v567
        %1345 = vmatpush.bf16.msra.mxu0 %v566
        %1346 = vmatmul.bf16.gmra.mxu0 %v1300
        %v1347 = vpop.f32.mrf.mxu0
        %v1348 = vadd.f32 %v493, %v1347
        %v1349 = vpop.f32.mrf.mxu0
        %v1350 = vadd.f32 %v493, %v1349
        %1351 = vmatmul.bf16.gmra.mxu0 %v1303
        %v1352 = vpop.f32.mrf.mxu0
        %v1353 = vadd.f32 %v493, %v1352
        %v1354 = vpop.f32.mrf.mxu0
        %v1355 = vadd.f32 %v493, %v1354
        %1356 = vmatmul.bf16.gmra.mxu0 %v1306
        %v1357 = vpop.f32.mrf.mxu0
        %v1358 = vadd.f32 %v493, %v1357
        %v1359 = vpop.f32.mrf.mxu0
        %v1360 = vadd.f32 %v493, %v1359
        %1361 = vmatmul.bf16.gmra.mxu0 %v1309
        %v1362 = vpop.f32.mrf.mxu0
        %v1363 = vadd.f32 %v493, %v1362
        %v1364 = vpop.f32.mrf.mxu0
        %v1365 = vadd.f32 %v493, %v1364
        %1366 = vmatmul.bf16.gmra.mxu0 %v1312
        %v1367 = vpop.f32.mrf.mxu0
        %v1368 = vadd.f32 %v493, %v1367
        %v1369 = vpop.f32.mrf.mxu0
        %v1370 = vadd.f32 %v493, %v1369
        %1371 = vmatmul.bf16.gmra.mxu0 %v1315
        %v1372 = vpop.f32.mrf.mxu0
        %v1373 = vadd.f32 %v493, %v1372
        %v1374 = vpop.f32.mrf.mxu0
        %v1375 = vadd.f32 %v493, %v1374
        %1376 = vmatmul.bf16.gmra.mxu0 %v1318
        %v1377 = vpop.f32.mrf.mxu0
        %v1378 = vadd.f32 %v493, %v1377
        %v1379 = vpop.f32.mrf.mxu0
        %v1380 = vadd.f32 %v493, %v1379
        %1381 = vmatmul.bf16.gmra.mxu0 %v1321
        %v1382 = vpop.f32.mrf.mxu0
        %v1383 = vadd.f32 %v493, %v1382
        %v1384 = vpop.f32.mrf.mxu0
        %v1385 = vadd.f32 %v493, %v1384
        %1386 = vmatmul.bf16.gmra.mxu0 %v1324
        %v1387 = vpop.f32.mrf.mxu0
        %v1388 = vadd.f32 %v493, %v1387
        %v1389 = vpop.f32.mrf.mxu0
        %v1390 = vadd.f32 %v493, %v1389
        %1391 = vmatmul.bf16.gmra.mxu0 %v1327
        %v1392 = vpop.f32.mrf.mxu0
        %v1393 = vadd.f32 %v493, %v1392
        %v1394 = vpop.f32.mrf.mxu0
        %v1395 = vadd.f32 %v493, %v1394
        %1396 = vmatmul.bf16.gmra.mxu0 %v1330
        %v1397 = vpop.f32.mrf.mxu0
        %v1398 = vadd.f32 %v493, %v1397
        %v1399 = vpop.f32.mrf.mxu0
        %v1400 = vadd.f32 %v493, %v1399
        %1401 = vmatmul.bf16.gmra.mxu0 %v1333
        %v1402 = vpop.f32.mrf.mxu0
        %v1403 = vadd.f32 %v493, %v1402
        %v1404 = vpop.f32.mrf.mxu0
        %v1405 = vadd.f32 %v493, %v1404
        %1406 = vmatmul.bf16.gmra.mxu0 %v1336
        %v1407 = vpop.f32.mrf.mxu0
        %v1408 = vadd.f32 %v493, %v1407
        %v1409 = vpop.f32.mrf.mxu0
        %1410 = vdwg.mxu0
        %v1411 = vmax.f32 %v1348, 0.0
        %v1412 = vmax.f32 %v1350, 0.0
        %v1413 = vmax.f32 %v1353, 0.0
        %v1414 = vmax.f32 %v1355, 0.0
        %v1415 = vmax.f32 %v1358, 0.0
        %v1416 = vmax.f32 %v1360, 0.0
        %v1417 = vmax.f32 %v1363, 0.0
        %v1418 = vmax.f32 %v1365, 0.0
        %v1419 = vmax.f32 %v1368, 0.0
        %v1420 = vmax.f32 %v1370, 0.0
        %v1421 = vmax.f32 %v1373, 0.0
        %v1422 = vmax.f32 %v1375, 0.0
        %v1423 = vmax.f32 %v1378, 0.0
        %v1424 = vmax.f32 %v1380, 0.0
        %v1425 = vmax.f32 %v1383, 0.0
        %v1426 = vmax.f32 %v1385, 0.0
        %v1427 = vmax.f32 %v1388, 0.0
        %v1428 = vmax.f32 %v1390, 0.0
        %v1429 = vmax.f32 %v1393, 0.0
        %v1430 = vmax.f32 %v1395, 0.0
        %v1431 = vmax.f32 %v1398, 0.0
        %v1432 = vmax.f32 %v1400, 0.0
        %v1433 = vmax.f32 %v1403, 0.0
        %v1434 = vmax.f32 %v1405, 0.0
        %v1435 = vmax.f32 %v1408, 0.0
        %v1436 = vmax.f32 %v1185, %v1411
        %v1437 = vmax.f32 %v1186, %v1412
        %v1438 = vmax.f32 %v1187, %v1413
        %v1439 = vmax.f32 %v1188, %v1414
        %v1440 = vmax.f32 %v1189, %v1415
        %v1441 = vmax.f32 %v1190, %v1416
        %v1442 = vmax.f32 %v1191, %v1417
        %v1443 = vmax.f32 %v1192, %v1418
        %v1444 = vmax.f32 %v1193, %v1419
        %v1445 = vmax.f32 %v1194, %v1420
        %v1446 = vmax.f32 %v1195, %v1421
        %v1447 = vmax.f32 %v1196, %v1422
        %v1448 = vmax.f32 %v1197, %v1423
        %v1449 = vmax.f32 %v1198, %v1424
        %v1450 = vmax.f32 %v1199, %v1425
        %v1451 = vmax.f32 %v1200, %v1426
        %v1452 = vmax.f32 %v1201, %v1427
        %v1453 = vmax.f32 %v1202, %v1428
        %v1454 = vmax.f32 %v1203, %v1429
        %v1455 = vmax.f32 %v1204, %v1430
        %v1456 = vmax.f32 %v1205, %v1431
        %v1457 = vmax.f32 %v1206, %v1432
        %v1458 = vmax.f32 %v1207, %v1433
        %v1459 = vmax.f32 %v1208, %v1434
        %v1460 = vmax.f32 %v1209, %v1435
        %v1461 = vpack.c.bf16 %v1436, %v1436
        %v1462 = vpack.c.bf16 %v1437, %v1437
        %v1463 = vpack.c.bf16 %v1438, %v1438
        %v1464 = vpack.c.bf16 %v1439, %v1439
        %v1465 = vpack.c.bf16 %v1440, %v1440
        %v1466 = vpack.c.bf16 %v1441, %v1441
        %v1467 = vpack.c.bf16 %v1442, %v1442
        %v1468 = vpack.c.bf16 %v1443, %v1443
        %v1469 = vpack.c.bf16 %v1444, %v1444
        %v1470 = vpack.c.bf16 %v1445, %v1445
        %v1471 = vpack.c.bf16 %v1446, %v1446
        %v1472 = vpack.c.bf16 %v1447, %v1447
        %v1473 = vpack.c.bf16 %v1448, %v1448
        %v1474 = vpack.c.bf16 %v1449, %v1449
        %v1475 = vpack.c.bf16 %v1450, %v1450
        %v1476 = vpack.c.bf16 %v1451, %v1451
        %v1477 = vpack.c.bf16 %v1452, %v1452
        %v1478 = vpack.c.bf16 %v1453, %v1453
        %v1479 = vpack.c.bf16 %v1454, %v1454
        %v1480 = vpack.c.bf16 %v1455, %v1455
        %v1481 = vpack.c.bf16 %v1456, %v1456
        %v1482 = vpack.c.bf16 %v1457, %v1457
        %v1483 = vpack.c.bf16 %v1458, %v1458
        %v1484 = vpack.c.bf16 %v1459, %v1459
        %v1485 = vpack.c.bf16 %v1460, %v1460
        %1486 = vst [vmem:[%s450] sm:$0xf] %v1461
        %1487 = vst [vmem:[%s450 + $0x4] sm:$0xf] %v1462
        %1488 = vst [vmem:[%s450 + $0x8] sm:$0xf] %v1463
        %1489 = vst [vmem:[%s450 + $0xc] sm:$0xf] %v1464
        %1490 = vst [vmem:[%s450 + $0x10] sm:$0xf] %v1465
        %1491 = vst [vmem:[%s450 + $0x14] sm:$0xf] %v1466
        %1492 = vst [vmem:[%s450 + $0x18] sm:$0xf] %v1467
        %1493 = vst [vmem:[%s450 + $0x1c] sm:$0xf] %v1468
        %1494 = vst [vmem:[%s450 + $0x20] sm:$0xf] %v1469
        %1495 = vst [vmem:[%s450 + $0x24] sm:$0xf] %v1470
        %1496 = vst [vmem:[%s450 + $0x28] sm:$0xf] %v1471
        %1497 = vst [vmem:[%s450 + $0x2c] sm:$0xf] %v1472
        %1498 = vst [vmem:[%s450 + $0x30] sm:$0xf] %v1473
        %1499 = vst [vmem:[%s450 + $0x34] sm:$0xf] %v1474
        %1500 = vst [vmem:[%s450 + $0x38] sm:$0xf] %v1475
        %1501 = vst [vmem:[%s450 + $0x3c] sm:$0xf] %v1476
        %1502 = vst [vmem:[%s450 + $0x40] sm:$0xf] %v1477
        %1503 = vst [vmem:[%s450 + $0x44] sm:$0xf] %v1478
        %1504 = vst [vmem:[%s450 + $0x48] sm:$0xf] %v1479
        %1505 = vst [vmem:[%s450 + $0x4c] sm:$0xf] %v1480
        %1506 = vst [vmem:[%s450 + $0x50] sm:$0xf] %v1481
        %1507 = vst [vmem:[%s450 + $0x54] sm:$0xf] %v1482
        %1508 = vst [vmem:[%s450 + $0x58] sm:$0xf] %v1483
        %1509 = vst [vmem:[%s450 + $0x5c] sm:$0xf] %v1484
        %1510 = vst [vmem:[%s450 + $0x60] sm:$0xf] %v1485
        %s1511 = sand.u32 %s90, 1
        %s1512 = sand.u32 %s90, 1
        %s1513 = smul.addr %s1512, 100
        %s1514 = scalar_lea.vmem [#allocation3], %s1513
        // Predicated region
        $region95: #{convnet_forward.3} parent=89 // pred_check
          %p1515 = pneg %p100
        $region96: #{convnet_forward.3} parent=89 // pred_check_branch
          %1517 = sbr.rel (%p1515) target = $region98
        $region97: #{convnet_forward.3} parent=89 // pred_region
          %s1518 = smul.u32 25, %s14
          %s1519 = ssub.s32 49, %s1518
          %p1520 = scmp.lt.s32.totalorder %s1519, 25
          %s1521 = scalar_select %p1520, %s1519, 25
          %s1522 = smul.u32 4, %s1521
          %p1523 = scmp.ne.s32.totalorder 0, %s1522
          %s1524 = smul.addr %s1518, 4
          %s1525 = scalar_lea.vmem %s3, %s1524
          // Predicated region
          $region99: #{convnet_forward.3} parent=97 // pred_check
            %p1526 = pneg %p1523
          $region100: #{convnet_forward.3} parent=97 // pred_check_branch
            %1528 = sbr.rel (%p1526) target = $region102
          $region101: #{convnet_forward.3} parent=97 // pred_region
            // Predicated region
            $region103: #{convnet_forward.3} parent=101 // pred_check
              _
            $region104: #{convnet_forward.3} parent=101 // pred_check_branch
              %1530 = sbr.rel target = $region106
            $region105: #{convnet_forward.3} parent=101 // pred_region
              // Predicated region
              $region125: #{convnet_forward.3} parent=105 // pred_check
                _
              $region126: #{convnet_forward.3} parent=105 // pred_check_branch
                %1629 = sbr.rel (0) target = $region128
              $region127: #{convnet_forward.3} parent=105 // pred_region
                %s1631 = ssub.s32 16, 1
                %s1632 = sdiv.u32.pop %s1521, 25
                %s1633 = srem.u32.pop %s1521, 25
                // While loop
                $region129: #{convnet_forward.3} parent=127 // loop_pre_header
                  _
                $region130: #{convnet_forward.3} parent=127 // loop_header
                  %s1635 = sphi 0, %s1637
                  %p1636 = scmp.ge.s32.totalorder %s1635, %s1632
                  %s1640 = sphi 0, %s1695
                  %s1641 = sphi %s1514, %s1698
                  %s1642 = sphi %s1525, %s1699
                $region131: #{convnet_forward.3} parent=127 // loop_header_branch
                  %1639 = sbr.rel (%p1636) target = $region135
                $region132: #{convnet_forward.3} parent=127 // loop_body
                  %v1643 = vld [vmem:[%s1641] sm:%s1631]
                  %1644 = vst [vmem:[%s1642] sm:%s1631] %v1643
                  %v1645 = vld [vmem:[%s1641 + $0x4] sm:%s1631]
                  %1646 = vst [vmem:[%s1642 + $0x4] sm:%s1631] %v1645
                  %v1647 = vld [vmem:[%s1641 + $0x8] sm:%s1631]
                  %1648 = vst [vmem:[%s1642 + $0x8] sm:%s1631] %v1647
                  %v1649 = vld [vmem:[%s1641 + $0xc] sm:%s1631]
                  %1650 = vst [vmem:[%s1642 + $0xc] sm:%s1631] %v1649
                  %v1651 = vld [vmem:[%s1641 + $0x10] sm:%s1631]
                  %1652 = vst [vmem:[%s1642 + $0x10] sm:%s1631] %v1651
                  %v1653 = vld [vmem:[%s1641 + $0x14] sm:%s1631]
                  %1654 = vst [vmem:[%s1642 + $0x14] sm:%s1631] %v1653
                  %v1655 = vld [vmem:[%s1641 + $0x18] sm:%s1631]
                  %1656 = vst [vmem:[%s1642 + $0x18] sm:%s1631] %v1655
                  %v1657 = vld [vmem:[%s1641 + $0x1c] sm:%s1631]
                  %1658 = vst [vmem:[%s1642 + $0x1c] sm:%s1631] %v1657
                  %v1659 = vld [vmem:[%s1641 + $0x20] sm:%s1631]
                  %1660 = vst [vmem:[%s1642 + $0x20] sm:%s1631] %v1659
                  %v1661 = vld [vmem:[%s1641 + $0x24] sm:%s1631]
                  %1662 = vst [vmem:[%s1642 + $0x24] sm:%s1631] %v1661
                  %v1663 = vld [vmem:[%s1641 + $0x28] sm:%s1631]
                  %1664 = vst [vmem:[%s1642 + $0x28] sm:%s1631] %v1663
                  %v1665 = vld [vmem:[%s1641 + $0x2c] sm:%s1631]
                  %1666 = vst [vmem:[%s1642 + $0x2c] sm:%s1631] %v1665
                  %v1667 = vld [vmem:[%s1641 + $0x30] sm:%s1631]
                  %1668 = vst [vmem:[%s1642 + $0x30] sm:%s1631] %v1667
                  %v1669 = vld [vmem:[%s1641 + $0x34] sm:%s1631]
                  %1670 = vst [vmem:[%s1642 + $0x34] sm:%s1631] %v1669
                  %v1671 = vld [vmem:[%s1641 + $0x38] sm:%s1631]
                  %1672 = vst [vmem:[%s1642 + $0x38] sm:%s1631] %v1671
                  %v1673 = vld [vmem:[%s1641 + $0x3c] sm:%s1631]
                  %1674 = vst [vmem:[%s1642 + $0x3c] sm:%s1631] %v1673
                  %v1675 = vld [vmem:[%s1641 + $0x40] sm:%s1631]
                  %1676 = vst [vmem:[%s1642 + $0x40] sm:%s1631] %v1675
                  %v1677 = vld [vmem:[%s1641 + $0x44] sm:%s1631]
                  %1678 = vst [vmem:[%s1642 + $0x44] sm:%s1631] %v1677
                  %v1679 = vld [vmem:[%s1641 + $0x48] sm:%s1631]
                  %1680 = vst [vmem:[%s1642 + $0x48] sm:%s1631] %v1679
                  %v1681 = vld [vmem:[%s1641 + $0x4c] sm:%s1631]
                  %1682 = vst [vmem:[%s1642 + $0x4c] sm:%s1631] %v1681
                  %v1683 = vld [vmem:[%s1641 + $0x50] sm:%s1631]
                  %1684 = vst [vmem:[%s1642 + $0x50] sm:%s1631] %v1683
                  %v1685 = vld [vmem:[%s1641 + $0x54] sm:%s1631]
                  %1686 = vst [vmem:[%s1642 + $0x54] sm:%s1631] %v1685
                  %v1687 = vld [vmem:[%s1641 + $0x58] sm:%s1631]
                  %1688 = vst [vmem:[%s1642 + $0x58] sm:%s1631] %v1687
                  %v1689 = vld [vmem:[%s1641 + $0x5c] sm:%s1631]
                  %1690 = vst [vmem:[%s1642 + $0x5c] sm:%s1631] %v1689
                  %v1691 = vld [vmem:[%s1641 + $0x60] sm:%s1631]
                  %1692 = vst [vmem:[%s1642 + $0x60] sm:%s1631] %v1691
                  %s1693 = sadd.s32 1, %s1640
                  %p1694 = scmp.ge.s32.totalorder %s1693, %s1632
                  %s1695 = scalar_select %p1694, 0, %s1693
                  %s1696 = smul.u32 %s1695, 100
                  %s1697 = smul.u32 %s1695, 100
                  %s1698 = scalar_lea.vmem %s1514, %s1696 [#allocation3]
                  %s1699 = scalar_lea.vmem %s1525, %s1697
                $region133: #{convnet_forward.3} parent=127 // loop_footer
                  %s1637 = sadd.s32 %s1635, 1
                $region134: #{convnet_forward.3} parent=127 // loop_footer_branch
                  %1634 = sbr.rel target = $region130
                $region135: #{convnet_forward.3} parent=127 // loop_exit
                  _
                %s1700 = sdiv.u32.pop %s1521, 25
                %s1701 = srem.u32.pop %s1521, 25
                %s1702 = smul.u32 %s1700, 25
                %s1703 = smul.u32 4, %s1702
                %s1704 = scalar_lea.vmem %s1514, %s1703 [#allocation3]
                %s1705 = smul.u32 4, %s1702
                %s1706 = scalar_lea.vmem %s1525, %s1705
                // While loop
                $region136: #{convnet_forward.3} parent=127 // loop_pre_header
                  _
                $region137: #{convnet_forward.3} parent=127 // loop_header
                  %s1708 = sphi 0, %s1710
                  %p1709 = scmp.ge.s32.totalorder %s1708, %s1701
                  %s1713 = sphi 0, %s1720
                  %s1714 = sphi %s1704, %s1723
                  %s1715 = sphi %s1706, %s1724
                $region138: #{convnet_forward.3} parent=127 // loop_header_branch
                  %1712 = sbr.rel (%p1709) target = $region142
                $region139: #{convnet_forward.3} parent=127 // loop_body
                  %v1716 = vld [vmem:[%s1714] sm:%s1631]
                  %1717 = vst [vmem:[%s1715] sm:%s1631] %v1716
                  %s1718 = sadd.s32 1, %s1713
                  %p1719 = scmp.ge.s32.totalorder %s1718, %s1701
                  %s1720 = scalar_select %p1719, 0, %s1718
                  %s1721 = smul.u32 %s1720, 4
                  %s1722 = smul.u32 %s1720, 4
                  %s1723 = scalar_lea.vmem %s1704, %s1721 [#allocation3]
                  %s1724 = scalar_lea.vmem %s1706, %s1722
                $region140: #{convnet_forward.3} parent=127 // loop_footer
                  %s1710 = sadd.s32 %s1708, 1
                $region141: #{convnet_forward.3} parent=127 // loop_footer_branch
                  %1707 = sbr.rel target = $region137
                $region142: #{convnet_forward.3} parent=127 // loop_exit
                  _
              $region128: #{convnet_forward.3} parent=105 // pred_fallthru
                _
            $region106: #{convnet_forward.3} parent=101 // pred_fallthru
              _
            // Predicated region
            $region107: #{convnet_forward.3} parent=101 // pred_check
              _
            $region108: #{convnet_forward.3} parent=101 // pred_check_branch
              %1532 = sbr.rel (0) target = $region110
            $region109: #{convnet_forward.3} parent=101 // pred_region
              %s1534 = ssub.s32 16, 1
              %s1535 = sdiv.u32.pop %s1521, 25
              %s1536 = srem.u32.pop %s1521, 25
              // While loop
              $region111: #{convnet_forward.3} parent=109 // loop_pre_header
                _
              $region112: #{convnet_forward.3} parent=109 // loop_header
                %s1538 = sphi 0, %s1540
                %p1539 = scmp.ge.s32.totalorder %s1538, %s1535
                %s1543 = sphi 0, %s1598
                %s1544 = sphi %s1514, %s1601
                %s1545 = sphi %s1525, %s1602
              $region113: #{convnet_forward.3} parent=109 // loop_header_branch
                %1542 = sbr.rel (%p1539) target = $region117
              $region114: #{convnet_forward.3} parent=109 // loop_body
                %v1546 = vld [vmem:[%s1544] sm:%s1534]
                %1547 = vst [vmem:[%s1545] sm:%s1534] %v1546
                %v1548 = vld [vmem:[%s1544 + $0x4] sm:%s1534]
                %1549 = vst [vmem:[%s1545 + $0x4] sm:%s1534] %v1548
                %v1550 = vld [vmem:[%s1544 + $0x8] sm:%s1534]
                %1551 = vst [vmem:[%s1545 + $0x8] sm:%s1534] %v1550
                %v1552 = vld [vmem:[%s1544 + $0xc] sm:%s1534]
                %1553 = vst [vmem:[%s1545 + $0xc] sm:%s1534] %v1552
                %v1554 = vld [vmem:[%s1544 + $0x10] sm:%s1534]
                %1555 = vst [vmem:[%s1545 + $0x10] sm:%s1534] %v1554
                %v1556 = vld [vmem:[%s1544 + $0x14] sm:%s1534]
                %1557 = vst [vmem:[%s1545 + $0x14] sm:%s1534] %v1556
                %v1558 = vld [vmem:[%s1544 + $0x18] sm:%s1534]
                %1559 = vst [vmem:[%s1545 + $0x18] sm:%s1534] %v1558
                %v1560 = vld [vmem:[%s1544 + $0x1c] sm:%s1534]
                %1561 = vst [vmem:[%s1545 + $0x1c] sm:%s1534] %v1560
                %v1562 = vld [vmem:[%s1544 + $0x20] sm:%s1534]
                %1563 = vst [vmem:[%s1545 + $0x20] sm:%s1534] %v1562
                %v1564 = vld [vmem:[%s1544 + $0x24] sm:%s1534]
                %1565 = vst [vmem:[%s1545 + $0x24] sm:%s1534] %v1564
                %v1566 = vld [vmem:[%s1544 + $0x28] sm:%s1534]
                %1567 = vst [vmem:[%s1545 + $0x28] sm:%s1534] %v1566
                %v1568 = vld [vmem:[%s1544 + $0x2c] sm:%s1534]
                %1569 = vst [vmem:[%s1545 + $0x2c] sm:%s1534] %v1568
                %v1570 = vld [vmem:[%s1544 + $0x30] sm:%s1534]
                %1571 = vst [vmem:[%s1545 + $0x30] sm:%s1534] %v1570
                %v1572 = vld [vmem:[%s1544 + $0x34] sm:%s1534]
                %1573 = vst [vmem:[%s1545 + $0x34] sm:%s1534] %v1572
                %v1574 = vld [vmem:[%s1544 + $0x38] sm:%s1534]
                %1575 = vst [vmem:[%s1545 + $0x38] sm:%s1534] %v1574
                %v1576 = vld [vmem:[%s1544 + $0x3c] sm:%s1534]
                %1577 = vst [vmem:[%s1545 + $0x3c] sm:%s1534] %v1576
                %v1578 = vld [vmem:[%s1544 + $0x40] sm:%s1534]
                %1579 = vst [vmem:[%s1545 + $0x40] sm:%s1534] %v1578
                %v1580 = vld [vmem:[%s1544 + $0x44] sm:%s1534]
                %1581 = vst [vmem:[%s1545 + $0x44] sm:%s1534] %v1580
                %v1582 = vld [vmem:[%s1544 + $0x48] sm:%s1534]
                %1583 = vst [vmem:[%s1545 + $0x48] sm:%s1534] %v1582
                %v1584 = vld [vmem:[%s1544 + $0x4c] sm:%s1534]
                %1585 = vst [vmem:[%s1545 + $0x4c] sm:%s1534] %v1584
                %v1586 = vld [vmem:[%s1544 + $0x50] sm:%s1534]
                %1587 = vst [vmem:[%s1545 + $0x50] sm:%s1534] %v1586
                %v1588 = vld [vmem:[%s1544 + $0x54] sm:%s1534]
                %1589 = vst [vmem:[%s1545 + $0x54] sm:%s1534] %v1588
                %v1590 = vld [vmem:[%s1544 + $0x58] sm:%s1534]
                %1591 = vst [vmem:[%s1545 + $0x58] sm:%s1534] %v1590
                %v1592 = vld [vmem:[%s1544 + $0x5c] sm:%s1534]
                %1593 = vst [vmem:[%s1545 + $0x5c] sm:%s1534] %v1592
                %v1594 = vld [vmem:[%s1544 + $0x60] sm:%s1534]
                %1595 = vst [vmem:[%s1545 + $0x60] sm:%s1534] %v1594
                %s1596 = sadd.s32 1, %s1543
                %p1597 = scmp.ge.s32.totalorder %s1596, %s1535
                %s1598 = scalar_select %p1597, 0, %s1596
                %s1599 = smul.u32 %s1598, 100
                %s1600 = smul.u32 %s1598, 100
                %s1601 = scalar_lea.vmem %s1514, %s1599 [#allocation3]
                %s1602 = scalar_lea.vmem %s1525, %s1600
              $region115: #{convnet_forward.3} parent=109 // loop_footer
                %s1540 = sadd.s32 %s1538, 1
              $region116: #{convnet_forward.3} parent=109 // loop_footer_branch
                %1537 = sbr.rel target = $region112
              $region117: #{convnet_forward.3} parent=109 // loop_exit
                _
              %s1603 = sdiv.u32.pop %s1521, 25
              %s1604 = srem.u32.pop %s1521, 25
              %s1605 = smul.u32 %s1603, 25
              %s1606 = smul.u32 4, %s1605
              %s1607 = scalar_lea.vmem %s1514, %s1606 [#allocation3]
              %s1608 = smul.u32 4, %s1605
              %s1609 = scalar_lea.vmem %s1525, %s1608
              // While loop
              $region118: #{convnet_forward.3} parent=109 // loop_pre_header
                _
              $region119: #{convnet_forward.3} parent=109 // loop_header
                %s1611 = sphi 0, %s1613
                %p1612 = scmp.ge.s32.totalorder %s1611, %s1604
                %s1616 = sphi 0, %s1623
                %s1617 = sphi %s1607, %s1626
                %s1618 = sphi %s1609, %s1627
              $region120: #{convnet_forward.3} parent=109 // loop_header_branch
                %1615 = sbr.rel (%p1612) target = $region124
              $region121: #{convnet_forward.3} parent=109 // loop_body
                %v1619 = vld [vmem:[%s1617] sm:%s1534]
                %1620 = vst [vmem:[%s1618] sm:%s1534] %v1619
                %s1621 = sadd.s32 1, %s1616
                %p1622 = scmp.ge.s32.totalorder %s1621, %s1604
                %s1623 = scalar_select %p1622, 0, %s1621
                %s1624 = smul.u32 %s1623, 4
                %s1625 = smul.u32 %s1623, 4
                %s1626 = scalar_lea.vmem %s1607, %s1624 [#allocation3]
                %s1627 = scalar_lea.vmem %s1609, %s1625
              $region122: #{convnet_forward.3} parent=109 // loop_footer
                %s1613 = sadd.s32 %s1611, 1
              $region123: #{convnet_forward.3} parent=109 // loop_footer_branch
                %1610 = sbr.rel target = $region119
              $region124: #{convnet_forward.3} parent=109 // loop_exit
                _
            $region110: #{convnet_forward.3} parent=101 // pred_fallthru
              _
          $region102: #{convnet_forward.3} parent=97 // pred_fallthru
            _
          %1725 = vnop
        $region98: #{convnet_forward.3} parent=89 // pred_fallthru
          _
      $region90: #{convnet_forward.3} parent=5 // pred_fallthru
        _
      %p1726 = scmp.le.s32.totalorder 2, %s9
      // Predicated region
      $region143: #{convnet_forward.3} parent=5 // pred_check
        %p1727 = pneg %p1726
      $region144: #{convnet_forward.3} parent=5 // pred_check_branch
        %1729 = sbr.rel (%p1727) target = $region146
      $region145: #{convnet_forward.3} parent=5 // pred_region
        %s1730 = ssub.s32 %s9, 2
        // Predicated region
        $region147: #{convnet_forward.3} parent=145 // pred_check
          %p1731 = pneg %p106
        $region148: #{convnet_forward.3} parent=145 // pred_check_branch
          %1733 = sbr.rel (%p1731) target = $region150
        $region149: #{convnet_forward.3} parent=145 // pred_region
          %s1734 = sand.u32 %s91, 1
          %s1735 = sand.u32 %s91, 1
          %s1736 = smul.addr %s1735, 100
          %s1737 = scalar_lea.vmem [#allocation3], %s1736
        $region150: #{convnet_forward.3} parent=145 // pred_fallthru
          _
      $region146: #{convnet_forward.3} parent=5 // pred_fallthru
        _
    $region6: #{convnet_forward.3} parent=1 // loop_footer
      %s13 = sadd.s32 1, %s9
    $region7: #{convnet_forward.3} parent=1 // loop_footer_branch
      %8 = sbr.rel target = $region3
    $region8: #{convnet_forward.3} parent=1 // loop_exit
      _

// kernel: convnet_forward.4
$region0: #{convnet_forward.4}
  #allocation0 [shape = 'u32[]', space=smem, size = 0x4, offset = 0x4, fixed_abs, tag = 'smem constant byte address 0x4 - core index']
  #allocation1 [shape = 'u32[72,128]{1,0:T(1,128)}', space=vmem, size = 0x9000, scoped, tag = 'internal scratch']
  %s0 = inlined_call_operand.vmem [shape: bf16[4,98,400], index: 0, kind: input, shape index: {}]
  %s1 = inlined_call_operand.vmem [shape: bf16[400,128], index: 1, kind: input, shape index: {}]
  %s2 = inlined_call_operand.vmem [shape: f32[1,128], index: 2, kind: input, shape index: {}]
  %s3 = inlined_call_operand.vmem [shape: bf16[98,128], index: 3, kind: output, shape index: {}]
  %s4 = sld [smem:[#allocation0]]
  $region22: #{convnet_forward.4} parent=0
    _
  %s6 = ssub.s32 1, %s4
  %s7 = scalar_select 0, %s6, %s4
  // Predicated region
  $region2: #{convnet_forward.4} parent=0 // pred_check
    _
  $region3: #{convnet_forward.4} parent=0 // pred_check_branch
    %9 = sbr.rel (0) target = $region5
  $region4: #{convnet_forward.4} parent=0 // pred_region
    _
  $region5: #{convnet_forward.4} parent=0 // pred_fallthru
    _
  // Predicated region
  $region6: #{convnet_forward.4} parent=0 // pred_check
    _
  $region7: #{convnet_forward.4} parent=0 // pred_check_branch
    %11 = sbr.rel (0) target = $region9
  $region8: #{convnet_forward.4} parent=0 // pred_region
    _
  $region9: #{convnet_forward.4} parent=0 // pred_fallthru
    _
  // Predicated region
  $region10: #{convnet_forward.4} parent=0 // pred_check
    _
  $region11: #{convnet_forward.4} parent=0 // pred_check_branch
    %13 = sbr.rel (0) target = $region13
  $region12: #{convnet_forward.4} parent=0 // pred_region
    _
  $region13: #{convnet_forward.4} parent=0 // pred_fallthru
    _
  %v15 = vld [vmem:[%s0] sm:$0xff]
  %v16 = vld [vmem:[%s0 + $0x8] sm:$0xff]
  %v17 = vld [vmem:[%s0 + $0x10] sm:$0xff]
  %v18 = vld [vmem:[%s0 + $0x18] sm:$0xff]
  %v19 = vld [vmem:[%s0 + $0x20] sm:$0xff]
  %v20 = vld [vmem:[%s0 + $0x28] sm:$0xff]
  %v21 = vld [vmem:[%s0 + $0x30] sm:$0xff]
  %v22 = vld [vmem:[%s0 + $0x38] sm:$0xff]
  %v23 = vld [vmem:[%s0 + $0x40] sm:$0xff]
  %v24 = vld [vmem:[%s0 + $0x48] sm:$0xff]
  %v25 = vld [vmem:[%s0 + $0x50] sm:$0xff]
  %v26 = vld [vmem:[%s0 + $0x58] sm:$0xff]
  %v27 = vld [vmem:[%s0 + $0x60] sm:$0xff]
  %v28 = vld [vmem:[%s0 + $0x68] sm:$0xff]
  %v29 = vld [vmem:[%s0 + $0x70] sm:$0xff]
  %v30 = vld [vmem:[%s0 + $0x78] sm:$0xff]
  %v31 = vld [vmem:[%s0 + $0x80] sm:$0xff]
  %v32 = vld [vmem:[%s0 + $0x88] sm:$0xff]
  %v33 = vld [vmem:[%s0 + $0x90] sm:$0xff]
  %v34 = vld [vmem:[%s0 + $0x98] sm:$0xff]
  %v35 = vld [vmem:[%s0 + $0xa0] sm:$0xff]
  %v36 = vld [vmem:[%s0 + $0xa8] sm:$0xff]
  %v37 = vld [vmem:[%s0 + $0xb0] sm:$0xff]
  %v38 = vld [vmem:[%s0 + $0xb8] sm:$0xff]
  %v39 = vld [vmem:[%s0 + $0xc0] sm:$0x11]
  %v40 = vld [vmem:[%s0 + $0xc8] sm:$0x11]
  %v41 = vld [vmem:[%s1] sm:$0xf]
  %v42 = vld [vmem:[%s1 + $0x4] sm:$0xf]
  %v43 = vld [vmem:[%s1 + $0x8] sm:$0xf]
  %v44 = vld [vmem:[%s1 + $0xc] sm:$0xf]
  %v45 = vld [vmem:[%s1 + $0x10] sm:$0xf]
  %v46 = vld [vmem:[%s1 + $0x14] sm:$0xf]
  %v47 = vld [vmem:[%s1 + $0x18] sm:$0xf]
  %v48 = vld [vmem:[%s1 + $0x1c] sm:$0xf]
  %v49 = vld [vmem:[%s1 + $0x20] sm:$0xf]
  %v50 = vld [vmem:[%s1 + $0x24] sm:$0xf]
  %v51 = vld [vmem:[%s1 + $0x28] sm:$0xf]
  %v52 = vld [vmem:[%s1 + $0x2c] sm:$0xf]
  %v53 = vld [vmem:[%s1 + $0x30] sm:$0xf]
  %v54 = vld [vmem:[%s1 + $0x34] sm:$0xf]
  %v55 = vld [vmem:[%s1 + $0x38] sm:$0xf]
  %v56 = vld [vmem:[%s1 + $0x3c] sm:$0xf]
  %v57 = vld [vmem:[%s1 + $0x40] sm:$0xf]
  %v58 = vld [vmem:[%s1 + $0x44] sm:$0xf]
  %v59 = vld [vmem:[%s1 + $0x48] sm:$0xf]
  %v60 = vld [vmem:[%s1 + $0x4c] sm:$0xf]
  %v61 = vld [vmem:[%s1 + $0x50] sm:$0xf]
  %v62 = vld [vmem:[%s1 + $0x54] sm:$0xf]
  %v63 = vld [vmem:[%s1 + $0x58] sm:$0xf]
  %v64 = vld [vmem:[%s1 + $0x5c] sm:$0xf]
  %v65 = vld [vmem:[%s1 + $0x60] sm:$0xf]
  %v66 = vld [vmem:[%s1 + $0x64] sm:$0xf]
  %v67 = vld [vmem:[%s1 + $0x68] sm:$0xf]
  %v68 = vld [vmem:[%s1 + $0x6c] sm:$0xf]
  %v69 = vld [vmem:[%s1 + $0x70] sm:$0xf]
  %v70 = vld [vmem:[%s1 + $0x74] sm:$0xf]
  %v71 = vld [vmem:[%s1 + $0x78] sm:$0xf]
  %v72 = vld [vmem:[%s1 + $0x7c] sm:$0xf]
  %v73 = vld [vmem:[%s1 + $0x80] sm:$0xf]
  %v74 = vld [vmem:[%s1 + $0x84] sm:$0xf]
  %v75 = vld [vmem:[%s1 + $0x88] sm:$0xf]
  %v76 = vld [vmem:[%s1 + $0x8c] sm:$0xf]
  %v77 = vld [vmem:[%s1 + $0x90] sm:$0xf]
  %v78 = vld [vmem:[%s1 + $0x94] sm:$0xf]
  %v79 = vld [vmem:[%s1 + $0x98] sm:$0xf]
  %v80 = vld [vmem:[%s1 + $0x9c] sm:$0xf]
  %v81 = vld [vmem:[%s1 + $0xa0] sm:$0xf]
  %v82 = vld [vmem:[%s1 + $0xa4] sm:$0xf]
  %v83 = vld [vmem:[%s1 + $0xa8] sm:$0xf]
  %v84 = vld [vmem:[%s1 + $0xac] sm:$0xf]
  %v85 = vld [vmem:[%s1 + $0xb0] sm:$0xf]
  %v86 = vld [vmem:[%s1 + $0xb4] sm:$0xf]
  %v87 = vld [vmem:[%s1 + $0xb8] sm:$0xf]
  %v88 = vld [vmem:[%s1 + $0xbc] sm:$0xf]
  %v89 = vld [vmem:[%s1 + $0xc0] sm:$0xf]
  %v90 = vld [vmem:[%s1 + $0xc4] sm:$0xf]
  %v91 = vld [vmem:[%s2] sm:$0x1]
  %v93 = vperm.slane %v91, 0
  %v121 = vunpack.c.l.b16 %v15
  %v122 = vunpack.c.h.b16 %v15
  %v123 = vunpack.c.l.b16 %v16
  %v124 = vunpack.c.h.b16 %v16
  %v125 = vunpack.c.l.b16 %v17
  %v126 = vunpack.c.h.b16 %v17
  %v127 = vunpack.c.l.b16 %v18
  %v128 = vunpack.c.h.b16 %v18
  %v129 = vunpack.c.l.b16 %v19
  %v130 = vunpack.c.h.b16 %v19
  %v131 = vunpack.c.l.b16 %v20
  %v132 = vunpack.c.h.b16 %v20
  %v133 = vunpack.c.l.b16 %v21
  %v134 = vunpack.c.h.b16 %v21
  %v135 = vunpack.c.l.b16 %v22
  %v136 = vunpack.c.h.b16 %v22
  %v137 = vunpack.c.l.b16 %v23
  %v138 = vunpack.c.h.b16 %v23
  %v139 = vunpack.c.l.b16 %v24
  %v140 = vunpack.c.h.b16 %v24
  %v141 = vunpack.c.l.b16 %v25
  %v142 = vunpack.c.h.b16 %v25
  %v143 = vunpack.c.l.b16 %v26
  %v144 = vunpack.c.h.b16 %v26
  %v145 = vunpack.c.l.b16 %v27
  %v146 = vunpack.c.h.b16 %v27
  %v147 = vunpack.c.l.b16 %v28
  %v148 = vunpack.c.h.b16 %v28
  %v149 = vunpack.c.l.b16 %v29
  %v150 = vunpack.c.h.b16 %v29
  %v151 = vunpack.c.l.b16 %v30
  %v152 = vunpack.c.h.b16 %v30
  %v153 = vunpack.c.l.b16 %v31
  %v154 = vunpack.c.h.b16 %v31
  %v155 = vunpack.c.l.b16 %v32
  %v156 = vunpack.c.h.b16 %v32
  %v157 = vunpack.c.l.b16 %v33
  %v158 = vunpack.c.h.b16 %v33
  %v159 = vunpack.c.l.b16 %v34
  %v160 = vunpack.c.h.b16 %v34
  %v161 = vunpack.c.l.b16 %v35
  %v162 = vunpack.c.h.b16 %v35
  %v163 = vunpack.c.l.b16 %v36
  %v164 = vunpack.c.h.b16 %v36
  %v165 = vunpack.c.l.b16 %v37
  %v166 = vunpack.c.h.b16 %v37
  %v167 = vunpack.c.l.b16 %v38
  %v168 = vunpack.c.h.b16 %v38
  %v169 = vunpack.c.l.b16 %v39
  %v170 = vunpack.c.h.b16 %v39
  %v171 = vunpack.c.l.b16 %v40
  %v172 = vunpack.c.h.b16 %v40
  %v173 = vpack.c.b16 %v125, %v121
  %v174 = vpack.c.b16 %v126, %v122
  %v175 = vpack.c.b16 %v127, %v123
  %v176 = vpack.c.b16 %v128, %v124
  %v177 = vpack.c.b16 %v133, %v129
  %v178 = vpack.c.b16 %v134, %v130
  %v179 = vpack.c.b16 %v135, %v131
  %v180 = vpack.c.b16 %v136, %v132
  %v181 = vpack.c.b16 %v141, %v137
  %v182 = vpack.c.b16 %v142, %v138
  %v183 = vpack.c.b16 %v143, %v139
  %v184 = vpack.c.b16 %v144, %v140
  %v185 = vpack.c.b16 %v149, %v145
  %v186 = vpack.c.b16 %v150, %v146
  %v187 = vpack.c.b16 %v151, %v147
  %v188 = vpack.c.b16 %v152, %v148
  %v189 = vpack.c.b16 %v157, %v153
  %v190 = vpack.c.b16 %v158, %v154
  %v191 = vpack.c.b16 %v159, %v155
  %v192 = vpack.c.b16 %v160, %v156
  %v193 = vpack.c.b16 %v165, %v161
  %v194 = vpack.c.b16 %v166, %v162
  %v195 = vpack.c.b16 %v167, %v163
  %v196 = vpack.c.b16 %v168, %v164
  %v197 = vpack.c.b16 %v169, %v169
  %v198 = vpack.c.b16 %v170, %v170
  %v199 = vpack.c.b16 %v171, %v171
  %v200 = vpack.c.b16 %v172, %v172
  %v272 = vunpack.c.l.b16 %v41
  %v273 = vunpack.c.l.b16 %v42
  %v274 = vunpack.c.l.b16 %v43
  %v275 = vunpack.c.l.b16 %v44
  %v276 = vunpack.c.l.b16 %v45
  %v277 = vunpack.c.l.b16 %v46
  %v278 = vunpack.c.l.b16 %v47
  %v279 = vunpack.c.l.b16 %v48
  %v280 = vunpack.c.l.b16 %v49
  %v281 = vunpack.c.l.b16 %v50
  %v282 = vunpack.c.l.b16 %v51
  %v283 = vunpack.c.l.b16 %v52
  %v284 = vunpack.c.l.b16 %v53
  %v285 = vunpack.c.l.b16 %v54
  %v286 = vunpack.c.l.b16 %v55
  %v287 = vunpack.c.l.b16 %v56
  %v288 = vunpack.c.l.b16 %v57
  %v289 = vunpack.c.l.b16 %v58
  %v290 = vunpack.c.l.b16 %v59
  %v291 = vunpack.c.l.b16 %v60
  %v292 = vunpack.c.l.b16 %v61
  %v293 = vunpack.c.l.b16 %v62
  %v294 = vunpack.c.l.b16 %v63
  %v295 = vunpack.c.l.b16 %v64
  %v296 = vunpack.c.l.b16 %v65
  %v297 = vunpack.c.l.b16 %v66
  %v298 = vunpack.c.l.b16 %v67
  %v299 = vunpack.c.l.b16 %v68
  %v300 = vunpack.c.l.b16 %v69
  %v301 = vunpack.c.l.b16 %v70
  %v302 = vunpack.c.l.b16 %v71
  %v303 = vunpack.c.l.b16 %v72
  %v304 = vunpack.c.l.b16 %v73
  %v305 = vunpack.c.l.b16 %v74
  %v306 = vunpack.c.l.b16 %v75
  %v307 = vunpack.c.l.b16 %v76
  %v308 = vunpack.c.l.b16 %v77
  %v309 = vunpack.c.l.b16 %v78
  %v310 = vunpack.c.l.b16 %v79
  %v311 = vunpack.c.l.b16 %v80
  %v312 = vunpack.c.l.b16 %v81
  %v313 = vunpack.c.l.b16 %v82
  %v314 = vunpack.c.l.b16 %v83
  %v315 = vunpack.c.l.b16 %v84
  %v316 = vunpack.c.l.b16 %v85
  %v317 = vunpack.c.l.b16 %v86
  %v318 = vunpack.c.l.b16 %v87
  %v319 = vunpack.c.l.b16 %v88
  %v320 = vunpack.c.l.b16 %v89
  %v321 = vunpack.c.l.b16 %v90
  %v322 = vpack.c.b16 %v273, %v272
  %v323 = vpack.c.b16 %v275, %v274
  %v324 = vpack.c.b16 %v277, %v276
  %v325 = vpack.c.b16 %v279, %v278
  %v326 = vpack.c.b16 %v281, %v280
  %v327 = vpack.c.b16 %v283, %v282
  %v328 = vpack.c.b16 %v285, %v284
  %v329 = vpack.c.b16 %v287, %v286
  %v330 = vpack.c.b16 %v289, %v288
  %v331 = vpack.c.b16 %v291, %v290
  %v332 = vpack.c.b16 %v293, %v292
  %v333 = vpack.c.b16 %v295, %v294
  %v334 = vpack.c.b16 %v297, %v296
  %v335 = vpack.c.b16 %v299, %v298
  %v336 = vpack.c.b16 %v301, %v300
  %v337 = vpack.c.b16 %v303, %v302
  %v338 = vpack.c.b16 %v305, %v304
  %v339 = vpack.c.b16 %v307, %v306
  %v340 = vpack.c.b16 %v309, %v308
  %v341 = vpack.c.b16 %v311, %v310
  %v342 = vpack.c.b16 %v313, %v312
  %v343 = vpack.c.b16 %v315, %v314
  %v344 = vpack.c.b16 %v317, %v316
  %v345 = vpack.c.b16 %v319, %v318
  %v346 = vpack.c.b16 %v321, %v320
  %vm372 = vcmask 130048
  %v374 = vsel %vm372, %v176, 0
  %v377 = vsel %vm372, %v180, 0
  %v380 = vsel %vm372, %v184, 0
  %v383 = vsel %vm372, %v188, 0
  %v386 = vsel %vm372, %v192, 0
  %v389 = vsel %vm372, %v196, 0
  %v392 = vsel %vm372, %v200, 0
  %394 = vmatpush.bf16.msra.mxu0 %v329
  %395 = vmatpush.bf16.msra.mxu0 %v328
  %396 = vmatpush.bf16.msra.mxu0 %v327
  %397 = vmatpush.bf16.msra.mxu0 %v326
  %398 = vmatpush.bf16.msra.mxu0 %v325
  %399 = vmatpush.bf16.msra.mxu0 %v324
  %400 = vmatpush.bf16.msra.mxu0 %v323
  %401 = vmatpush.bf16.msra.mxu0 %v322
  %402 = vmatmul.bf16.gmra.mxu0 %v173
  %v403 = vpop.f32.mrf.mxu0
  %v404 = vadd.f32 %v93, %v403
  %v405 = vpop.f32.mrf.mxu0
  %v406 = vadd.f32 %v93, %v405
  %407 = vmatmul.bf16.gmra.mxu0 %v177
  %v408 = vpop.f32.mrf.mxu0
  %v409 = vadd.f32 %v93, %v408
  %v410 = vpop.f32.mrf.mxu0
  %v411 = vadd.f32 %v93, %v410
  %412 = vmatmul.bf16.gmra.mxu0 %v181
  %v413 = vpop.f32.mrf.mxu0
  %v414 = vadd.f32 %v93, %v413
  %v415 = vpop.f32.mrf.mxu0
  %v416 = vadd.f32 %v93, %v415
  %417 = vmatmul.bf16.gmra.mxu0 %v185
  %v418 = vpop.f32.mrf.mxu0
  %v419 = vadd.f32 %v93, %v418
  %v420 = vpop.f32.mrf.mxu0
  %v421 = vadd.f32 %v93, %v420
  %422 = vmatmul.bf16.gmra.mxu0 %v189
  %v423 = vpop.f32.mrf.mxu0
  %v424 = vadd.f32 %v93, %v423
  %v425 = vpop.f32.mrf.mxu0
  %v426 = vadd.f32 %v93, %v425
  %427 = vmatmul.bf16.gmra.mxu0 %v193
  %v428 = vpop.f32.mrf.mxu0
  %v429 = vadd.f32 %v93, %v428
  %v430 = vpop.f32.mrf.mxu0
  %v431 = vadd.f32 %v93, %v430
  %432 = vmatmul.bf16.gmra.mxu0 %v197
  %v433 = vpop.f32.mrf.mxu0
  %v434 = vadd.f32 %v93, %v433
  %v435 = vpop.f32.mrf.mxu0
  %436 = vdwg.mxu0
  %437 = vmatpush.bf16.msra.mxu0 %v337
  %438 = vmatpush.bf16.msra.mxu0 %v336
  %439 = vmatpush.bf16.msra.mxu0 %v335
  %440 = vmatpush.bf16.msra.mxu0 %v334
  %441 = vmatpush.bf16.msra.mxu0 %v333
  %442 = vmatpush.bf16.msra.mxu0 %v332
  %443 = vmatpush.bf16.msra.mxu0 %v331
  %444 = vmatpush.bf16.msra.mxu0 %v330
  %445 = vmatmul.bf16.gmra.mxu0 %v174
  %v446 = vpop.f32.mrf.mxu0
  %v447 = vadd.f32 %v404, %v446
  %v448 = vpop.f32.mrf.mxu0
  %v449 = vadd.f32 %v406, %v448
  %450 = vmatmul.bf16.gmra.mxu0 %v178
  %v451 = vpop.f32.mrf.mxu0
  %v452 = vadd.f32 %v409, %v451
  %v453 = vpop.f32.mrf.mxu0
  %v454 = vadd.f32 %v411, %v453
  %455 = vmatmul.bf16.gmra.mxu0 %v182
  %v456 = vpop.f32.mrf.mxu0
  %v457 = vadd.f32 %v414, %v456
  %v458 = vpop.f32.mrf.mxu0
  %v459 = vadd.f32 %v416, %v458
  %460 = vmatmul.bf16.gmra.mxu0 %v186
  %v461 = vpop.f32.mrf.mxu0
  %v462 = vadd.f32 %v419, %v461
  %v463 = vpop.f32.mrf.mxu0
  %v464 = vadd.f32 %v421, %v463
  %465 = vmatmul.bf16.gmra.mxu0 %v190
  %v466 = vpop.f32.mrf.mxu0
  %v467 = vadd.f32 %v424, %v466
  %v468 = vpop.f32.mrf.mxu0
  %v469 = vadd.f32 %v426, %v468
  %470 = vmatmul.bf16.gmra.mxu0 %v194
  %v471 = vpop.f32.mrf.mxu0
  %v472 = vadd.f32 %v429, %v471
  %v473 = vpop.f32.mrf.mxu0
  %v474 = vadd.f32 %v431, %v473
  %475 = vmatmul.bf16.gmra.mxu0 %v198
  %v476 = vpop.f32.mrf.mxu0
  %v477 = vadd.f32 %v434, %v476
  %v478 = vpop.f32.mrf.mxu0
  %479 = vdwg.mxu0
  %480 = vmatpush.bf16.msra.mxu0 %v345
  %481 = vmatpush.bf16.msra.mxu0 %v344
  %482 = vmatpush.bf16.msra.mxu0 %v343
  %483 = vmatpush.bf16.msra.mxu0 %v342
  %484 = vmatpush.bf16.msra.mxu0 %v341
  %485 = vmatpush.bf16.msra.mxu0 %v340
  %486 = vmatpush.bf16.msra.mxu0 %v339
  %487 = vmatpush.bf16.msra.mxu0 %v338
  %488 = vmatmul.bf16.gmra.mxu0 %v175
  %v489 = vpop.f32.mrf.mxu0
  %v490 = vadd.f32 %v447, %v489
  %v491 = vpop.f32.mrf.mxu0
  %v492 = vadd.f32 %v449, %v491
  %493 = vmatmul.bf16.gmra.mxu0 %v179
  %v494 = vpop.f32.mrf.mxu0
  %v495 = vadd.f32 %v452, %v494
  %v496 = vpop.f32.mrf.mxu0
  %v497 = vadd.f32 %v454, %v496
  %498 = vmatmul.bf16.gmra.mxu0 %v183
  %v499 = vpop.f32.mrf.mxu0
  %v500 = vadd.f32 %v457, %v499
  %v501 = vpop.f32.mrf.mxu0
  %v502 = vadd.f32 %v459, %v501
  %503 = vmatmul.bf16.gmra.mxu0 %v187
  %v504 = vpop.f32.mrf.mxu0
  %v505 = vadd.f32 %v462, %v504
  %v506 = vpop.f32.mrf.mxu0
  %v507 = vadd.f32 %v464, %v506
  %508 = vmatmul.bf16.gmra.mxu0 %v191
  %v509 = vpop.f32.mrf.mxu0
  %v510 = vadd.f32 %v467, %v509
  %v511 = vpop.f32.mrf.mxu0
  %v512 = vadd.f32 %v469, %v511
  %513 = vmatmul.bf16.gmra.mxu0 %v195
  %v514 = vpop.f32.mrf.mxu0
  %v515 = vadd.f32 %v472, %v514
  %v516 = vpop.f32.mrf.mxu0
  %v517 = vadd.f32 %v474, %v516
  %518 = vmatmul.bf16.gmra.mxu0 %v199
  %v519 = vpop.f32.mrf.mxu0
  %v520 = vadd.f32 %v477, %v519
  %v521 = vpop.f32.mrf.mxu0
  %522 = vdwg.mxu0
  %523 = vmatpush.bf16.msra.mxu0 0
  %524 = vmatpush.bf16.msra.mxu0 0
  %525 = vmatpush.bf16.msra.mxu0 0
  %526 = vmatpush.bf16.msra.mxu0 0
  %527 = vmatpush.bf16.msra.mxu0 0
  %528 = vmatpush.bf16.msra.mxu0 0
  %529 = vmatpush.bf16.msra.mxu0 0
  %530 = vmatpush.bf16.msra.mxu0 %v346
  %531 = vmatmul.bf16.gmra.mxu0 %v374
  %v532 = vpop.f32.mrf.mxu0
  %v533 = vadd.f32 %v490, %v532
  %v534 = vpop.f32.mrf.mxu0
  %v535 = vadd.f32 %v492, %v534
  %536 = vmatmul.bf16.gmra.mxu0 %v377
  %v537 = vpop.f32.mrf.mxu0
  %v538 = vadd.f32 %v495, %v537
  %v539 = vpop.f32.mrf.mxu0
  %v540 = vadd.f32 %v497, %v539
  %541 = vmatmul.bf16.gmra.mxu0 %v380
  %v542 = vpop.f32.mrf.mxu0
  %v543 = vadd.f32 %v500, %v542
  %v544 = vpop.f32.mrf.mxu0
  %v545 = vadd.f32 %v502, %v544
  %546 = vmatmul.bf16.gmra.mxu0 %v383
  %v547 = vpop.f32.mrf.mxu0
  %v548 = vadd.f32 %v505, %v547
  %v549 = vpop.f32.mrf.mxu0
  %v550 = vadd.f32 %v507, %v549
  %551 = vmatmul.bf16.gmra.mxu0 %v386
  %v552 = vpop.f32.mrf.mxu0
  %v553 = vadd.f32 %v510, %v552
  %v554 = vpop.f32.mrf.mxu0
  %v555 = vadd.f32 %v512, %v554
  %556 = vmatmul.bf16.gmra.mxu0 %v389
  %v557 = vpop.f32.mrf.mxu0
  %v558 = vadd.f32 %v515, %v557
  %v559 = vpop.f32.mrf.mxu0
  %v560 = vadd.f32 %v517, %v559
  %561 = vmatmul.bf16.gmra.mxu0 %v392
  %v562 = vpop.f32.mrf.mxu0
  %v563 = vadd.f32 %v520, %v562
  %v564 = vpop.f32.mrf.mxu0
  %565 = vdwg.mxu0
  %v566 = vmax.f32 %v533, 0.0
  %v567 = vmax.f32 %v535, 0.0
  %v568 = vmax.f32 %v538, 0.0
  %v569 = vmax.f32 %v540, 0.0
  %v570 = vmax.f32 %v543, 0.0
  %v571 = vmax.f32 %v545, 0.0
  %v572 = vmax.f32 %v548, 0.0
  %v573 = vmax.f32 %v550, 0.0
  %v574 = vmax.f32 %v553, 0.0
  %v575 = vmax.f32 %v555, 0.0
  %v576 = vmax.f32 %v558, 0.0
  %v577 = vmax.f32 %v560, 0.0
  %v578 = vmax.f32 %v563, 0.0
  %s579 = scalar_lea.vmem %s0, 208
  %v580 = vld [vmem:[%s579] sm:$0xff]
  %v581 = vld [vmem:[%s579 + $0x8] sm:$0xff]
  %v582 = vld [vmem:[%s579 + $0x10] sm:$0xff]
  %v583 = vld [vmem:[%s579 + $0x18] sm:$0xff]
  %v584 = vld [vmem:[%s579 + $0x20] sm:$0xff]
  %v585 = vld [vmem:[%s579 + $0x28] sm:$0xff]
  %v586 = vld [vmem:[%s579 + $0x30] sm:$0xff]
  %v587 = vld [vmem:[%s579 + $0x38] sm:$0xff]
  %v588 = vld [vmem:[%s579 + $0x40] sm:$0xff]
  %v589 = vld [vmem:[%s579 + $0x48] sm:$0xff]
  %v590 = vld [vmem:[%s579 + $0x50] sm:$0xff]
  %v591 = vld [vmem:[%s579 + $0x58] sm:$0xff]
  %v592 = vld [vmem:[%s579 + $0x60] sm:$0xff]
  %v593 = vld [vmem:[%s579 + $0x68] sm:$0xff]
  %v594 = vld [vmem:[%s579 + $0x70] sm:$0xff]
  %v595 = vld [vmem:[%s579 + $0x78] sm:$0xff]
  %v596 = vld [vmem:[%s579 + $0x80] sm:$0xff]
  %v597 = vld [vmem:[%s579 + $0x88] sm:$0xff]
  %v598 = vld [vmem:[%s579 + $0x90] sm:$0xff]
  %v599 = vld [vmem:[%s579 + $0x98] sm:$0xff]
  %v600 = vld [vmem:[%s579 + $0xa0] sm:$0xff]
  %v601 = vld [vmem:[%s579 + $0xa8] sm:$0xff]
  %v602 = vld [vmem:[%s579 + $0xb0] sm:$0xff]
  %v603 = vld [vmem:[%s579 + $0xb8] sm:$0xff]
  %v604 = vld [vmem:[%s579 + $0xc0] sm:$0x11]
  %v605 = vld [vmem:[%s579 + $0xc8] sm:$0x11]
  %v632 = vunpack.c.l.b16 %v580
  %v633 = vunpack.c.h.b16 %v580
  %v634 = vunpack.c.l.b16 %v581
  %v635 = vunpack.c.h.b16 %v581
  %v636 = vunpack.c.l.b16 %v582
  %v637 = vunpack.c.h.b16 %v582
  %v638 = vunpack.c.l.b16 %v583
  %v639 = vunpack.c.h.b16 %v583
  %v640 = vunpack.c.l.b16 %v584
  %v641 = vunpack.c.h.b16 %v584
  %v642 = vunpack.c.l.b16 %v585
  %v643 = vunpack.c.h.b16 %v585
  %v644 = vunpack.c.l.b16 %v586
  %v645 = vunpack.c.h.b16 %v586
  %v646 = vunpack.c.l.b16 %v587
  %v647 = vunpack.c.h.b16 %v587
  %v648 = vunpack.c.l.b16 %v588
  %v649 = vunpack.c.h.b16 %v588
  %v650 = vunpack.c.l.b16 %v589
  %v651 = vunpack.c.h.b16 %v589
  %v652 = vunpack.c.l.b16 %v590
  %v653 = vunpack.c.h.b16 %v590
  %v654 = vunpack.c.l.b16 %v591
  %v655 = vunpack.c.h.b16 %v591
  %v656 = vunpack.c.l.b16 %v592
  %v657 = vunpack.c.h.b16 %v592
  %v658 = vunpack.c.l.b16 %v593
  %v659 = vunpack.c.h.b16 %v593
  %v660 = vunpack.c.l.b16 %v594
  %v661 = vunpack.c.h.b16 %v594
  %v662 = vunpack.c.l.b16 %v595
  %v663 = vunpack.c.h.b16 %v595
  %v664 = vunpack.c.l.b16 %v596
  %v665 = vunpack.c.h.b16 %v596
  %v666 = vunpack.c.l.b16 %v597
  %v667 = vunpack.c.h.b16 %v597
  %v668 = vunpack.c.l.b16 %v598
  %v669 = vunpack.c.h.b16 %v598
  %v670 = vunpack.c.l.b16 %v599
  %v671 = vunpack.c.h.b16 %v599
  %v672 = vunpack.c.l.b16 %v600
  %v673 = vunpack.c.h.b16 %v600
  %v674 = vunpack.c.l.b16 %v601
  %v675 = vunpack.c.h.b16 %v601
  %v676 = vunpack.c.l.b16 %v602
  %v677 = vunpack.c.h.b16 %v602
  %v678 = vunpack.c.l.b16 %v603
  %v679 = vunpack.c.h.b16 %v603
  %v680 = vunpack.c.l.b16 %v604
  %v681 = vunpack.c.h.b16 %v604
  %v682 = vunpack.c.l.b16 %v605
  %v683 = vunpack.c.h.b16 %v605
  %v684 = vpack.c.b16 %v636, %v632
  %v685 = vpack.c.b16 %v637, %v633
  %v686 = vpack.c.b16 %v638, %v634
  %v687 = vpack.c.b16 %v639, %v635
  %v688 = vpack.c.b16 %v644, %v640
  %v689 = vpack.c.b16 %v645, %v641
  %v690 = vpack.c.b16 %v646, %v642
  %v691 = vpack.c.b16 %v647, %v643
  %v692 = vpack.c.b16 %v652, %v648
  %v693 = vpack.c.b16 %v653, %v649
  %v694 = vpack.c.b16 %v654, %v650
  %v695 = vpack.c.b16 %v655, %v651
  %v696 = vpack.c.b16 %v660, %v656
  %v697 = vpack.c.b16 %v661, %v657
  %v698 = vpack.c.b16 %v662, %v658
  %v699 = vpack.c.b16 %v663, %v659
  %v700 = vpack.c.b16 %v668, %v664
  %v701 = vpack.c.b16 %v669, %v665
  %v702 = vpack.c.b16 %v670, %v666
  %v703 = vpack.c.b16 %v671, %v667
  %v704 = vpack.c.b16 %v676, %v672
  %v705 = vpack.c.b16 %v677, %v673
  %v706 = vpack.c.b16 %v678, %v674
  %v707 = vpack.c.b16 %v679, %v675
  %v708 = vpack.c.b16 %v680, %v680
  %v709 = vpack.c.b16 %v681, %v681
  %v710 = vpack.c.b16 %v682, %v682
  %v711 = vpack.c.b16 %v683, %v683
  %v734 = vsel %vm372, %v687, 0
  %v737 = vsel %vm372, %v691, 0
  %v740 = vsel %vm372, %v695, 0
  %v743 = vsel %vm372, %v699, 0
  %v746 = vsel %vm372, %v703, 0
  %v749 = vsel %vm372, %v707, 0
  %v752 = vsel %vm372, %v711, 0
  %754 = vmatpush.bf16.msra.mxu0 %v329
  %755 = vmatpush.bf16.msra.mxu0 %v328
  %756 = vmatpush.bf16.msra.mxu0 %v327
  %757 = vmatpush.bf16.msra.mxu0 %v326
  %758 = vmatpush.bf16.msra.mxu0 %v325
  %759 = vmatpush.bf16.msra.mxu0 %v324
  %760 = vmatpush.bf16.msra.mxu0 %v323
  %761 = vmatpush.bf16.msra.mxu0 %v322
  %762 = vmatmul.bf16.gmra.mxu0 %v684
  %v763 = vpop.f32.mrf.mxu0
  %v764 = vadd.f32 %v93, %v763
  %v765 = vpop.f32.mrf.mxu0
  %v766 = vadd.f32 %v93, %v765
  %767 = vmatmul.bf16.gmra.mxu0 %v688
  %v768 = vpop.f32.mrf.mxu0
  %v769 = vadd.f32 %v93, %v768
  %v770 = vpop.f32.mrf.mxu0
  %v771 = vadd.f32 %v93, %v770
  %772 = vmatmul.bf16.gmra.mxu0 %v692
  %v773 = vpop.f32.mrf.mxu0
  %v774 = vadd.f32 %v93, %v773
  %v775 = vpop.f32.mrf.mxu0
  %v776 = vadd.f32 %v93, %v775
  %777 = vmatmul.bf16.gmra.mxu0 %v696
  %v778 = vpop.f32.mrf.mxu0
  %v779 = vadd.f32 %v93, %v778
  %v780 = vpop.f32.mrf.mxu0
  %v781 = vadd.f32 %v93, %v780
  %782 = vmatmul.bf16.gmra.mxu0 %v700
  %v783 = vpop.f32.mrf.mxu0
  %v784 = vadd.f32 %v93, %v783
  %v785 = vpop.f32.mrf.mxu0
  %v786 = vadd.f32 %v93, %v785
  %787 = vmatmul.bf16.gmra.mxu0 %v704
  %v788 = vpop.f32.mrf.mxu0
  %v789 = vadd.f32 %v93, %v788
  %v790 = vpop.f32.mrf.mxu0
  %v791 = vadd.f32 %v93, %v790
  %792 = vmatmul.bf16.gmra.mxu0 %v708
  %v793 = vpop.f32.mrf.mxu0
  %v794 = vadd.f32 %v93, %v793
  %v795 = vpop.f32.mrf.mxu0
  %796 = vdwg.mxu0
  %797 = vmatpush.bf16.msra.mxu0 %v337
  %798 = vmatpush.bf16.msra.mxu0 %v336
  %799 = vmatpush.bf16.msra.mxu0 %v335
  %800 = vmatpush.bf16.msra.mxu0 %v334
  %801 = vmatpush.bf16.msra.mxu0 %v333
  %802 = vmatpush.bf16.msra.mxu0 %v332
  %803 = vmatpush.bf16.msra.mxu0 %v331
  %804 = vmatpush.bf16.msra.mxu0 %v330
  %805 = vmatmul.bf16.gmra.mxu0 %v685
  %v806 = vpop.f32.mrf.mxu0
  %v807 = vadd.f32 %v764, %v806
  %v808 = vpop.f32.mrf.mxu0
  %v809 = vadd.f32 %v766, %v808
  %810 = vmatmul.bf16.gmra.mxu0 %v689
  %v811 = vpop.f32.mrf.mxu0
  %v812 = vadd.f32 %v769, %v811
  %v813 = vpop.f32.mrf.mxu0
  %v814 = vadd.f32 %v771, %v813
  %815 = vmatmul.bf16.gmra.mxu0 %v693
  %v816 = vpop.f32.mrf.mxu0
  %v817 = vadd.f32 %v774, %v816
  %v818 = vpop.f32.mrf.mxu0
  %v819 = vadd.f32 %v776, %v818
  %820 = vmatmul.bf16.gmra.mxu0 %v697
  %v821 = vpop.f32.mrf.mxu0
  %v822 = vadd.f32 %v779, %v821
  %v823 = vpop.f32.mrf.mxu0
  %v824 = vadd.f32 %v781, %v823
  %825 = vmatmul.bf16.gmra.mxu0 %v701
  %v826 = vpop.f32.mrf.mxu0
  %v827 = vadd.f32 %v784, %v826
  %v828 = vpop.f32.mrf.mxu0
  %v829 = vadd.f32 %v786, %v828
  %830 = vmatmul.bf16.gmra.mxu0 %v705
  %v831 = vpop.f32.mrf.mxu0
  %v832 = vadd.f32 %v789, %v831
  %v833 = vpop.f32.mrf.mxu0
  %v834 = vadd.f32 %v791, %v833
  %835 = vmatmul.bf16.gmra.mxu0 %v709
  %v836 = vpop.f32.mrf.mxu0
  %v837 = vadd.f32 %v794, %v836
  %v838 = vpop.f32.mrf.mxu0
  %839 = vdwg.mxu0
  %840 = vmatpush.bf16.msra.mxu0 %v345
  %841 = vmatpush.bf16.msra.mxu0 %v344
  %842 = vmatpush.bf16.msra.mxu0 %v343
  %843 = vmatpush.bf16.msra.mxu0 %v342
  %844 = vmatpush.bf16.msra.mxu0 %v341
  %845 = vmatpush.bf16.msra.mxu0 %v340
  %846 = vmatpush.bf16.msra.mxu0 %v339
  %847 = vmatpush.bf16.msra.mxu0 %v338
  %848 = vmatmul.bf16.gmra.mxu0 %v686
  %v849 = vpop.f32.mrf.mxu0
  %v850 = vadd.f32 %v807, %v849
  %v851 = vpop.f32.mrf.mxu0
  %v852 = vadd.f32 %v809, %v851
  %853 = vmatmul.bf16.gmra.mxu0 %v690
  %v854 = vpop.f32.mrf.mxu0
  %v855 = vadd.f32 %v812, %v854
  %v856 = vpop.f32.mrf.mxu0
  %v857 = vadd.f32 %v814, %v856
  %858 = vmatmul.bf16.gmra.mxu0 %v694
  %v859 = vpop.f32.mrf.mxu0
  %v860 = vadd.f32 %v817, %v859
  %v861 = vpop.f32.mrf.mxu0
  %v862 = vadd.f32 %v819, %v861
  %863 = vmatmul.bf16.gmra.mxu0 %v698
  %v864 = vpop.f32.mrf.mxu0
  %v865 = vadd.f32 %v822, %v864
  %v866 = vpop.f32.mrf.mxu0
  %v867 = vadd.f32 %v824, %v866
  %868 = vmatmul.bf16.gmra.mxu0 %v702
  %v869 = vpop.f32.mrf.mxu0
  %v870 = vadd.f32 %v827, %v869
  %v871 = vpop.f32.mrf.mxu0
  %v872 = vadd.f32 %v829, %v871
  %873 = vmatmul.bf16.gmra.mxu0 %v706
  %v874 = vpop.f32.mrf.mxu0
  %v875 = vadd.f32 %v832, %v874
  %v876 = vpop.f32.mrf.mxu0
  %v877 = vadd.f32 %v834, %v876
  %878 = vmatmul.bf16.gmra.mxu0 %v710
  %v879 = vpop.f32.mrf.mxu0
  %v880 = vadd.f32 %v837, %v879
  %v881 = vpop.f32.mrf.mxu0
  %882 = vdwg.mxu0
  %883 = vmatpush.bf16.msra.mxu0 0
  %884 = vmatpush.bf16.msra.mxu0 0
  %885 = vmatpush.bf16.msra.mxu0 0
  %886 = vmatpush.bf16.msra.mxu0 0
  %887 = vmatpush.bf16.msra.mxu0 0
  %888 = vmatpush.bf16.msra.mxu0 0
  %889 = vmatpush.bf16.msra.mxu0 0
  %890 = vmatpush.bf16.msra.mxu0 %v346
  %891 = vmatmul.bf16.gmra.mxu0 %v734
  %v892 = vpop.f32.mrf.mxu0
  %v893 = vadd.f32 %v850, %v892
  %v894 = vpop.f32.mrf.mxu0
  %v895 = vadd.f32 %v852, %v894
  %896 = vmatmul.bf16.gmra.mxu0 %v737
  %v897 = vpop.f32.mrf.mxu0
  %v898 = vadd.f32 %v855, %v897
  %v899 = vpop.f32.mrf.mxu0
  %v900 = vadd.f32 %v857, %v899
  %901 = vmatmul.bf16.gmra.mxu0 %v740
  %v902 = vpop.f32.mrf.mxu0
  %v903 = vadd.f32 %v860, %v902
  %v904 = vpop.f32.mrf.mxu0
  %v905 = vadd.f32 %v862, %v904
  %906 = vmatmul.bf16.gmra.mxu0 %v743
  %v907 = vpop.f32.mrf.mxu0
  %v908 = vadd.f32 %v865, %v907
  %v909 = vpop.f32.mrf.mxu0
  %v910 = vadd.f32 %v867, %v909
  %911 = vmatmul.bf16.gmra.mxu0 %v746
  %v912 = vpop.f32.mrf.mxu0
  %v913 = vadd.f32 %v870, %v912
  %v914 = vpop.f32.mrf.mxu0
  %v915 = vadd.f32 %v872, %v914
  %916 = vmatmul.bf16.gmra.mxu0 %v749
  %v917 = vpop.f32.mrf.mxu0
  %v918 = vadd.f32 %v875, %v917
  %v919 = vpop.f32.mrf.mxu0
  %v920 = vadd.f32 %v877, %v919
  %921 = vmatmul.bf16.gmra.mxu0 %v752
  %v922 = vpop.f32.mrf.mxu0
  %v923 = vadd.f32 %v880, %v922
  %v924 = vpop.f32.mrf.mxu0
  %925 = vdwg.mxu0
  %v926 = vmax.f32 %v893, 0.0
  %v927 = vmax.f32 %v895, 0.0
  %v928 = vmax.f32 %v898, 0.0
  %v929 = vmax.f32 %v900, 0.0
  %v930 = vmax.f32 %v903, 0.0
  %v931 = vmax.f32 %v905, 0.0
  %v932 = vmax.f32 %v908, 0.0
  %v933 = vmax.f32 %v910, 0.0
  %v934 = vmax.f32 %v913, 0.0
  %v935 = vmax.f32 %v915, 0.0
  %v936 = vmax.f32 %v918, 0.0
  %v937 = vmax.f32 %v920, 0.0
  %v938 = vmax.f32 %v923, 0.0
  %v939 = vmax.f32 %v566, %v926
  %v940 = vmax.f32 %v567, %v927
  %v941 = vmax.f32 %v568, %v928
  %v942 = vmax.f32 %v569, %v929
  %v943 = vmax.f32 %v570, %v930
  %v944 = vmax.f32 %v571, %v931
  %v945 = vmax.f32 %v572, %v932
  %v946 = vmax.f32 %v573, %v933
  %v947 = vmax.f32 %v574, %v934
  %v948 = vmax.f32 %v575, %v935
  %v949 = vmax.f32 %v576, %v936
  %v950 = vmax.f32 %v577, %v937
  %v951 = vmax.f32 %v578, %v938
  %s952 = scalar_lea.vmem %s0, 416
  %v953 = vld [vmem:[%s952] sm:$0xff]
  %v954 = vld [vmem:[%s952 + $0x8] sm:$0xff]
  %v955 = vld [vmem:[%s952 + $0x10] sm:$0xff]
  %v956 = vld [vmem:[%s952 + $0x18] sm:$0xff]
  %v957 = vld [vmem:[%s952 + $0x20] sm:$0xff]
  %v958 = vld [vmem:[%s952 + $0x28] sm:$0xff]
  %v959 = vld [vmem:[%s952 + $0x30] sm:$0xff]
  %v960 = vld [vmem:[%s952 + $0x38] sm:$0xff]
  %v961 = vld [vmem:[%s952 + $0x40] sm:$0xff]
  %v962 = vld [vmem:[%s952 + $0x48] sm:$0xff]
  %v963 = vld [vmem:[%s952 + $0x50] sm:$0xff]
  %v964 = vld [vmem:[%s952 + $0x58] sm:$0xff]
  %v965 = vld [vmem:[%s952 + $0x60] sm:$0xff]
  %v966 = vld [vmem:[%s952 + $0x68] sm:$0xff]
  %v967 = vld [vmem:[%s952 + $0x70] sm:$0xff]
  %v968 = vld [vmem:[%s952 + $0x78] sm:$0xff]
  %v969 = vld [vmem:[%s952 + $0x80] sm:$0xff]
  %v970 = vld [vmem:[%s952 + $0x88] sm:$0xff]
  %v971 = vld [vmem:[%s952 + $0x90] sm:$0xff]
  %v972 = vld [vmem:[%s952 + $0x98] sm:$0xff]
  %v973 = vld [vmem:[%s952 + $0xa0] sm:$0xff]
  %v974 = vld [vmem:[%s952 + $0xa8] sm:$0xff]
  %v975 = vld [vmem:[%s952 + $0xb0] sm:$0xff]
  %v976 = vld [vmem:[%s952 + $0xb8] sm:$0xff]
  %v977 = vld [vmem:[%s952 + $0xc0] sm:$0x11]
  %v978 = vld [vmem:[%s952 + $0xc8] sm:$0x11]
  %v1005 = vunpack.c.l.b16 %v953
  %v1006 = vunpack.c.h.b16 %v953
  %v1007 = vunpack.c.l.b16 %v954
  %v1008 = vunpack.c.h.b16 %v954
  %v1009 = vunpack.c.l.b16 %v955
  %v1010 = vunpack.c.h.b16 %v955
  %v1011 = vunpack.c.l.b16 %v956
  %v1012 = vunpack.c.h.b16 %v956
  %v1013 = vunpack.c.l.b16 %v957
  %v1014 = vunpack.c.h.b16 %v957
  %v1015 = vunpack.c.l.b16 %v958
  %v1016 = vunpack.c.h.b16 %v958
  %v1017 = vunpack.c.l.b16 %v959
  %v1018 = vunpack.c.h.b16 %v959
  %v1019 = vunpack.c.l.b16 %v960
  %v1020 = vunpack.c.h.b16 %v960
  %v1021 = vunpack.c.l.b16 %v961
  %v1022 = vunpack.c.h.b16 %v961
  %v1023 = vunpack.c.l.b16 %v962
  %v1024 = vunpack.c.h.b16 %v962
  %v1025 = vunpack.c.l.b16 %v963
  %v1026 = vunpack.c.h.b16 %v963
  %v1027 = vunpack.c.l.b16 %v964
  %v1028 = vunpack.c.h.b16 %v964
  %v1029 = vunpack.c.l.b16 %v965
  %v1030 = vunpack.c.h.b16 %v965
  %v1031 = vunpack.c.l.b16 %v966
  %v1032 = vunpack.c.h.b16 %v966
  %v1033 = vunpack.c.l.b16 %v967
  %v1034 = vunpack.c.h.b16 %v967
  %v1035 = vunpack.c.l.b16 %v968
  %v1036 = vunpack.c.h.b16 %v968
  %v1037 = vunpack.c.l.b16 %v969
  %v1038 = vunpack.c.h.b16 %v969
  %v1039 = vunpack.c.l.b16 %v970
  %v1040 = vunpack.c.h.b16 %v970
  %v1041 = vunpack.c.l.b16 %v971
  %v1042 = vunpack.c.h.b16 %v971
  %v1043 = vunpack.c.l.b16 %v972
  %v1044 = vunpack.c.h.b16 %v972
  %v1045 = vunpack.c.l.b16 %v973
  %v1046 = vunpack.c.h.b16 %v973
  %v1047 = vunpack.c.l.b16 %v974
  %v1048 = vunpack.c.h.b16 %v974
  %v1049 = vunpack.c.l.b16 %v975
  %v1050 = vunpack.c.h.b16 %v975
  %v1051 = vunpack.c.l.b16 %v976
  %v1052 = vunpack.c.h.b16 %v976
  %v1053 = vunpack.c.l.b16 %v977
  %v1054 = vunpack.c.h.b16 %v977
  %v1055 = vunpack.c.l.b16 %v978
  %v1056 = vunpack.c.h.b16 %v978
  %v1057 = vpack.c.b16 %v1009, %v1005
  %v1058 = vpack.c.b16 %v1010, %v1006
  %v1059 = vpack.c.b16 %v1011, %v1007
  %v1060 = vpack.c.b16 %v1012, %v1008
  %v1061 = vpack.c.b16 %v1017, %v1013
  %v1062 = vpack.c.b16 %v1018, %v1014
  %v1063 = vpack.c.b16 %v1019, %v1015
  %v1064 = vpack.c.b16 %v1020, %v1016
  %v1065 = vpack.c.b16 %v1025, %v1021
  %v1066 = vpack.c.b16 %v1026, %v1022
  %v1067 = vpack.c.b16 %v1027, %v1023
  %v1068 = vpack.c.b16 %v1028, %v1024
  %v1069 = vpack.c.b16 %v1033, %v1029
  %v1070 = vpack.c.b16 %v1034, %v1030
  %v1071 = vpack.c.b16 %v1035, %v1031
  %v1072 = vpack.c.b16 %v1036, %v1032
  %v1073 = vpack.c.b16 %v1041, %v1037
  %v1074 = vpack.c.b16 %v1042, %v1038
  %v1075 = vpack.c.b16 %v1043, %v1039
  %v1076 = vpack.c.b16 %v1044, %v1040
  %v1077 = vpack.c.b16 %v1049, %v1045
  %v1078 = vpack.c.b16 %v1050, %v1046
  %v1079 = vpack.c.b16 %v1051, %v1047
  %v1080 = vpack.c.b16 %v1052, %v1048
  %v1081 = vpack.c.b16 %v1053, %v1053
  %v1082 = vpack.c.b16 %v1054, %v1054
  %v1083 = vpack.c.b16 %v1055, %v1055
  %v1084 = vpack.c.b16 %v1056, %v1056
  %v1107 = vsel %vm372, %v1060, 0
  %v1110 = vsel %vm372, %v1064, 0
  %v1113 = vsel %vm372, %v1068, 0
  %v1116 = vsel %vm372, %v1072, 0
  %v1119 = vsel %vm372, %v1076, 0
  %v1122 = vsel %vm372, %v1080, 0
  %v1125 = vsel %vm372, %v1084, 0
  %1127 = vmatpush.bf16.msra.mxu0 %v329
  %1128 = vmatpush.bf16.msra.mxu0 %v328
  %1129 = vmatpush.bf16.msra.mxu0 %v327
  %1130 = vmatpush.bf16.msra.mxu0 %v326
  %1131 = vmatpush.bf16.msra.mxu0 %v325
  %1132 = vmatpush.bf16.msra.mxu0 %v324
  %1133 = vmatpush.bf16.msra.mxu0 %v323
  %1134 = vmatpush.bf16.msra.mxu0 %v322
  %1135 = vmatmul.bf16.gmra.mxu0 %v1057
  %v1136 = vpop.f32.mrf.mxu0
  %v1137 = vadd.f32 %v93, %v1136
  %v1138 = vpop.f32.mrf.mxu0
  %v1139 = vadd.f32 %v93, %v1138
  %1140 = vmatmul.bf16.gmra.mxu0 %v1061
  %v1141 = vpop.f32.mrf.mxu0
  %v1142 = vadd.f32 %v93, %v1141
  %v1143 = vpop.f32.mrf.mxu0
  %v1144 = vadd.f32 %v93, %v1143
  %1145 = vmatmul.bf16.gmra.mxu0 %v1065
  %v1146 = vpop.f32.mrf.mxu0
  %v1147 = vadd.f32 %v93, %v1146
  %v1148 = vpop.f32.mrf.mxu0
  %v1149 = vadd.f32 %v93, %v1148
  %1150 = vmatmul.bf16.gmra.mxu0 %v1069
  %v1151 = vpop.f32.mrf.mxu0
  %v1152 = vadd.f32 %v93, %v1151
  %v1153 = vpop.f32.mrf.mxu0
  %v1154 = vadd.f32 %v93, %v1153
  %1155 = vmatmul.bf16.gmra.mxu0 %v1073
  %v1156 = vpop.f32.mrf.mxu0
  %v1157 = vadd.f32 %v93, %v1156
  %v1158 = vpop.f32.mrf.mxu0
  %v1159 = vadd.f32 %v93, %v1158
  %1160 = vmatmul.bf16.gmra.mxu0 %v1077
  %v1161 = vpop.f32.mrf.mxu0
  %v1162 = vadd.f32 %v93, %v1161
  %v1163 = vpop.f32.mrf.mxu0
  %v1164 = vadd.f32 %v93, %v1163
  %1165 = vmatmul.bf16.gmra.mxu0 %v1081
  %v1166 = vpop.f32.mrf.mxu0
  %v1167 = vadd.f32 %v93, %v1166
  %v1168 = vpop.f32.mrf.mxu0
  %1169 = vdwg.mxu0
  %1170 = vmatpush.bf16.msra.mxu0 %v337
  %1171 = vmatpush.bf16.msra.mxu0 %v336
  %1172 = vmatpush.bf16.msra.mxu0 %v335
  %1173 = vmatpush.bf16.msra.mxu0 %v334
  %1174 = vmatpush.bf16.msra.mxu0 %v333
  %1175 = vmatpush.bf16.msra.mxu0 %v332
  %1176 = vmatpush.bf16.msra.mxu0 %v331
  %1177 = vmatpush.bf16.msra.mxu0 %v330
  %1178 = vmatmul.bf16.gmra.mxu0 %v1058
  %v1179 = vpop.f32.mrf.mxu0
  %v1180 = vadd.f32 %v1137, %v1179
  %v1181 = vpop.f32.mrf.mxu0
  %v1182 = vadd.f32 %v1139, %v1181
  %1183 = vmatmul.bf16.gmra.mxu0 %v1062
  %v1184 = vpop.f32.mrf.mxu0
  %v1185 = vadd.f32 %v1142, %v1184
  %v1186 = vpop.f32.mrf.mxu0
  %v1187 = vadd.f32 %v1144, %v1186
  %1188 = vmatmul.bf16.gmra.mxu0 %v1066
  %v1189 = vpop.f32.mrf.mxu0
  %v1190 = vadd.f32 %v1147, %v1189
  %v1191 = vpop.f32.mrf.mxu0
  %v1192 = vadd.f32 %v1149, %v1191
  %1193 = vmatmul.bf16.gmra.mxu0 %v1070
  %v1194 = vpop.f32.mrf.mxu0
  %v1195 = vadd.f32 %v1152, %v1194
  %v1196 = vpop.f32.mrf.mxu0
  %v1197 = vadd.f32 %v1154, %v1196
  %1198 = vmatmul.bf16.gmra.mxu0 %v1074
  %v1199 = vpop.f32.mrf.mxu0
  %v1200 = vadd.f32 %v1157, %v1199
  %v1201 = vpop.f32.mrf.mxu0
  %v1202 = vadd.f32 %v1159, %v1201
  %1203 = vmatmul.bf16.gmra.mxu0 %v1078
  %v1204 = vpop.f32.mrf.mxu0
  %v1205 = vadd.f32 %v1162, %v1204
  %v1206 = vpop.f32.mrf.mxu0
  %v1207 = vadd.f32 %v1164, %v1206
  %1208 = vmatmul.bf16.gmra.mxu0 %v1082
  %v1209 = vpop.f32.mrf.mxu0
  %v1210 = vadd.f32 %v1167, %v1209
  %v1211 = vpop.f32.mrf.mxu0
  %1212 = vdwg.mxu0
  %1213 = vmatpush.bf16.msra.mxu0 %v345
  %1214 = vmatpush.bf16.msra.mxu0 %v344
  %1215 = vmatpush.bf16.msra.mxu0 %v343
  %1216 = vmatpush.bf16.msra.mxu0 %v342
  %1217 = vmatpush.bf16.msra.mxu0 %v341
  %1218 = vmatpush.bf16.msra.mxu0 %v340
  %1219 = vmatpush.bf16.msra.mxu0 %v339
  %1220 = vmatpush.bf16.msra.mxu0 %v338
  %1221 = vmatmul.bf16.gmra.mxu0 %v1059
  %v1222 = vpop.f32.mrf.mxu0
  %v1223 = vadd.f32 %v1180, %v1222
  %v1224 = vpop.f32.mrf.mxu0
  %v1225 = vadd.f32 %v1182, %v1224
  %1226 = vmatmul.bf16.gmra.mxu0 %v1063
  %v1227 = vpop.f32.mrf.mxu0
  %v1228 = vadd.f32 %v1185, %v1227
  %v1229 = vpop.f32.mrf.mxu0
  %v1230 = vadd.f32 %v1187, %v1229
  %1231 = vmatmul.bf16.gmra.mxu0 %v1067
  %v1232 = vpop.f32.mrf.mxu0
  %v1233 = vadd.f32 %v1190, %v1232
  %v1234 = vpop.f32.mrf.mxu0
  %v1235 = vadd.f32 %v1192, %v1234
  %1236 = vmatmul.bf16.gmra.mxu0 %v1071
  %v1237 = vpop.f32.mrf.mxu0
  %v1238 = vadd.f32 %v1195, %v1237
  %v1239 = vpop.f32.mrf.mxu0
  %v1240 = vadd.f32 %v1197, %v1239
  %1241 = vmatmul.bf16.gmra.mxu0 %v1075
  %v1242 = vpop.f32.mrf.mxu0
  %v1243 = vadd.f32 %v1200, %v1242
  %v1244 = vpop.f32.mrf.mxu0
  %v1245 = vadd.f32 %v1202, %v1244
  %1246 = vmatmul.bf16.gmra.mxu0 %v1079
  %v1247 = vpop.f32.mrf.mxu0
  %v1248 = vadd.f32 %v1205, %v1247
  %v1249 = vpop.f32.mrf.mxu0
  %v1250 = vadd.f32 %v1207, %v1249
  %1251 = vmatmul.bf16.gmra.mxu0 %v1083
  %v1252 = vpop.f32.mrf.mxu0
  %v1253 = vadd.f32 %v1210, %v1252
  %v1254 = vpop.f32.mrf.mxu0
  %1255 = vdwg.mxu0
  %1256 = vmatpush.bf16.msra.mxu0 0
  %1257 = vmatpush.bf16.msra.mxu0 0
  %1258 = vmatpush.bf16.msra.mxu0 0
  %1259 = vmatpush.bf16.msra.mxu0 0
  %1260 = vmatpush.bf16.msra.mxu0 0
  %1261 = vmatpush.bf16.msra.mxu0 0
  %1262 = vmatpush.bf16.msra.mxu0 0
  %1263 = vmatpush.bf16.msra.mxu0 %v346
  %1264 = vmatmul.bf16.gmra.mxu0 %v1107
  %v1265 = vpop.f32.mrf.mxu0
  %v1266 = vadd.f32 %v1223, %v1265
  %v1267 = vpop.f32.mrf.mxu0
  %v1268 = vadd.f32 %v1225, %v1267
  %1269 = vmatmul.bf16.gmra.mxu0 %v1110
  %v1270 = vpop.f32.mrf.mxu0
  %v1271 = vadd.f32 %v1228, %v1270
  %v1272 = vpop.f32.mrf.mxu0
  %v1273 = vadd.f32 %v1230, %v1272
  %1274 = vmatmul.bf16.gmra.mxu0 %v1113
  %v1275 = vpop.f32.mrf.mxu0
  %v1276 = vadd.f32 %v1233, %v1275
  %v1277 = vpop.f32.mrf.mxu0
  %v1278 = vadd.f32 %v1235, %v1277
  %1279 = vmatmul.bf16.gmra.mxu0 %v1116
  %v1280 = vpop.f32.mrf.mxu0
  %v1281 = vadd.f32 %v1238, %v1280
  %v1282 = vpop.f32.mrf.mxu0
  %v1283 = vadd.f32 %v1240, %v1282
  %1284 = vmatmul.bf16.gmra.mxu0 %v1119
  %v1285 = vpop.f32.mrf.mxu0
  %v1286 = vadd.f32 %v1243, %v1285
  %v1287 = vpop.f32.mrf.mxu0
  %v1288 = vadd.f32 %v1245, %v1287
  %1289 = vmatmul.bf16.gmra.mxu0 %v1122
  %v1290 = vpop.f32.mrf.mxu0
  %v1291 = vadd.f32 %v1248, %v1290
  %v1292 = vpop.f32.mrf.mxu0
  %v1293 = vadd.f32 %v1250, %v1292
  %1294 = vmatmul.bf16.gmra.mxu0 %v1125
  %v1295 = vpop.f32.mrf.mxu0
  %v1296 = vadd.f32 %v1253, %v1295
  %v1297 = vpop.f32.mrf.mxu0
  %1298 = vdwg.mxu0
  %v1299 = vmax.f32 %v1266, 0.0
  %v1300 = vmax.f32 %v1268, 0.0
  %v1301 = vmax.f32 %v1271, 0.0
  %v1302 = vmax.f32 %v1273, 0.0
  %v1303 = vmax.f32 %v1276, 0.0
  %v1304 = vmax.f32 %v1278, 0.0
  %v1305 = vmax.f32 %v1281, 0.0
  %v1306 = vmax.f32 %v1283, 0.0
  %v1307 = vmax.f32 %v1286, 0.0
  %v1308 = vmax.f32 %v1288, 0.0
  %v1309 = vmax.f32 %v1291, 0.0
  %v1310 = vmax.f32 %v1293, 0.0
  %v1311 = vmax.f32 %v1296, 0.0
  %v1312 = vmax.f32 %v939, %v1299
  %v1313 = vmax.f32 %v940, %v1300
  %v1314 = vmax.f32 %v941, %v1301
  %v1315 = vmax.f32 %v942, %v1302
  %v1316 = vmax.f32 %v943, %v1303
  %v1317 = vmax.f32 %v944, %v1304
  %v1318 = vmax.f32 %v945, %v1305
  %v1319 = vmax.f32 %v946, %v1306
  %v1320 = vmax.f32 %v947, %v1307
  %v1321 = vmax.f32 %v948, %v1308
  %v1322 = vmax.f32 %v949, %v1309
  %v1323 = vmax.f32 %v950, %v1310
  %v1324 = vmax.f32 %v951, %v1311
  %s1325 = scalar_lea.vmem %s0, 624
  %v1326 = vld [vmem:[%s1325] sm:$0xff]
  %v1327 = vld [vmem:[%s1325 + $0x8] sm:$0xff]
  %v1328 = vld [vmem:[%s1325 + $0x10] sm:$0xff]
  %v1329 = vld [vmem:[%s1325 + $0x18] sm:$0xff]
  %v1330 = vld [vmem:[%s1325 + $0x20] sm:$0xff]
  %v1331 = vld [vmem:[%s1325 + $0x28] sm:$0xff]
  %v1332 = vld [vmem:[%s1325 + $0x30] sm:$0xff]
  %v1333 = vld [vmem:[%s1325 + $0x38] sm:$0xff]
  %v1334 = vld [vmem:[%s1325 + $0x40] sm:$0xff]
  %v1335 = vld [vmem:[%s1325 + $0x48] sm:$0xff]
  %v1336 = vld [vmem:[%s1325 + $0x50] sm:$0xff]
  %v1337 = vld [vmem:[%s1325 + $0x58] sm:$0xff]
  %v1338 = vld [vmem:[%s1325 + $0x60] sm:$0xff]
  %v1339 = vld [vmem:[%s1325 + $0x68] sm:$0xff]
  %v1340 = vld [vmem:[%s1325 + $0x70] sm:$0xff]
  %v1341 = vld [vmem:[%s1325 + $0x78] sm:$0xff]
  %v1342 = vld [vmem:[%s1325 + $0x80] sm:$0xff]
  %v1343 = vld [vmem:[%s1325 + $0x88] sm:$0xff]
  %v1344 = vld [vmem:[%s1325 + $0x90] sm:$0xff]
  %v1345 = vld [vmem:[%s1325 + $0x98] sm:$0xff]
  %v1346 = vld [vmem:[%s1325 + $0xa0] sm:$0xff]
  %v1347 = vld [vmem:[%s1325 + $0xa8] sm:$0xff]
  %v1348 = vld [vmem:[%s1325 + $0xb0] sm:$0xff]
  %v1349 = vld [vmem:[%s1325 + $0xb8] sm:$0xff]
  %v1350 = vld [vmem:[%s1325 + $0xc0] sm:$0x11]
  %v1351 = vld [vmem:[%s1325 + $0xc8] sm:$0x11]
  %v1378 = vunpack.c.l.b16 %v1326
  %v1379 = vunpack.c.h.b16 %v1326
  %v1380 = vunpack.c.l.b16 %v1327
  %v1381 = vunpack.c.h.b16 %v1327
  %v1382 = vunpack.c.l.b16 %v1328
  %v1383 = vunpack.c.h.b16 %v1328
  %v1384 = vunpack.c.l.b16 %v1329
  %v1385 = vunpack.c.h.b16 %v1329
  %v1386 = vunpack.c.l.b16 %v1330
  %v1387 = vunpack.c.h.b16 %v1330
  %v1388 = vunpack.c.l.b16 %v1331
  %v1389 = vunpack.c.h.b16 %v1331
  %v1390 = vunpack.c.l.b16 %v1332
  %v1391 = vunpack.c.h.b16 %v1332
  %v1392 = vunpack.c.l.b16 %v1333
  %v1393 = vunpack.c.h.b16 %v1333
  %v1394 = vunpack.c.l.b16 %v1334
  %v1395 = vunpack.c.h.b16 %v1334
  %v1396 = vunpack.c.l.b16 %v1335
  %v1397 = vunpack.c.h.b16 %v1335
  %v1398 = vunpack.c.l.b16 %v1336
  %v1399 = vunpack.c.h.b16 %v1336
  %v1400 = vunpack.c.l.b16 %v1337
  %v1401 = vunpack.c.h.b16 %v1337
  %v1402 = vunpack.c.l.b16 %v1338
  %v1403 = vunpack.c.h.b16 %v1338
  %v1404 = vunpack.c.l.b16 %v1339
  %v1405 = vunpack.c.h.b16 %v1339
  %v1406 = vunpack.c.l.b16 %v1340
  %v1407 = vunpack.c.h.b16 %v1340
  %v1408 = vunpack.c.l.b16 %v1341
  %v1409 = vunpack.c.h.b16 %v1341
  %v1410 = vunpack.c.l.b16 %v1342
  %v1411 = vunpack.c.h.b16 %v1342
  %v1412 = vunpack.c.l.b16 %v1343
  %v1413 = vunpack.c.h.b16 %v1343
  %v1414 = vunpack.c.l.b16 %v1344
  %v1415 = vunpack.c.h.b16 %v1344
  %v1416 = vunpack.c.l.b16 %v1345
  %v1417 = vunpack.c.h.b16 %v1345
  %v1418 = vunpack.c.l.b16 %v1346
  %v1419 = vunpack.c.h.b16 %v1346
  %v1420 = vunpack.c.l.b16 %v1347
  %v1421 = vunpack.c.h.b16 %v1347
  %v1422 = vunpack.c.l.b16 %v1348
  %v1423 = vunpack.c.h.b16 %v1348
  %v1424 = vunpack.c.l.b16 %v1349
  %v1425 = vunpack.c.h.b16 %v1349
  %v1426 = vunpack.c.l.b16 %v1350
  %v1427 = vunpack.c.h.b16 %v1350
  %v1428 = vunpack.c.l.b16 %v1351
  %v1429 = vunpack.c.h.b16 %v1351
  %v1430 = vpack.c.b16 %v1382, %v1378
  %v1431 = vpack.c.b16 %v1383, %v1379
  %v1432 = vpack.c.b16 %v1384, %v1380
  %v1433 = vpack.c.b16 %v1385, %v1381
  %v1434 = vpack.c.b16 %v1390, %v1386
  %v1435 = vpack.c.b16 %v1391, %v1387
  %v1436 = vpack.c.b16 %v1392, %v1388
  %v1437 = vpack.c.b16 %v1393, %v1389
  %v1438 = vpack.c.b16 %v1398, %v1394
  %v1439 = vpack.c.b16 %v1399, %v1395
  %v1440 = vpack.c.b16 %v1400, %v1396
  %v1441 = vpack.c.b16 %v1401, %v1397
  %v1442 = vpack.c.b16 %v1406, %v1402
  %v1443 = vpack.c.b16 %v1407, %v1403
  %v1444 = vpack.c.b16 %v1408, %v1404
  %v1445 = vpack.c.b16 %v1409, %v1405
  %v1446 = vpack.c.b16 %v1414, %v1410
  %v1447 = vpack.c.b16 %v1415, %v1411
  %v1448 = vpack.c.b16 %v1416, %v1412
  %v1449 = vpack.c.b16 %v1417, %v1413
  %v1450 = vpack.c.b16 %v1422, %v1418
  %v1451 = vpack.c.b16 %v1423, %v1419
  %v1452 = vpack.c.b16 %v1424, %v1420
  %v1453 = vpack.c.b16 %v1425, %v1421
  %v1454 = vpack.c.b16 %v1426, %v1426
  %v1455 = vpack.c.b16 %v1427, %v1427
  %v1456 = vpack.c.b16 %v1428, %v1428
  %v1457 = vpack.c.b16 %v1429, %v1429
  %v1480 = vsel %vm372, %v1433, 0
  %v1483 = vsel %vm372, %v1437, 0
  %v1486 = vsel %vm372, %v1441, 0
  %v1489 = vsel %vm372, %v1445, 0
  %v1492 = vsel %vm372, %v1449, 0
  %v1495 = vsel %vm372, %v1453, 0
  %v1498 = vsel %vm372, %v1457, 0
  %1500 = vmatpush.bf16.msra.mxu0 %v329
  %1501 = vmatpush.bf16.msra.mxu0 %v328
  %1502 = vmatpush.bf16.msra.mxu0 %v327
  %1503 = vmatpush.bf16.msra.mxu0 %v326
  %1504 = vmatpush.bf16.msra.mxu0 %v325
  %1505 = vmatpush.bf16.msra.mxu0 %v324
  %1506 = vmatpush.bf16.msra.mxu0 %v323
  %1507 = vmatpush.bf16.msra.mxu0 %v322
  %1508 = vmatmul.bf16.gmra.mxu0 %v1430
  %v1509 = vpop.f32.mrf.mxu0
  %v1510 = vadd.f32 %v93, %v1509
  %v1511 = vpop.f32.mrf.mxu0
  %v1512 = vadd.f32 %v93, %v1511
  %1513 = vmatmul.bf16.gmra.mxu0 %v1434
  %v1514 = vpop.f32.mrf.mxu0
  %v1515 = vadd.f32 %v93, %v1514
  %v1516 = vpop.f32.mrf.mxu0
  %v1517 = vadd.f32 %v93, %v1516
  %1518 = vmatmul.bf16.gmra.mxu0 %v1438
  %v1519 = vpop.f32.mrf.mxu0
  %v1520 = vadd.f32 %v93, %v1519
  %v1521 = vpop.f32.mrf.mxu0
  %v1522 = vadd.f32 %v93, %v1521
  %1523 = vmatmul.bf16.gmra.mxu0 %v1442
  %v1524 = vpop.f32.mrf.mxu0
  %v1525 = vadd.f32 %v93, %v1524
  %v1526 = vpop.f32.mrf.mxu0
  %v1527 = vadd.f32 %v93, %v1526
  %1528 = vmatmul.bf16.gmra.mxu0 %v1446
  %v1529 = vpop.f32.mrf.mxu0
  %v1530 = vadd.f32 %v93, %v1529
  %v1531 = vpop.f32.mrf.mxu0
  %v1532 = vadd.f32 %v93, %v1531
  %1533 = vmatmul.bf16.gmra.mxu0 %v1450
  %v1534 = vpop.f32.mrf.mxu0
  %v1535 = vadd.f32 %v93, %v1534
  %v1536 = vpop.f32.mrf.mxu0
  %v1537 = vadd.f32 %v93, %v1536
  %1538 = vmatmul.bf16.gmra.mxu0 %v1454
  %v1539 = vpop.f32.mrf.mxu0
  %v1540 = vadd.f32 %v93, %v1539
  %v1541 = vpop.f32.mrf.mxu0
  %1542 = vdwg.mxu0
  %1543 = vmatpush.bf16.msra.mxu0 %v337
  %1544 = vmatpush.bf16.msra.mxu0 %v336
  %1545 = vmatpush.bf16.msra.mxu0 %v335
  %1546 = vmatpush.bf16.msra.mxu0 %v334
  %1547 = vmatpush.bf16.msra.mxu0 %v333
  %1548 = vmatpush.bf16.msra.mxu0 %v332
  %1549 = vmatpush.bf16.msra.mxu0 %v331
  %1550 = vmatpush.bf16.msra.mxu0 %v330
  %1551 = vmatmul.bf16.gmra.mxu0 %v1431
  %v1552 = vpop.f32.mrf.mxu0
  %v1553 = vadd.f32 %v1510, %v1552
  %v1554 = vpop.f32.mrf.mxu0
  %v1555 = vadd.f32 %v1512, %v1554
  %1556 = vmatmul.bf16.gmra.mxu0 %v1435
  %v1557 = vpop.f32.mrf.mxu0
  %v1558 = vadd.f32 %v1515, %v1557
  %v1559 = vpop.f32.mrf.mxu0
  %v1560 = vadd.f32 %v1517, %v1559
  %1561 = vmatmul.bf16.gmra.mxu0 %v1439
  %v1562 = vpop.f32.mrf.mxu0
  %v1563 = vadd.f32 %v1520, %v1562
  %v1564 = vpop.f32.mrf.mxu0
  %v1565 = vadd.f32 %v1522, %v1564
  %1566 = vmatmul.bf16.gmra.mxu0 %v1443
  %v1567 = vpop.f32.mrf.mxu0
  %v1568 = vadd.f32 %v1525, %v1567
  %v1569 = vpop.f32.mrf.mxu0
  %v1570 = vadd.f32 %v1527, %v1569
  %1571 = vmatmul.bf16.gmra.mxu0 %v1447
  %v1572 = vpop.f32.mrf.mxu0
  %v1573 = vadd.f32 %v1530, %v1572
  %v1574 = vpop.f32.mrf.mxu0
  %v1575 = vadd.f32 %v1532, %v1574
  %1576 = vmatmul.bf16.gmra.mxu0 %v1451
  %v1577 = vpop.f32.mrf.mxu0
  %v1578 = vadd.f32 %v1535, %v1577
  %v1579 = vpop.f32.mrf.mxu0
  %v1580 = vadd.f32 %v1537, %v1579
  %1581 = vmatmul.bf16.gmra.mxu0 %v1455
  %v1582 = vpop.f32.mrf.mxu0
  %v1583 = vadd.f32 %v1540, %v1582
  %v1584 = vpop.f32.mrf.mxu0
  %1585 = vdwg.mxu0
  %1586 = vmatpush.bf16.msra.mxu0 %v345
  %1587 = vmatpush.bf16.msra.mxu0 %v344
  %1588 = vmatpush.bf16.msra.mxu0 %v343
  %1589 = vmatpush.bf16.msra.mxu0 %v342
  %1590 = vmatpush.bf16.msra.mxu0 %v341
  %1591 = vmatpush.bf16.msra.mxu0 %v340
  %1592 = vmatpush.bf16.msra.mxu0 %v339
  %1593 = vmatpush.bf16.msra.mxu0 %v338
  %1594 = vmatmul.bf16.gmra.mxu0 %v1432
  %v1595 = vpop.f32.mrf.mxu0
  %v1596 = vadd.f32 %v1553, %v1595
  %v1597 = vpop.f32.mrf.mxu0
  %v1598 = vadd.f32 %v1555, %v1597
  %1599 = vmatmul.bf16.gmra.mxu0 %v1436
  %v1600 = vpop.f32.mrf.mxu0
  %v1601 = vadd.f32 %v1558, %v1600
  %v1602 = vpop.f32.mrf.mxu0
  %v1603 = vadd.f32 %v1560, %v1602
  %1604 = vmatmul.bf16.gmra.mxu0 %v1440
  %v1605 = vpop.f32.mrf.mxu0
  %v1606 = vadd.f32 %v1563, %v1605
  %v1607 = vpop.f32.mrf.mxu0
  %v1608 = vadd.f32 %v1565, %v1607
  %1609 = vmatmul.bf16.gmra.mxu0 %v1444
  %v1610 = vpop.f32.mrf.mxu0
  %v1611 = vadd.f32 %v1568, %v1610
  %v1612 = vpop.f32.mrf.mxu0
  %v1613 = vadd.f32 %v1570, %v1612
  %1614 = vmatmul.bf16.gmra.mxu0 %v1448
  %v1615 = vpop.f32.mrf.mxu0
  %v1616 = vadd.f32 %v1573, %v1615
  %v1617 = vpop.f32.mrf.mxu0
  %v1618 = vadd.f32 %v1575, %v1617
  %1619 = vmatmul.bf16.gmra.mxu0 %v1452
  %v1620 = vpop.f32.mrf.mxu0
  %v1621 = vadd.f32 %v1578, %v1620
  %v1622 = vpop.f32.mrf.mxu0
  %v1623 = vadd.f32 %v1580, %v1622
  %1624 = vmatmul.bf16.gmra.mxu0 %v1456
  %v1625 = vpop.f32.mrf.mxu0
  %v1626 = vadd.f32 %v1583, %v1625
  %v1627 = vpop.f32.mrf.mxu0
  %1628 = vdwg.mxu0
  %1629 = vmatpush.bf16.msra.mxu0 0
  %1630 = vmatpush.bf16.msra.mxu0 0
  %1631 = vmatpush.bf16.msra.mxu0 0
  %1632 = vmatpush.bf16.msra.mxu0 0
  %1633 = vmatpush.bf16.msra.mxu0 0
  %1634 = vmatpush.bf16.msra.mxu0 0
  %1635 = vmatpush.bf16.msra.mxu0 0
  %1636 = vmatpush.bf16.msra.mxu0 %v346
  %1637 = vmatmul.bf16.gmra.mxu0 %v1480
  %v1638 = vpop.f32.mrf.mxu0
  %v1639 = vadd.f32 %v1596, %v1638
  %v1640 = vpop.f32.mrf.mxu0
  %v1641 = vadd.f32 %v1598, %v1640
  %1642 = vmatmul.bf16.gmra.mxu0 %v1483
  %v1643 = vpop.f32.mrf.mxu0
  %v1644 = vadd.f32 %v1601, %v1643
  %v1645 = vpop.f32.mrf.mxu0
  %v1646 = vadd.f32 %v1603, %v1645
  %1647 = vmatmul.bf16.gmra.mxu0 %v1486
  %v1648 = vpop.f32.mrf.mxu0
  %v1649 = vadd.f32 %v1606, %v1648
  %v1650 = vpop.f32.mrf.mxu0
  %v1651 = vadd.f32 %v1608, %v1650
  %1652 = vmatmul.bf16.gmra.mxu0 %v1489
  %v1653 = vpop.f32.mrf.mxu0
  %v1654 = vadd.f32 %v1611, %v1653
  %v1655 = vpop.f32.mrf.mxu0
  %v1656 = vadd.f32 %v1613, %v1655
  %1657 = vmatmul.bf16.gmra.mxu0 %v1492
  %v1658 = vpop.f32.mrf.mxu0
  %v1659 = vadd.f32 %v1616, %v1658
  %v1660 = vpop.f32.mrf.mxu0
  %v1661 = vadd.f32 %v1618, %v1660
  %1662 = vmatmul.bf16.gmra.mxu0 %v1495
  %v1663 = vpop.f32.mrf.mxu0
  %v1664 = vadd.f32 %v1621, %v1663
  %v1665 = vpop.f32.mrf.mxu0
  %v1666 = vadd.f32 %v1623, %v1665
  %1667 = vmatmul.bf16.gmra.mxu0 %v1498
  %v1668 = vpop.f32.mrf.mxu0
  %v1669 = vadd.f32 %v1626, %v1668
  %v1670 = vpop.f32.mrf.mxu0
  %1671 = vdwg.mxu0
  %v1672 = vmax.f32 %v1639, 0.0
  %v1673 = vmax.f32 %v1641, 0.0
  %v1674 = vmax.f32 %v1644, 0.0
  %v1675 = vmax.f32 %v1646, 0.0
  %v1676 = vmax.f32 %v1649, 0.0
  %v1677 = vmax.f32 %v1651, 0.0
  %v1678 = vmax.f32 %v1654, 0.0
  %v1679 = vmax.f32 %v1656, 0.0
  %v1680 = vmax.f32 %v1659, 0.0
  %v1681 = vmax.f32 %v1661, 0.0
  %v1682 = vmax.f32 %v1664, 0.0
  %v1683 = vmax.f32 %v1666, 0.0
  %v1684 = vmax.f32 %v1669, 0.0
  %v1685 = vmax.f32 %v1312, %v1672
  %v1686 = vmax.f32 %v1313, %v1673
  %v1687 = vmax.f32 %v1314, %v1674
  %v1688 = vmax.f32 %v1315, %v1675
  %v1689 = vmax.f32 %v1316, %v1676
  %v1690 = vmax.f32 %v1317, %v1677
  %v1691 = vmax.f32 %v1318, %v1678
  %v1692 = vmax.f32 %v1319, %v1679
  %v1693 = vmax.f32 %v1320, %v1680
  %v1694 = vmax.f32 %v1321, %v1681
  %v1695 = vmax.f32 %v1322, %v1682
  %v1696 = vmax.f32 %v1323, %v1683
  %v1697 = vmax.f32 %v1324, %v1684
  %v1698 = vpack.c.bf16 %v1685, %v1685
  %v1699 = vpack.c.bf16 %v1686, %v1686
  %v1700 = vpack.c.bf16 %v1687, %v1687
  %v1701 = vpack.c.bf16 %v1688, %v1688
  %v1702 = vpack.c.bf16 %v1689, %v1689
  %v1703 = vpack.c.bf16 %v1690, %v1690
  %v1704 = vpack.c.bf16 %v1691, %v1691
  %v1705 = vpack.c.bf16 %v1692, %v1692
  %v1706 = vpack.c.bf16 %v1693, %v1693
  %v1707 = vpack.c.bf16 %v1694, %v1694
  %v1708 = vpack.c.bf16 %v1695, %v1695
  %v1709 = vpack.c.bf16 %v1696, %v1696
  %v1710 = vpack.c.bf16 %v1697, %v1697
  %1711 = vst [vmem:[%s3] sm:$0xf] %v1698
  %1712 = vst [vmem:[%s3 + $0x4] sm:$0xf] %v1699
  %1713 = vst [vmem:[%s3 + $0x8] sm:$0xf] %v1700
  %1714 = vst [vmem:[%s3 + $0xc] sm:$0xf] %v1701
  %1715 = vst [vmem:[%s3 + $0x10] sm:$0xf] %v1702
  %1716 = vst [vmem:[%s3 + $0x14] sm:$0xf] %v1703
  %1717 = vst [vmem:[%s3 + $0x18] sm:$0xf] %v1704
  %1718 = vst [vmem:[%s3 + $0x1c] sm:$0xf] %v1705
  %1719 = vst [vmem:[%s3 + $0x20] sm:$0xf] %v1706
  %1720 = vst [vmem:[%s3 + $0x24] sm:$0xf] %v1707
  %1721 = vst [vmem:[%s3 + $0x28] sm:$0xf] %v1708
  %1722 = vst [vmem:[%s3 + $0x2c] sm:$0xf] %v1709
  %1723 = vst [vmem:[%s3 + $0x30] sm:$0x1] %v1710
  // Predicated region
  $region14: #{convnet_forward.4} parent=0 // pred_check
    _
  $region15: #{convnet_forward.4} parent=0 // pred_check_branch
    %1725 = sbr.rel (0) target = $region17
  $region16: #{convnet_forward.4} parent=0 // pred_region
    _
  $region17: #{convnet_forward.4} parent=0 // pred_fallthru
    _
  // Predicated region
  $region18: #{convnet_forward.4} parent=0 // pred_check
    _
  $region19: #{convnet_forward.4} parent=0 // pred_check_branch
    %1727 = sbr.rel (0) target = $region21
  $region20: #{convnet_forward.4} parent=0 // pred_region
    _
  $region21: #{convnet_forward.4} parent=0 // pred_fallthru
    _

// kernel: convnet_forward.5
$region0: #{convnet_forward.5}
  #allocation0 [shape = 'u32[]', space=smem, size = 0x4, offset = 0x4, fixed_abs, tag = 'smem constant byte address 0x4 - core index']
  #allocation1 [shape = 'u32[72,128]{1,0:T(1,128)}', space=vmem, size = 0x9000, scoped, tag = 'internal scratch']
  %s0 = inlined_call_operand.vmem [shape: bf16[2,6272], index: 0, kind: input, shape index: {}]
  %s1 = inlined_call_operand.vmem [shape: bf16[6272,128], index: 1, kind: input, shape index: {}]
  %s2 = inlined_call_operand.vmem [shape: f32[1,128], index: 2, kind: input, shape index: {}]
  %s3 = inlined_call_operand.hbm [shape: f32[2,128], index: 3, kind: output, shape index: {}]
  %s4 = sld [smem:[#allocation0]]
  $region22: #{convnet_forward.5} parent=0
    _
  %s6 = ssub.s32 1, %s4
  %s7 = scalar_select 0, %s6, %s4
  $region1: #{convnet_forward.5} parent=0
    #allocation2 [shape = 'u8[1024]{0}', space=vmem, size = 0x400, scoped, tag = 'output window, operand 0, single buffered']
    #allocation3 [shape = 's32[1]{0}', space=sflag, size = 0x4, scoped, tag = 'scoped memory for convnet_forward.5']
    %8 = vsyncpa [#allocation3], 0
    // Predicated region
    $region2: #{convnet_forward.5} parent=1 // pred_check
      _
    $region3: #{convnet_forward.5} parent=1 // pred_check_branch
      %10 = sbr.rel (0) target = $region5
    $region4: #{convnet_forward.5} parent=1 // pred_region
      _
    $region5: #{convnet_forward.5} parent=1 // pred_fallthru
      _
    // Predicated region
    $region6: #{convnet_forward.5} parent=1 // pred_check
      _
    $region7: #{convnet_forward.5} parent=1 // pred_check_branch
      %12 = sbr.rel (0) target = $region9
    $region8: #{convnet_forward.5} parent=1 // pred_region
      _
    $region9: #{convnet_forward.5} parent=1 // pred_fallthru
      _
    // Predicated region
    $region10: #{convnet_forward.5} parent=1 // pred_check
      _
    $region11: #{convnet_forward.5} parent=1 // pred_check_branch
      %14 = sbr.rel (0) target = $region13
    $region12: #{convnet_forward.5} parent=1 // pred_region
      _
    $region13: #{convnet_forward.5} parent=1 // pred_fallthru
      _
    %v15 = vld [vmem:[%s0] sm:$0xff]
    %v16 = vld [vmem:[%s0 + $0x8] sm:$0xff]
    %v17 = vld [vmem:[%s0 + $0x10] sm:$0xff]
    %v18 = vld [vmem:[%s0 + $0x18] sm:$0xff]
    %v19 = vld [vmem:[%s0 + $0x20] sm:$0xff]
    %v20 = vld [vmem:[%s0 + $0x28] sm:$0xff]
    %v21 = vld [vmem:[%s0 + $0x30] sm:$0x1]
    %v22 = vld [vmem:[%s1] sm:$0xf]
    %v23 = vld [vmem:[%s1 + $0x4] sm:$0xf]
    %v24 = vld [vmem:[%s1 + $0x8] sm:$0xf]
    %v25 = vld [vmem:[%s1 + $0xc] sm:$0xf]
    %v26 = vld [vmem:[%s1 + $0x10] sm:$0xf]
    %v27 = vld [vmem:[%s1 + $0x14] sm:$0xf]
    %v28 = vld [vmem:[%s1 + $0x18] sm:$0xf]
    %v29 = vld [vmem:[%s1 + $0x1c] sm:$0xf]
    %v30 = vld [vmem:[%s1 + $0x20] sm:$0xf]
    %v31 = vld [vmem:[%s1 + $0x24] sm:$0xf]
    %v32 = vld [vmem:[%s1 + $0x28] sm:$0xf]
    %v33 = vld [vmem:[%s1 + $0x2c] sm:$0xf]
    %v34 = vld [vmem:[%s1 + $0x30] sm:$0xf]
    %v35 = vld [vmem:[%s1 + $0x34] sm:$0xf]
    %v36 = vld [vmem:[%s1 + $0x38] sm:$0xf]
    %v37 = vld [vmem:[%s1 + $0x3c] sm:$0xf]
    %v38 = vld [vmem:[%s1 + $0x40] sm:$0xf]
    %v39 = vld [vmem:[%s1 + $0x44] sm:$0xf]
    %v40 = vld [vmem:[%s1 + $0x48] sm:$0xf]
    %v41 = vld [vmem:[%s1 + $0x4c] sm:$0xf]
    %v42 = vld [vmem:[%s1 + $0x50] sm:$0xf]
    %v43 = vld [vmem:[%s1 + $0x54] sm:$0xf]
    %v44 = vld [vmem:[%s1 + $0x58] sm:$0xf]
    %v45 = vld [vmem:[%s1 + $0x5c] sm:$0xf]
    %v46 = vld [vmem:[%s1 + $0x60] sm:$0xf]
    %v47 = vld [vmem:[%s1 + $0x64] sm:$0xf]
    %v48 = vld [vmem:[%s1 + $0x68] sm:$0xf]
    %v49 = vld [vmem:[%s1 + $0x6c] sm:$0xf]
    %v50 = vld [vmem:[%s1 + $0x70] sm:$0xf]
    %v51 = vld [vmem:[%s1 + $0x74] sm:$0xf]
    %v52 = vld [vmem:[%s1 + $0x78] sm:$0xf]
    %v53 = vld [vmem:[%s1 + $0x7c] sm:$0xf]
    %v54 = vld [vmem:[%s1 + $0x80] sm:$0xf]
    %v55 = vld [vmem:[%s1 + $0x84] sm:$0xf]
    %v56 = vld [vmem:[%s1 + $0x88] sm:$0xf]
    %v57 = vld [vmem:[%s1 + $0x8c] sm:$0xf]
    %v58 = vld [vmem:[%s1 + $0x90] sm:$0xf]
    %v59 = vld [vmem:[%s1 + $0x94] sm:$0xf]
    %v60 = vld [vmem:[%s1 + $0x98] sm:$0xf]
    %v61 = vld [vmem:[%s1 + $0x9c] sm:$0xf]
    %v62 = vld [vmem:[%s1 + $0xa0] sm:$0xf]
    %v63 = vld [vmem:[%s1 + $0xa4] sm:$0xf]
    %v64 = vld [vmem:[%s1 + $0xa8] sm:$0xf]
    %v65 = vld [vmem:[%s1 + $0xac] sm:$0xf]
    %v66 = vld [vmem:[%s1 + $0xb0] sm:$0xf]
    %v67 = vld [vmem:[%s1 + $0xb4] sm:$0xf]
    %v68 = vld [vmem:[%s1 + $0xb8] sm:$0xf]
    %v69 = vld [vmem:[%s1 + $0xbc] sm:$0xf]
    %v70 = vld [vmem:[%s1 + $0xc0] sm:$0xf]
    %v71 = vld [vmem:[%s1 + $0xc4] sm:$0xf]
    %v72 = vld [vmem:[%s1 + $0xc8] sm:$0xf]
    %v73 = vld [vmem:[%s1 + $0xcc] sm:$0xf]
    %v74 = vld [vmem:[%s1 + $0xd0] sm:$0xf]
    %v75 = vld [vmem:[%s1 + $0xd4] sm:$0xf]
    %v76 = vld [vmem:[%s1 + $0xd8] sm:$0xf]
    %v77 = vld [vmem:[%s1 + $0xdc] sm:$0xf]
    %v78 = vld [vmem:[%s1 + $0xe0] sm:$0xf]
    %v79 = vld [vmem:[%s1 + $0xe4] sm:$0xf]
    %v80 = vld [vmem:[%s1 + $0xe8] sm:$0xf]
    %v81 = vld [vmem:[%s1 + $0xec] sm:$0xf]
    %v82 = vld [vmem:[%s1 + $0xf0] sm:$0xf]
    %v83 = vld [vmem:[%s1 + $0xf4] sm:$0xf]
    %v84 = vld [vmem:[%s1 + $0xf8] sm:$0xf]
    %v85 = vld [vmem:[%s1 + $0xfc] sm:$0xf]
    %v86 = vld [vmem:[%s1 + $0x100] sm:$0xf]
    %v87 = vld [vmem:[%s1 + $0x104] sm:$0xf]
    %v88 = vld [vmem:[%s1 + $0x108] sm:$0xf]
    %v89 = vld [vmem:[%s1 + $0x10c] sm:$0xf]
    %v90 = vld [vmem:[%s1 + $0x110] sm:$0xf]
    %v91 = vld [vmem:[%s1 + $0x114] sm:$0xf]
    %v92 = vld [vmem:[%s1 + $0x118] sm:$0xf]
    %v93 = vld [vmem:[%s1 + $0x11c] sm:$0xf]
    %v94 = vld [vmem:[%s1 + $0x120] sm:$0xf]
    %v95 = vld [vmem:[%s1 + $0x124] sm:$0xf]
    %v96 = vld [vmem:[%s1 + $0x128] sm:$0xf]
    %v97 = vld [vmem:[%s1 + $0x12c] sm:$0xf]
    %v98 = vld [vmem:[%s1 + $0x130] sm:$0xf]
    %v99 = vld [vmem:[%s1 + $0x134] sm:$0xf]
    %v100 = vld [vmem:[%s1 + $0x138] sm:$0xf]
    %v101 = vld [vmem:[%s1 + $0x13c] sm:$0xf]
    %v102 = vld [vmem:[%s1 + $0x140] sm:$0xf]
    %v103 = vld [vmem:[%s1 + $0x144] sm:$0xf]
    %v104 = vld [vmem:[%s1 + $0x148] sm:$0xf]
    %v105 = vld [vmem:[%s1 + $0x14c] sm:$0xf]
    %v106 = vld [vmem:[%s1 + $0x150] sm:$0xf]
    %v107 = vld [vmem:[%s1 + $0x154] sm:$0xf]
    %v108 = vld [vmem:[%s1 + $0x158] sm:$0xf]
    %v109 = vld [vmem:[%s1 + $0x15c] sm:$0xf]
    %v110 = vld [vmem:[%s1 + $0x160] sm:$0xf]
    %v111 = vld [vmem:[%s1 + $0x164] sm:$0xf]
    %v112 = vld [vmem:[%s1 + $0x168] sm:$0xf]
    %v113 = vld [vmem:[%s1 + $0x16c] sm:$0xf]
    %v114 = vld [vmem:[%s1 + $0x170] sm:$0xf]
    %v115 = vld [vmem:[%s1 + $0x174] sm:$0xf]
    %v116 = vld [vmem:[%s1 + $0x178] sm:$0xf]
    %v117 = vld [vmem:[%s1 + $0x17c] sm:$0xf]
    %v118 = vld [vmem:[%s1 + $0x180] sm:$0xf]
    %v119 = vld [vmem:[%s1 + $0x184] sm:$0xf]
    %v120 = vld [vmem:[%s1 + $0x188] sm:$0xf]
    %v121 = vld [vmem:[%s1 + $0x18c] sm:$0xf]
    %v122 = vld [vmem:[%s1 + $0x190] sm:$0xf]
    %v123 = vld [vmem:[%s1 + $0x194] sm:$0xf]
    %v124 = vld [vmem:[%s1 + $0x198] sm:$0xf]
    %v125 = vld [vmem:[%s1 + $0x19c] sm:$0xf]
    %v126 = vld [vmem:[%s1 + $0x1a0] sm:$0xf]
    %v127 = vld [vmem:[%s1 + $0x1a4] sm:$0xf]
    %v128 = vld [vmem:[%s1 + $0x1a8] sm:$0xf]
    %v129 = vld [vmem:[%s1 + $0x1ac] sm:$0xf]
    %v130 = vld [vmem:[%s1 + $0x1b0] sm:$0xf]
    %v131 = vld [vmem:[%s1 + $0x1b4] sm:$0xf]
    %v132 = vld [vmem:[%s1 + $0x1b8] sm:$0xf]
    %v133 = vld [vmem:[%s1 + $0x1bc] sm:$0xf]
    %v134 = vld [vmem:[%s1 + $0x1c0] sm:$0xf]
    %v135 = vld [vmem:[%s1 + $0x1c4] sm:$0xf]
    %v136 = vld [vmem:[%s1 + $0x1c8] sm:$0xf]
    %v137 = vld [vmem:[%s1 + $0x1cc] sm:$0xf]
    %v138 = vld [vmem:[%s1 + $0x1d0] sm:$0xf]
    %v139 = vld [vmem:[%s1 + $0x1d4] sm:$0xf]
    %v140 = vld [vmem:[%s1 + $0x1d8] sm:$0xf]
    %v141 = vld [vmem:[%s1 + $0x1dc] sm:$0xf]
    %v142 = vld [vmem:[%s1 + $0x1e0] sm:$0xf]
    %v143 = vld [vmem:[%s1 + $0x1e4] sm:$0xf]
    %v144 = vld [vmem:[%s1 + $0x1e8] sm:$0xf]
    %v145 = vld [vmem:[%s1 + $0x1ec] sm:$0xf]
    %v146 = vld [vmem:[%s1 + $0x1f0] sm:$0xf]
    %v147 = vld [vmem:[%s1 + $0x1f4] sm:$0xf]
    %v148 = vld [vmem:[%s1 + $0x1f8] sm:$0xf]
    %v149 = vld [vmem:[%s1 + $0x1fc] sm:$0xf]
    %v150 = vld [vmem:[%s1 + $0x200] sm:$0xf]
    %v151 = vld [vmem:[%s1 + $0x204] sm:$0xf]
    %v152 = vld [vmem:[%s1 + $0x208] sm:$0xf]
    %v153 = vld [vmem:[%s1 + $0x20c] sm:$0xf]
    %v154 = vld [vmem:[%s1 + $0x210] sm:$0xf]
    %v155 = vld [vmem:[%s1 + $0x214] sm:$0xf]
    %v156 = vld [vmem:[%s1 + $0x218] sm:$0xf]
    %v157 = vld [vmem:[%s1 + $0x21c] sm:$0xf]
    %v158 = vld [vmem:[%s1 + $0x220] sm:$0xf]
    %v159 = vld [vmem:[%s1 + $0x224] sm:$0xf]
    %v160 = vld [vmem:[%s1 + $0x228] sm:$0xf]
    %v161 = vld [vmem:[%s1 + $0x22c] sm:$0xf]
    %v162 = vld [vmem:[%s1 + $0x230] sm:$0xf]
    %v163 = vld [vmem:[%s1 + $0x234] sm:$0xf]
    %v164 = vld [vmem:[%s1 + $0x238] sm:$0xf]
    %v165 = vld [vmem:[%s1 + $0x23c] sm:$0xf]
    %v166 = vld [vmem:[%s1 + $0x240] sm:$0xf]
    %v167 = vld [vmem:[%s1 + $0x244] sm:$0xf]
    %v168 = vld [vmem:[%s1 + $0x248] sm:$0xf]
    %v169 = vld [vmem:[%s1 + $0x24c] sm:$0xf]
    %v170 = vld [vmem:[%s1 + $0x250] sm:$0xf]
    %v171 = vld [vmem:[%s1 + $0x254] sm:$0xf]
    %v172 = vld [vmem:[%s1 + $0x258] sm:$0xf]
    %v173 = vld [vmem:[%s1 + $0x25c] sm:$0xf]
    %v174 = vld [vmem:[%s1 + $0x260] sm:$0xf]
    %v175 = vld [vmem:[%s1 + $0x264] sm:$0xf]
    %v176 = vld [vmem:[%s1 + $0x268] sm:$0xf]
    %v177 = vld [vmem:[%s1 + $0x26c] sm:$0xf]
    %v178 = vld [vmem:[%s1 + $0x270] sm:$0xf]
    %v179 = vld [vmem:[%s1 + $0x274] sm:$0xf]
    %v180 = vld [vmem:[%s1 + $0x278] sm:$0xf]
    %v181 = vld [vmem:[%s1 + $0x27c] sm:$0xf]
    %v182 = vld [vmem:[%s1 + $0x280] sm:$0xf]
    %v183 = vld [vmem:[%s1 + $0x284] sm:$0xf]
    %v184 = vld [vmem:[%s1 + $0x288] sm:$0xf]
    %v185 = vld [vmem:[%s1 + $0x28c] sm:$0xf]
    %v186 = vld [vmem:[%s1 + $0x290] sm:$0xf]
    %v187 = vld [vmem:[%s1 + $0x294] sm:$0xf]
    %v188 = vld [vmem:[%s1 + $0x298] sm:$0xf]
    %v189 = vld [vmem:[%s1 + $0x29c] sm:$0xf]
    %v190 = vld [vmem:[%s1 + $0x2a0] sm:$0xf]
    %v191 = vld [vmem:[%s1 + $0x2a4] sm:$0xf]
    %v192 = vld [vmem:[%s1 + $0x2a8] sm:$0xf]
    %v193 = vld [vmem:[%s1 + $0x2ac] sm:$0xf]
    %v194 = vld [vmem:[%s1 + $0x2b0] sm:$0xf]
    %v195 = vld [vmem:[%s1 + $0x2b4] sm:$0xf]
    %v196 = vld [vmem:[%s1 + $0x2b8] sm:$0xf]
    %v197 = vld [vmem:[%s1 + $0x2bc] sm:$0xf]
    %v198 = vld [vmem:[%s1 + $0x2c0] sm:$0xf]
    %v199 = vld [vmem:[%s1 + $0x2c4] sm:$0xf]
    %v200 = vld [vmem:[%s1 + $0x2c8] sm:$0xf]
    %v201 = vld [vmem:[%s1 + $0x2cc] sm:$0xf]
    %v202 = vld [vmem:[%s1 + $0x2d0] sm:$0xf]
    %v203 = vld [vmem:[%s1 + $0x2d4] sm:$0xf]
    %v204 = vld [vmem:[%s1 + $0x2d8] sm:$0xf]
    %v205 = vld [vmem:[%s1 + $0x2dc] sm:$0xf]
    %v206 = vld [vmem:[%s1 + $0x2e0] sm:$0xf]
    %v207 = vld [vmem:[%s1 + $0x2e4] sm:$0xf]
    %v208 = vld [vmem:[%s1 + $0x2e8] sm:$0xf]
    %v209 = vld [vmem:[%s1 + $0x2ec] sm:$0xf]
    %v210 = vld [vmem:[%s1 + $0x2f0] sm:$0xf]
    %v211 = vld [vmem:[%s1 + $0x2f4] sm:$0xf]
    %v212 = vld [vmem:[%s1 + $0x2f8] sm:$0xf]
    %v213 = vld [vmem:[%s1 + $0x2fc] sm:$0xf]
    %v214 = vld [vmem:[%s1 + $0x300] sm:$0xf]
    %v215 = vld [vmem:[%s1 + $0x304] sm:$0xf]
    %v216 = vld [vmem:[%s1 + $0x308] sm:$0xf]
    %v217 = vld [vmem:[%s1 + $0x30c] sm:$0xf]
    %v218 = vld [vmem:[%s1 + $0x310] sm:$0xf]
    %v219 = vld [vmem:[%s1 + $0x314] sm:$0xf]
    %v220 = vld [vmem:[%s1 + $0x318] sm:$0xf]
    %v221 = vld [vmem:[%s1 + $0x31c] sm:$0xf]
    %v222 = vld [vmem:[%s1 + $0x320] sm:$0xf]
    %v223 = vld [vmem:[%s1 + $0x324] sm:$0xf]
    %v224 = vld [vmem:[%s1 + $0x328] sm:$0xf]
    %v225 = vld [vmem:[%s1 + $0x32c] sm:$0xf]
    %v226 = vld [vmem:[%s1 + $0x330] sm:$0xf]
    %v227 = vld [vmem:[%s1 + $0x334] sm:$0xf]
    %v228 = vld [vmem:[%s1 + $0x338] sm:$0xf]
    %v229 = vld [vmem:[%s1 + $0x33c] sm:$0xf]
    %v230 = vld [vmem:[%s1 + $0x340] sm:$0xf]
    %v231 = vld [vmem:[%s1 + $0x344] sm:$0xf]
    %v232 = vld [vmem:[%s1 + $0x348] sm:$0xf]
    %v233 = vld [vmem:[%s1 + $0x34c] sm:$0xf]
    %v234 = vld [vmem:[%s1 + $0x350] sm:$0xf]
    %v235 = vld [vmem:[%s1 + $0x354] sm:$0xf]
    %v236 = vld [vmem:[%s1 + $0x358] sm:$0xf]
    %v237 = vld [vmem:[%s1 + $0x35c] sm:$0xf]
    %v238 = vld [vmem:[%s1 + $0x360] sm:$0xf]
    %v239 = vld [vmem:[%s1 + $0x364] sm:$0xf]
    %v240 = vld [vmem:[%s1 + $0x368] sm:$0xf]
    %v241 = vld [vmem:[%s1 + $0x36c] sm:$0xf]
    %v242 = vld [vmem:[%s1 + $0x370] sm:$0xf]
    %v243 = vld [vmem:[%s1 + $0x374] sm:$0xf]
    %v244 = vld [vmem:[%s1 + $0x378] sm:$0xf]
    %v245 = vld [vmem:[%s1 + $0x37c] sm:$0xf]
    %v246 = vld [vmem:[%s1 + $0x380] sm:$0xf]
    %v247 = vld [vmem:[%s1 + $0x384] sm:$0xf]
    %v248 = vld [vmem:[%s1 + $0x388] sm:$0xf]
    %v249 = vld [vmem:[%s1 + $0x38c] sm:$0xf]
    %v250 = vld [vmem:[%s1 + $0x390] sm:$0xf]
    %v251 = vld [vmem:[%s1 + $0x394] sm:$0xf]
    %v252 = vld [vmem:[%s1 + $0x398] sm:$0xf]
    %v253 = vld [vmem:[%s1 + $0x39c] sm:$0xf]
    %v254 = vld [vmem:[%s1 + $0x3a0] sm:$0xf]
    %v255 = vld [vmem:[%s1 + $0x3a4] sm:$0xf]
    %v256 = vld [vmem:[%s1 + $0x3a8] sm:$0xf]
    %v257 = vld [vmem:[%s1 + $0x3ac] sm:$0xf]
    %v258 = vld [vmem:[%s1 + $0x3b0] sm:$0xf]
    %v259 = vld [vmem:[%s1 + $0x3b4] sm:$0xf]
    %v260 = vld [vmem:[%s1 + $0x3b8] sm:$0xf]
    %v261 = vld [vmem:[%s1 + $0x3bc] sm:$0xf]
    %v262 = vld [vmem:[%s1 + $0x3c0] sm:$0xf]
    %v263 = vld [vmem:[%s1 + $0x3c4] sm:$0xf]
    %v264 = vld [vmem:[%s1 + $0x3c8] sm:$0xf]
    %v265 = vld [vmem:[%s1 + $0x3cc] sm:$0xf]
    %v266 = vld [vmem:[%s1 + $0x3d0] sm:$0xf]
    %v267 = vld [vmem:[%s1 + $0x3d4] sm:$0xf]
    %v268 = vld [vmem:[%s1 + $0x3d8] sm:$0xf]
    %v269 = vld [vmem:[%s1 + $0x3dc] sm:$0xf]
    %v270 = vld [vmem:[%s1 + $0x3e0] sm:$0xf]
    %v271 = vld [vmem:[%s1 + $0x3e4] sm:$0xf]
    %v272 = vld [vmem:[%s1 + $0x3e8] sm:$0xf]
    %v273 = vld [vmem:[%s1 + $0x3ec] sm:$0xf]
    %v274 = vld [vmem:[%s1 + $0x3f0] sm:$0xf]
    %v275 = vld [vmem:[%s1 + $0x3f4] sm:$0xf]
    %v276 = vld [vmem:[%s1 + $0x3f8] sm:$0xf]
    %v277 = vld [vmem:[%s1 + $0x3fc] sm:$0xf]
    %v278 = vld [vmem:[%s1 + $0x400] sm:$0xf]
    %v279 = vld [vmem:[%s1 + $0x404] sm:$0xf]
    %v280 = vld [vmem:[%s1 + $0x408] sm:$0xf]
    %v281 = vld [vmem:[%s1 + $0x40c] sm:$0xf]
    %v282 = vld [vmem:[%s1 + $0x410] sm:$0xf]
    %v283 = vld [vmem:[%s1 + $0x414] sm:$0xf]
    %v284 = vld [vmem:[%s1 + $0x418] sm:$0xf]
    %v285 = vld [vmem:[%s1 + $0x41c] sm:$0xf]
    %v286 = vld [vmem:[%s1 + $0x420] sm:$0xf]
    %v287 = vld [vmem:[%s1 + $0x424] sm:$0xf]
    %v288 = vld [vmem:[%s1 + $0x428] sm:$0xf]
    %v289 = vld [vmem:[%s1 + $0x42c] sm:$0xf]
    %v290 = vld [vmem:[%s1 + $0x430] sm:$0xf]
    %v291 = vld [vmem:[%s1 + $0x434] sm:$0xf]
    %v292 = vld [vmem:[%s1 + $0x438] sm:$0xf]
    %v293 = vld [vmem:[%s1 + $0x43c] sm:$0xf]
    %v294 = vld [vmem:[%s1 + $0x440] sm:$0xf]
    %v295 = vld [vmem:[%s1 + $0x444] sm:$0xf]
    %v296 = vld [vmem:[%s1 + $0x448] sm:$0xf]
    %v297 = vld [vmem:[%s1 + $0x44c] sm:$0xf]
    %v298 = vld [vmem:[%s1 + $0x450] sm:$0xf]
    %v299 = vld [vmem:[%s1 + $0x454] sm:$0xf]
    %v300 = vld [vmem:[%s1 + $0x458] sm:$0xf]
    %v301 = vld [vmem:[%s1 + $0x45c] sm:$0xf]
    %v302 = vld [vmem:[%s1 + $0x460] sm:$0xf]
    %v303 = vld [vmem:[%s1 + $0x464] sm:$0xf]
    %v304 = vld [vmem:[%s1 + $0x468] sm:$0xf]
    %v305 = vld [vmem:[%s1 + $0x46c] sm:$0xf]
    %v306 = vld [vmem:[%s1 + $0x470] sm:$0xf]
    %v307 = vld [vmem:[%s1 + $0x474] sm:$0xf]
    %v308 = vld [vmem:[%s1 + $0x478] sm:$0xf]
    %v309 = vld [vmem:[%s1 + $0x47c] sm:$0xf]
    %v310 = vld [vmem:[%s1 + $0x480] sm:$0xf]
    %v311 = vld [vmem:[%s1 + $0x484] sm:$0xf]
    %v312 = vld [vmem:[%s1 + $0x488] sm:$0xf]
    %v313 = vld [vmem:[%s1 + $0x48c] sm:$0xf]
    %v314 = vld [vmem:[%s1 + $0x490] sm:$0xf]
    %v315 = vld [vmem:[%s1 + $0x494] sm:$0xf]
    %v316 = vld [vmem:[%s1 + $0x498] sm:$0xf]
    %v317 = vld [vmem:[%s1 + $0x49c] sm:$0xf]
    %v318 = vld [vmem:[%s1 + $0x4a0] sm:$0xf]
    %v319 = vld [vmem:[%s1 + $0x4a4] sm:$0xf]
    %v320 = vld [vmem:[%s1 + $0x4a8] sm:$0xf]
    %v321 = vld [vmem:[%s1 + $0x4ac] sm:$0xf]
    %v322 = vld [vmem:[%s1 + $0x4b0] sm:$0xf]
    %v323 = vld [vmem:[%s1 + $0x4b4] sm:$0xf]
    %v324 = vld [vmem:[%s1 + $0x4b8] sm:$0xf]
    %v325 = vld [vmem:[%s1 + $0x4bc] sm:$0xf]
    %v326 = vld [vmem:[%s1 + $0x4c0] sm:$0xf]
    %v327 = vld [vmem:[%s1 + $0x4c4] sm:$0xf]
    %v328 = vld [vmem:[%s1 + $0x4c8] sm:$0xf]
    %v329 = vld [vmem:[%s1 + $0x4cc] sm:$0xf]
    %v330 = vld [vmem:[%s1 + $0x4d0] sm:$0xf]
    %v331 = vld [vmem:[%s1 + $0x4d4] sm:$0xf]
    %v332 = vld [vmem:[%s1 + $0x4d8] sm:$0xf]
    %v333 = vld [vmem:[%s1 + $0x4dc] sm:$0xf]
    %v334 = vld [vmem:[%s1 + $0x4e0] sm:$0xf]
    %v335 = vld [vmem:[%s1 + $0x4e4] sm:$0xf]
    %v336 = vld [vmem:[%s1 + $0x4e8] sm:$0xf]
    %v337 = vld [vmem:[%s1 + $0x4ec] sm:$0xf]
    %v338 = vld [vmem:[%s1 + $0x4f0] sm:$0xf]
    %v339 = vld [vmem:[%s1 + $0x4f4] sm:$0xf]
    %v340 = vld [vmem:[%s1 + $0x4f8] sm:$0xf]
    %v341 = vld [vmem:[%s1 + $0x4fc] sm:$0xf]
    %v342 = vld [vmem:[%s1 + $0x500] sm:$0xf]
    %v343 = vld [vmem:[%s1 + $0x504] sm:$0xf]
    %v344 = vld [vmem:[%s1 + $0x508] sm:$0xf]
    %v345 = vld [vmem:[%s1 + $0x50c] sm:$0xf]
    %v346 = vld [vmem:[%s1 + $0x510] sm:$0xf]
    %v347 = vld [vmem:[%s1 + $0x514] sm:$0xf]
    %v348 = vld [vmem:[%s1 + $0x518] sm:$0xf]
    %v349 = vld [vmem:[%s1 + $0x51c] sm:$0xf]
    %v350 = vld [vmem:[%s1 + $0x520] sm:$0xf]
    %v351 = vld [vmem:[%s1 + $0x524] sm:$0xf]
    %v352 = vld [vmem:[%s1 + $0x528] sm:$0xf]
    %v353 = vld [vmem:[%s1 + $0x52c] sm:$0xf]
    %v354 = vld [vmem:[%s1 + $0x530] sm:$0xf]
    %v355 = vld [vmem:[%s1 + $0x534] sm:$0xf]
    %v356 = vld [vmem:[%s1 + $0x538] sm:$0xf]
    %v357 = vld [vmem:[%s1 + $0x53c] sm:$0xf]
    %v358 = vld [vmem:[%s1 + $0x540] sm:$0xf]
    %v359 = vld [vmem:[%s1 + $0x544] sm:$0xf]
    %v360 = vld [vmem:[%s1 + $0x548] sm:$0xf]
    %v361 = vld [vmem:[%s1 + $0x54c] sm:$0xf]
    %v362 = vld [vmem:[%s1 + $0x550] sm:$0xf]
    %v363 = vld [vmem:[%s1 + $0x554] sm:$0xf]
    %v364 = vld [vmem:[%s1 + $0x558] sm:$0xf]
    %v365 = vld [vmem:[%s1 + $0x55c] sm:$0xf]
    %v366 = vld [vmem:[%s1 + $0x560] sm:$0xf]
    %v367 = vld [vmem:[%s1 + $0x564] sm:$0xf]
    %v368 = vld [vmem:[%s1 + $0x568] sm:$0xf]
    %v369 = vld [vmem:[%s1 + $0x56c] sm:$0xf]
    %v370 = vld [vmem:[%s1 + $0x570] sm:$0xf]
    %v371 = vld [vmem:[%s1 + $0x574] sm:$0xf]
    %v372 = vld [vmem:[%s1 + $0x578] sm:$0xf]
    %v373 = vld [vmem:[%s1 + $0x57c] sm:$0xf]
    %v374 = vld [vmem:[%s1 + $0x580] sm:$0xf]
    %v375 = vld [vmem:[%s1 + $0x584] sm:$0xf]
    %v376 = vld [vmem:[%s1 + $0x588] sm:$0xf]
    %v377 = vld [vmem:[%s1 + $0x58c] sm:$0xf]
    %v378 = vld [vmem:[%s1 + $0x590] sm:$0xf]
    %v379 = vld [vmem:[%s1 + $0x594] sm:$0xf]
    %v380 = vld [vmem:[%s1 + $0x598] sm:$0xf]
    %v381 = vld [vmem:[%s1 + $0x59c] sm:$0xf]
    %v382 = vld [vmem:[%s1 + $0x5a0] sm:$0xf]
    %v383 = vld [vmem:[%s1 + $0x5a4] sm:$0xf]
    %v384 = vld [vmem:[%s1 + $0x5a8] sm:$0xf]
    %v385 = vld [vmem:[%s1 + $0x5ac] sm:$0xf]
    %v386 = vld [vmem:[%s1 + $0x5b0] sm:$0xf]
    %v387 = vld [vmem:[%s1 + $0x5b4] sm:$0xf]
    %v388 = vld [vmem:[%s1 + $0x5b8] sm:$0xf]
    %v389 = vld [vmem:[%s1 + $0x5bc] sm:$0xf]
    %v390 = vld [vmem:[%s1 + $0x5c0] sm:$0xf]
    %v391 = vld [vmem:[%s1 + $0x5c4] sm:$0xf]
    %v392 = vld [vmem:[%s1 + $0x5c8] sm:$0xf]
    %v393 = vld [vmem:[%s1 + $0x5cc] sm:$0xf]
    %v394 = vld [vmem:[%s1 + $0x5d0] sm:$0xf]
    %v395 = vld [vmem:[%s1 + $0x5d4] sm:$0xf]
    %v396 = vld [vmem:[%s1 + $0x5d8] sm:$0xf]
    %v397 = vld [vmem:[%s1 + $0x5dc] sm:$0xf]
    %v398 = vld [vmem:[%s1 + $0x5e0] sm:$0xf]
    %v399 = vld [vmem:[%s1 + $0x5e4] sm:$0xf]
    %v400 = vld [vmem:[%s1 + $0x5e8] sm:$0xf]
    %v401 = vld [vmem:[%s1 + $0x5ec] sm:$0xf]
    %v402 = vld [vmem:[%s1 + $0x5f0] sm:$0xf]
    %v403 = vld [vmem:[%s1 + $0x5f4] sm:$0xf]
    %v404 = vld [vmem:[%s1 + $0x5f8] sm:$0xf]
    %v405 = vld [vmem:[%s1 + $0x5fc] sm:$0xf]
    %v406 = vld [vmem:[%s1 + $0x600] sm:$0xf]
    %v407 = vld [vmem:[%s1 + $0x604] sm:$0xf]
    %v408 = vld [vmem:[%s1 + $0x608] sm:$0xf]
    %v409 = vld [vmem:[%s1 + $0x60c] sm:$0xf]
    %v410 = vld [vmem:[%s1 + $0x610] sm:$0xf]
    %v411 = vld [vmem:[%s1 + $0x614] sm:$0xf]
    %v412 = vld [vmem:[%s1 + $0x618] sm:$0xf]
    %v413 = vld [vmem:[%s1 + $0x61c] sm:$0xf]
    %v414 = vld [vmem:[%s1 + $0x620] sm:$0xf]
    %v415 = vld [vmem:[%s1 + $0x624] sm:$0xf]
    %v416 = vld [vmem:[%s1 + $0x628] sm:$0xf]
    %v417 = vld [vmem:[%s1 + $0x62c] sm:$0xf]
    %v418 = vld [vmem:[%s1 + $0x630] sm:$0xf]
    %v419 = vld [vmem:[%s1 + $0x634] sm:$0xf]
    %v420 = vld [vmem:[%s1 + $0x638] sm:$0xf]
    %v421 = vld [vmem:[%s1 + $0x63c] sm:$0xf]
    %v422 = vld [vmem:[%s1 + $0x640] sm:$0xf]
    %v423 = vld [vmem:[%s1 + $0x644] sm:$0xf]
    %v424 = vld [vmem:[%s1 + $0x648] sm:$0xf]
    %v425 = vld [vmem:[%s1 + $0x64c] sm:$0xf]
    %v426 = vld [vmem:[%s1 + $0x650] sm:$0xf]
    %v427 = vld [vmem:[%s1 + $0x654] sm:$0xf]
    %v428 = vld [vmem:[%s1 + $0x658] sm:$0xf]
    %v429 = vld [vmem:[%s1 + $0x65c] sm:$0xf]
    %v430 = vld [vmem:[%s1 + $0x660] sm:$0xf]
    %v431 = vld [vmem:[%s1 + $0x664] sm:$0xf]
    %v432 = vld [vmem:[%s1 + $0x668] sm:$0xf]
    %v433 = vld [vmem:[%s1 + $0x66c] sm:$0xf]
    %v434 = vld [vmem:[%s1 + $0x670] sm:$0xf]
    %v435 = vld [vmem:[%s1 + $0x674] sm:$0xf]
    %v436 = vld [vmem:[%s1 + $0x678] sm:$0xf]
    %v437 = vld [vmem:[%s1 + $0x67c] sm:$0xf]
    %v438 = vld [vmem:[%s1 + $0x680] sm:$0xf]
    %v439 = vld [vmem:[%s1 + $0x684] sm:$0xf]
    %v440 = vld [vmem:[%s1 + $0x688] sm:$0xf]
    %v441 = vld [vmem:[%s1 + $0x68c] sm:$0xf]
    %v442 = vld [vmem:[%s1 + $0x690] sm:$0xf]
    %v443 = vld [vmem:[%s1 + $0x694] sm:$0xf]
    %v444 = vld [vmem:[%s1 + $0x698] sm:$0xf]
    %v445 = vld [vmem:[%s1 + $0x69c] sm:$0xf]
    %v446 = vld [vmem:[%s1 + $0x6a0] sm:$0xf]
    %v447 = vld [vmem:[%s1 + $0x6a4] sm:$0xf]
    %v448 = vld [vmem:[%s1 + $0x6a8] sm:$0xf]
    %v449 = vld [vmem:[%s1 + $0x6ac] sm:$0xf]
    %v450 = vld [vmem:[%s1 + $0x6b0] sm:$0xf]
    %v451 = vld [vmem:[%s1 + $0x6b4] sm:$0xf]
    %v452 = vld [vmem:[%s1 + $0x6b8] sm:$0xf]
    %v453 = vld [vmem:[%s1 + $0x6bc] sm:$0xf]
    %v454 = vld [vmem:[%s1 + $0x6c0] sm:$0xf]
    %v455 = vld [vmem:[%s1 + $0x6c4] sm:$0xf]
    %v456 = vld [vmem:[%s1 + $0x6c8] sm:$0xf]
    %v457 = vld [vmem:[%s1 + $0x6cc] sm:$0xf]
    %v458 = vld [vmem:[%s1 + $0x6d0] sm:$0xf]
    %v459 = vld [vmem:[%s1 + $0x6d4] sm:$0xf]
    %v460 = vld [vmem:[%s1 + $0x6d8] sm:$0xf]
    %v461 = vld [vmem:[%s1 + $0x6dc] sm:$0xf]
    %v462 = vld [vmem:[%s1 + $0x6e0] sm:$0xf]
    %v463 = vld [vmem:[%s1 + $0x6e4] sm:$0xf]
    %v464 = vld [vmem:[%s1 + $0x6e8] sm:$0xf]
    %v465 = vld [vmem:[%s1 + $0x6ec] sm:$0xf]
    %v466 = vld [vmem:[%s1 + $0x6f0] sm:$0xf]
    %v467 = vld [vmem:[%s1 + $0x6f4] sm:$0xf]
    %v468 = vld [vmem:[%s1 + $0x6f8] sm:$0xf]
    %v469 = vld [vmem:[%s1 + $0x6fc] sm:$0xf]
    %v470 = vld [vmem:[%s1 + $0x700] sm:$0xf]
    %v471 = vld [vmem:[%s1 + $0x704] sm:$0xf]
    %v472 = vld [vmem:[%s1 + $0x708] sm:$0xf]
    %v473 = vld [vmem:[%s1 + $0x70c] sm:$0xf]
    %v474 = vld [vmem:[%s1 + $0x710] sm:$0xf]
    %v475 = vld [vmem:[%s1 + $0x714] sm:$0xf]
    %v476 = vld [vmem:[%s1 + $0x718] sm:$0xf]
    %v477 = vld [vmem:[%s1 + $0x71c] sm:$0xf]
    %v478 = vld [vmem:[%s1 + $0x720] sm:$0xf]
    %v479 = vld [vmem:[%s1 + $0x724] sm:$0xf]
    %v480 = vld [vmem:[%s1 + $0x728] sm:$0xf]
    %v481 = vld [vmem:[%s1 + $0x72c] sm:$0xf]
    %v482 = vld [vmem:[%s1 + $0x730] sm:$0xf]
    %v483 = vld [vmem:[%s1 + $0x734] sm:$0xf]
    %v484 = vld [vmem:[%s1 + $0x738] sm:$0xf]
    %v485 = vld [vmem:[%s1 + $0x73c] sm:$0xf]
    %v486 = vld [vmem:[%s1 + $0x740] sm:$0xf]
    %v487 = vld [vmem:[%s1 + $0x744] sm:$0xf]
    %v488 = vld [vmem:[%s1 + $0x748] sm:$0xf]
    %v489 = vld [vmem:[%s1 + $0x74c] sm:$0xf]
    %v490 = vld [vmem:[%s1 + $0x750] sm:$0xf]
    %v491 = vld [vmem:[%s1 + $0x754] sm:$0xf]
    %v492 = vld [vmem:[%s1 + $0x758] sm:$0xf]
    %v493 = vld [vmem:[%s1 + $0x75c] sm:$0xf]
    %v494 = vld [vmem:[%s1 + $0x760] sm:$0xf]
    %v495 = vld [vmem:[%s1 + $0x764] sm:$0xf]
    %v496 = vld [vmem:[%s1 + $0x768] sm:$0xf]
    %v497 = vld [vmem:[%s1 + $0x76c] sm:$0xf]
    %v498 = vld [vmem:[%s1 + $0x770] sm:$0xf]
    %v499 = vld [vmem:[%s1 + $0x774] sm:$0xf]
    %v500 = vld [vmem:[%s1 + $0x778] sm:$0xf]
    %v501 = vld [vmem:[%s1 + $0x77c] sm:$0xf]
    %v502 = vld [vmem:[%s1 + $0x780] sm:$0xf]
    %v503 = vld [vmem:[%s1 + $0x784] sm:$0xf]
    %v504 = vld [vmem:[%s1 + $0x788] sm:$0xf]
    %v505 = vld [vmem:[%s1 + $0x78c] sm:$0xf]
    %v506 = vld [vmem:[%s1 + $0x790] sm:$0xf]
    %v507 = vld [vmem:[%s1 + $0x794] sm:$0xf]
    %v508 = vld [vmem:[%s1 + $0x798] sm:$0xf]
    %v509 = vld [vmem:[%s1 + $0x79c] sm:$0xf]
    %v510 = vld [vmem:[%s1 + $0x7a0] sm:$0xf]
    %v511 = vld [vmem:[%s1 + $0x7a4] sm:$0xf]
    %v512 = vld [vmem:[%s1 + $0x7a8] sm:$0xf]
    %v513 = vld [vmem:[%s1 + $0x7ac] sm:$0xf]
    %v514 = vld [vmem:[%s1 + $0x7b0] sm:$0xf]
    %v515 = vld [vmem:[%s1 + $0x7b4] sm:$0xf]
    %v516 = vld [vmem:[%s1 + $0x7b8] sm:$0xf]
    %v517 = vld [vmem:[%s1 + $0x7bc] sm:$0xf]
    %v518 = vld [vmem:[%s1 + $0x7c0] sm:$0xf]
    %v519 = vld [vmem:[%s1 + $0x7c4] sm:$0xf]
    %v520 = vld [vmem:[%s1 + $0x7c8] sm:$0xf]
    %v521 = vld [vmem:[%s1 + $0x7cc] sm:$0xf]
    %v522 = vld [vmem:[%s1 + $0x7d0] sm:$0xf]
    %v523 = vld [vmem:[%s1 + $0x7d4] sm:$0xf]
    %v524 = vld [vmem:[%s1 + $0x7d8] sm:$0xf]
    %v525 = vld [vmem:[%s1 + $0x7dc] sm:$0xf]
    %v526 = vld [vmem:[%s1 + $0x7e0] sm:$0xf]
    %v527 = vld [vmem:[%s1 + $0x7e4] sm:$0xf]
    %v528 = vld [vmem:[%s1 + $0x7e8] sm:$0xf]
    %v529 = vld [vmem:[%s1 + $0x7ec] sm:$0xf]
    %v530 = vld [vmem:[%s1 + $0x7f0] sm:$0xf]
    %v531 = vld [vmem:[%s1 + $0x7f4] sm:$0xf]
    %v532 = vld [vmem:[%s1 + $0x7f8] sm:$0xf]
    %v533 = vld [vmem:[%s1 + $0x7fc] sm:$0xf]
    %v534 = vld [vmem:[%s1 + $0x800] sm:$0xf]
    %v535 = vld [vmem:[%s1 + $0x804] sm:$0xf]
    %v536 = vld [vmem:[%s1 + $0x808] sm:$0xf]
    %v537 = vld [vmem:[%s1 + $0x80c] sm:$0xf]
    %v538 = vld [vmem:[%s1 + $0x810] sm:$0xf]
    %v539 = vld [vmem:[%s1 + $0x814] sm:$0xf]
    %v540 = vld [vmem:[%s1 + $0x818] sm:$0xf]
    %v541 = vld [vmem:[%s1 + $0x81c] sm:$0xf]
    %v542 = vld [vmem:[%s1 + $0x820] sm:$0xf]
    %v543 = vld [vmem:[%s1 + $0x824] sm:$0xf]
    %v544 = vld [vmem:[%s1 + $0x828] sm:$0xf]
    %v545 = vld [vmem:[%s1 + $0x82c] sm:$0xf]
    %v546 = vld [vmem:[%s1 + $0x830] sm:$0xf]
    %v547 = vld [vmem:[%s1 + $0x834] sm:$0xf]
    %v548 = vld [vmem:[%s1 + $0x838] sm:$0xf]
    %v549 = vld [vmem:[%s1 + $0x83c] sm:$0xf]
    %v550 = vld [vmem:[%s1 + $0x840] sm:$0xf]
    %v551 = vld [vmem:[%s1 + $0x844] sm:$0xf]
    %v552 = vld [vmem:[%s1 + $0x848] sm:$0xf]
    %v553 = vld [vmem:[%s1 + $0x84c] sm:$0xf]
    %v554 = vld [vmem:[%s1 + $0x850] sm:$0xf]
    %v555 = vld [vmem:[%s1 + $0x854] sm:$0xf]
    %v556 = vld [vmem:[%s1 + $0x858] sm:$0xf]
    %v557 = vld [vmem:[%s1 + $0x85c] sm:$0xf]
    %v558 = vld [vmem:[%s1 + $0x860] sm:$0xf]
    %v559 = vld [vmem:[%s1 + $0x864] sm:$0xf]
    %v560 = vld [vmem:[%s1 + $0x868] sm:$0xf]
    %v561 = vld [vmem:[%s1 + $0x86c] sm:$0xf]
    %v562 = vld [vmem:[%s1 + $0x870] sm:$0xf]
    %v563 = vld [vmem:[%s1 + $0x874] sm:$0xf]
    %v564 = vld [vmem:[%s1 + $0x878] sm:$0xf]
    %v565 = vld [vmem:[%s1 + $0x87c] sm:$0xf]
    %v566 = vld [vmem:[%s1 + $0x880] sm:$0xf]
    %v567 = vld [vmem:[%s1 + $0x884] sm:$0xf]
    %v568 = vld [vmem:[%s1 + $0x888] sm:$0xf]
    %v569 = vld [vmem:[%s1 + $0x88c] sm:$0xf]
    %v570 = vld [vmem:[%s1 + $0x890] sm:$0xf]
    %v571 = vld [vmem:[%s1 + $0x894] sm:$0xf]
    %v572 = vld [vmem:[%s1 + $0x898] sm:$0xf]
    %v573 = vld [vmem:[%s1 + $0x89c] sm:$0xf]
    %v574 = vld [vmem:[%s1 + $0x8a0] sm:$0xf]
    %v575 = vld [vmem:[%s1 + $0x8a4] sm:$0xf]
    %v576 = vld [vmem:[%s1 + $0x8a8] sm:$0xf]
    %v577 = vld [vmem:[%s1 + $0x8ac] sm:$0xf]
    %v578 = vld [vmem:[%s1 + $0x8b0] sm:$0xf]
    %v579 = vld [vmem:[%s1 + $0x8b4] sm:$0xf]
    %v580 = vld [vmem:[%s1 + $0x8b8] sm:$0xf]
    %v581 = vld [vmem:[%s1 + $0x8bc] sm:$0xf]
    %v582 = vld [vmem:[%s1 + $0x8c0] sm:$0xf]
    %v583 = vld [vmem:[%s1 + $0x8c4] sm:$0xf]
    %v584 = vld [vmem:[%s1 + $0x8c8] sm:$0xf]
    %v585 = vld [vmem:[%s1 + $0x8cc] sm:$0xf]
    %v586 = vld [vmem:[%s1 + $0x8d0] sm:$0xf]
    %v587 = vld [vmem:[%s1 + $0x8d4] sm:$0xf]
    %v588 = vld [vmem:[%s1 + $0x8d8] sm:$0xf]
    %v589 = vld [vmem:[%s1 + $0x8dc] sm:$0xf]
    %v590 = vld [vmem:[%s1 + $0x8e0] sm:$0xf]
    %v591 = vld [vmem:[%s1 + $0x8e4] sm:$0xf]
    %v592 = vld [vmem:[%s1 + $0x8e8] sm:$0xf]
    %v593 = vld [vmem:[%s1 + $0x8ec] sm:$0xf]
    %v594 = vld [vmem:[%s1 + $0x8f0] sm:$0xf]
    %v595 = vld [vmem:[%s1 + $0x8f4] sm:$0xf]
    %v596 = vld [vmem:[%s1 + $0x8f8] sm:$0xf]
    %v597 = vld [vmem:[%s1 + $0x8fc] sm:$0xf]
    %v598 = vld [vmem:[%s1 + $0x900] sm:$0xf]
    %v599 = vld [vmem:[%s1 + $0x904] sm:$0xf]
    %v600 = vld [vmem:[%s1 + $0x908] sm:$0xf]
    %v601 = vld [vmem:[%s1 + $0x90c] sm:$0xf]
    %v602 = vld [vmem:[%s1 + $0x910] sm:$0xf]
    %v603 = vld [vmem:[%s1 + $0x914] sm:$0xf]
    %v604 = vld [vmem:[%s1 + $0x918] sm:$0xf]
    %v605 = vld [vmem:[%s1 + $0x91c] sm:$0xf]
    %v606 = vld [vmem:[%s1 + $0x920] sm:$0xf]
    %v607 = vld [vmem:[%s1 + $0x924] sm:$0xf]
    %v608 = vld [vmem:[%s1 + $0x928] sm:$0xf]
    %v609 = vld [vmem:[%s1 + $0x92c] sm:$0xf]
    %v610 = vld [vmem:[%s1 + $0x930] sm:$0xf]
    %v611 = vld [vmem:[%s1 + $0x934] sm:$0xf]
    %v612 = vld [vmem:[%s1 + $0x938] sm:$0xf]
    %v613 = vld [vmem:[%s1 + $0x93c] sm:$0xf]
    %v614 = vld [vmem:[%s1 + $0x940] sm:$0xf]
    %v615 = vld [vmem:[%s1 + $0x944] sm:$0xf]
    %v616 = vld [vmem:[%s1 + $0x948] sm:$0xf]
    %v617 = vld [vmem:[%s1 + $0x94c] sm:$0xf]
    %v618 = vld [vmem:[%s1 + $0x950] sm:$0xf]
    %v619 = vld [vmem:[%s1 + $0x954] sm:$0xf]
    %v620 = vld [vmem:[%s1 + $0x958] sm:$0xf]
    %v621 = vld [vmem:[%s1 + $0x95c] sm:$0xf]
    %v622 = vld [vmem:[%s1 + $0x960] sm:$0xf]
    %v623 = vld [vmem:[%s1 + $0x964] sm:$0xf]
    %v624 = vld [vmem:[%s1 + $0x968] sm:$0xf]
    %v625 = vld [vmem:[%s1 + $0x96c] sm:$0xf]
    %v626 = vld [vmem:[%s1 + $0x970] sm:$0xf]
    %v627 = vld [vmem:[%s1 + $0x974] sm:$0xf]
    %v628 = vld [vmem:[%s1 + $0x978] sm:$0xf]
    %v629 = vld [vmem:[%s1 + $0x97c] sm:$0xf]
    %v630 = vld [vmem:[%s1 + $0x980] sm:$0xf]
    %v631 = vld [vmem:[%s1 + $0x984] sm:$0xf]
    %v632 = vld [vmem:[%s1 + $0x988] sm:$0xf]
    %v633 = vld [vmem:[%s1 + $0x98c] sm:$0xf]
    %v634 = vld [vmem:[%s1 + $0x990] sm:$0xf]
    %v635 = vld [vmem:[%s1 + $0x994] sm:$0xf]
    %v636 = vld [vmem:[%s1 + $0x998] sm:$0xf]
    %v637 = vld [vmem:[%s1 + $0x99c] sm:$0xf]
    %v638 = vld [vmem:[%s1 + $0x9a0] sm:$0xf]
    %v639 = vld [vmem:[%s1 + $0x9a4] sm:$0xf]
    %v640 = vld [vmem:[%s1 + $0x9a8] sm:$0xf]
    %v641 = vld [vmem:[%s1 + $0x9ac] sm:$0xf]
    %v642 = vld [vmem:[%s1 + $0x9b0] sm:$0xf]
    %v643 = vld [vmem:[%s1 + $0x9b4] sm:$0xf]
    %v644 = vld [vmem:[%s1 + $0x9b8] sm:$0xf]
    %v645 = vld [vmem:[%s1 + $0x9bc] sm:$0xf]
    %v646 = vld [vmem:[%s1 + $0x9c0] sm:$0xf]
    %v647 = vld [vmem:[%s1 + $0x9c4] sm:$0xf]
    %v648 = vld [vmem:[%s1 + $0x9c8] sm:$0xf]
    %v649 = vld [vmem:[%s1 + $0x9cc] sm:$0xf]
    %v650 = vld [vmem:[%s1 + $0x9d0] sm:$0xf]
    %v651 = vld [vmem:[%s1 + $0x9d4] sm:$0xf]
    %v652 = vld [vmem:[%s1 + $0x9d8] sm:$0xf]
    %v653 = vld [vmem:[%s1 + $0x9dc] sm:$0xf]
    %v654 = vld [vmem:[%s1 + $0x9e0] sm:$0xf]
    %v655 = vld [vmem:[%s1 + $0x9e4] sm:$0xf]
    %v656 = vld [vmem:[%s1 + $0x9e8] sm:$0xf]
    %v657 = vld [vmem:[%s1 + $0x9ec] sm:$0xf]
    %v658 = vld [vmem:[%s1 + $0x9f0] sm:$0xf]
    %v659 = vld [vmem:[%s1 + $0x9f4] sm:$0xf]
    %v660 = vld [vmem:[%s1 + $0x9f8] sm:$0xf]
    %v661 = vld [vmem:[%s1 + $0x9fc] sm:$0xf]
    %v662 = vld [vmem:[%s1 + $0xa00] sm:$0xf]
    %v663 = vld [vmem:[%s1 + $0xa04] sm:$0xf]
    %v664 = vld [vmem:[%s1 + $0xa08] sm:$0xf]
    %v665 = vld [vmem:[%s1 + $0xa0c] sm:$0xf]
    %v666 = vld [vmem:[%s1 + $0xa10] sm:$0xf]
    %v667 = vld [vmem:[%s1 + $0xa14] sm:$0xf]
    %v668 = vld [vmem:[%s1 + $0xa18] sm:$0xf]
    %v669 = vld [vmem:[%s1 + $0xa1c] sm:$0xf]
    %v670 = vld [vmem:[%s1 + $0xa20] sm:$0xf]
    %v671 = vld [vmem:[%s1 + $0xa24] sm:$0xf]
    %v672 = vld [vmem:[%s1 + $0xa28] sm:$0xf]
    %v673 = vld [vmem:[%s1 + $0xa2c] sm:$0xf]
    %v674 = vld [vmem:[%s1 + $0xa30] sm:$0xf]
    %v675 = vld [vmem:[%s1 + $0xa34] sm:$0xf]
    %v676 = vld [vmem:[%s1 + $0xa38] sm:$0xf]
    %v677 = vld [vmem:[%s1 + $0xa3c] sm:$0xf]
    %v678 = vld [vmem:[%s1 + $0xa40] sm:$0xf]
    %v679 = vld [vmem:[%s1 + $0xa44] sm:$0xf]
    %v680 = vld [vmem:[%s1 + $0xa48] sm:$0xf]
    %v681 = vld [vmem:[%s1 + $0xa4c] sm:$0xf]
    %v682 = vld [vmem:[%s1 + $0xa50] sm:$0xf]
    %v683 = vld [vmem:[%s1 + $0xa54] sm:$0xf]
    %v684 = vld [vmem:[%s1 + $0xa58] sm:$0xf]
    %v685 = vld [vmem:[%s1 + $0xa5c] sm:$0xf]
    %v686 = vld [vmem:[%s1 + $0xa60] sm:$0xf]
    %v687 = vld [vmem:[%s1 + $0xa64] sm:$0xf]
    %v688 = vld [vmem:[%s1 + $0xa68] sm:$0xf]
    %v689 = vld [vmem:[%s1 + $0xa6c] sm:$0xf]
    %v690 = vld [vmem:[%s1 + $0xa70] sm:$0xf]
    %v691 = vld [vmem:[%s1 + $0xa74] sm:$0xf]
    %v692 = vld [vmem:[%s1 + $0xa78] sm:$0xf]
    %v693 = vld [vmem:[%s1 + $0xa7c] sm:$0xf]
    %v694 = vld [vmem:[%s1 + $0xa80] sm:$0xf]
    %v695 = vld [vmem:[%s1 + $0xa84] sm:$0xf]
    %v696 = vld [vmem:[%s1 + $0xa88] sm:$0xf]
    %v697 = vld [vmem:[%s1 + $0xa8c] sm:$0xf]
    %v698 = vld [vmem:[%s1 + $0xa90] sm:$0xf]
    %v699 = vld [vmem:[%s1 + $0xa94] sm:$0xf]
    %v700 = vld [vmem:[%s1 + $0xa98] sm:$0xf]
    %v701 = vld [vmem:[%s1 + $0xa9c] sm:$0xf]
    %v702 = vld [vmem:[%s1 + $0xaa0] sm:$0xf]
    %v703 = vld [vmem:[%s1 + $0xaa4] sm:$0xf]
    %v704 = vld [vmem:[%s1 + $0xaa8] sm:$0xf]
    %v705 = vld [vmem:[%s1 + $0xaac] sm:$0xf]
    %v706 = vld [vmem:[%s1 + $0xab0] sm:$0xf]
    %v707 = vld [vmem:[%s1 + $0xab4] sm:$0xf]
    %v708 = vld [vmem:[%s1 + $0xab8] sm:$0xf]
    %v709 = vld [vmem:[%s1 + $0xabc] sm:$0xf]
    %v710 = vld [vmem:[%s1 + $0xac0] sm:$0xf]
    %v711 = vld [vmem:[%s1 + $0xac4] sm:$0xf]
    %v712 = vld [vmem:[%s1 + $0xac8] sm:$0xf]
    %v713 = vld [vmem:[%s1 + $0xacc] sm:$0xf]
    %v714 = vld [vmem:[%s1 + $0xad0] sm:$0xf]
    %v715 = vld [vmem:[%s1 + $0xad4] sm:$0xf]
    %v716 = vld [vmem:[%s1 + $0xad8] sm:$0xf]
    %v717 = vld [vmem:[%s1 + $0xadc] sm:$0xf]
    %v718 = vld [vmem:[%s1 + $0xae0] sm:$0xf]
    %v719 = vld [vmem:[%s1 + $0xae4] sm:$0xf]
    %v720 = vld [vmem:[%s1 + $0xae8] sm:$0xf]
    %v721 = vld [vmem:[%s1 + $0xaec] sm:$0xf]
    %v722 = vld [vmem:[%s1 + $0xaf0] sm:$0xf]
    %v723 = vld [vmem:[%s1 + $0xaf4] sm:$0xf]
    %v724 = vld [vmem:[%s1 + $0xaf8] sm:$0xf]
    %v725 = vld [vmem:[%s1 + $0xafc] sm:$0xf]
    %v726 = vld [vmem:[%s1 + $0xb00] sm:$0xf]
    %v727 = vld [vmem:[%s1 + $0xb04] sm:$0xf]
    %v728 = vld [vmem:[%s1 + $0xb08] sm:$0xf]
    %v729 = vld [vmem:[%s1 + $0xb0c] sm:$0xf]
    %v730 = vld [vmem:[%s1 + $0xb10] sm:$0xf]
    %v731 = vld [vmem:[%s1 + $0xb14] sm:$0xf]
    %v732 = vld [vmem:[%s1 + $0xb18] sm:$0xf]
    %v733 = vld [vmem:[%s1 + $0xb1c] sm:$0xf]
    %v734 = vld [vmem:[%s1 + $0xb20] sm:$0xf]
    %v735 = vld [vmem:[%s1 + $0xb24] sm:$0xf]
    %v736 = vld [vmem:[%s1 + $0xb28] sm:$0xf]
    %v737 = vld [vmem:[%s1 + $0xb2c] sm:$0xf]
    %v738 = vld [vmem:[%s1 + $0xb30] sm:$0xf]
    %v739 = vld [vmem:[%s1 + $0xb34] sm:$0xf]
    %v740 = vld [vmem:[%s1 + $0xb38] sm:$0xf]
    %v741 = vld [vmem:[%s1 + $0xb3c] sm:$0xf]
    %v742 = vld [vmem:[%s1 + $0xb40] sm:$0xf]
    %v743 = vld [vmem:[%s1 + $0xb44] sm:$0xf]
    %v744 = vld [vmem:[%s1 + $0xb48] sm:$0xf]
    %v745 = vld [vmem:[%s1 + $0xb4c] sm:$0xf]
    %v746 = vld [vmem:[%s1 + $0xb50] sm:$0xf]
    %v747 = vld [vmem:[%s1 + $0xb54] sm:$0xf]
    %v748 = vld [vmem:[%s1 + $0xb58] sm:$0xf]
    %v749 = vld [vmem:[%s1 + $0xb5c] sm:$0xf]
    %v750 = vld [vmem:[%s1 + $0xb60] sm:$0xf]
    %v751 = vld [vmem:[%s1 + $0xb64] sm:$0xf]
    %v752 = vld [vmem:[%s1 + $0xb68] sm:$0xf]
    %v753 = vld [vmem:[%s1 + $0xb6c] sm:$0xf]
    %v754 = vld [vmem:[%s1 + $0xb70] sm:$0xf]
    %v755 = vld [vmem:[%s1 + $0xb74] sm:$0xf]
    %v756 = vld [vmem:[%s1 + $0xb78] sm:$0xf]
    %v757 = vld [vmem:[%s1 + $0xb7c] sm:$0xf]
    %v758 = vld [vmem:[%s1 + $0xb80] sm:$0xf]
    %v759 = vld [vmem:[%s1 + $0xb84] sm:$0xf]
    %v760 = vld [vmem:[%s1 + $0xb88] sm:$0xf]
    %v761 = vld [vmem:[%s1 + $0xb8c] sm:$0xf]
    %v762 = vld [vmem:[%s1 + $0xb90] sm:$0xf]
    %v763 = vld [vmem:[%s1 + $0xb94] sm:$0xf]
    %v764 = vld [vmem:[%s1 + $0xb98] sm:$0xf]
    %v765 = vld [vmem:[%s1 + $0xb9c] sm:$0xf]
    %v766 = vld [vmem:[%s1 + $0xba0] sm:$0xf]
    %v767 = vld [vmem:[%s1 + $0xba4] sm:$0xf]
    %v768 = vld [vmem:[%s1 + $0xba8] sm:$0xf]
    %v769 = vld [vmem:[%s1 + $0xbac] sm:$0xf]
    %v770 = vld [vmem:[%s1 + $0xbb0] sm:$0xf]
    %v771 = vld [vmem:[%s1 + $0xbb4] sm:$0xf]
    %v772 = vld [vmem:[%s1 + $0xbb8] sm:$0xf]
    %v773 = vld [vmem:[%s1 + $0xbbc] sm:$0xf]
    %v774 = vld [vmem:[%s1 + $0xbc0] sm:$0xf]
    %v775 = vld [vmem:[%s1 + $0xbc4] sm:$0xf]
    %v776 = vld [vmem:[%s1 + $0xbc8] sm:$0xf]
    %v777 = vld [vmem:[%s1 + $0xbcc] sm:$0xf]
    %v778 = vld [vmem:[%s1 + $0xbd0] sm:$0xf]
    %v779 = vld [vmem:[%s1 + $0xbd4] sm:$0xf]
    %v780 = vld [vmem:[%s1 + $0xbd8] sm:$0xf]
    %v781 = vld [vmem:[%s1 + $0xbdc] sm:$0xf]
    %v782 = vld [vmem:[%s1 + $0xbe0] sm:$0xf]
    %v783 = vld [vmem:[%s1 + $0xbe4] sm:$0xf]
    %v784 = vld [vmem:[%s1 + $0xbe8] sm:$0xf]
    %v785 = vld [vmem:[%s1 + $0xbec] sm:$0xf]
    %v786 = vld [vmem:[%s1 + $0xbf0] sm:$0xf]
    %v787 = vld [vmem:[%s1 + $0xbf4] sm:$0xf]
    %v788 = vld [vmem:[%s1 + $0xbf8] sm:$0xf]
    %v789 = vld [vmem:[%s1 + $0xbfc] sm:$0xf]
    %v790 = vld [vmem:[%s1 + $0xc00] sm:$0xf]
    %v791 = vld [vmem:[%s1 + $0xc04] sm:$0xf]
    %v792 = vld [vmem:[%s1 + $0xc08] sm:$0xf]
    %v793 = vld [vmem:[%s1 + $0xc0c] sm:$0xf]
    %v794 = vld [vmem:[%s1 + $0xc10] sm:$0xf]
    %v795 = vld [vmem:[%s1 + $0xc14] sm:$0xf]
    %v796 = vld [vmem:[%s1 + $0xc18] sm:$0xf]
    %v797 = vld [vmem:[%s1 + $0xc1c] sm:$0xf]
    %v798 = vld [vmem:[%s1 + $0xc20] sm:$0xf]
    %v799 = vld [vmem:[%s1 + $0xc24] sm:$0xf]
    %v800 = vld [vmem:[%s1 + $0xc28] sm:$0xf]
    %v801 = vld [vmem:[%s1 + $0xc2c] sm:$0xf]
    %v802 = vld [vmem:[%s1 + $0xc30] sm:$0xf]
    %v803 = vld [vmem:[%s1 + $0xc34] sm:$0xf]
    %v804 = vld [vmem:[%s1 + $0xc38] sm:$0xf]
    %v805 = vld [vmem:[%s1 + $0xc3c] sm:$0xf]
    %v806 = vld [vmem:[%s2] sm:$0x1]
    %v808 = vperm.slane %v806, 0
    %811 = vst [vmem:[#allocation1] ss:$9 sm:$0xff] %v15
    %v812 = vld [vmem:[#allocation1] sm:$0xff]
    %v813 = vld [vmem:[#allocation1 + $0x9] sm:$0xff]
    %v814 = vld [vmem:[#allocation1 + $0x12] sm:$0xff]
    %v815 = vld [vmem:[#allocation1 + $0x1b] sm:$0xff]
    %v816 = vld [vmem:[#allocation1 + $0x24] sm:$0xff]
    %v817 = vld [vmem:[#allocation1 + $0x2d] sm:$0xff]
    %v818 = vld [vmem:[#allocation1 + $0x36] sm:$0xff]
    %v819 = vld [vmem:[#allocation1 + $0x3f] sm:$0xff]
    %821 = vst [vmem:[#allocation1] ss:$9 sm:$0xff] %v16
    %v822 = vld [vmem:[#allocation1] sm:$0xff]
    %v823 = vld [vmem:[#allocation1 + $0x9] sm:$0xff]
    %v824 = vld [vmem:[#allocation1 + $0x12] sm:$0xff]
    %v825 = vld [vmem:[#allocation1 + $0x1b] sm:$0xff]
    %v826 = vld [vmem:[#allocation1 + $0x24] sm:$0xff]
    %v827 = vld [vmem:[#allocation1 + $0x2d] sm:$0xff]
    %v828 = vld [vmem:[#allocation1 + $0x36] sm:$0xff]
    %v829 = vld [vmem:[#allocation1 + $0x3f] sm:$0xff]
    %831 = vst [vmem:[#allocation1] ss:$9 sm:$0xff] %v17
    %v832 = vld [vmem:[#allocation1] sm:$0xff]
    %v833 = vld [vmem:[#allocation1 + $0x9] sm:$0xff]
    %v834 = vld [vmem:[#allocation1 + $0x12] sm:$0xff]
    %v835 = vld [vmem:[#allocation1 + $0x1b] sm:$0xff]
    %v836 = vld [vmem:[#allocation1 + $0x24] sm:$0xff]
    %v837 = vld [vmem:[#allocation1 + $0x2d] sm:$0xff]
    %v838 = vld [vmem:[#allocation1 + $0x36] sm:$0xff]
    %v839 = vld [vmem:[#allocation1 + $0x3f] sm:$0xff]
    %841 = vst [vmem:[#allocation1] ss:$9 sm:$0xff] %v18
    %v842 = vld [vmem:[#allocation1] sm:$0xff]
    %v843 = vld [vmem:[#allocation1 + $0x9] sm:$0xff]
    %v844 = vld [vmem:[#allocation1 + $0x12] sm:$0xff]
    %v845 = vld [vmem:[#allocation1 + $0x1b] sm:$0xff]
    %v846 = vld [vmem:[#allocation1 + $0x24] sm:$0xff]
    %v847 = vld [vmem:[#allocation1 + $0x2d] sm:$0xff]
    %v848 = vld [vmem:[#allocation1 + $0x36] sm:$0xff]
    %v849 = vld [vmem:[#allocation1 + $0x3f] sm:$0xff]
    %851 = vst [vmem:[#allocation1] ss:$9 sm:$0xff] %v19
    %v852 = vld [vmem:[#allocation1] sm:$0xff]
    %v853 = vld [vmem:[#allocation1 + $0x9] sm:$0xff]
    %v854 = vld [vmem:[#allocation1 + $0x12] sm:$0xff]
    %v855 = vld [vmem:[#allocation1 + $0x1b] sm:$0xff]
    %v856 = vld [vmem:[#allocation1 + $0x24] sm:$0xff]
    %v857 = vld [vmem:[#allocation1 + $0x2d] sm:$0xff]
    %v858 = vld [vmem:[#allocation1 + $0x36] sm:$0xff]
    %v859 = vld [vmem:[#allocation1 + $0x3f] sm:$0xff]
    %861 = vst [vmem:[#allocation1] ss:$9 sm:$0xff] %v20
    %v862 = vld [vmem:[#allocation1] sm:$0xff]
    %v863 = vld [vmem:[#allocation1 + $0x9] sm:$0xff]
    %v864 = vld [vmem:[#allocation1 + $0x12] sm:$0xff]
    %v865 = vld [vmem:[#allocation1 + $0x1b] sm:$0xff]
    %v866 = vld [vmem:[#allocation1 + $0x24] sm:$0xff]
    %v867 = vld [vmem:[#allocation1 + $0x2d] sm:$0xff]
    %v868 = vld [vmem:[#allocation1 + $0x36] sm:$0xff]
    %v869 = vld [vmem:[#allocation1 + $0x3f] sm:$0xff]
    %871 = vst [vmem:[#allocation1] ss:$9 sm:$0xff] %v21
    %v872 = vld [vmem:[#allocation1] sm:$0xff]
    %v1706 = vunpack.c.l.b16 %v22
    %v1707 = vunpack.c.l.b16 %v23
    %v1708 = vunpack.c.l.b16 %v24
    %v1709 = vunpack.c.l.b16 %v25
    %v1710 = vunpack.c.l.b16 %v26
    %v1711 = vunpack.c.l.b16 %v27
    %v1712 = vunpack.c.l.b16 %v28
    %v1713 = vunpack.c.l.b16 %v29
    %v1714 = vunpack.c.l.b16 %v30
    %v1715 = vunpack.c.l.b16 %v31
    %v1716 = vunpack.c.l.b16 %v32
    %v1717 = vunpack.c.l.b16 %v33
    %v1718 = vunpack.c.l.b16 %v34
    %v1719 = vunpack.c.l.b16 %v35
    %v1720 = vunpack.c.l.b16 %v36
    %v1721 = vunpack.c.l.b16 %v37
    %v1722 = vunpack.c.l.b16 %v38
    %v1723 = vunpack.c.l.b16 %v39
    %v1724 = vunpack.c.l.b16 %v40
    %v1725 = vunpack.c.l.b16 %v41
    %v1726 = vunpack.c.l.b16 %v42
    %v1727 = vunpack.c.l.b16 %v43
    %v1728 = vunpack.c.l.b16 %v44
    %v1729 = vunpack.c.l.b16 %v45
    %v1730 = vunpack.c.l.b16 %v46
    %v1731 = vunpack.c.l.b16 %v47
    %v1732 = vunpack.c.l.b16 %v48
    %v1733 = vunpack.c.l.b16 %v49
    %v1734 = vunpack.c.l.b16 %v50
    %v1735 = vunpack.c.l.b16 %v51
    %v1736 = vunpack.c.l.b16 %v52
    %v1737 = vunpack.c.l.b16 %v53
    %v1738 = vunpack.c.l.b16 %v54
    %v1739 = vunpack.c.l.b16 %v55
    %v1740 = vunpack.c.l.b16 %v56
    %v1741 = vunpack.c.l.b16 %v57
    %v1742 = vunpack.c.l.b16 %v58
    %v1743 = vunpack.c.l.b16 %v59
    %v1744 = vunpack.c.l.b16 %v60
    %v1745 = vunpack.c.l.b16 %v61
    %v1746 = vunpack.c.l.b16 %v62
    %v1747 = vunpack.c.l.b16 %v63
    %v1748 = vunpack.c.l.b16 %v64
    %v1749 = vunpack.c.l.b16 %v65
    %v1750 = vunpack.c.l.b16 %v66
    %v1751 = vunpack.c.l.b16 %v67
    %v1752 = vunpack.c.l.b16 %v68
    %v1753 = vunpack.c.l.b16 %v69
    %v1754 = vunpack.c.l.b16 %v70
    %v1755 = vunpack.c.l.b16 %v71
    %v1756 = vunpack.c.l.b16 %v72
    %v1757 = vunpack.c.l.b16 %v73
    %v1758 = vunpack.c.l.b16 %v74
    %v1759 = vunpack.c.l.b16 %v75
    %v1760 = vunpack.c.l.b16 %v76
    %v1761 = vunpack.c.l.b16 %v77
    %v1762 = vunpack.c.l.b16 %v78
    %v1763 = vunpack.c.l.b16 %v79
    %v1764 = vunpack.c.l.b16 %v80
    %v1765 = vunpack.c.l.b16 %v81
    %v1766 = vunpack.c.l.b16 %v82
    %v1767 = vunpack.c.l.b16 %v83
    %v1768 = vunpack.c.l.b16 %v84
    %v1769 = vunpack.c.l.b16 %v85
    %v1770 = vunpack.c.l.b16 %v86
    %v1771 = vunpack.c.l.b16 %v87
    %v1772 = vunpack.c.l.b16 %v88
    %v1773 = vunpack.c.l.b16 %v89
    %v1774 = vunpack.c.l.b16 %v90
    %v1775 = vunpack.c.l.b16 %v91
    %v1776 = vunpack.c.l.b16 %v92
    %v1777 = vunpack.c.l.b16 %v93
    %v1778 = vunpack.c.l.b16 %v94
    %v1779 = vunpack.c.l.b16 %v95
    %v1780 = vunpack.c.l.b16 %v96
    %v1781 = vunpack.c.l.b16 %v97
    %v1782 = vunpack.c.l.b16 %v98
    %v1783 = vunpack.c.l.b16 %v99
    %v1784 = vunpack.c.l.b16 %v100
    %v1785 = vunpack.c.l.b16 %v101
    %v1786 = vunpack.c.l.b16 %v102
    %v1787 = vunpack.c.l.b16 %v103
    %v1788 = vunpack.c.l.b16 %v104
    %v1789 = vunpack.c.l.b16 %v105
    %v1790 = vunpack.c.l.b16 %v106
    %v1791 = vunpack.c.l.b16 %v107
    %v1792 = vunpack.c.l.b16 %v108
    %v1793 = vunpack.c.l.b16 %v109
    %v1794 = vunpack.c.l.b16 %v110
    %v1795 = vunpack.c.l.b16 %v111
    %v1796 = vunpack.c.l.b16 %v112
    %v1797 = vunpack.c.l.b16 %v113
    %v1798 = vunpack.c.l.b16 %v114
    %v1799 = vunpack.c.l.b16 %v115
    %v1800 = vunpack.c.l.b16 %v116
    %v1801 = vunpack.c.l.b16 %v117
    %v1802 = vunpack.c.l.b16 %v118
    %v1803 = vunpack.c.l.b16 %v119
    %v1804 = vunpack.c.l.b16 %v120
    %v1805 = vunpack.c.l.b16 %v121
    %v1806 = vunpack.c.l.b16 %v122
    %v1807 = vunpack.c.l.b16 %v123
    %v1808 = vunpack.c.l.b16 %v124
    %v1809 = vunpack.c.l.b16 %v125
    %v1810 = vunpack.c.l.b16 %v126
    %v1811 = vunpack.c.l.b16 %v127
    %v1812 = vunpack.c.l.b16 %v128
    %v1813 = vunpack.c.l.b16 %v129
    %v1814 = vunpack.c.l.b16 %v130
    %v1815 = vunpack.c.l.b16 %v131
    %v1816 = vunpack.c.l.b16 %v132
    %v1817 = vunpack.c.l.b16 %v133
    %v1818 = vunpack.c.l.b16 %v134
    %v1819 = vunpack.c.l.b16 %v135
    %v1820 = vunpack.c.l.b16 %v136
    %v1821 = vunpack.c.l.b16 %v137
    %v1822 = vunpack.c.l.b16 %v138
    %v1823 = vunpack.c.l.b16 %v139
    %v1824 = vunpack.c.l.b16 %v140
    %v1825 = vunpack.c.l.b16 %v141
    %v1826 = vunpack.c.l.b16 %v142
    %v1827 = vunpack.c.l.b16 %v143
    %v1828 = vunpack.c.l.b16 %v144
    %v1829 = vunpack.c.l.b16 %v145
    %v1830 = vunpack.c.l.b16 %v146
    %v1831 = vunpack.c.l.b16 %v147
    %v1832 = vunpack.c.l.b16 %v148
    %v1833 = vunpack.c.l.b16 %v149
    %v1834 = vunpack.c.l.b16 %v150
    %v1835 = vunpack.c.l.b16 %v151
    %v1836 = vunpack.c.l.b16 %v152
    %v1837 = vunpack.c.l.b16 %v153
    %v1838 = vunpack.c.l.b16 %v154
    %v1839 = vunpack.c.l.b16 %v155
    %v1840 = vunpack.c.l.b16 %v156
    %v1841 = vunpack.c.l.b16 %v157
    %v1842 = vunpack.c.l.b16 %v158
    %v1843 = vunpack.c.l.b16 %v159
    %v1844 = vunpack.c.l.b16 %v160
    %v1845 = vunpack.c.l.b16 %v161
    %v1846 = vunpack.c.l.b16 %v162
    %v1847 = vunpack.c.l.b16 %v163
    %v1848 = vunpack.c.l.b16 %v164
    %v1849 = vunpack.c.l.b16 %v165
    %v1850 = vunpack.c.l.b16 %v166
    %v1851 = vunpack.c.l.b16 %v167
    %v1852 = vunpack.c.l.b16 %v168
    %v1853 = vunpack.c.l.b16 %v169
    %v1854 = vunpack.c.l.b16 %v170
    %v1855 = vunpack.c.l.b16 %v171
    %v1856 = vunpack.c.l.b16 %v172
    %v1857 = vunpack.c.l.b16 %v173
    %v1858 = vunpack.c.l.b16 %v174
    %v1859 = vunpack.c.l.b16 %v175
    %v1860 = vunpack.c.l.b16 %v176
    %v1861 = vunpack.c.l.b16 %v177
    %v1862 = vunpack.c.l.b16 %v178
    %v1863 = vunpack.c.l.b16 %v179
    %v1864 = vunpack.c.l.b16 %v180
    %v1865 = vunpack.c.l.b16 %v181
    %v1866 = vunpack.c.l.b16 %v182
    %v1867 = vunpack.c.l.b16 %v183
    %v1868 = vunpack.c.l.b16 %v184
    %v1869 = vunpack.c.l.b16 %v185
    %v1870 = vunpack.c.l.b16 %v186
    %v1871 = vunpack.c.l.b16 %v187
    %v1872 = vunpack.c.l.b16 %v188
    %v1873 = vunpack.c.l.b16 %v189
    %v1874 = vunpack.c.l.b16 %v190
    %v1875 = vunpack.c.l.b16 %v191
    %v1876 = vunpack.c.l.b16 %v192
    %v1877 = vunpack.c.l.b16 %v193
    %v1878 = vunpack.c.l.b16 %v194
    %v1879 = vunpack.c.l.b16 %v195
    %v1880 = vunpack.c.l.b16 %v196
    %v1881 = vunpack.c.l.b16 %v197
    %v1882 = vunpack.c.l.b16 %v198
    %v1883 = vunpack.c.l.b16 %v199
    %v1884 = vunpack.c.l.b16 %v200
    %v1885 = vunpack.c.l.b16 %v201
    %v1886 = vunpack.c.l.b16 %v202
    %v1887 = vunpack.c.l.b16 %v203
    %v1888 = vunpack.c.l.b16 %v204
    %v1889 = vunpack.c.l.b16 %v205
    %v1890 = vunpack.c.l.b16 %v206
    %v1891 = vunpack.c.l.b16 %v207
    %v1892 = vunpack.c.l.b16 %v208
    %v1893 = vunpack.c.l.b16 %v209
    %v1894 = vunpack.c.l.b16 %v210
    %v1895 = vunpack.c.l.b16 %v211
    %v1896 = vunpack.c.l.b16 %v212
    %v1897 = vunpack.c.l.b16 %v213
    %v1898 = vunpack.c.l.b16 %v214
    %v1899 = vunpack.c.l.b16 %v215
    %v1900 = vunpack.c.l.b16 %v216
    %v1901 = vunpack.c.l.b16 %v217
    %v1902 = vunpack.c.l.b16 %v218
    %v1903 = vunpack.c.l.b16 %v219
    %v1904 = vunpack.c.l.b16 %v220
    %v1905 = vunpack.c.l.b16 %v221
    %v1906 = vunpack.c.l.b16 %v222
    %v1907 = vunpack.c.l.b16 %v223
    %v1908 = vunpack.c.l.b16 %v224
    %v1909 = vunpack.c.l.b16 %v225
    %v1910 = vunpack.c.l.b16 %v226
    %v1911 = vunpack.c.l.b16 %v227
    %v1912 = vunpack.c.l.b16 %v228
    %v1913 = vunpack.c.l.b16 %v229
    %v1914 = vunpack.c.l.b16 %v230
    %v1915 = vunpack.c.l.b16 %v231
    %v1916 = vunpack.c.l.b16 %v232
    %v1917 = vunpack.c.l.b16 %v233
    %v1918 = vunpack.c.l.b16 %v234
    %v1919 = vunpack.c.l.b16 %v235
    %v1920 = vunpack.c.l.b16 %v236
    %v1921 = vunpack.c.l.b16 %v237
    %v1922 = vunpack.c.l.b16 %v238
    %v1923 = vunpack.c.l.b16 %v239
    %v1924 = vunpack.c.l.b16 %v240
    %v1925 = vunpack.c.l.b16 %v241
    %v1926 = vunpack.c.l.b16 %v242
    %v1927 = vunpack.c.l.b16 %v243
    %v1928 = vunpack.c.l.b16 %v244
    %v1929 = vunpack.c.l.b16 %v245
    %v1930 = vunpack.c.l.b16 %v246
    %v1931 = vunpack.c.l.b16 %v247
    %v1932 = vunpack.c.l.b16 %v248
    %v1933 = vunpack.c.l.b16 %v249
    %v1934 = vunpack.c.l.b16 %v250
    %v1935 = vunpack.c.l.b16 %v251
    %v1936 = vunpack.c.l.b16 %v252
    %v1937 = vunpack.c.l.b16 %v253
    %v1938 = vunpack.c.l.b16 %v254
    %v1939 = vunpack.c.l.b16 %v255
    %v1940 = vunpack.c.l.b16 %v256
    %v1941 = vunpack.c.l.b16 %v257
    %v1942 = vunpack.c.l.b16 %v258
    %v1943 = vunpack.c.l.b16 %v259
    %v1944 = vunpack.c.l.b16 %v260
    %v1945 = vunpack.c.l.b16 %v261
    %v1946 = vunpack.c.l.b16 %v262
    %v1947 = vunpack.c.l.b16 %v263
    %v1948 = vunpack.c.l.b16 %v264
    %v1949 = vunpack.c.l.b16 %v265
    %v1950 = vunpack.c.l.b16 %v266
    %v1951 = vunpack.c.l.b16 %v267
    %v1952 = vunpack.c.l.b16 %v268
    %v1953 = vunpack.c.l.b16 %v269
    %v1954 = vunpack.c.l.b16 %v270
    %v1955 = vunpack.c.l.b16 %v271
    %v1956 = vunpack.c.l.b16 %v272
    %v1957 = vunpack.c.l.b16 %v273
    %v1958 = vunpack.c.l.b16 %v274
    %v1959 = vunpack.c.l.b16 %v275
    %v1960 = vunpack.c.l.b16 %v276
    %v1961 = vunpack.c.l.b16 %v277
    %v1962 = vunpack.c.l.b16 %v278
    %v1963 = vunpack.c.l.b16 %v279
    %v1964 = vunpack.c.l.b16 %v280
    %v1965 = vunpack.c.l.b16 %v281
    %v1966 = vunpack.c.l.b16 %v282
    %v1967 = vunpack.c.l.b16 %v283
    %v1968 = vunpack.c.l.b16 %v284
    %v1969 = vunpack.c.l.b16 %v285
    %v1970 = vunpack.c.l.b16 %v286
    %v1971 = vunpack.c.l.b16 %v287
    %v1972 = vunpack.c.l.b16 %v288
    %v1973 = vunpack.c.l.b16 %v289
    %v1974 = vunpack.c.l.b16 %v290
    %v1975 = vunpack.c.l.b16 %v291
    %v1976 = vunpack.c.l.b16 %v292
    %v1977 = vunpack.c.l.b16 %v293
    %v1978 = vunpack.c.l.b16 %v294
    %v1979 = vunpack.c.l.b16 %v295
    %v1980 = vunpack.c.l.b16 %v296
    %v1981 = vunpack.c.l.b16 %v297
    %v1982 = vunpack.c.l.b16 %v298
    %v1983 = vunpack.c.l.b16 %v299
    %v1984 = vunpack.c.l.b16 %v300
    %v1985 = vunpack.c.l.b16 %v301
    %v1986 = vunpack.c.l.b16 %v302
    %v1987 = vunpack.c.l.b16 %v303
    %v1988 = vunpack.c.l.b16 %v304
    %v1989 = vunpack.c.l.b16 %v305
    %v1990 = vunpack.c.l.b16 %v306
    %v1991 = vunpack.c.l.b16 %v307
    %v1992 = vunpack.c.l.b16 %v308
    %v1993 = vunpack.c.l.b16 %v309
    %v1994 = vunpack.c.l.b16 %v310
    %v1995 = vunpack.c.l.b16 %v311
    %v1996 = vunpack.c.l.b16 %v312
    %v1997 = vunpack.c.l.b16 %v313
    %v1998 = vunpack.c.l.b16 %v314
    %v1999 = vunpack.c.l.b16 %v315
    %v2000 = vunpack.c.l.b16 %v316
    %v2001 = vunpack.c.l.b16 %v317
    %v2002 = vunpack.c.l.b16 %v318
    %v2003 = vunpack.c.l.b16 %v319
    %v2004 = vunpack.c.l.b16 %v320
    %v2005 = vunpack.c.l.b16 %v321
    %v2006 = vunpack.c.l.b16 %v322
    %v2007 = vunpack.c.l.b16 %v323
    %v2008 = vunpack.c.l.b16 %v324
    %v2009 = vunpack.c.l.b16 %v325
    %v2010 = vunpack.c.l.b16 %v326
    %v2011 = vunpack.c.l.b16 %v327
    %v2012 = vunpack.c.l.b16 %v328
    %v2013 = vunpack.c.l.b16 %v329
    %v2014 = vunpack.c.l.b16 %v330
    %v2015 = vunpack.c.l.b16 %v331
    %v2016 = vunpack.c.l.b16 %v332
    %v2017 = vunpack.c.l.b16 %v333
    %v2018 = vunpack.c.l.b16 %v334
    %v2019 = vunpack.c.l.b16 %v335
    %v2020 = vunpack.c.l.b16 %v336
    %v2021 = vunpack.c.l.b16 %v337
    %v2022 = vunpack.c.l.b16 %v338
    %v2023 = vunpack.c.l.b16 %v339
    %v2024 = vunpack.c.l.b16 %v340
    %v2025 = vunpack.c.l.b16 %v341
    %v2026 = vunpack.c.l.b16 %v342
    %v2027 = vunpack.c.l.b16 %v343
    %v2028 = vunpack.c.l.b16 %v344
    %v2029 = vunpack.c.l.b16 %v345
    %v2030 = vunpack.c.l.b16 %v346
    %v2031 = vunpack.c.l.b16 %v347
    %v2032 = vunpack.c.l.b16 %v348
    %v2033 = vunpack.c.l.b16 %v349
    %v2034 = vunpack.c.l.b16 %v350
    %v2035 = vunpack.c.l.b16 %v351
    %v2036 = vunpack.c.l.b16 %v352
    %v2037 = vunpack.c.l.b16 %v353
    %v2038 = vunpack.c.l.b16 %v354
    %v2039 = vunpack.c.l.b16 %v355
    %v2040 = vunpack.c.l.b16 %v356
    %v2041 = vunpack.c.l.b16 %v357
    %v2042 = vunpack.c.l.b16 %v358
    %v2043 = vunpack.c.l.b16 %v359
    %v2044 = vunpack.c.l.b16 %v360
    %v2045 = vunpack.c.l.b16 %v361
    %v2046 = vunpack.c.l.b16 %v362
    %v2047 = vunpack.c.l.b16 %v363
    %v2048 = vunpack.c.l.b16 %v364
    %v2049 = vunpack.c.l.b16 %v365
    %v2050 = vunpack.c.l.b16 %v366
    %v2051 = vunpack.c.l.b16 %v367
    %v2052 = vunpack.c.l.b16 %v368
    %v2053 = vunpack.c.l.b16 %v369
    %v2054 = vunpack.c.l.b16 %v370
    %v2055 = vunpack.c.l.b16 %v371
    %v2056 = vunpack.c.l.b16 %v372
    %v2057 = vunpack.c.l.b16 %v373
    %v2058 = vunpack.c.l.b16 %v374
    %v2059 = vunpack.c.l.b16 %v375
    %v2060 = vunpack.c.l.b16 %v376
    %v2061 = vunpack.c.l.b16 %v377
    %v2062 = vunpack.c.l.b16 %v378
    %v2063 = vunpack.c.l.b16 %v379
    %v2064 = vunpack.c.l.b16 %v380
    %v2065 = vunpack.c.l.b16 %v381
    %v2066 = vunpack.c.l.b16 %v382
    %v2067 = vunpack.c.l.b16 %v383
    %v2068 = vunpack.c.l.b16 %v384
    %v2069 = vunpack.c.l.b16 %v385
    %v2070 = vunpack.c.l.b16 %v386
    %v2071 = vunpack.c.l.b16 %v387
    %v2072 = vunpack.c.l.b16 %v388
    %v2073 = vunpack.c.l.b16 %v389
    %v2074 = vunpack.c.l.b16 %v390
    %v2075 = vunpack.c.l.b16 %v391
    %v2076 = vunpack.c.l.b16 %v392
    %v2077 = vunpack.c.l.b16 %v393
    %v2078 = vunpack.c.l.b16 %v394
    %v2079 = vunpack.c.l.b16 %v395
    %v2080 = vunpack.c.l.b16 %v396
    %v2081 = vunpack.c.l.b16 %v397
    %v2082 = vunpack.c.l.b16 %v398
    %v2083 = vunpack.c.l.b16 %v399
    %v2084 = vunpack.c.l.b16 %v400
    %v2085 = vunpack.c.l.b16 %v401
    %v2086 = vunpack.c.l.b16 %v402
    %v2087 = vunpack.c.l.b16 %v403
    %v2088 = vunpack.c.l.b16 %v404
    %v2089 = vunpack.c.l.b16 %v405
    %v2090 = vunpack.c.l.b16 %v406
    %v2091 = vunpack.c.l.b16 %v407
    %v2092 = vunpack.c.l.b16 %v408
    %v2093 = vunpack.c.l.b16 %v409
    %v2094 = vunpack.c.l.b16 %v410
    %v2095 = vunpack.c.l.b16 %v411
    %v2096 = vunpack.c.l.b16 %v412
    %v2097 = vunpack.c.l.b16 %v413
    %v2098 = vunpack.c.l.b16 %v414
    %v2099 = vunpack.c.l.b16 %v415
    %v2100 = vunpack.c.l.b16 %v416
    %v2101 = vunpack.c.l.b16 %v417
    %v2102 = vunpack.c.l.b16 %v418
    %v2103 = vunpack.c.l.b16 %v419
    %v2104 = vunpack.c.l.b16 %v420
    %v2105 = vunpack.c.l.b16 %v421
    %v2106 = vunpack.c.l.b16 %v422
    %v2107 = vunpack.c.l.b16 %v423
    %v2108 = vunpack.c.l.b16 %v424
    %v2109 = vunpack.c.l.b16 %v425
    %v2110 = vunpack.c.l.b16 %v426
    %v2111 = vunpack.c.l.b16 %v427
    %v2112 = vunpack.c.l.b16 %v428
    %v2113 = vunpack.c.l.b16 %v429
    %v2114 = vunpack.c.l.b16 %v430
    %v2115 = vunpack.c.l.b16 %v431
    %v2116 = vunpack.c.l.b16 %v432
    %v2117 = vunpack.c.l.b16 %v433
    %v2118 = vunpack.c.l.b16 %v434
    %v2119 = vunpack.c.l.b16 %v435
    %v2120 = vunpack.c.l.b16 %v436
    %v2121 = vunpack.c.l.b16 %v437
    %v2122 = vunpack.c.l.b16 %v438
    %v2123 = vunpack.c.l.b16 %v439
    %v2124 = vunpack.c.l.b16 %v440
    %v2125 = vunpack.c.l.b16 %v441
    %v2126 = vunpack.c.l.b16 %v442
    %v2127 = vunpack.c.l.b16 %v443
    %v2128 = vunpack.c.l.b16 %v444
    %v2129 = vunpack.c.l.b16 %v445
    %v2130 = vunpack.c.l.b16 %v446
    %v2131 = vunpack.c.l.b16 %v447
    %v2132 = vunpack.c.l.b16 %v448
    %v2133 = vunpack.c.l.b16 %v449
    %v2134 = vunpack.c.l.b16 %v450
    %v2135 = vunpack.c.l.b16 %v451
    %v2136 = vunpack.c.l.b16 %v452
    %v2137 = vunpack.c.l.b16 %v453
    %v2138 = vunpack.c.l.b16 %v454
    %v2139 = vunpack.c.l.b16 %v455
    %v2140 = vunpack.c.l.b16 %v456
    %v2141 = vunpack.c.l.b16 %v457
    %v2142 = vunpack.c.l.b16 %v458
    %v2143 = vunpack.c.l.b16 %v459
    %v2144 = vunpack.c.l.b16 %v460
    %v2145 = vunpack.c.l.b16 %v461
    %v2146 = vunpack.c.l.b16 %v462
    %v2147 = vunpack.c.l.b16 %v463
    %v2148 = vunpack.c.l.b16 %v464
    %v2149 = vunpack.c.l.b16 %v465
    %v2150 = vunpack.c.l.b16 %v466
    %v2151 = vunpack.c.l.b16 %v467
    %v2152 = vunpack.c.l.b16 %v468
    %v2153 = vunpack.c.l.b16 %v469
    %v2154 = vunpack.c.l.b16 %v470
    %v2155 = vunpack.c.l.b16 %v471
    %v2156 = vunpack.c.l.b16 %v472
    %v2157 = vunpack.c.l.b16 %v473
    %v2158 = vunpack.c.l.b16 %v474
    %v2159 = vunpack.c.l.b16 %v475
    %v2160 = vunpack.c.l.b16 %v476
    %v2161 = vunpack.c.l.b16 %v477
    %v2162 = vunpack.c.l.b16 %v478
    %v2163 = vunpack.c.l.b16 %v479
    %v2164 = vunpack.c.l.b16 %v480
    %v2165 = vunpack.c.l.b16 %v481
    %v2166 = vunpack.c.l.b16 %v482
    %v2167 = vunpack.c.l.b16 %v483
    %v2168 = vunpack.c.l.b16 %v484
    %v2169 = vunpack.c.l.b16 %v485
    %v2170 = vunpack.c.l.b16 %v486
    %v2171 = vunpack.c.l.b16 %v487
    %v2172 = vunpack.c.l.b16 %v488
    %v2173 = vunpack.c.l.b16 %v489
    %v2174 = vunpack.c.l.b16 %v490
    %v2175 = vunpack.c.l.b16 %v491
    %v2176 = vunpack.c.l.b16 %v492
    %v2177 = vunpack.c.l.b16 %v493
    %v2178 = vunpack.c.l.b16 %v494
    %v2179 = vunpack.c.l.b16 %v495
    %v2180 = vunpack.c.l.b16 %v496
    %v2181 = vunpack.c.l.b16 %v497
    %v2182 = vunpack.c.l.b16 %v498
    %v2183 = vunpack.c.l.b16 %v499
    %v2184 = vunpack.c.l.b16 %v500
    %v2185 = vunpack.c.l.b16 %v501
    %v2186 = vunpack.c.l.b16 %v502
    %v2187 = vunpack.c.l.b16 %v503
    %v2188 = vunpack.c.l.b16 %v504
    %v2189 = vunpack.c.l.b16 %v505
    %v2190 = vunpack.c.l.b16 %v506
    %v2191 = vunpack.c.l.b16 %v507
    %v2192 = vunpack.c.l.b16 %v508
    %v2193 = vunpack.c.l.b16 %v509
    %v2194 = vunpack.c.l.b16 %v510
    %v2195 = vunpack.c.l.b16 %v511
    %v2196 = vunpack.c.l.b16 %v512
    %v2197 = vunpack.c.l.b16 %v513
    %v2198 = vunpack.c.l.b16 %v514
    %v2199 = vunpack.c.l.b16 %v515
    %v2200 = vunpack.c.l.b16 %v516
    %v2201 = vunpack.c.l.b16 %v517
    %v2202 = vunpack.c.l.b16 %v518
    %v2203 = vunpack.c.l.b16 %v519
    %v2204 = vunpack.c.l.b16 %v520
    %v2205 = vunpack.c.l.b16 %v521
    %v2206 = vunpack.c.l.b16 %v522
    %v2207 = vunpack.c.l.b16 %v523
    %v2208 = vunpack.c.l.b16 %v524
    %v2209 = vunpack.c.l.b16 %v525
    %v2210 = vunpack.c.l.b16 %v526
    %v2211 = vunpack.c.l.b16 %v527
    %v2212 = vunpack.c.l.b16 %v528
    %v2213 = vunpack.c.l.b16 %v529
    %v2214 = vunpack.c.l.b16 %v530
    %v2215 = vunpack.c.l.b16 %v531
    %v2216 = vunpack.c.l.b16 %v532
    %v2217 = vunpack.c.l.b16 %v533
    %v2218 = vunpack.c.l.b16 %v534
    %v2219 = vunpack.c.l.b16 %v535
    %v2220 = vunpack.c.l.b16 %v536
    %v2221 = vunpack.c.l.b16 %v537
    %v2222 = vunpack.c.l.b16 %v538
    %v2223 = vunpack.c.l.b16 %v539
    %v2224 = vunpack.c.l.b16 %v540
    %v2225 = vunpack.c.l.b16 %v541
    %v2226 = vunpack.c.l.b16 %v542
    %v2227 = vunpack.c.l.b16 %v543
    %v2228 = vunpack.c.l.b16 %v544
    %v2229 = vunpack.c.l.b16 %v545
    %v2230 = vunpack.c.l.b16 %v546
    %v2231 = vunpack.c.l.b16 %v547
    %v2232 = vunpack.c.l.b16 %v548
    %v2233 = vunpack.c.l.b16 %v549
    %v2234 = vunpack.c.l.b16 %v550
    %v2235 = vunpack.c.l.b16 %v551
    %v2236 = vunpack.c.l.b16 %v552
    %v2237 = vunpack.c.l.b16 %v553
    %v2238 = vunpack.c.l.b16 %v554
    %v2239 = vunpack.c.l.b16 %v555
    %v2240 = vunpack.c.l.b16 %v556
    %v2241 = vunpack.c.l.b16 %v557
    %v2242 = vunpack.c.l.b16 %v558
    %v2243 = vunpack.c.l.b16 %v559
    %v2244 = vunpack.c.l.b16 %v560
    %v2245 = vunpack.c.l.b16 %v561
    %v2246 = vunpack.c.l.b16 %v562
    %v2247 = vunpack.c.l.b16 %v563
    %v2248 = vunpack.c.l.b16 %v564
    %v2249 = vunpack.c.l.b16 %v565
    %v2250 = vunpack.c.l.b16 %v566
    %v2251 = vunpack.c.l.b16 %v567
    %v2252 = vunpack.c.l.b16 %v568
    %v2253 = vunpack.c.l.b16 %v569
    %v2254 = vunpack.c.l.b16 %v570
    %v2255 = vunpack.c.l.b16 %v571
    %v2256 = vunpack.c.l.b16 %v572
    %v2257 = vunpack.c.l.b16 %v573
    %v2258 = vunpack.c.l.b16 %v574
    %v2259 = vunpack.c.l.b16 %v575
    %v2260 = vunpack.c.l.b16 %v576
    %v2261 = vunpack.c.l.b16 %v577
    %v2262 = vunpack.c.l.b16 %v578
    %v2263 = vunpack.c.l.b16 %v579
    %v2264 = vunpack.c.l.b16 %v580
    %v2265 = vunpack.c.l.b16 %v581
    %v2266 = vunpack.c.l.b16 %v582
    %v2267 = vunpack.c.l.b16 %v583
    %v2268 = vunpack.c.l.b16 %v584
    %v2269 = vunpack.c.l.b16 %v585
    %v2270 = vunpack.c.l.b16 %v586
    %v2271 = vunpack.c.l.b16 %v587
    %v2272 = vunpack.c.l.b16 %v588
    %v2273 = vunpack.c.l.b16 %v589
    %v2274 = vunpack.c.l.b16 %v590
    %v2275 = vunpack.c.l.b16 %v591
    %v2276 = vunpack.c.l.b16 %v592
    %v2277 = vunpack.c.l.b16 %v593
    %v2278 = vunpack.c.l.b16 %v594
    %v2279 = vunpack.c.l.b16 %v595
    %v2280 = vunpack.c.l.b16 %v596
    %v2281 = vunpack.c.l.b16 %v597
    %v2282 = vunpack.c.l.b16 %v598
    %v2283 = vunpack.c.l.b16 %v599
    %v2284 = vunpack.c.l.b16 %v600
    %v2285 = vunpack.c.l.b16 %v601
    %v2286 = vunpack.c.l.b16 %v602
    %v2287 = vunpack.c.l.b16 %v603
    %v2288 = vunpack.c.l.b16 %v604
    %v2289 = vunpack.c.l.b16 %v605
    %v2290 = vunpack.c.l.b16 %v606
    %v2291 = vunpack.c.l.b16 %v607
    %v2292 = vunpack.c.l.b16 %v608
    %v2293 = vunpack.c.l.b16 %v609
    %v2294 = vunpack.c.l.b16 %v610
    %v2295 = vunpack.c.l.b16 %v611
    %v2296 = vunpack.c.l.b16 %v612
    %v2297 = vunpack.c.l.b16 %v613
    %v2298 = vunpack.c.l.b16 %v614
    %v2299 = vunpack.c.l.b16 %v615
    %v2300 = vunpack.c.l.b16 %v616
    %v2301 = vunpack.c.l.b16 %v617
    %v2302 = vunpack.c.l.b16 %v618
    %v2303 = vunpack.c.l.b16 %v619
    %v2304 = vunpack.c.l.b16 %v620
    %v2305 = vunpack.c.l.b16 %v621
    %v2306 = vunpack.c.l.b16 %v622
    %v2307 = vunpack.c.l.b16 %v623
    %v2308 = vunpack.c.l.b16 %v624
    %v2309 = vunpack.c.l.b16 %v625
    %v2310 = vunpack.c.l.b16 %v626
    %v2311 = vunpack.c.l.b16 %v627
    %v2312 = vunpack.c.l.b16 %v628
    %v2313 = vunpack.c.l.b16 %v629
    %v2314 = vunpack.c.l.b16 %v630
    %v2315 = vunpack.c.l.b16 %v631
    %v2316 = vunpack.c.l.b16 %v632
    %v2317 = vunpack.c.l.b16 %v633
    %v2318 = vunpack.c.l.b16 %v634
    %v2319 = vunpack.c.l.b16 %v635
    %v2320 = vunpack.c.l.b16 %v636
    %v2321 = vunpack.c.l.b16 %v637
    %v2322 = vunpack.c.l.b16 %v638
    %v2323 = vunpack.c.l.b16 %v639
    %v2324 = vunpack.c.l.b16 %v640
    %v2325 = vunpack.c.l.b16 %v641
    %v2326 = vunpack.c.l.b16 %v642
    %v2327 = vunpack.c.l.b16 %v643
    %v2328 = vunpack.c.l.b16 %v644
    %v2329 = vunpack.c.l.b16 %v645
    %v2330 = vunpack.c.l.b16 %v646
    %v2331 = vunpack.c.l.b16 %v647
    %v2332 = vunpack.c.l.b16 %v648
    %v2333 = vunpack.c.l.b16 %v649
    %v2334 = vunpack.c.l.b16 %v650
    %v2335 = vunpack.c.l.b16 %v651
    %v2336 = vunpack.c.l.b16 %v652
    %v2337 = vunpack.c.l.b16 %v653
    %v2338 = vunpack.c.l.b16 %v654
    %v2339 = vunpack.c.l.b16 %v655
    %v2340 = vunpack.c.l.b16 %v656
    %v2341 = vunpack.c.l.b16 %v657
    %v2342 = vunpack.c.l.b16 %v658
    %v2343 = vunpack.c.l.b16 %v659
    %v2344 = vunpack.c.l.b16 %v660
    %v2345 = vunpack.c.l.b16 %v661
    %v2346 = vunpack.c.l.b16 %v662
    %v2347 = vunpack.c.l.b16 %v663
    %v2348 = vunpack.c.l.b16 %v664
    %v2349 = vunpack.c.l.b16 %v665
    %v2350 = vunpack.c.l.b16 %v666
    %v2351 = vunpack.c.l.b16 %v667
    %v2352 = vunpack.c.l.b16 %v668
    %v2353 = vunpack.c.l.b16 %v669
    %v2354 = vunpack.c.l.b16 %v670
    %v2355 = vunpack.c.l.b16 %v671
    %v2356 = vunpack.c.l.b16 %v672
    %v2357 = vunpack.c.l.b16 %v673
    %v2358 = vunpack.c.l.b16 %v674
    %v2359 = vunpack.c.l.b16 %v675
    %v2360 = vunpack.c.l.b16 %v676
    %v2361 = vunpack.c.l.b16 %v677
    %v2362 = vunpack.c.l.b16 %v678
    %v2363 = vunpack.c.l.b16 %v679
    %v2364 = vunpack.c.l.b16 %v680
    %v2365 = vunpack.c.l.b16 %v681
    %v2366 = vunpack.c.l.b16 %v682
    %v2367 = vunpack.c.l.b16 %v683
    %v2368 = vunpack.c.l.b16 %v684
    %v2369 = vunpack.c.l.b16 %v685
    %v2370 = vunpack.c.l.b16 %v686
    %v2371 = vunpack.c.l.b16 %v687
    %v2372 = vunpack.c.l.b16 %v688
    %v2373 = vunpack.c.l.b16 %v689
    %v2374 = vunpack.c.l.b16 %v690
    %v2375 = vunpack.c.l.b16 %v691
    %v2376 = vunpack.c.l.b16 %v692
    %v2377 = vunpack.c.l.b16 %v693
    %v2378 = vunpack.c.l.b16 %v694
    %v2379 = vunpack.c.l.b16 %v695
    %v2380 = vunpack.c.l.b16 %v696
    %v2381 = vunpack.c.l.b16 %v697
    %v2382 = vunpack.c.l.b16 %v698
    %v2383 = vunpack.c.l.b16 %v699
    %v2384 = vunpack.c.l.b16 %v700
    %v2385 = vunpack.c.l.b16 %v701
    %v2386 = vunpack.c.l.b16 %v702
    %v2387 = vunpack.c.l.b16 %v703
    %v2388 = vunpack.c.l.b16 %v704
    %v2389 = vunpack.c.l.b16 %v705
    %v2390 = vunpack.c.l.b16 %v706
    %v2391 = vunpack.c.l.b16 %v707
    %v2392 = vunpack.c.l.b16 %v708
    %v2393 = vunpack.c.l.b16 %v709
    %v2394 = vunpack.c.l.b16 %v710
    %v2395 = vunpack.c.l.b16 %v711
    %v2396 = vunpack.c.l.b16 %v712
    %v2397 = vunpack.c.l.b16 %v713
    %v2398 = vunpack.c.l.b16 %v714
    %v2399 = vunpack.c.l.b16 %v715
    %v2400 = vunpack.c.l.b16 %v716
    %v2401 = vunpack.c.l.b16 %v717
    %v2402 = vunpack.c.l.b16 %v718
    %v2403 = vunpack.c.l.b16 %v719
    %v2404 = vunpack.c.l.b16 %v720
    %v2405 = vunpack.c.l.b16 %v721
    %v2406 = vunpack.c.l.b16 %v722
    %v2407 = vunpack.c.l.b16 %v723
    %v2408 = vunpack.c.l.b16 %v724
    %v2409 = vunpack.c.l.b16 %v725
    %v2410 = vunpack.c.l.b16 %v726
    %v2411 = vunpack.c.l.b16 %v727
    %v2412 = vunpack.c.l.b16 %v728
    %v2413 = vunpack.c.l.b16 %v729
    %v2414 = vunpack.c.l.b16 %v730
    %v2415 = vunpack.c.l.b16 %v731
    %v2416 = vunpack.c.l.b16 %v732
    %v2417 = vunpack.c.l.b16 %v733
    %v2418 = vunpack.c.l.b16 %v734
    %v2419 = vunpack.c.l.b16 %v735
    %v2420 = vunpack.c.l.b16 %v736
    %v2421 = vunpack.c.l.b16 %v737
    %v2422 = vunpack.c.l.b16 %v738
    %v2423 = vunpack.c.l.b16 %v739
    %v2424 = vunpack.c.l.b16 %v740
    %v2425 = vunpack.c.l.b16 %v741
    %v2426 = vunpack.c.l.b16 %v742
    %v2427 = vunpack.c.l.b16 %v743
    %v2428 = vunpack.c.l.b16 %v744
    %v2429 = vunpack.c.l.b16 %v745
    %v2430 = vunpack.c.l.b16 %v746
    %v2431 = vunpack.c.l.b16 %v747
    %v2432 = vunpack.c.l.b16 %v748
    %v2433 = vunpack.c.l.b16 %v749
    %v2434 = vunpack.c.l.b16 %v750
    %v2435 = vunpack.c.l.b16 %v751
    %v2436 = vunpack.c.l.b16 %v752
    %v2437 = vunpack.c.l.b16 %v753
    %v2438 = vunpack.c.l.b16 %v754
    %v2439 = vunpack.c.l.b16 %v755
    %v2440 = vunpack.c.l.b16 %v756
    %v2441 = vunpack.c.l.b16 %v757
    %v2442 = vunpack.c.l.b16 %v758
    %v2443 = vunpack.c.l.b16 %v759
    %v2444 = vunpack.c.l.b16 %v760
    %v2445 = vunpack.c.l.b16 %v761
    %v2446 = vunpack.c.l.b16 %v762
    %v2447 = vunpack.c.l.b16 %v763
    %v2448 = vunpack.c.l.b16 %v764
    %v2449 = vunpack.c.l.b16 %v765
    %v2450 = vunpack.c.l.b16 %v766
    %v2451 = vunpack.c.l.b16 %v767
    %v2452 = vunpack.c.l.b16 %v768
    %v2453 = vunpack.c.l.b16 %v769
    %v2454 = vunpack.c.l.b16 %v770
    %v2455 = vunpack.c.l.b16 %v771
    %v2456 = vunpack.c.l.b16 %v772
    %v2457 = vunpack.c.l.b16 %v773
    %v2458 = vunpack.c.l.b16 %v774
    %v2459 = vunpack.c.l.b16 %v775
    %v2460 = vunpack.c.l.b16 %v776
    %v2461 = vunpack.c.l.b16 %v777
    %v2462 = vunpack.c.l.b16 %v778
    %v2463 = vunpack.c.l.b16 %v779
    %v2464 = vunpack.c.l.b16 %v780
    %v2465 = vunpack.c.l.b16 %v781
    %v2466 = vunpack.c.l.b16 %v782
    %v2467 = vunpack.c.l.b16 %v783
    %v2468 = vunpack.c.l.b16 %v784
    %v2469 = vunpack.c.l.b16 %v785
    %v2470 = vunpack.c.l.b16 %v786
    %v2471 = vunpack.c.l.b16 %v787
    %v2472 = vunpack.c.l.b16 %v788
    %v2473 = vunpack.c.l.b16 %v789
    %v2474 = vunpack.c.l.b16 %v790
    %v2475 = vunpack.c.l.b16 %v791
    %v2476 = vunpack.c.l.b16 %v792
    %v2477 = vunpack.c.l.b16 %v793
    %v2478 = vunpack.c.l.b16 %v794
    %v2479 = vunpack.c.l.b16 %v795
    %v2480 = vunpack.c.l.b16 %v796
    %v2481 = vunpack.c.l.b16 %v797
    %v2482 = vunpack.c.l.b16 %v798
    %v2483 = vunpack.c.l.b16 %v799
    %v2484 = vunpack.c.l.b16 %v800
    %v2485 = vunpack.c.l.b16 %v801
    %v2486 = vunpack.c.l.b16 %v802
    %v2487 = vunpack.c.l.b16 %v803
    %v2488 = vunpack.c.l.b16 %v804
    %v2489 = vunpack.c.l.b16 %v805
    %v2490 = vpack.c.b16 %v1707, %v1706
    %v2491 = vpack.c.b16 %v1709, %v1708
    %v2492 = vpack.c.b16 %v1711, %v1710
    %v2493 = vpack.c.b16 %v1713, %v1712
    %v2494 = vpack.c.b16 %v1715, %v1714
    %v2495 = vpack.c.b16 %v1717, %v1716
    %v2496 = vpack.c.b16 %v1719, %v1718
    %v2497 = vpack.c.b16 %v1721, %v1720
    %v2498 = vpack.c.b16 %v1723, %v1722
    %v2499 = vpack.c.b16 %v1725, %v1724
    %v2500 = vpack.c.b16 %v1727, %v1726
    %v2501 = vpack.c.b16 %v1729, %v1728
    %v2502 = vpack.c.b16 %v1731, %v1730
    %v2503 = vpack.c.b16 %v1733, %v1732
    %v2504 = vpack.c.b16 %v1735, %v1734
    %v2505 = vpack.c.b16 %v1737, %v1736
    %v2506 = vpack.c.b16 %v1739, %v1738
    %v2507 = vpack.c.b16 %v1741, %v1740
    %v2508 = vpack.c.b16 %v1743, %v1742
    %v2509 = vpack.c.b16 %v1745, %v1744
    %v2510 = vpack.c.b16 %v1747, %v1746
    %v2511 = vpack.c.b16 %v1749, %v1748
    %v2512 = vpack.c.b16 %v1751, %v1750
    %v2513 = vpack.c.b16 %v1753, %v1752
    %v2514 = vpack.c.b16 %v1755, %v1754
    %v2515 = vpack.c.b16 %v1757, %v1756
    %v2516 = vpack.c.b16 %v1759, %v1758
    %v2517 = vpack.c.b16 %v1761, %v1760
    %v2518 = vpack.c.b16 %v1763, %v1762
    %v2519 = vpack.c.b16 %v1765, %v1764
    %v2520 = vpack.c.b16 %v1767, %v1766
    %v2521 = vpack.c.b16 %v1769, %v1768
    %v2522 = vpack.c.b16 %v1771, %v1770
    %v2523 = vpack.c.b16 %v1773, %v1772
    %v2524 = vpack.c.b16 %v1775, %v1774
    %v2525 = vpack.c.b16 %v1777, %v1776
    %v2526 = vpack.c.b16 %v1779, %v1778
    %v2527 = vpack.c.b16 %v1781, %v1780
    %v2528 = vpack.c.b16 %v1783, %v1782
    %v2529 = vpack.c.b16 %v1785, %v1784
    %v2530 = vpack.c.b16 %v1787, %v1786
    %v2531 = vpack.c.b16 %v1789, %v1788
    %v2532 = vpack.c.b16 %v1791, %v1790
    %v2533 = vpack.c.b16 %v1793, %v1792
    %v2534 = vpack.c.b16 %v1795, %v1794
    %v2535 = vpack.c.b16 %v1797, %v1796
    %v2536 = vpack.c.b16 %v1799, %v1798
    %v2537 = vpack.c.b16 %v1801, %v1800
    %v2538 = vpack.c.b16 %v1803, %v1802
    %v2539 = vpack.c.b16 %v1805, %v1804
    %v2540 = vpack.c.b16 %v1807, %v1806
    %v2541 = vpack.c.b16 %v1809, %v1808
    %v2542 = vpack.c.b16 %v1811, %v1810
    %v2543 = vpack.c.b16 %v1813, %v1812
    %v2544 = vpack.c.b16 %v1815, %v1814
    %v2545 = vpack.c.b16 %v1817, %v1816
    %v2546 = vpack.c.b16 %v1819, %v1818
    %v2547 = vpack.c.b16 %v1821, %v1820
    %v2548 = vpack.c.b16 %v1823, %v1822
    %v2549 = vpack.c.b16 %v1825, %v1824
    %v2550 = vpack.c.b16 %v1827, %v1826
    %v2551 = vpack.c.b16 %v1829, %v1828
    %v2552 = vpack.c.b16 %v1831, %v1830
    %v2553 = vpack.c.b16 %v1833, %v1832
    %v2554 = vpack.c.b16 %v1835, %v1834
    %v2555 = vpack.c.b16 %v1837, %v1836
    %v2556 = vpack.c.b16 %v1839, %v1838
    %v2557 = vpack.c.b16 %v1841, %v1840
    %v2558 = vpack.c.b16 %v1843, %v1842
    %v2559 = vpack.c.b16 %v1845, %v1844
    %v2560 = vpack.c.b16 %v1847, %v1846
    %v2561 = vpack.c.b16 %v1849, %v1848
    %v2562 = vpack.c.b16 %v1851, %v1850
    %v2563 = vpack.c.b16 %v1853, %v1852
    %v2564 = vpack.c.b16 %v1855, %v1854
    %v2565 = vpack.c.b16 %v1857, %v1856
    %v2566 = vpack.c.b16 %v1859, %v1858
    %v2567 = vpack.c.b16 %v1861, %v1860
    %v2568 = vpack.c.b16 %v1863, %v1862
    %v2569 = vpack.c.b16 %v1865, %v1864
    %v2570 = vpack.c.b16 %v1867, %v1866
    %v2571 = vpack.c.b16 %v1869, %v1868
    %v2572 = vpack.c.b16 %v1871, %v1870
    %v2573 = vpack.c.b16 %v1873, %v1872
    %v2574 = vpack.c.b16 %v1875, %v1874
    %v2575 = vpack.c.b16 %v1877, %v1876
    %v2576 = vpack.c.b16 %v1879, %v1878
    %v2577 = vpack.c.b16 %v1881, %v1880
    %v2578 = vpack.c.b16 %v1883, %v1882
    %v2579 = vpack.c.b16 %v1885, %v1884
    %v2580 = vpack.c.b16 %v1887, %v1886
    %v2581 = vpack.c.b16 %v1889, %v1888
    %v2582 = vpack.c.b16 %v1891, %v1890
    %v2583 = vpack.c.b16 %v1893, %v1892
    %v2584 = vpack.c.b16 %v1895, %v1894
    %v2585 = vpack.c.b16 %v1897, %v1896
    %v2586 = vpack.c.b16 %v1899, %v1898
    %v2587 = vpack.c.b16 %v1901, %v1900
    %v2588 = vpack.c.b16 %v1903, %v1902
    %v2589 = vpack.c.b16 %v1905, %v1904
    %v2590 = vpack.c.b16 %v1907, %v1906
    %v2591 = vpack.c.b16 %v1909, %v1908
    %v2592 = vpack.c.b16 %v1911, %v1910
    %v2593 = vpack.c.b16 %v1913, %v1912
    %v2594 = vpack.c.b16 %v1915, %v1914
    %v2595 = vpack.c.b16 %v1917, %v1916
    %v2596 = vpack.c.b16 %v1919, %v1918
    %v2597 = vpack.c.b16 %v1921, %v1920
    %v2598 = vpack.c.b16 %v1923, %v1922
    %v2599 = vpack.c.b16 %v1925, %v1924
    %v2600 = vpack.c.b16 %v1927, %v1926
    %v2601 = vpack.c.b16 %v1929, %v1928
    %v2602 = vpack.c.b16 %v1931, %v1930
    %v2603 = vpack.c.b16 %v1933, %v1932
    %v2604 = vpack.c.b16 %v1935, %v1934
    %v2605 = vpack.c.b16 %v1937, %v1936
    %v2606 = vpack.c.b16 %v1939, %v1938
    %v2607 = vpack.c.b16 %v1941, %v1940
    %v2608 = vpack.c.b16 %v1943, %v1942
    %v2609 = vpack.c.b16 %v1945, %v1944
    %v2610 = vpack.c.b16 %v1947, %v1946
    %v2611 = vpack.c.b16 %v1949, %v1948
    %v2612 = vpack.c.b16 %v1951, %v1950
    %v2613 = vpack.c.b16 %v1953, %v1952
    %v2614 = vpack.c.b16 %v1955, %v1954
    %v2615 = vpack.c.b16 %v1957, %v1956
    %v2616 = vpack.c.b16 %v1959, %v1958
    %v2617 = vpack.c.b16 %v1961, %v1960
    %v2618 = vpack.c.b16 %v1963, %v1962
    %v2619 = vpack.c.b16 %v1965, %v1964
    %v2620 = vpack.c.b16 %v1967, %v1966
    %v2621 = vpack.c.b16 %v1969, %v1968
    %v2622 = vpack.c.b16 %v1971, %v1970
    %v2623 = vpack.c.b16 %v1973, %v1972
    %v2624 = vpack.c.b16 %v1975, %v1974
    %v2625 = vpack.c.b16 %v1977, %v1976
    %v2626 = vpack.c.b16 %v1979, %v1978
    %v2627 = vpack.c.b16 %v1981, %v1980
    %v2628 = vpack.c.b16 %v1983, %v1982
    %v2629 = vpack.c.b16 %v1985, %v1984
    %v2630 = vpack.c.b16 %v1987, %v1986
    %v2631 = vpack.c.b16 %v1989, %v1988
    %v2632 = vpack.c.b16 %v1991, %v1990
    %v2633 = vpack.c.b16 %v1993, %v1992
    %v2634 = vpack.c.b16 %v1995, %v1994
    %v2635 = vpack.c.b16 %v1997, %v1996
    %v2636 = vpack.c.b16 %v1999, %v1998
    %v2637 = vpack.c.b16 %v2001, %v2000
    %v2638 = vpack.c.b16 %v2003, %v2002
    %v2639 = vpack.c.b16 %v2005, %v2004
    %v2640 = vpack.c.b16 %v2007, %v2006
    %v2641 = vpack.c.b16 %v2009, %v2008
    %v2642 = vpack.c.b16 %v2011, %v2010
    %v2643 = vpack.c.b16 %v2013, %v2012
    %v2644 = vpack.c.b16 %v2015, %v2014
    %v2645 = vpack.c.b16 %v2017, %v2016
    %v2646 = vpack.c.b16 %v2019, %v2018
    %v2647 = vpack.c.b16 %v2021, %v2020
    %v2648 = vpack.c.b16 %v2023, %v2022
    %v2649 = vpack.c.b16 %v2025, %v2024
    %v2650 = vpack.c.b16 %v2027, %v2026
    %v2651 = vpack.c.b16 %v2029, %v2028
    %v2652 = vpack.c.b16 %v2031, %v2030
    %v2653 = vpack.c.b16 %v2033, %v2032
    %v2654 = vpack.c.b16 %v2035, %v2034
    %v2655 = vpack.c.b16 %v2037, %v2036
    %v2656 = vpack.c.b16 %v2039, %v2038
    %v2657 = vpack.c.b16 %v2041, %v2040
    %v2658 = vpack.c.b16 %v2043, %v2042
    %v2659 = vpack.c.b16 %v2045, %v2044
    %v2660 = vpack.c.b16 %v2047, %v2046
    %v2661 = vpack.c.b16 %v2049, %v2048
    %v2662 = vpack.c.b16 %v2051, %v2050
    %v2663 = vpack.c.b16 %v2053, %v2052
    %v2664 = vpack.c.b16 %v2055, %v2054
    %v2665 = vpack.c.b16 %v2057, %v2056
    %v2666 = vpack.c.b16 %v2059, %v2058
    %v2667 = vpack.c.b16 %v2061, %v2060
    %v2668 = vpack.c.b16 %v2063, %v2062
    %v2669 = vpack.c.b16 %v2065, %v2064
    %v2670 = vpack.c.b16 %v2067, %v2066
    %v2671 = vpack.c.b16 %v2069, %v2068
    %v2672 = vpack.c.b16 %v2071, %v2070
    %v2673 = vpack.c.b16 %v2073, %v2072
    %v2674 = vpack.c.b16 %v2075, %v2074
    %v2675 = vpack.c.b16 %v2077, %v2076
    %v2676 = vpack.c.b16 %v2079, %v2078
    %v2677 = vpack.c.b16 %v2081, %v2080
    %v2678 = vpack.c.b16 %v2083, %v2082
    %v2679 = vpack.c.b16 %v2085, %v2084
    %v2680 = vpack.c.b16 %v2087, %v2086
    %v2681 = vpack.c.b16 %v2089, %v2088
    %v2682 = vpack.c.b16 %v2091, %v2090
    %v2683 = vpack.c.b16 %v2093, %v2092
    %v2684 = vpack.c.b16 %v2095, %v2094
    %v2685 = vpack.c.b16 %v2097, %v2096
    %v2686 = vpack.c.b16 %v2099, %v2098
    %v2687 = vpack.c.b16 %v2101, %v2100
    %v2688 = vpack.c.b16 %v2103, %v2102
    %v2689 = vpack.c.b16 %v2105, %v2104
    %v2690 = vpack.c.b16 %v2107, %v2106
    %v2691 = vpack.c.b16 %v2109, %v2108
    %v2692 = vpack.c.b16 %v2111, %v2110
    %v2693 = vpack.c.b16 %v2113, %v2112
    %v2694 = vpack.c.b16 %v2115, %v2114
    %v2695 = vpack.c.b16 %v2117, %v2116
    %v2696 = vpack.c.b16 %v2119, %v2118
    %v2697 = vpack.c.b16 %v2121, %v2120
    %v2698 = vpack.c.b16 %v2123, %v2122
    %v2699 = vpack.c.b16 %v2125, %v2124
    %v2700 = vpack.c.b16 %v2127, %v2126
    %v2701 = vpack.c.b16 %v2129, %v2128
    %v2702 = vpack.c.b16 %v2131, %v2130
    %v2703 = vpack.c.b16 %v2133, %v2132
    %v2704 = vpack.c.b16 %v2135, %v2134
    %v2705 = vpack.c.b16 %v2137, %v2136
    %v2706 = vpack.c.b16 %v2139, %v2138
    %v2707 = vpack.c.b16 %v2141, %v2140
    %v2708 = vpack.c.b16 %v2143, %v2142
    %v2709 = vpack.c.b16 %v2145, %v2144
    %v2710 = vpack.c.b16 %v2147, %v2146
    %v2711 = vpack.c.b16 %v2149, %v2148
    %v2712 = vpack.c.b16 %v2151, %v2150
    %v2713 = vpack.c.b16 %v2153, %v2152
    %v2714 = vpack.c.b16 %v2155, %v2154
    %v2715 = vpack.c.b16 %v2157, %v2156
    %v2716 = vpack.c.b16 %v2159, %v2158
    %v2717 = vpack.c.b16 %v2161, %v2160
    %v2718 = vpack.c.b16 %v2163, %v2162
    %v2719 = vpack.c.b16 %v2165, %v2164
    %v2720 = vpack.c.b16 %v2167, %v2166
    %v2721 = vpack.c.b16 %v2169, %v2168
    %v2722 = vpack.c.b16 %v2171, %v2170
    %v2723 = vpack.c.b16 %v2173, %v2172
    %v2724 = vpack.c.b16 %v2175, %v2174
    %v2725 = vpack.c.b16 %v2177, %v2176
    %v2726 = vpack.c.b16 %v2179, %v2178
    %v2727 = vpack.c.b16 %v2181, %v2180
    %v2728 = vpack.c.b16 %v2183, %v2182
    %v2729 = vpack.c.b16 %v2185, %v2184
    %v2730 = vpack.c.b16 %v2187, %v2186
    %v2731 = vpack.c.b16 %v2189, %v2188
    %v2732 = vpack.c.b16 %v2191, %v2190
    %v2733 = vpack.c.b16 %v2193, %v2192
    %v2734 = vpack.c.b16 %v2195, %v2194
    %v2735 = vpack.c.b16 %v2197, %v2196
    %v2736 = vpack.c.b16 %v2199, %v2198
    %v2737 = vpack.c.b16 %v2201, %v2200
    %v2738 = vpack.c.b16 %v2203, %v2202
    %v2739 = vpack.c.b16 %v2205, %v2204
    %v2740 = vpack.c.b16 %v2207, %v2206
    %v2741 = vpack.c.b16 %v2209, %v2208
    %v2742 = vpack.c.b16 %v2211, %v2210
    %v2743 = vpack.c.b16 %v2213, %v2212
    %v2744 = vpack.c.b16 %v2215, %v2214
    %v2745 = vpack.c.b16 %v2217, %v2216
    %v2746 = vpack.c.b16 %v2219, %v2218
    %v2747 = vpack.c.b16 %v2221, %v2220
    %v2748 = vpack.c.b16 %v2223, %v2222
    %v2749 = vpack.c.b16 %v2225, %v2224
    %v2750 = vpack.c.b16 %v2227, %v2226
    %v2751 = vpack.c.b16 %v2229, %v2228
    %v2752 = vpack.c.b16 %v2231, %v2230
    %v2753 = vpack.c.b16 %v2233, %v2232
    %v2754 = vpack.c.b16 %v2235, %v2234
    %v2755 = vpack.c.b16 %v2237, %v2236
    %v2756 = vpack.c.b16 %v2239, %v2238
    %v2757 = vpack.c.b16 %v2241, %v2240
    %v2758 = vpack.c.b16 %v2243, %v2242
    %v2759 = vpack.c.b16 %v2245, %v2244
    %v2760 = vpack.c.b16 %v2247, %v2246
    %v2761 = vpack.c.b16 %v2249, %v2248
    %v2762 = vpack.c.b16 %v2251, %v2250
    %v2763 = vpack.c.b16 %v2253, %v2252
    %v2764 = vpack.c.b16 %v2255, %v2254
    %v2765 = vpack.c.b16 %v2257, %v2256
    %v2766 = vpack.c.b16 %v2259, %v2258
    %v2767 = vpack.c.b16 %v2261, %v2260
    %v2768 = vpack.c.b16 %v2263, %v2262
    %v2769 = vpack.c.b16 %v2265, %v2264
    %v2770 = vpack.c.b16 %v2267, %v2266
    %v2771 = vpack.c.b16 %v2269, %v2268
    %v2772 = vpack.c.b16 %v2271, %v2270
    %v2773 = vpack.c.b16 %v2273, %v2272
    %v2774 = vpack.c.b16 %v2275, %v2274
    %v2775 = vpack.c.b16 %v2277, %v2276
    %v2776 = vpack.c.b16 %v2279, %v2278
    %v2777 = vpack.c.b16 %v2281, %v2280
    %v2778 = vpack.c.b16 %v2283, %v2282
    %v2779 = vpack.c.b16 %v2285, %v2284
    %v2780 = vpack.c.b16 %v2287, %v2286
    %v2781 = vpack.c.b16 %v2289, %v2288
    %v2782 = vpack.c.b16 %v2291, %v2290
    %v2783 = vpack.c.b16 %v2293, %v2292
    %v2784 = vpack.c.b16 %v2295, %v2294
    %v2785 = vpack.c.b16 %v2297, %v2296
    %v2786 = vpack.c.b16 %v2299, %v2298
    %v2787 = vpack.c.b16 %v2301, %v2300
    %v2788 = vpack.c.b16 %v2303, %v2302
    %v2789 = vpack.c.b16 %v2305, %v2304
    %v2790 = vpack.c.b16 %v2307, %v2306
    %v2791 = vpack.c.b16 %v2309, %v2308
    %v2792 = vpack.c.b16 %v2311, %v2310
    %v2793 = vpack.c.b16 %v2313, %v2312
    %v2794 = vpack.c.b16 %v2315, %v2314
    %v2795 = vpack.c.b16 %v2317, %v2316
    %v2796 = vpack.c.b16 %v2319, %v2318
    %v2797 = vpack.c.b16 %v2321, %v2320
    %v2798 = vpack.c.b16 %v2323, %v2322
    %v2799 = vpack.c.b16 %v2325, %v2324
    %v2800 = vpack.c.b16 %v2327, %v2326
    %v2801 = vpack.c.b16 %v2329, %v2328
    %v2802 = vpack.c.b16 %v2331, %v2330
    %v2803 = vpack.c.b16 %v2333, %v2332
    %v2804 = vpack.c.b16 %v2335, %v2334
    %v2805 = vpack.c.b16 %v2337, %v2336
    %v2806 = vpack.c.b16 %v2339, %v2338
    %v2807 = vpack.c.b16 %v2341, %v2340
    %v2808 = vpack.c.b16 %v2343, %v2342
    %v2809 = vpack.c.b16 %v2345, %v2344
    %v2810 = vpack.c.b16 %v2347, %v2346
    %v2811 = vpack.c.b16 %v2349, %v2348
    %v2812 = vpack.c.b16 %v2351, %v2350
    %v2813 = vpack.c.b16 %v2353, %v2352
    %v2814 = vpack.c.b16 %v2355, %v2354
    %v2815 = vpack.c.b16 %v2357, %v2356
    %v2816 = vpack.c.b16 %v2359, %v2358
    %v2817 = vpack.c.b16 %v2361, %v2360
    %v2818 = vpack.c.b16 %v2363, %v2362
    %v2819 = vpack.c.b16 %v2365, %v2364
    %v2820 = vpack.c.b16 %v2367, %v2366
    %v2821 = vpack.c.b16 %v2369, %v2368
    %v2822 = vpack.c.b16 %v2371, %v2370
    %v2823 = vpack.c.b16 %v2373, %v2372
    %v2824 = vpack.c.b16 %v2375, %v2374
    %v2825 = vpack.c.b16 %v2377, %v2376
    %v2826 = vpack.c.b16 %v2379, %v2378
    %v2827 = vpack.c.b16 %v2381, %v2380
    %v2828 = vpack.c.b16 %v2383, %v2382
    %v2829 = vpack.c.b16 %v2385, %v2384
    %v2830 = vpack.c.b16 %v2387, %v2386
    %v2831 = vpack.c.b16 %v2389, %v2388
    %v2832 = vpack.c.b16 %v2391, %v2390
    %v2833 = vpack.c.b16 %v2393, %v2392
    %v2834 = vpack.c.b16 %v2395, %v2394
    %v2835 = vpack.c.b16 %v2397, %v2396
    %v2836 = vpack.c.b16 %v2399, %v2398
    %v2837 = vpack.c.b16 %v2401, %v2400
    %v2838 = vpack.c.b16 %v2403, %v2402
    %v2839 = vpack.c.b16 %v2405, %v2404
    %v2840 = vpack.c.b16 %v2407, %v2406
    %v2841 = vpack.c.b16 %v2409, %v2408
    %v2842 = vpack.c.b16 %v2411, %v2410
    %v2843 = vpack.c.b16 %v2413, %v2412
    %v2844 = vpack.c.b16 %v2415, %v2414
    %v2845 = vpack.c.b16 %v2417, %v2416
    %v2846 = vpack.c.b16 %v2419, %v2418
    %v2847 = vpack.c.b16 %v2421, %v2420
    %v2848 = vpack.c.b16 %v2423, %v2422
    %v2849 = vpack.c.b16 %v2425, %v2424
    %v2850 = vpack.c.b16 %v2427, %v2426
    %v2851 = vpack.c.b16 %v2429, %v2428
    %v2852 = vpack.c.b16 %v2431, %v2430
    %v2853 = vpack.c.b16 %v2433, %v2432
    %v2854 = vpack.c.b16 %v2435, %v2434
    %v2855 = vpack.c.b16 %v2437, %v2436
    %v2856 = vpack.c.b16 %v2439, %v2438
    %v2857 = vpack.c.b16 %v2441, %v2440
    %v2858 = vpack.c.b16 %v2443, %v2442
    %v2859 = vpack.c.b16 %v2445, %v2444
    %v2860 = vpack.c.b16 %v2447, %v2446
    %v2861 = vpack.c.b16 %v2449, %v2448
    %v2862 = vpack.c.b16 %v2451, %v2450
    %v2863 = vpack.c.b16 %v2453, %v2452
    %v2864 = vpack.c.b16 %v2455, %v2454
    %v2865 = vpack.c.b16 %v2457, %v2456
    %v2866 = vpack.c.b16 %v2459, %v2458
    %v2867 = vpack.c.b16 %v2461, %v2460
    %v2868 = vpack.c.b16 %v2463, %v2462
    %v2869 = vpack.c.b16 %v2465, %v2464
    %v2870 = vpack.c.b16 %v2467, %v2466
    %v2871 = vpack.c.b16 %v2469, %v2468
    %v2872 = vpack.c.b16 %v2471, %v2470
    %v2873 = vpack.c.b16 %v2473, %v2472
    %v2874 = vpack.c.b16 %v2475, %v2474
    %v2875 = vpack.c.b16 %v2477, %v2476
    %v2876 = vpack.c.b16 %v2479, %v2478
    %v2877 = vpack.c.b16 %v2481, %v2480
    %v2878 = vpack.c.b16 %v2483, %v2482
    %v2879 = vpack.c.b16 %v2485, %v2484
    %v2880 = vpack.c.b16 %v2487, %v2486
    %v2881 = vpack.c.b16 %v2489, %v2488
    %3274 = vmatpush.bf16.msra.mxu0 %v2497
    %3275 = vmatpush.bf16.msra.mxu0 %v2496
    %3276 = vmatpush.bf16.msra.mxu0 %v2495
    %3277 = vmatpush.bf16.msra.mxu0 %v2494
    %3278 = vmatpush.bf16.msra.mxu0 %v2493
    %3279 = vmatpush.bf16.msra.mxu0 %v2492
    %3280 = vmatpush.bf16.msra.mxu0 %v2491
    %3281 = vmatpush.bf16.msra.mxu0 %v2490
    %3282 = vmatmul.bf16.gmra.mxu0 %v812
    %v3283 = vpop.f32.mrf.mxu0
    %v3284 = vadd.f32 %v808, %v3283
    %v3285 = vpop.f32.mrf.mxu0
    %3286 = vdwg.mxu0
    %3287 = vmatpush.bf16.msra.mxu0 %v2505
    %3288 = vmatpush.bf16.msra.mxu0 %v2504
    %3289 = vmatpush.bf16.msra.mxu0 %v2503
    %3290 = vmatpush.bf16.msra.mxu0 %v2502
    %3291 = vmatpush.bf16.msra.mxu0 %v2501
    %3292 = vmatpush.bf16.msra.mxu0 %v2500
    %3293 = vmatpush.bf16.msra.mxu0 %v2499
    %3294 = vmatpush.bf16.msra.mxu0 %v2498
    %3295 = vmatmul.bf16.gmra.mxu0 %v813
    %v3296 = vpop.f32.mrf.mxu0
    %v3297 = vadd.f32 %v3284, %v3296
    %v3298 = vpop.f32.mrf.mxu0
    %3299 = vdwg.mxu0
    %3300 = vmatpush.bf16.msra.mxu0 %v2513
    %3301 = vmatpush.bf16.msra.mxu0 %v2512
    %3302 = vmatpush.bf16.msra.mxu0 %v2511
    %3303 = vmatpush.bf16.msra.mxu0 %v2510
    %3304 = vmatpush.bf16.msra.mxu0 %v2509
    %3305 = vmatpush.bf16.msra.mxu0 %v2508
    %3306 = vmatpush.bf16.msra.mxu0 %v2507
    %3307 = vmatpush.bf16.msra.mxu0 %v2506
    %3308 = vmatmul.bf16.gmra.mxu0 %v814
    %v3309 = vpop.f32.mrf.mxu0
    %v3310 = vadd.f32 %v3297, %v3309
    %v3311 = vpop.f32.mrf.mxu0
    %3312 = vdwg.mxu0
    %3313 = vmatpush.bf16.msra.mxu0 %v2521
    %3314 = vmatpush.bf16.msra.mxu0 %v2520
    %3315 = vmatpush.bf16.msra.mxu0 %v2519
    %3316 = vmatpush.bf16.msra.mxu0 %v2518
    %3317 = vmatpush.bf16.msra.mxu0 %v2517
    %3318 = vmatpush.bf16.msra.mxu0 %v2516
    %3319 = vmatpush.bf16.msra.mxu0 %v2515
    %3320 = vmatpush.bf16.msra.mxu0 %v2514
    %3321 = vmatmul.bf16.gmra.mxu0 %v815
    %v3322 = vpop.f32.mrf.mxu0
    %v3323 = vadd.f32 %v3310, %v3322
    %v3324 = vpop.f32.mrf.mxu0
    %3325 = vdwg.mxu0
    %3326 = vmatpush.bf16.msra.mxu0 %v2529
    %3327 = vmatpush.bf16.msra.mxu0 %v2528
    %3328 = vmatpush.bf16.msra.mxu0 %v2527
    %3329 = vmatpush.bf16.msra.mxu0 %v2526
    %3330 = vmatpush.bf16.msra.mxu0 %v2525
    %3331 = vmatpush.bf16.msra.mxu0 %v2524
    %3332 = vmatpush.bf16.msra.mxu0 %v2523
    %3333 = vmatpush.bf16.msra.mxu0 %v2522
    %3334 = vmatmul.bf16.gmra.mxu0 %v816
    %v3335 = vpop.f32.mrf.mxu0
    %v3336 = vadd.f32 %v3323, %v3335
    %v3337 = vpop.f32.mrf.mxu0
    %3338 = vdwg.mxu0
    %3339 = vmatpush.bf16.msra.mxu0 %v2537
    %3340 = vmatpush.bf16.msra.mxu0 %v2536
    %3341 = vmatpush.bf16.msra.mxu0 %v2535
    %3342 = vmatpush.bf16.msra.mxu0 %v2534
    %3343 = vmatpush.bf16.msra.mxu0 %v2533
    %3344 = vmatpush.bf16.msra.mxu0 %v2532
    %3345 = vmatpush.bf16.msra.mxu0 %v2531
    %3346 = vmatpush.bf16.msra.mxu0 %v2530
    %3347 = vmatmul.bf16.gmra.mxu0 %v817
    %v3348 = vpop.f32.mrf.mxu0
    %v3349 = vadd.f32 %v3336, %v3348
    %v3350 = vpop.f32.mrf.mxu0
    %3351 = vdwg.mxu0
    %3352 = vmatpush.bf16.msra.mxu0 %v2545
    %3353 = vmatpush.bf16.msra.mxu0 %v2544
    %3354 = vmatpush.bf16.msra.mxu0 %v2543
    %3355 = vmatpush.bf16.msra.mxu0 %v2542
    %3356 = vmatpush.bf16.msra.mxu0 %v2541
    %3357 = vmatpush.bf16.msra.mxu0 %v2540
    %3358 = vmatpush.bf16.msra.mxu0 %v2539
    %3359 = vmatpush.bf16.msra.mxu0 %v2538
    %3360 = vmatmul.bf16.gmra.mxu0 %v818
    %v3361 = vpop.f32.mrf.mxu0
    %v3362 = vadd.f32 %v3349, %v3361
    %v3363 = vpop.f32.mrf.mxu0
    %3364 = vdwg.mxu0
    %3365 = vmatpush.bf16.msra.mxu0 %v2553
    %3366 = vmatpush.bf16.msra.mxu0 %v2552
    %3367 = vmatpush.bf16.msra.mxu0 %v2551
    %3368 = vmatpush.bf16.msra.mxu0 %v2550
    %3369 = vmatpush.bf16.msra.mxu0 %v2549
    %3370 = vmatpush.bf16.msra.mxu0 %v2548
    %3371 = vmatpush.bf16.msra.mxu0 %v2547
    %3372 = vmatpush.bf16.msra.mxu0 %v2546
    %3373 = vmatmul.bf16.gmra.mxu0 %v819
    %v3374 = vpop.f32.mrf.mxu0
    %v3375 = vadd.f32 %v3362, %v3374
    %v3376 = vpop.f32.mrf.mxu0
    %3377 = vdwg.mxu0
    %3378 = vmatpush.bf16.msra.mxu0 %v2561
    %3379 = vmatpush.bf16.msra.mxu0 %v2560
    %3380 = vmatpush.bf16.msra.mxu0 %v2559
    %3381 = vmatpush.bf16.msra.mxu0 %v2558
    %3382 = vmatpush.bf16.msra.mxu0 %v2557
    %3383 = vmatpush.bf16.msra.mxu0 %v2556
    %3384 = vmatpush.bf16.msra.mxu0 %v2555
    %3385 = vmatpush.bf16.msra.mxu0 %v2554
    %3386 = vmatmul.bf16.gmra.mxu0 %v822
    %v3387 = vpop.f32.mrf.mxu0
    %v3388 = vadd.f32 %v3375, %v3387
    %v3389 = vpop.f32.mrf.mxu0
    %3390 = vdwg.mxu0
    %3391 = vmatpush.bf16.msra.mxu0 %v2569
    %3392 = vmatpush.bf16.msra.mxu0 %v2568
    %3393 = vmatpush.bf16.msra.mxu0 %v2567
    %3394 = vmatpush.bf16.msra.mxu0 %v2566
    %3395 = vmatpush.bf16.msra.mxu0 %v2565
    %3396 = vmatpush.bf16.msra.mxu0 %v2564
    %3397 = vmatpush.bf16.msra.mxu0 %v2563
    %3398 = vmatpush.bf16.msra.mxu0 %v2562
    %3399 = vmatmul.bf16.gmra.mxu0 %v823
    %v3400 = vpop.f32.mrf.mxu0
    %v3401 = vadd.f32 %v3388, %v3400
    %v3402 = vpop.f32.mrf.mxu0
    %3403 = vdwg.mxu0
    %3404 = vmatpush.bf16.msra.mxu0 %v2577
    %3405 = vmatpush.bf16.msra.mxu0 %v2576
    %3406 = vmatpush.bf16.msra.mxu0 %v2575
    %3407 = vmatpush.bf16.msra.mxu0 %v2574
    %3408 = vmatpush.bf16.msra.mxu0 %v2573
    %3409 = vmatpush.bf16.msra.mxu0 %v2572
    %3410 = vmatpush.bf16.msra.mxu0 %v2571
    %3411 = vmatpush.bf16.msra.mxu0 %v2570
    %3412 = vmatmul.bf16.gmra.mxu0 %v824
    %v3413 = vpop.f32.mrf.mxu0
    %v3414 = vadd.f32 %v3401, %v3413
    %v3415 = vpop.f32.mrf.mxu0
    %3416 = vdwg.mxu0
    %3417 = vmatpush.bf16.msra.mxu0 %v2585
    %3418 = vmatpush.bf16.msra.mxu0 %v2584
    %3419 = vmatpush.bf16.msra.mxu0 %v2583
    %3420 = vmatpush.bf16.msra.mxu0 %v2582
    %3421 = vmatpush.bf16.msra.mxu0 %v2581
    %3422 = vmatpush.bf16.msra.mxu0 %v2580
    %3423 = vmatpush.bf16.msra.mxu0 %v2579
    %3424 = vmatpush.bf16.msra.mxu0 %v2578
    %3425 = vmatmul.bf16.gmra.mxu0 %v825
    %v3426 = vpop.f32.mrf.mxu0
    %v3427 = vadd.f32 %v3414, %v3426
    %v3428 = vpop.f32.mrf.mxu0
    %3429 = vdwg.mxu0
    %3430 = vmatpush.bf16.msra.mxu0 %v2593
    %3431 = vmatpush.bf16.msra.mxu0 %v2592
    %3432 = vmatpush.bf16.msra.mxu0 %v2591
    %3433 = vmatpush.bf16.msra.mxu0 %v2590
    %3434 = vmatpush.bf16.msra.mxu0 %v2589
    %3435 = vmatpush.bf16.msra.mxu0 %v2588
    %3436 = vmatpush.bf16.msra.mxu0 %v2587
    %3437 = vmatpush.bf16.msra.mxu0 %v2586
    %3438 = vmatmul.bf16.gmra.mxu0 %v826
    %v3439 = vpop.f32.mrf.mxu0
    %v3440 = vadd.f32 %v3427, %v3439
    %v3441 = vpop.f32.mrf.mxu0
    %3442 = vdwg.mxu0
    %3443 = vmatpush.bf16.msra.mxu0 %v2601
    %3444 = vmatpush.bf16.msra.mxu0 %v2600
    %3445 = vmatpush.bf16.msra.mxu0 %v2599
    %3446 = vmatpush.bf16.msra.mxu0 %v2598
    %3447 = vmatpush.bf16.msra.mxu0 %v2597
    %3448 = vmatpush.bf16.msra.mxu0 %v2596
    %3449 = vmatpush.bf16.msra.mxu0 %v2595
    %3450 = vmatpush.bf16.msra.mxu0 %v2594
    %3451 = vmatmul.bf16.gmra.mxu0 %v827
    %v3452 = vpop.f32.mrf.mxu0
    %v3453 = vadd.f32 %v3440, %v3452
    %v3454 = vpop.f32.mrf.mxu0
    %3455 = vdwg.mxu0
    %3456 = vmatpush.bf16.msra.mxu0 %v2609
    %3457 = vmatpush.bf16.msra.mxu0 %v2608
    %3458 = vmatpush.bf16.msra.mxu0 %v2607
    %3459 = vmatpush.bf16.msra.mxu0 %v2606
    %3460 = vmatpush.bf16.msra.mxu0 %v2605
    %3461 = vmatpush.bf16.msra.mxu0 %v2604
    %3462 = vmatpush.bf16.msra.mxu0 %v2603
    %3463 = vmatpush.bf16.msra.mxu0 %v2602
    %3464 = vmatmul.bf16.gmra.mxu0 %v828
    %v3465 = vpop.f32.mrf.mxu0
    %v3466 = vadd.f32 %v3453, %v3465
    %v3467 = vpop.f32.mrf.mxu0
    %3468 = vdwg.mxu0
    %3469 = vmatpush.bf16.msra.mxu0 %v2617
    %3470 = vmatpush.bf16.msra.mxu0 %v2616
    %3471 = vmatpush.bf16.msra.mxu0 %v2615
    %3472 = vmatpush.bf16.msra.mxu0 %v2614
    %3473 = vmatpush.bf16.msra.mxu0 %v2613
    %3474 = vmatpush.bf16.msra.mxu0 %v2612
    %3475 = vmatpush.bf16.msra.mxu0 %v2611
    %3476 = vmatpush.bf16.msra.mxu0 %v2610
    %3477 = vmatmul.bf16.gmra.mxu0 %v829
    %v3478 = vpop.f32.mrf.mxu0
    %v3479 = vadd.f32 %v3466, %v3478
    %v3480 = vpop.f32.mrf.mxu0
    %3481 = vdwg.mxu0
    %3482 = vmatpush.bf16.msra.mxu0 %v2625
    %3483 = vmatpush.bf16.msra.mxu0 %v2624
    %3484 = vmatpush.bf16.msra.mxu0 %v2623
    %3485 = vmatpush.bf16.msra.mxu0 %v2622
    %3486 = vmatpush.bf16.msra.mxu0 %v2621
    %3487 = vmatpush.bf16.msra.mxu0 %v2620
    %3488 = vmatpush.bf16.msra.mxu0 %v2619
    %3489 = vmatpush.bf16.msra.mxu0 %v2618
    %3490 = vmatmul.bf16.gmra.mxu0 %v832
    %v3491 = vpop.f32.mrf.mxu0
    %v3492 = vadd.f32 %v3479, %v3491
    %v3493 = vpop.f32.mrf.mxu0
    %3494 = vdwg.mxu0
    %3495 = vmatpush.bf16.msra.mxu0 %v2633
    %3496 = vmatpush.bf16.msra.mxu0 %v2632
    %3497 = vmatpush.bf16.msra.mxu0 %v2631
    %3498 = vmatpush.bf16.msra.mxu0 %v2630
    %3499 = vmatpush.bf16.msra.mxu0 %v2629
    %3500 = vmatpush.bf16.msra.mxu0 %v2628
    %3501 = vmatpush.bf16.msra.mxu0 %v2627
    %3502 = vmatpush.bf16.msra.mxu0 %v2626
    %3503 = vmatmul.bf16.gmra.mxu0 %v833
    %v3504 = vpop.f32.mrf.mxu0
    %v3505 = vadd.f32 %v3492, %v3504
    %v3506 = vpop.f32.mrf.mxu0
    %3507 = vdwg.mxu0
    %3508 = vmatpush.bf16.msra.mxu0 %v2641
    %3509 = vmatpush.bf16.msra.mxu0 %v2640
    %3510 = vmatpush.bf16.msra.mxu0 %v2639
    %3511 = vmatpush.bf16.msra.mxu0 %v2638
    %3512 = vmatpush.bf16.msra.mxu0 %v2637
    %3513 = vmatpush.bf16.msra.mxu0 %v2636
    %3514 = vmatpush.bf16.msra.mxu0 %v2635
    %3515 = vmatpush.bf16.msra.mxu0 %v2634
    %3516 = vmatmul.bf16.gmra.mxu0 %v834
    %v3517 = vpop.f32.mrf.mxu0
    %v3518 = vadd.f32 %v3505, %v3517
    %v3519 = vpop.f32.mrf.mxu0
    %3520 = vdwg.mxu0
    %3521 = vmatpush.bf16.msra.mxu0 %v2649
    %3522 = vmatpush.bf16.msra.mxu0 %v2648
    %3523 = vmatpush.bf16.msra.mxu0 %v2647
    %3524 = vmatpush.bf16.msra.mxu0 %v2646
    %3525 = vmatpush.bf16.msra.mxu0 %v2645
    %3526 = vmatpush.bf16.msra.mxu0 %v2644
    %3527 = vmatpush.bf16.msra.mxu0 %v2643
    %3528 = vmatpush.bf16.msra.mxu0 %v2642
    %3529 = vmatmul.bf16.gmra.mxu0 %v835
    %v3530 = vpop.f32.mrf.mxu0
    %v3531 = vadd.f32 %v3518, %v3530
    %v3532 = vpop.f32.mrf.mxu0
    %3533 = vdwg.mxu0
    %3534 = vmatpush.bf16.msra.mxu0 %v2657
    %3535 = vmatpush.bf16.msra.mxu0 %v2656
    %3536 = vmatpush.bf16.msra.mxu0 %v2655
    %3537 = vmatpush.bf16.msra.mxu0 %v2654
    %3538 = vmatpush.bf16.msra.mxu0 %v2653
    %3539 = vmatpush.bf16.msra.mxu0 %v2652
    %3540 = vmatpush.bf16.msra.mxu0 %v2651
    %3541 = vmatpush.bf16.msra.mxu0 %v2650
    %3542 = vmatmul.bf16.gmra.mxu0 %v836
    %v3543 = vpop.f32.mrf.mxu0
    %v3544 = vadd.f32 %v3531, %v3543
    %v3545 = vpop.f32.mrf.mxu0
    %3546 = vdwg.mxu0
    %3547 = vmatpush.bf16.msra.mxu0 %v2665
    %3548 = vmatpush.bf16.msra.mxu0 %v2664
    %3549 = vmatpush.bf16.msra.mxu0 %v2663
    %3550 = vmatpush.bf16.msra.mxu0 %v2662
    %3551 = vmatpush.bf16.msra.mxu0 %v2661
    %3552 = vmatpush.bf16.msra.mxu0 %v2660
    %3553 = vmatpush.bf16.msra.mxu0 %v2659
    %3554 = vmatpush.bf16.msra.mxu0 %v2658
    %3555 = vmatmul.bf16.gmra.mxu0 %v837
    %v3556 = vpop.f32.mrf.mxu0
    %v3557 = vadd.f32 %v3544, %v3556
    %v3558 = vpop.f32.mrf.mxu0
    %3559 = vdwg.mxu0
    %3560 = vmatpush.bf16.msra.mxu0 %v2673
    %3561 = vmatpush.bf16.msra.mxu0 %v2672
    %3562 = vmatpush.bf16.msra.mxu0 %v2671
    %3563 = vmatpush.bf16.msra.mxu0 %v2670
    %3564 = vmatpush.bf16.msra.mxu0 %v2669
    %3565 = vmatpush.bf16.msra.mxu0 %v2668
    %3566 = vmatpush.bf16.msra.mxu0 %v2667
    %3567 = vmatpush.bf16.msra.mxu0 %v2666
    %3568 = vmatmul.bf16.gmra.mxu0 %v838
    %v3569 = vpop.f32.mrf.mxu0
    %v3570 = vadd.f32 %v3557, %v3569
    %v3571 = vpop.f32.mrf.mxu0
    %3572 = vdwg.mxu0
    %3573 = vmatpush.bf16.msra.mxu0 %v2681
    %3574 = vmatpush.bf16.msra.mxu0 %v2680
    %3575 = vmatpush.bf16.msra.mxu0 %v2679
    %3576 = vmatpush.bf16.msra.mxu0 %v2678
    %3577 = vmatpush.bf16.msra.mxu0 %v2677
    %3578 = vmatpush.bf16.msra.mxu0 %v2676
    %3579 = vmatpush.bf16.msra.mxu0 %v2675
    %3580 = vmatpush.bf16.msra.mxu0 %v2674
    %3581 = vmatmul.bf16.gmra.mxu0 %v839
    %v3582 = vpop.f32.mrf.mxu0
    %v3583 = vadd.f32 %v3570, %v3582
    %v3584 = vpop.f32.mrf.mxu0
    %3585 = vdwg.mxu0
    %3586 = vmatpush.bf16.msra.mxu0 %v2689
    %3587 = vmatpush.bf16.msra.mxu0 %v2688
    %3588 = vmatpush.bf16.msra.mxu0 %v2687
    %3589 = vmatpush.bf16.msra.mxu0 %v2686
    %3590 = vmatpush.bf16.msra.mxu0 %v2685
    %3591 = vmatpush.bf16.msra.mxu0 %v2684
    %3592 = vmatpush.bf16.msra.mxu0 %v2683
    %3593 = vmatpush.bf16.msra.mxu0 %v2682
    %3594 = vmatmul.bf16.gmra.mxu0 %v842
    %v3595 = vpop.f32.mrf.mxu0
    %v3596 = vadd.f32 %v3583, %v3595
    %v3597 = vpop.f32.mrf.mxu0
    %3598 = vdwg.mxu0
    %3599 = vmatpush.bf16.msra.mxu0 %v2697
    %3600 = vmatpush.bf16.msra.mxu0 %v2696
    %3601 = vmatpush.bf16.msra.mxu0 %v2695
    %3602 = vmatpush.bf16.msra.mxu0 %v2694
    %3603 = vmatpush.bf16.msra.mxu0 %v2693
    %3604 = vmatpush.bf16.msra.mxu0 %v2692
    %3605 = vmatpush.bf16.msra.mxu0 %v2691
    %3606 = vmatpush.bf16.msra.mxu0 %v2690
    %3607 = vmatmul.bf16.gmra.mxu0 %v843
    %v3608 = vpop.f32.mrf.mxu0
    %v3609 = vadd.f32 %v3596, %v3608
    %v3610 = vpop.f32.mrf.mxu0
    %3611 = vdwg.mxu0
    %3612 = vmatpush.bf16.msra.mxu0 %v2705
    %3613 = vmatpush.bf16.msra.mxu0 %v2704
    %3614 = vmatpush.bf16.msra.mxu0 %v2703
    %3615 = vmatpush.bf16.msra.mxu0 %v2702
    %3616 = vmatpush.bf16.msra.mxu0 %v2701
    %3617 = vmatpush.bf16.msra.mxu0 %v2700
    %3618 = vmatpush.bf16.msra.mxu0 %v2699
    %3619 = vmatpush.bf16.msra.mxu0 %v2698
    %3620 = vmatmul.bf16.gmra.mxu0 %v844
    %v3621 = vpop.f32.mrf.mxu0
    %v3622 = vadd.f32 %v3609, %v3621
    %v3623 = vpop.f32.mrf.mxu0
    %3624 = vdwg.mxu0
    %3625 = vmatpush.bf16.msra.mxu0 %v2713
    %3626 = vmatpush.bf16.msra.mxu0 %v2712
    %3627 = vmatpush.bf16.msra.mxu0 %v2711
    %3628 = vmatpush.bf16.msra.mxu0 %v2710
    %3629 = vmatpush.bf16.msra.mxu0 %v2709
    %3630 = vmatpush.bf16.msra.mxu0 %v2708
    %3631 = vmatpush.bf16.msra.mxu0 %v2707
    %3632 = vmatpush.bf16.msra.mxu0 %v2706
    %3633 = vmatmul.bf16.gmra.mxu0 %v845
    %v3634 = vpop.f32.mrf.mxu0
    %v3635 = vadd.f32 %v3622, %v3634
    %v3636 = vpop.f32.mrf.mxu0
    %3637 = vdwg.mxu0
    %3638 = vmatpush.bf16.msra.mxu0 %v2721
    %3639 = vmatpush.bf16.msra.mxu0 %v2720
    %3640 = vmatpush.bf16.msra.mxu0 %v2719
    %3641 = vmatpush.bf16.msra.mxu0 %v2718
    %3642 = vmatpush.bf16.msra.mxu0 %v2717
    %3643 = vmatpush.bf16.msra.mxu0 %v2716
    %3644 = vmatpush.bf16.msra.mxu0 %v2715
    %3645 = vmatpush.bf16.msra.mxu0 %v2714
    %3646 = vmatmul.bf16.gmra.mxu0 %v846
    %v3647 = vpop.f32.mrf.mxu0
    %v3648 = vadd.f32 %v3635, %v3647
    %v3649 = vpop.f32.mrf.mxu0
    %3650 = vdwg.mxu0
    %3651 = vmatpush.bf16.msra.mxu0 %v2729
    %3652 = vmatpush.bf16.msra.mxu0 %v2728
    %3653 = vmatpush.bf16.msra.mxu0 %v2727
    %3654 = vmatpush.bf16.msra.mxu0 %v2726
    %3655 = vmatpush.bf16.msra.mxu0 %v2725
    %3656 = vmatpush.bf16.msra.mxu0 %v2724
    %3657 = vmatpush.bf16.msra.mxu0 %v2723
    %3658 = vmatpush.bf16.msra.mxu0 %v2722
    %3659 = vmatmul.bf16.gmra.mxu0 %v847
    %v3660 = vpop.f32.mrf.mxu0
    %v3661 = vadd.f32 %v3648, %v3660
    %v3662 = vpop.f32.mrf.mxu0
    %3663 = vdwg.mxu0
    %3664 = vmatpush.bf16.msra.mxu0 %v2737
    %3665 = vmatpush.bf16.msra.mxu0 %v2736
    %3666 = vmatpush.bf16.msra.mxu0 %v2735
    %3667 = vmatpush.bf16.msra.mxu0 %v2734
    %3668 = vmatpush.bf16.msra.mxu0 %v2733
    %3669 = vmatpush.bf16.msra.mxu0 %v2732
    %3670 = vmatpush.bf16.msra.mxu0 %v2731
    %3671 = vmatpush.bf16.msra.mxu0 %v2730
    %3672 = vmatmul.bf16.gmra.mxu0 %v848
    %v3673 = vpop.f32.mrf.mxu0
    %v3674 = vadd.f32 %v3661, %v3673
    %v3675 = vpop.f32.mrf.mxu0
    %3676 = vdwg.mxu0
    %3677 = vmatpush.bf16.msra.mxu0 %v2745
    %3678 = vmatpush.bf16.msra.mxu0 %v2744
    %3679 = vmatpush.bf16.msra.mxu0 %v2743
    %3680 = vmatpush.bf16.msra.mxu0 %v2742
    %3681 = vmatpush.bf16.msra.mxu0 %v2741
    %3682 = vmatpush.bf16.msra.mxu0 %v2740
    %3683 = vmatpush.bf16.msra.mxu0 %v2739
    %3684 = vmatpush.bf16.msra.mxu0 %v2738
    %3685 = vmatmul.bf16.gmra.mxu0 %v849
    %v3686 = vpop.f32.mrf.mxu0
    %v3687 = vadd.f32 %v3674, %v3686
    %v3688 = vpop.f32.mrf.mxu0
    %3689 = vdwg.mxu0
    %3690 = vmatpush.bf16.msra.mxu0 %v2753
    %3691 = vmatpush.bf16.msra.mxu0 %v2752
    %3692 = vmatpush.bf16.msra.mxu0 %v2751
    %3693 = vmatpush.bf16.msra.mxu0 %v2750
    %3694 = vmatpush.bf16.msra.mxu0 %v2749
    %3695 = vmatpush.bf16.msra.mxu0 %v2748
    %3696 = vmatpush.bf16.msra.mxu0 %v2747
    %3697 = vmatpush.bf16.msra.mxu0 %v2746
    %3698 = vmatmul.bf16.gmra.mxu0 %v852
    %v3699 = vpop.f32.mrf.mxu0
    %v3700 = vadd.f32 %v3687, %v3699
    %v3701 = vpop.f32.mrf.mxu0
    %3702 = vdwg.mxu0
    %3703 = vmatpush.bf16.msra.mxu0 %v2761
    %3704 = vmatpush.bf16.msra.mxu0 %v2760
    %3705 = vmatpush.bf16.msra.mxu0 %v2759
    %3706 = vmatpush.bf16.msra.mxu0 %v2758
    %3707 = vmatpush.bf16.msra.mxu0 %v2757
    %3708 = vmatpush.bf16.msra.mxu0 %v2756
    %3709 = vmatpush.bf16.msra.mxu0 %v2755
    %3710 = vmatpush.bf16.msra.mxu0 %v2754
    %3711 = vmatmul.bf16.gmra.mxu0 %v853
    %v3712 = vpop.f32.mrf.mxu0
    %v3713 = vadd.f32 %v3700, %v3712
    %v3714 = vpop.f32.mrf.mxu0
    %3715 = vdwg.mxu0
    %3716 = vmatpush.bf16.msra.mxu0 %v2769
    %3717 = vmatpush.bf16.msra.mxu0 %v2768
    %3718 = vmatpush.bf16.msra.mxu0 %v2767
    %3719 = vmatpush.bf16.msra.mxu0 %v2766
    %3720 = vmatpush.bf16.msra.mxu0 %v2765
    %3721 = vmatpush.bf16.msra.mxu0 %v2764
    %3722 = vmatpush.bf16.msra.mxu0 %v2763
    %3723 = vmatpush.bf16.msra.mxu0 %v2762
    %3724 = vmatmul.bf16.gmra.mxu0 %v854
    %v3725 = vpop.f32.mrf.mxu0
    %v3726 = vadd.f32 %v3713, %v3725
    %v3727 = vpop.f32.mrf.mxu0
    %3728 = vdwg.mxu0
    %3729 = vmatpush.bf16.msra.mxu0 %v2777
    %3730 = vmatpush.bf16.msra.mxu0 %v2776
    %3731 = vmatpush.bf16.msra.mxu0 %v2775
    %3732 = vmatpush.bf16.msra.mxu0 %v2774
    %3733 = vmatpush.bf16.msra.mxu0 %v2773
    %3734 = vmatpush.bf16.msra.mxu0 %v2772
    %3735 = vmatpush.bf16.msra.mxu0 %v2771
    %3736 = vmatpush.bf16.msra.mxu0 %v2770
    %3737 = vmatmul.bf16.gmra.mxu0 %v855
    %v3738 = vpop.f32.mrf.mxu0
    %v3739 = vadd.f32 %v3726, %v3738
    %v3740 = vpop.f32.mrf.mxu0
    %3741 = vdwg.mxu0
    %3742 = vmatpush.bf16.msra.mxu0 %v2785
    %3743 = vmatpush.bf16.msra.mxu0 %v2784
    %3744 = vmatpush.bf16.msra.mxu0 %v2783
    %3745 = vmatpush.bf16.msra.mxu0 %v2782
    %3746 = vmatpush.bf16.msra.mxu0 %v2781
    %3747 = vmatpush.bf16.msra.mxu0 %v2780
    %3748 = vmatpush.bf16.msra.mxu0 %v2779
    %3749 = vmatpush.bf16.msra.mxu0 %v2778
    %3750 = vmatmul.bf16.gmra.mxu0 %v856
    %v3751 = vpop.f32.mrf.mxu0
    %v3752 = vadd.f32 %v3739, %v3751
    %v3753 = vpop.f32.mrf.mxu0
    %3754 = vdwg.mxu0
    %3755 = vmatpush.bf16.msra.mxu0 %v2793
    %3756 = vmatpush.bf16.msra.mxu0 %v2792
    %3757 = vmatpush.bf16.msra.mxu0 %v2791
    %3758 = vmatpush.bf16.msra.mxu0 %v2790
    %3759 = vmatpush.bf16.msra.mxu0 %v2789
    %3760 = vmatpush.bf16.msra.mxu0 %v2788
    %3761 = vmatpush.bf16.msra.mxu0 %v2787
    %3762 = vmatpush.bf16.msra.mxu0 %v2786
    %3763 = vmatmul.bf16.gmra.mxu0 %v857
    %v3764 = vpop.f32.mrf.mxu0
    %v3765 = vadd.f32 %v3752, %v3764
    %v3766 = vpop.f32.mrf.mxu0
    %3767 = vdwg.mxu0
    %3768 = vmatpush.bf16.msra.mxu0 %v2801
    %3769 = vmatpush.bf16.msra.mxu0 %v2800
    %3770 = vmatpush.bf16.msra.mxu0 %v2799
    %3771 = vmatpush.bf16.msra.mxu0 %v2798
    %3772 = vmatpush.bf16.msra.mxu0 %v2797
    %3773 = vmatpush.bf16.msra.mxu0 %v2796
    %3774 = vmatpush.bf16.msra.mxu0 %v2795
    %3775 = vmatpush.bf16.msra.mxu0 %v2794
    %3776 = vmatmul.bf16.gmra.mxu0 %v858
    %v3777 = vpop.f32.mrf.mxu0
    %v3778 = vadd.f32 %v3765, %v3777
    %v3779 = vpop.f32.mrf.mxu0
    %3780 = vdwg.mxu0
    %3781 = vmatpush.bf16.msra.mxu0 %v2809
    %3782 = vmatpush.bf16.msra.mxu0 %v2808
    %3783 = vmatpush.bf16.msra.mxu0 %v2807
    %3784 = vmatpush.bf16.msra.mxu0 %v2806
    %3785 = vmatpush.bf16.msra.mxu0 %v2805
    %3786 = vmatpush.bf16.msra.mxu0 %v2804
    %3787 = vmatpush.bf16.msra.mxu0 %v2803
    %3788 = vmatpush.bf16.msra.mxu0 %v2802
    %3789 = vmatmul.bf16.gmra.mxu0 %v859
    %v3790 = vpop.f32.mrf.mxu0
    %v3791 = vadd.f32 %v3778, %v3790
    %v3792 = vpop.f32.mrf.mxu0
    %3793 = vdwg.mxu0
    %3794 = vmatpush.bf16.msra.mxu0 %v2817
    %3795 = vmatpush.bf16.msra.mxu0 %v2816
    %3796 = vmatpush.bf16.msra.mxu0 %v2815
    %3797 = vmatpush.bf16.msra.mxu0 %v2814
    %3798 = vmatpush.bf16.msra.mxu0 %v2813
    %3799 = vmatpush.bf16.msra.mxu0 %v2812
    %3800 = vmatpush.bf16.msra.mxu0 %v2811
    %3801 = vmatpush.bf16.msra.mxu0 %v2810
    %3802 = vmatmul.bf16.gmra.mxu0 %v862
    %v3803 = vpop.f32.mrf.mxu0
    %v3804 = vadd.f32 %v3791, %v3803
    %v3805 = vpop.f32.mrf.mxu0
    %3806 = vdwg.mxu0
    %3807 = vmatpush.bf16.msra.mxu0 %v2825
    %3808 = vmatpush.bf16.msra.mxu0 %v2824
    %3809 = vmatpush.bf16.msra.mxu0 %v2823
    %3810 = vmatpush.bf16.msra.mxu0 %v2822
    %3811 = vmatpush.bf16.msra.mxu0 %v2821
    %3812 = vmatpush.bf16.msra.mxu0 %v2820
    %3813 = vmatpush.bf16.msra.mxu0 %v2819
    %3814 = vmatpush.bf16.msra.mxu0 %v2818
    %3815 = vmatmul.bf16.gmra.mxu0 %v863
    %v3816 = vpop.f32.mrf.mxu0
    %v3817 = vadd.f32 %v3804, %v3816
    %v3818 = vpop.f32.mrf.mxu0
    %3819 = vdwg.mxu0
    %3820 = vmatpush.bf16.msra.mxu0 %v2833
    %3821 = vmatpush.bf16.msra.mxu0 %v2832
    %3822 = vmatpush.bf16.msra.mxu0 %v2831
    %3823 = vmatpush.bf16.msra.mxu0 %v2830
    %3824 = vmatpush.bf16.msra.mxu0 %v2829
    %3825 = vmatpush.bf16.msra.mxu0 %v2828
    %3826 = vmatpush.bf16.msra.mxu0 %v2827
    %3827 = vmatpush.bf16.msra.mxu0 %v2826
    %3828 = vmatmul.bf16.gmra.mxu0 %v864
    %v3829 = vpop.f32.mrf.mxu0
    %v3830 = vadd.f32 %v3817, %v3829
    %v3831 = vpop.f32.mrf.mxu0
    %3832 = vdwg.mxu0
    %3833 = vmatpush.bf16.msra.mxu0 %v2841
    %3834 = vmatpush.bf16.msra.mxu0 %v2840
    %3835 = vmatpush.bf16.msra.mxu0 %v2839
    %3836 = vmatpush.bf16.msra.mxu0 %v2838
    %3837 = vmatpush.bf16.msra.mxu0 %v2837
    %3838 = vmatpush.bf16.msra.mxu0 %v2836
    %3839 = vmatpush.bf16.msra.mxu0 %v2835
    %3840 = vmatpush.bf16.msra.mxu0 %v2834
    %3841 = vmatmul.bf16.gmra.mxu0 %v865
    %v3842 = vpop.f32.mrf.mxu0
    %v3843 = vadd.f32 %v3830, %v3842
    %v3844 = vpop.f32.mrf.mxu0
    %3845 = vdwg.mxu0
    %3846 = vmatpush.bf16.msra.mxu0 %v2849
    %3847 = vmatpush.bf16.msra.mxu0 %v2848
    %3848 = vmatpush.bf16.msra.mxu0 %v2847
    %3849 = vmatpush.bf16.msra.mxu0 %v2846
    %3850 = vmatpush.bf16.msra.mxu0 %v2845
    %3851 = vmatpush.bf16.msra.mxu0 %v2844
    %3852 = vmatpush.bf16.msra.mxu0 %v2843
    %3853 = vmatpush.bf16.msra.mxu0 %v2842
    %3854 = vmatmul.bf16.gmra.mxu0 %v866
    %v3855 = vpop.f32.mrf.mxu0
    %v3856 = vadd.f32 %v3843, %v3855
    %v3857 = vpop.f32.mrf.mxu0
    %3858 = vdwg.mxu0
    %3859 = vmatpush.bf16.msra.mxu0 %v2857
    %3860 = vmatpush.bf16.msra.mxu0 %v2856
    %3861 = vmatpush.bf16.msra.mxu0 %v2855
    %3862 = vmatpush.bf16.msra.mxu0 %v2854
    %3863 = vmatpush.bf16.msra.mxu0 %v2853
    %3864 = vmatpush.bf16.msra.mxu0 %v2852
    %3865 = vmatpush.bf16.msra.mxu0 %v2851
    %3866 = vmatpush.bf16.msra.mxu0 %v2850
    %3867 = vmatmul.bf16.gmra.mxu0 %v867
    %v3868 = vpop.f32.mrf.mxu0
    %v3869 = vadd.f32 %v3856, %v3868
    %v3870 = vpop.f32.mrf.mxu0
    %3871 = vdwg.mxu0
    %3872 = vmatpush.bf16.msra.mxu0 %v2865
    %3873 = vmatpush.bf16.msra.mxu0 %v2864
    %3874 = vmatpush.bf16.msra.mxu0 %v2863
    %3875 = vmatpush.bf16.msra.mxu0 %v2862
    %3876 = vmatpush.bf16.msra.mxu0 %v2861
    %3877 = vmatpush.bf16.msra.mxu0 %v2860
    %3878 = vmatpush.bf16.msra.mxu0 %v2859
    %3879 = vmatpush.bf16.msra.mxu0 %v2858
    %3880 = vmatmul.bf16.gmra.mxu0 %v868
    %v3881 = vpop.f32.mrf.mxu0
    %v3882 = vadd.f32 %v3869, %v3881
    %v3883 = vpop.f32.mrf.mxu0
    %3884 = vdwg.mxu0
    %3885 = vmatpush.bf16.msra.mxu0 %v2873
    %3886 = vmatpush.bf16.msra.mxu0 %v2872
    %3887 = vmatpush.bf16.msra.mxu0 %v2871
    %3888 = vmatpush.bf16.msra.mxu0 %v2870
    %3889 = vmatpush.bf16.msra.mxu0 %v2869
    %3890 = vmatpush.bf16.msra.mxu0 %v2868
    %3891 = vmatpush.bf16.msra.mxu0 %v2867
    %3892 = vmatpush.bf16.msra.mxu0 %v2866
    %3893 = vmatmul.bf16.gmra.mxu0 %v869
    %v3894 = vpop.f32.mrf.mxu0
    %v3895 = vadd.f32 %v3882, %v3894
    %v3896 = vpop.f32.mrf.mxu0
    %3897 = vdwg.mxu0
    %3898 = vmatpush.bf16.msra.mxu0 %v2881
    %3899 = vmatpush.bf16.msra.mxu0 %v2880
    %3900 = vmatpush.bf16.msra.mxu0 %v2879
    %3901 = vmatpush.bf16.msra.mxu0 %v2878
    %3902 = vmatpush.bf16.msra.mxu0 %v2877
    %3903 = vmatpush.bf16.msra.mxu0 %v2876
    %3904 = vmatpush.bf16.msra.mxu0 %v2875
    %3905 = vmatpush.bf16.msra.mxu0 %v2874
    %3906 = vmatmul.bf16.gmra.mxu0 %v872
    %v3907 = vpop.f32.mrf.mxu0
    %v3908 = vadd.f32 %v3895, %v3907
    %v3909 = vpop.f32.mrf.mxu0
    %3910 = vdwg.mxu0
    %3911 = vst [vmem:[#allocation2] sm:$0x3] %v3908
    // Predicated region
    $region14: #{convnet_forward.5} parent=1 // pred_check
      _
    $region15: #{convnet_forward.5} parent=1 // pred_check_branch
      %3913 = sbr.rel (0) target = $region17
    $region16: #{convnet_forward.5} parent=1 // pred_region
      %3915 = vsyncadd [#allocation3], 0
      %s3917 = sshll.u32 [#allocation2], 4
      %s3918 = int_to_ptr.vmem [resolvable:$true] %s3917
      %s3919 = sshll.u32 %s3, 4
      %s3920 = int_to_ptr.hbm [resolvable:$true] %s3919
      %3922 = dma.vmem_to_hbm [thread:$0]  %s3918, 32, %s3920, [#allocation3]
    $region17: #{convnet_forward.5} parent=1 // pred_fallthru
      _
    // Predicated region
    $region18: #{convnet_forward.5} parent=1 // pred_check
      _
    $region19: #{convnet_forward.5} parent=1 // pred_check_branch
      %3924 = sbr.rel (0) target = $region21
    $region20: #{convnet_forward.5} parent=1 // pred_region
      %3926 = dma.done [#allocation3], 32
    $region21: #{convnet_forward.5} parent=1 // pred_fallthru
      _
    %3927 = vsyncpa [#allocation3], 1

</llo_original>
